<compile_context>
chip_gen: v7x
topology: tpu7x:2x2x1
jax: 0.10.0
libtpu: 0.0.40
codegen_flags: <defaults>
</compile_context>

<pallas_src>
import jax
import jax.numpy as jnp
from jax.experimental import pallas as pl
from jax.experimental.pallas import tpu as pltpu

EPS = 1e-6          # LayerNorm eps used by the module (eps=1e-06)
COUT = 256          # fixed by the module definition


# ---------------------------------------------------------------------------
# helpers
# ---------------------------------------------------------------------------
def _layernorm(y, gamma, beta):
    # channels_first LayerNorm == per-row LN over the channel (lane) axis.
    mu = jnp.mean(y, axis=-1, keepdims=True)
    var = jnp.maximum(jnp.mean(y * y, axis=-1, keepdims=True) - mu * mu, 0.0)
    return (y - mu) * jax.lax.rsqrt(var + EPS) * gamma + beta


# ---------------------------------------------------------------------------
# Kernel 1: fused neck front.
#   inputs per grid step (tr low-res rows == 2*tr high-res rows):
#     x16 block : (tr, W1, C1)          low-res pixels
#     x32 block : (tr, 2, W1, 2*C2)     high-res pixels, dx-paired channels
#   output block: (tr, 2, W1, 2*256)    == NHWC (2*tr, W2, 256) in memory
# ---------------------------------------------------------------------------
def _neck_front_kernel(x16_ref, x32_ref, w1_ref, g1_ref, b1_ref,
                       wdt_ref, wdb_ref, bd_ref, wt_ref, g2_ref, b2_ref,
                       o_ref):
    tr, w1, c1 = x16_ref.shape
    c2p = x32_ref.shape[-1]

    # ---- upconv: 1x1 conv (no bias, tiny K, f32) + channels_first LN ----
    xu = x16_ref[...].reshape(tr * w1, c1)
    y = jnp.dot(xu, w1_ref[...], preferred_element_type=jnp.float32)
    y = _layernorm(y, g1_ref[...], b1_ref[...]).astype(jnp.bfloat16)

    # ---- 2x2 stride-2 ConvTranspose (+ bias), split per output sub-row dy.
    # Columns of wdt/wdb are ordered (dx, cout) so the result is already in
    # the interleaved high-res memory layout.
    z_top = jnp.dot(y, wdt_ref[...], preferred_element_type=jnp.float32) + bd_ref[...]
    z_bot = jnp.dot(y, wdb_ref[...], preferred_element_type=jnp.float32) + bd_ref[...]
    a = jnp.concatenate(
        [z_top.reshape(tr, 1, w1, 2 * COUT),
         z_bot.reshape(tr, 1, w1, 2 * COUT)], axis=1)       # (tr, 2, W1, 512)

    # ---- transconv: 1x1 conv on dx-paired pixels (block-diag weight) + LN
    # applied independently to each 256-channel lane half (== per pixel).
    xt = x32_ref[...].reshape(tr * 2 * w1, c2p)
    t = jnp.dot(xt, wt_ref[...], preferred_element_type=jnp.float32)
    t0 = _layernorm(t[:, :COUT], g2_ref[...], b2_ref[...])
    t1 = _layernorm(t[:, COUT:], g2_ref[...], b2_ref[...])
    t = jnp.concatenate([t0, t1], axis=-1).reshape(tr, 2, w1, 2 * COUT)

    # ---- s = x_up + x_trans, written once, lane-dense ----
    o_ref[...] = (a + t).astype(o_ref.dtype)


def neck_front(x16_rows, x32_rows, p, target_pixels=512):
    # x16_rows: (R, W1, C1) f32   with R = B*H1
    # x32_rows: (R, 2, W1, 2*C2) f32
    # returns s: (R, 2, W1, 2*256) bf16  (memory-identical to NHWC (B,H2,W2,256))
    R, W1, C1 = x16_rows.shape
    C2p = x32_rows.shape[-1]
    # row tile: big enough to amortize per-step overhead, never larger than data
    tr = max(1, min(R, max(1, target_pixels // max(W1, 1))))
    R_pad = -(-R // tr) * tr
    if R_pad != R:
        x16_rows = jnp.pad(x16_rows, ((0, R_pad - R), (0, 0), (0, 0)))
        x32_rows = jnp.pad(x32_rows, ((0, R_pad - R), (0, 0), (0, 0), (0, 0)))

    out = pl.pallas_call(
        _neck_front_kernel,
        out_shape=jax.ShapeDtypeStruct((R_pad, 2, W1, 2 * COUT), jnp.bfloat16),
        grid=(R_pad // tr,),
        in_specs=[
            pl.BlockSpec((tr, W1, C1), lambda i: (i, 0, 0)),
            pl.BlockSpec((tr, 2, W1, C2p), lambda i: (i, 0, 0, 0)),
            pl.BlockSpec((C1, COUT), lambda i: (0, 0)),
            pl.BlockSpec((1, COUT), lambda i: (0, 0)),
            pl.BlockSpec((1, COUT), lambda i: (0, 0)),
            pl.BlockSpec((COUT, 2 * COUT), lambda i: (0, 0)),
            pl.BlockSpec((COUT, 2 * COUT), lambda i: (0, 0)),
            pl.BlockSpec((1, 2 * COUT), lambda i: (0, 0)),
            pl.BlockSpec((C2p, 2 * COUT), lambda i: (0, 0)),
            pl.BlockSpec((1, COUT), lambda i: (0, 0)),
            pl.BlockSpec((1, COUT), lambda i: (0, 0)),
        ],
        out_specs=pl.BlockSpec((tr, 2, W1, 2 * COUT), lambda i: (i, 0, 0, 0)),
        compiler_params=pltpu.CompilerParams(dimension_semantics=("parallel",)),
    )(x16_rows, x32_rows,
      p["up_w1"], p["up_g1"].reshape(1, -1), p["up_b1"].reshape(1, -1),
      p["up_wd_top"], p["up_wd_bot"], p["up_bd2"].reshape(1, -1),
      p["tr_wbd"], p["tr_g1"].reshape(1, -1), p["tr_b1"].reshape(1, -1))
    return out[:R]


# ---------------------------------------------------------------------------
# Kernel 2: fuseconv = 3x3 conv (pad=1) + bias + LN, halo row-block tiling.
# Each grid step reads two consecutive tH-row blocks of the padded map (the
# second supplies the 2-row bottom halo), builds the 9 shifted tap windows in
# VMEM and does one K=2304 matmul.
# ---------------------------------------------------------------------------
def _make_fuse_kernel(th, w_out):
    def kernel(sa_ref, sb_ref, w_ref, bias_ref, g_ref, b_ref, o_ref):
        # assemble the (th + 2)-row halo slab for this output row block
        rows = jnp.concatenate([sa_ref[0], sb_ref[0, 0:2]], axis=0)  # (th+2, Wp, C)
        # 9 taps (dy, dx) as shifted in-VMEM windows, folded along channels
        taps = [rows[dy:dy + th, dx:dx + w_out, :]
                for dy in range(3) for dx in range(3)]
        xcat = jnp.concatenate(taps, axis=-1).reshape(th * w_out, 9 * COUT)
        acc = jnp.dot(xcat, w_ref[...], preferred_element_type=jnp.float32)
        y = _layernorm(acc + bias_ref[...], g_ref[...], b_ref[...])
        o_ref[...] = y.reshape(1, th, w_out, COUT).astype(o_ref.dtype)
    return kernel


def fuseconv(s_nhwc_bf16, w_flat_bf16, bias, gamma, beta):
    # s: (B, H, W, 256) bf16  ->  LN(conv3x3(s) + b)  ->  (B, H, W, 256) f32
    B, H, W, C = s_nhwc_bf16.shape
    assert C == COUT
    # row-block height; shrink for very wide maps so blocks stay VMEM-friendly
    th = 8 if W <= 256 else (4 if W <= 512 else 2)
    n_h = -(-H // th)                 # output row blocks
    h_out = n_h * th                  # padded output height
    # padded input height: top pad 1; enough bottom zeros so block (i+1) of
    # size th always exists and the bottom conv halo is covered.
    hp = h_out + th
    pad_bottom = hp - 1 - H
    s_pad = jnp.pad(s_nhwc_bf16, ((0, 0), (1, pad_bottom), (1, 1), (0, 0)))
    wp = W + 2
    assert hp % th == 0

    out = pl.pallas_call(
        _make_fuse_kernel(th, W),
        out_shape=jax.ShapeDtypeStruct((B, h_out, W, COUT), jnp.float32),
        grid=(B, n_h),
        in_specs=[
            pl.BlockSpec((1, th, wp, COUT), lambda b, i: (b, i, 0, 0)),
            pl.BlockSpec((1, th, wp, COUT), lambda b, i: (b, i + 1, 0, 0)),
            pl.BlockSpec((9 * COUT, COUT), lambda b, i: (0, 0)),
            pl.BlockSpec((1, COUT), lambda b, i: (0, 0)),
            pl.BlockSpec((1, COUT), lambda b, i: (0, 0)),
            pl.BlockSpec((1, COUT), lambda b, i: (0, 0)),
        ],
        out_specs=pl.BlockSpec((1, th, W, COUT), lambda b, i: (b, i, 0, 0)),
        compiler_params=pltpu.CompilerParams(
            dimension_semantics=("parallel", "parallel")),
    )(s_pad, s_pad, w_flat_bf16, bias.reshape(1, -1), gamma.reshape(1, -1),
      beta.reshape(1, -1))
    return out[:, :H]


# ---------------------------------------------------------------------------
# Parameters (random init; layouts differ from PyTorch checkpoints:
#   Conv2d weight (Cout,Cin,kH,kW)      -> here (Cin,Cout) / (kH*kW*Cin, Cout)
#   ConvTranspose2d weight (Cin,Cout,2,2)-> here two (Cin, 2*Cout) slabs,
#                                           one per output sub-row dy,
#                                           columns ordered (dx, Cout).)
# ---------------------------------------------------------------------------
def init_params(key, dim1, dim2):
    ks = jax.random.split(key, 6)
    wd = 0.05 * jax.random.normal(ks[1], (COUT, 2, 2, COUT), jnp.float32)  # (ci,dy,dx,co)
    bd = 0.05 * jax.random.normal(ks[2], (COUT,), jnp.float32)
    tr_w1 = 0.05 * jax.random.normal(ks[3], (dim2, COUT), jnp.float32)
    # block-diagonal 1x1-conv weight acting on dx-paired pixels
    wbd = jnp.zeros((2 * dim2, 2 * COUT), jnp.float32)
    wbd = wbd.at[:dim2, :COUT].set(tr_w1).at[dim2:, COUT:].set(tr_w1)
    fu_w = 0.02 * jax.random.normal(ks[4], (9, COUT, COUT), jnp.float32)
    return {
        # upconv: Conv2d(dim1,256,1,bias=False) -> LN(256) -> ConvT(256,256,2,2)
        "up_w1": 0.05 * jax.random.normal(ks[0], (dim1, COUT), jnp.float32),
        "up_g1": jnp.ones((COUT,), jnp.float32),
        "up_b1": jnp.zeros((COUT,), jnp.float32),
        "up_wd_top": wd[:, 0].reshape(COUT, 2 * COUT).astype(jnp.bfloat16),
        "up_wd_bot": wd[:, 1].reshape(COUT, 2 * COUT).astype(jnp.bfloat16),
        "up_bd2": jnp.tile(bd, 2),                           # f32, per (dx, co)
        # transconv: Conv2d(dim2,256,1,bias=False) -> LN(256)
        "tr_wbd": wbd,
        "tr_g1": jnp.ones((COUT,), jnp.float32),
        "tr_b1": jnp.zeros((COUT,), jnp.float32),
        # fuseconv: Conv2d(256,256,3,pad=1) -> LN(256); rows = tap*256 + cin
        "fu_w": fu_w.reshape(9 * COUT, COUT).astype(jnp.bfloat16),
        "fu_bias": 0.05 * jax.random.normal(ks[5], (COUT,), jnp.float32),
        "fu_g": jnp.ones((COUT,), jnp.float32),
        "fu_b": jnp.zeros((COUT,), jnp.float32),
    }


# ---------------------------------------------------------------------------
# BuildNeck forward
# ---------------------------------------------------------------------------
@jax.jit
def build_neck_forward(x32, x16, p):
    # x32: (B, dim2, H2, W2) NCHW   (high-res branch -> transconv)
    # x16: (B, dim1, H1, W1) NCHW   (low-res branch -> upconv, upsampled 2x)
    B, C2, H2, W2 = x32.shape
    _, C1, H1, W1 = x16.shape
    assert H2 == 2 * H1 and W2 == 2 * W1, "upconv doubles the spatial size"

    # NCHW -> channels-last row views (the transposes are the only XLA copies)
    x16_r = jnp.transpose(x16, (0, 2, 3, 1)).reshape(B * H1, W1, C1)
    x32_r = jnp.transpose(x32, (0, 2, 3, 1)).reshape(B * H1, 2, W1, 2 * C2)

    # fused upconv + transconv + add; output layout is NHWC bit-for-bit
    s = neck_front(x16_r, x32_r, p)
    s = s.reshape(B, H2, W2, COUT)        # pure metadata reshape, no transpose

    # fuseconv: 3x3 conv + bias + LN on halo row blocks
    out = fuseconv(s, p["fu_w"], p["fu_bias"], p["fu_g"], p["fu_b"])
    return out.transpose(0, 3, 1, 2)      # back to NCHW


if __name__ == "__main__":
    B, dim1, dim2 = 2, 4, 8
    H2 = W2 = 16          # spatial size of x32 (transconv input / output)
    H1 = W1 = 8           # spatial size of x16 (upconv input, upsampled 2x)

    key = jax.random.PRNGKey(0)
    k_p, k_a, k_b = jax.random.split(key, 3)
    params = init_params(k_p, dim1, dim2)

    x32 = jax.random.normal(k_a, (B, dim2, H2, W2), jnp.float32)
    x16 = jax.random.normal(k_b, (B, dim1, H1, W1), jnp.float32)

    out = jax.block_until_ready(build_neck_forward(x32, x16, params))

    assert out.shape == (B, COUT, H2, W2), out.shape
    assert bool(jnp.all(jnp.isfinite(out)))
    print("KERNEL_OK")
</pallas_src>

<mosaic_0001>
module attributes {stable_mosaic.version = 11 : i64} {
  func.func @_neck_front_kernel(%arg0: i32, %arg1: memref<16x8x4xf32, #tpu.memory_space<vmem>>, %arg2: memref<16x2x8x16xf32, #tpu.memory_space<vmem>>, %arg3: memref<4x256xf32, #tpu.memory_space<vmem>>, %arg4: memref<1x256xf32, #tpu.memory_space<vmem>>, %arg5: memref<1x256xf32, #tpu.memory_space<vmem>>, %arg6: memref<256x512xbf16, #tpu.memory_space<vmem>>, %arg7: memref<256x512xbf16, #tpu.memory_space<vmem>>, %arg8: memref<1x512xf32, #tpu.memory_space<vmem>>, %arg9: memref<16x512xf32, #tpu.memory_space<vmem>>, %arg10: memref<1x256xf32, #tpu.memory_space<vmem>>, %arg11: memref<1x256xf32, #tpu.memory_space<vmem>>, %arg12: memref<16x2x8x512xbf16, #tpu.memory_space<vmem>>) attributes {dimension_semantics = [#tpu.dimension_semantics<parallel>], iteration_bounds = array<i64: 1>, scalar_prefetch = 0 : i64, scratch_operands = 0 : i64, tpu.core_type = #tpu.core_type<tc>, window_params = [{transform_indices = @transform_0, window_bounds = array<i64: 16, 8, 4>}, {transform_indices = @transform_1, window_bounds = array<i64: 16, 2, 8, 16>}, {pipeline_mode = #tpu.pipeline_mode<synchronous>, transform_indices = @transform_2, window_bounds = array<i64: 4, 256>}, {pipeline_mode = #tpu.pipeline_mode<synchronous>, transform_indices = @transform_3, window_bounds = array<i64: 1, 256>}, {pipeline_mode = #tpu.pipeline_mode<synchronous>, transform_indices = @transform_4, window_bounds = array<i64: 1, 256>}, {pipeline_mode = #tpu.pipeline_mode<synchronous>, transform_indices = @transform_5, window_bounds = array<i64: 256, 512>}, {pipeline_mode = #tpu.pipeline_mode<synchronous>, transform_indices = @transform_6, window_bounds = array<i64: 256, 512>}, {pipeline_mode = #tpu.pipeline_mode<synchronous>, transform_indices = @transform_7, window_bounds = array<i64: 1, 512>}, {pipeline_mode = #tpu.pipeline_mode<synchronous>, transform_indices = @transform_8, window_bounds = array<i64: 16, 512>}, {pipeline_mode = #tpu.pipeline_mode<synchronous>, transform_indices = @transform_9, window_bounds = array<i64: 1, 256>}, {pipeline_mode = #tpu.pipeline_mode<synchronous>, transform_indices = @transform_10, window_bounds = array<i64: 1, 256>}, {transform_indices = @transform_11, window_bounds = array<i64: 16, 2, 8, 512>}]} {
    %c0 = arith.constant 0 : index
    %c0_0 = arith.constant 0 : index
    %c0_1 = arith.constant 0 : index
    %0 = vector.load %arg1[%c0, %c0_0, %c0_1] : memref<16x8x4xf32, #tpu.memory_space<vmem>>, vector<16x8x4xf32>
    %1 = vector.shape_cast %0 : vector<16x8x4xf32> to vector<128x4xf32>
    %c0_2 = arith.constant 0 : index
    %c0_3 = arith.constant 0 : index
    %2 = vector.load %arg3[%c0_2, %c0_3] : memref<4x256xf32, #tpu.memory_space<vmem>>, vector<4x256xf32>
    %cst = arith.constant dense<0.000000e+00> : vector<128x256xf32>
    %3 = tpu.matmul %1, %2, %cst {dimension_numbers = #tpu.dot_dimension_numbers<[1], [0], [0], [1], [0, 0, 1, 1], [], []>} : vector<128x4xf32>, vector<4x256xf32>, vector<128x256xf32> -> vector<128x256xf32>
    %c0_4 = arith.constant 0 : index
    %c0_5 = arith.constant 0 : index
    %4 = vector.load %arg4[%c0_4, %c0_5] : memref<1x256xf32, #tpu.memory_space<vmem>>, vector<1x256xf32>
    %c0_6 = arith.constant 0 : index
    %c0_7 = arith.constant 0 : index
    %5 = vector.load %arg5[%c0_6, %c0_7] : memref<1x256xf32, #tpu.memory_space<vmem>>, vector<1x256xf32>
    %cst_8 = arith.constant dense<0.000000e+00> : vector<128xf32>
    %6 = vector.multi_reduction <add>, %3, %cst_8 [1] : vector<128x256xf32> to vector<128xf32>
    %7 = vector.shape_cast %6 : vector<128xf32> to vector<128x1xf32>
    %cst_9 = arith.constant 2.560000e+02 : f32
    %8 = vector.broadcast %cst_9 : f32 to vector<128x1xf32>
    %9 = arith.divf %7, %8 : vector<128x1xf32>
    %10 = arith.mulf %3, %3 : vector<128x256xf32>
    %cst_10 = arith.constant dense<0.000000e+00> : vector<128xf32>
    %11 = vector.multi_reduction <add>, %10, %cst_10 [1] : vector<128x256xf32> to vector<128xf32>
    %12 = vector.shape_cast %11 : vector<128xf32> to vector<128x1xf32>
    %cst_11 = arith.constant 2.560000e+02 : f32
    %13 = vector.broadcast %cst_11 : f32 to vector<128x1xf32>
    %14 = arith.divf %12, %13 : vector<128x1xf32>
    %15 = arith.mulf %9, %9 : vector<128x1xf32>
    %16 = arith.subf %14, %15 : vector<128x1xf32>
    %cst_12 = arith.constant 0.000000e+00 : f32
    %17 = vector.broadcast %cst_12 : f32 to vector<128x1xf32>
    %18 = arith.maximumf %16, %17 : vector<128x1xf32>
    %19 = vector.broadcast %9 : vector<128x1xf32> to vector<128x256xf32>
    %20 = arith.subf %3, %19 : vector<128x256xf32>
    %cst_13 = arith.constant 9.99999997E-7 : f32
    %21 = vector.broadcast %cst_13 : f32 to vector<128x1xf32>
    %22 = arith.addf %18, %21 : vector<128x1xf32>
    %23 = math.rsqrt %22 : vector<128x1xf32>
    %24 = vector.broadcast %23 : vector<128x1xf32> to vector<128x256xf32>
    %25 = arith.mulf %20, %24 : vector<128x256xf32>
    %26 = vector.broadcast %4 : vector<1x256xf32> to vector<128x256xf32>
    %27 = arith.mulf %25, %26 : vector<128x256xf32>
    %28 = vector.broadcast %5 : vector<1x256xf32> to vector<128x256xf32>
    %29 = arith.addf %27, %28 : vector<128x256xf32>
    %30 = arith.truncf %29 : vector<128x256xf32> to vector<128x256xbf16>
    %c0_14 = arith.constant 0 : index
    %c0_15 = arith.constant 0 : index
    %31 = vector.load %arg6[%c0_14, %c0_15] : memref<256x512xbf16, #tpu.memory_space<vmem>>, vector<256x512xbf16>
    %cst_16 = arith.constant dense<0.000000e+00> : vector<128x512xf32>
    %32 = tpu.matmul %30, %31, %cst_16 {dimension_numbers = #tpu.dot_dimension_numbers<[1], [0], [0], [1], [0, 0, 1, 1], [], []>} : vector<128x256xbf16>, vector<256x512xbf16>, vector<128x512xf32> -> vector<128x512xf32>
    %c0_17 = arith.constant 0 : index
    %c0_18 = arith.constant 0 : index
    %33 = vector.load %arg8[%c0_17, %c0_18] : memref<1x512xf32, #tpu.memory_space<vmem>>, vector<1x512xf32>
    %34 = vector.broadcast %33 : vector<1x512xf32> to vector<128x512xf32>
    %35 = arith.addf %32, %34 : vector<128x512xf32>
    %c0_19 = arith.constant 0 : index
    %c0_20 = arith.constant 0 : index
    %36 = vector.load %arg7[%c0_19, %c0_20] : memref<256x512xbf16, #tpu.memory_space<vmem>>, vector<256x512xbf16>
    %cst_21 = arith.constant dense<0.000000e+00> : vector<128x512xf32>
    %37 = tpu.matmul %30, %36, %cst_21 {dimension_numbers = #tpu.dot_dimension_numbers<[1], [0], [0], [1], [0, 0, 1, 1], [], []>} : vector<128x256xbf16>, vector<256x512xbf16>, vector<128x512xf32> -> vector<128x512xf32>
    %c0_22 = arith.constant 0 : index
    %c0_23 = arith.constant 0 : index
    %38 = vector.load %arg8[%c0_22, %c0_23] : memref<1x512xf32, #tpu.memory_space<vmem>>, vector<1x512xf32>
    %39 = vector.broadcast %38 : vector<1x512xf32> to vector<128x512xf32>
    %40 = arith.addf %37, %39 : vector<128x512xf32>
    %41 = vector.shape_cast %35 : vector<128x512xf32> to vector<16x1x8x512xf32>
    %42 = vector.shape_cast %40 : vector<128x512xf32> to vector<16x1x8x512xf32>
    %43 = tpu.concatenate %41, %42 in 1 : vector<16x1x8x512xf32>, vector<16x1x8x512xf32> -> vector<16x2x8x512xf32>
    %c0_24 = arith.constant 0 : index
    %c0_25 = arith.constant 0 : index
    %c0_26 = arith.constant 0 : index
    %c0_27 = arith.constant 0 : index
    %44 = vector.load %arg2[%c0_24, %c0_25, %c0_26, %c0_27] : memref<16x2x8x16xf32, #tpu.memory_space<vmem>>, vector<16x2x8x16xf32>
    %45 = vector.shape_cast %44 : vector<16x2x8x16xf32> to vector<256x16xf32>
    %c0_28 = arith.constant 0 : index
    %c0_29 = arith.constant 0 : index
    %46 = vector.load %arg9[%c0_28, %c0_29] : memref<16x512xf32, #tpu.memory_space<vmem>>, vector<16x512xf32>
    %cst_30 = arith.constant dense<0.000000e+00> : vector<256x512xf32>
    %47 = tpu.matmul %45, %46, %cst_30 {dimension_numbers = #tpu.dot_dimension_numbers<[1], [0], [0], [1], [0, 0, 1, 1], [], []>} : vector<256x16xf32>, vector<16x512xf32>, vector<256x512xf32> -> vector<256x512xf32>
    %48 = vector.extract_strided_slice %47 {offsets = [0, 0], sizes = [256, 256], strides = [1, 1]} : vector<256x512xf32> to vector<256x256xf32>
    %c0_31 = arith.constant 0 : index
    %c0_32 = arith.constant 0 : index
    %49 = vector.load %arg10[%c0_31, %c0_32] : memref<1x256xf32, #tpu.memory_space<vmem>>, vector<1x256xf32>
    %c0_33 = arith.constant 0 : index
    %c0_34 = arith.constant 0 : index
    %50 = vector.load %arg11[%c0_33, %c0_34] : memref<1x256xf32, #tpu.memory_space<vmem>>, vector<1x256xf32>
    %cst_35 = arith.constant dense<0.000000e+00> : vector<256xf32>
    %51 = vector.multi_reduction <add>, %48, %cst_35 [1] : vector<256x256xf32> to vector<256xf32>
    %52 = vector.shape_cast %51 : vector<256xf32> to vector<256x1xf32>
    %cst_36 = arith.constant 2.560000e+02 : f32
    %53 = vector.broadcast %cst_36 : f32 to vector<256x1xf32>
    %54 = arith.divf %52, %53 : vector<256x1xf32>
    %55 = arith.mulf %48, %48 : vector<256x256xf32>
    %cst_37 = arith.constant dense<0.000000e+00> : vector<256xf32>
    %56 = vector.multi_reduction <add>, %55, %cst_37 [1] : vector<256x256xf32> to vector<256xf32>
    %57 = vector.shape_cast %56 : vector<256xf32> to vector<256x1xf32>
    %cst_38 = arith.constant 2.560000e+02 : f32
    %58 = vector.broadcast %cst_38 : f32 to vector<256x1xf32>
    %59 = arith.divf %57, %58 : vector<256x1xf32>
    %60 = arith.mulf %54, %54 : vector<256x1xf32>
    %61 = arith.subf %59, %60 : vector<256x1xf32>
    %cst_39 = arith.constant 0.000000e+00 : f32
    %62 = vector.broadcast %cst_39 : f32 to vector<256x1xf32>
    %63 = arith.maximumf %61, %62 : vector<256x1xf32>
    %64 = vector.broadcast %54 : vector<256x1xf32> to vector<256x256xf32>
    %65 = arith.subf %48, %64 : vector<256x256xf32>
    %cst_40 = arith.constant 9.99999997E-7 : f32
    %66 = vector.broadcast %cst_40 : f32 to vector<256x1xf32>
    %67 = arith.addf %63, %66 : vector<256x1xf32>
    %68 = math.rsqrt %67 : vector<256x1xf32>
    %69 = vector.broadcast %68 : vector<256x1xf32> to vector<256x256xf32>
    %70 = arith.mulf %65, %69 : vector<256x256xf32>
    %71 = vector.broadcast %49 : vector<1x256xf32> to vector<256x256xf32>
    %72 = arith.mulf %70, %71 : vector<256x256xf32>
    %73 = vector.broadcast %50 : vector<1x256xf32> to vector<256x256xf32>
    %74 = arith.addf %72, %73 : vector<256x256xf32>
    %75 = vector.extract_strided_slice %47 {offsets = [0, 256], sizes = [256, 256], strides = [1, 1]} : vector<256x512xf32> to vector<256x256xf32>
    %c0_41 = arith.constant 0 : index
    %c0_42 = arith.constant 0 : index
    %76 = vector.load %arg10[%c0_41, %c0_42] : memref<1x256xf32, #tpu.memory_space<vmem>>, vector<1x256xf32>
    %c0_43 = arith.constant 0 : index
    %c0_44 = arith.constant 0 : index
    %77 = vector.load %arg11[%c0_43, %c0_44] : memref<1x256xf32, #tpu.memory_space<vmem>>, vector<1x256xf32>
    %cst_45 = arith.constant dense<0.000000e+00> : vector<256xf32>
    %78 = vector.multi_reduction <add>, %75, %cst_45 [1] : vector<256x256xf32> to vector<256xf32>
    %79 = vector.shape_cast %78 : vector<256xf32> to vector<256x1xf32>
    %cst_46 = arith.constant 2.560000e+02 : f32
    %80 = vector.broadcast %cst_46 : f32 to vector<256x1xf32>
    %81 = arith.divf %79, %80 : vector<256x1xf32>
    %82 = arith.mulf %75, %75 : vector<256x256xf32>
    %cst_47 = arith.constant dense<0.000000e+00> : vector<256xf32>
    %83 = vector.multi_reduction <add>, %82, %cst_47 [1] : vector<256x256xf32> to vector<256xf32>
    %84 = vector.shape_cast %83 : vector<256xf32> to vector<256x1xf32>
    %cst_48 = arith.constant 2.560000e+02 : f32
    %85 = vector.broadcast %cst_48 : f32 to vector<256x1xf32>
    %86 = arith.divf %84, %85 : vector<256x1xf32>
    %87 = arith.mulf %81, %81 : vector<256x1xf32>
    %88 = arith.subf %86, %87 : vector<256x1xf32>
    %cst_49 = arith.constant 0.000000e+00 : f32
    %89 = vector.broadcast %cst_49 : f32 to vector<256x1xf32>
    %90 = arith.maximumf %88, %89 : vector<256x1xf32>
    %91 = vector.broadcast %81 : vector<256x1xf32> to vector<256x256xf32>
    %92 = arith.subf %75, %91 : vector<256x256xf32>
    %cst_50 = arith.constant 9.99999997E-7 : f32
    %93 = vector.broadcast %cst_50 : f32 to vector<256x1xf32>
    %94 = arith.addf %90, %93 : vector<256x1xf32>
    %95 = math.rsqrt %94 : vector<256x1xf32>
    %96 = vector.broadcast %95 : vector<256x1xf32> to vector<256x256xf32>
    %97 = arith.mulf %92, %96 : vector<256x256xf32>
    %98 = vector.broadcast %76 : vector<1x256xf32> to vector<256x256xf32>
    %99 = arith.mulf %97, %98 : vector<256x256xf32>
    %100 = vector.broadcast %77 : vector<1x256xf32> to vector<256x256xf32>
    %101 = arith.addf %99, %100 : vector<256x256xf32>
    %102 = tpu.concatenate %74, %101 in 1 : vector<256x256xf32>, vector<256x256xf32> -> vector<256x512xf32>
    %103 = vector.shape_cast %102 : vector<256x512xf32> to vector<16x2x8x512xf32>
    %104 = arith.addf %43, %103 : vector<16x2x8x512xf32>
    %105 = arith.truncf %104 : vector<16x2x8x512xf32> to vector<16x2x8x512xbf16>
    %c0_51 = arith.constant 0 : index
    %c0_52 = arith.constant 0 : index
    %c0_53 = arith.constant 0 : index
    %c0_54 = arith.constant 0 : index
    %106 = vector.load %arg12[%c0_51, %c0_52, %c0_53, %c0_54] : memref<16x2x8x512xbf16, #tpu.memory_space<vmem>>, vector<16x2x8x512xbf16>
    tpu.vector_store %arg12[%c0_51, %c0_52, %c0_53, %c0_54], %105 {strides = array<i32>} : memref<16x2x8x512xbf16, #tpu.memory_space<vmem>>, vector<16x2x8x512xbf16>,
    return
  }
  func.func @transform_0(%arg0: i32) -> (i32, i32, i32) {
    %c0_i32 = arith.constant 0 : i32
    %c0_i32_0 = arith.constant 0 : i32
    %c0_i32_1 = arith.constant 0 : i32
    return %arg0, %c0_i32, %c0_i32_0 : i32, i32, i32
  }
  func.func @transform_1(%arg0: i32) -> (i32, i32, i32, i32) {
    %c0_i32 = arith.constant 0 : i32
    %c0_i32_0 = arith.constant 0 : i32
    %c0_i32_1 = arith.constant 0 : i32
    %c0_i32_2 = arith.constant 0 : i32
    return %arg0, %c0_i32, %c0_i32_0, %c0_i32_1 : i32, i32, i32, i32
  }
  func.func @transform_2(%arg0: i32) -> (i32, i32) {
    %c0_i32 = arith.constant 0 : i32
    %c0_i32_0 = arith.constant 0 : i32
    %c0_i32_1 = arith.constant 0 : i32
    return %c0_i32, %c0_i32_0 : i32, i32
  }
  func.func @transform_3(%arg0: i32) -> (i32, i32) {
    %c0_i32 = arith.constant 0 : i32
    %c0_i32_0 = arith.constant 0 : i32
    %c0_i32_1 = arith.constant 0 : i32
    return %c0_i32, %c0_i32_0 : i32, i32
  }
  func.func @transform_4(%arg0: i32) -> (i32, i32) {
    %c0_i32 = arith.constant 0 : i32
    %c0_i32_0 = arith.constant 0 : i32
    %c0_i32_1 = arith.constant 0 : i32
    return %c0_i32, %c0_i32_0 : i32, i32
  }
  func.func @transform_5(%arg0: i32) -> (i32, i32) {
    %c0_i32 = arith.constant 0 : i32
    %c0_i32_0 = arith.constant 0 : i32
    %c0_i32_1 = arith.constant 0 : i32
    return %c0_i32, %c0_i32_0 : i32, i32
  }
  func.func @transform_6(%arg0: i32) -> (i32, i32) {
    %c0_i32 = arith.constant 0 : i32
    %c0_i32_0 = arith.constant 0 : i32
    %c0_i32_1 = arith.constant 0 : i32
    return %c0_i32, %c0_i32_0 : i32, i32
  }
  func.func @transform_7(%arg0: i32) -> (i32, i32) {
    %c0_i32 = arith.constant 0 : i32
    %c0_i32_0 = arith.constant 0 : i32
    %c0_i32_1 = arith.constant 0 : i32
    return %c0_i32, %c0_i32_0 : i32, i32
  }
  func.func @transform_8(%arg0: i32) -> (i32, i32) {
    %c0_i32 = arith.constant 0 : i32
    %c0_i32_0 = arith.constant 0 : i32
    %c0_i32_1 = arith.constant 0 : i32
    return %c0_i32, %c0_i32_0 : i32, i32
  }
  func.func @transform_9(%arg0: i32) -> (i32, i32) {
    %c0_i32 = arith.constant 0 : i32
    %c0_i32_0 = arith.constant 0 : i32
    %c0_i32_1 = arith.constant 0 : i32
    return %c0_i32, %c0_i32_0 : i32, i32
  }
  func.func @transform_10(%arg0: i32) -> (i32, i32) {
    %c0_i32 = arith.constant 0 : i32
    %c0_i32_0 = arith.constant 0 : i32
    %c0_i32_1 = arith.constant 0 : i32
    return %c0_i32, %c0_i32_0 : i32, i32
  }
  func.func @transform_11(%arg0: i32) -> (i32, i32, i32, i32) {
    %c0_i32 = arith.constant 0 : i32
    %c0_i32_0 = arith.constant 0 : i32
    %c0_i32_1 = arith.constant 0 : i32
    %c0_i32_2 = arith.constant 0 : i32
    return %arg0, %c0_i32, %c0_i32_0, %c0_i32_1 : i32, i32, i32, i32
  }
}

module attributes {stable_mosaic.version = 11 : i64} {
  func.func @kernel(%arg0: i32, %arg1: i32, %arg2: memref<1x8x18x256xbf16, #tpu.memory_space<vmem>>, %arg3: memref<1x8x18x256xbf16, #tpu.memory_space<vmem>>, %arg4: memref<2304x256xbf16, #tpu.memory_space<vmem>>, %arg5: memref<1x256xf32, #tpu.memory_space<vmem>>, %arg6: memref<1x256xf32, #tpu.memory_space<vmem>>, %arg7: memref<1x256xf32, #tpu.memory_space<vmem>>, %arg8: memref<1x8x16x256xf32, #tpu.memory_space<vmem>>) attributes {dimension_semantics = [#tpu.dimension_semantics<parallel>, #tpu.dimension_semantics<parallel>], iteration_bounds = array<i64: 2, 2>, scalar_prefetch = 0 : i64, scratch_operands = 0 : i64, tpu.core_type = #tpu.core_type<tc>, window_params = [{transform_indices = @transform_0, window_bounds = array<i64: 1, 8, 18, 256>}, {transform_indices = @transform_1, window_bounds = array<i64: 1, 8, 18, 256>}, {pipeline_mode = #tpu.pipeline_mode<synchronous>, transform_indices = @transform_2, window_bounds = array<i64: 2304, 256>}, {pipeline_mode = #tpu.pipeline_mode<synchronous>, transform_indices = @transform_3, window_bounds = array<i64: 1, 256>}, {pipeline_mode = #tpu.pipeline_mode<synchronous>, transform_indices = @transform_4, window_bounds = array<i64: 1, 256>}, {pipeline_mode = #tpu.pipeline_mode<synchronous>, transform_indices = @transform_5, window_bounds = array<i64: 1, 256>}, {transform_indices = @transform_6, window_bounds = array<i64: 1, 8, 16, 256>}]} {
    %c0 = arith.constant 0 : index
    %c0_0 = arith.constant 0 : index
    %c0_1 = arith.constant 0 : index
    %c0_2 = arith.constant 0 : index
    %0 = vector.load %arg2[%c0, %c0_0, %c0_1, %c0_2] : memref<1x8x18x256xbf16, #tpu.memory_space<vmem>>, vector<1x8x18x256xbf16>
    %1 = vector.shape_cast %0 : vector<1x8x18x256xbf16> to vector<8x18x256xbf16>
    %c0_3 = arith.constant 0 : index
    %c0_4 = arith.constant 0 : index
    %c0_5 = arith.constant 0 : index
    %c0_6 = arith.constant 0 : index
    %2 = vector.load %arg3[%c0_3, %c0_4, %c0_5, %c0_6] : memref<1x8x18x256xbf16, #tpu.memory_space<vmem>>, vector<1x2x18x256xbf16>
    %3 = vector.shape_cast %2 : vector<1x2x18x256xbf16> to vector<2x18x256xbf16>
    %4 = tpu.concatenate %1, %3 in 0 : vector<8x18x256xbf16>, vector<2x18x256xbf16> -> vector<10x18x256xbf16>
    %5 = vector.extract_strided_slice %4 {offsets = [0, 0, 0], sizes = [8, 16, 256], strides = [1, 1, 1]} : vector<10x18x256xbf16> to vector<8x16x256xbf16>
    %6 = vector.extract_strided_slice %4 {offsets = [0, 1, 0], sizes = [8, 16, 256], strides = [1, 1, 1]} : vector<10x18x256xbf16> to vector<8x16x256xbf16>
    %7 = vector.extract_strided_slice %4 {offsets = [0, 2, 0], sizes = [8, 16, 256], strides = [1, 1, 1]} : vector<10x18x256xbf16> to vector<8x16x256xbf16>
    %8 = vector.extract_strided_slice %4 {offsets = [1, 0, 0], sizes = [8, 16, 256], strides = [1, 1, 1]} : vector<10x18x256xbf16> to vector<8x16x256xbf16>
    %9 = vector.extract_strided_slice %4 {offsets = [1, 1, 0], sizes = [8, 16, 256], strides = [1, 1, 1]} : vector<10x18x256xbf16> to vector<8x16x256xbf16>
    %10 = vector.extract_strided_slice %4 {offsets = [1, 2, 0], sizes = [8, 16, 256], strides = [1, 1, 1]} : vector<10x18x256xbf16> to vector<8x16x256xbf16>
    %11 = vector.extract_strided_slice %4 {offsets = [2, 0, 0], sizes = [8, 16, 256], strides = [1, 1, 1]} : vector<10x18x256xbf16> to vector<8x16x256xbf16>
    %12 = vector.extract_strided_slice %4 {offsets = [2, 1, 0], sizes = [8, 16, 256], strides = [1, 1, 1]} : vector<10x18x256xbf16> to vector<8x16x256xbf16>
    %13 = vector.extract_strided_slice %4 {offsets = [2, 2, 0], sizes = [8, 16, 256], strides = [1, 1, 1]} : vector<10x18x256xbf16> to vector<8x16x256xbf16>
    %14 = tpu.concatenate %5, %6, %7, %8, %9, %10, %11, %12, %13 in 2 : vector<8x16x256xbf16>, vector<8x16x256xbf16>, vector<8x16x256xbf16>, vector<8x16x256xbf16>, vector<8x16x256xbf16>, vector<8x16x256xbf16>, vector<8x16x256xbf16>, vector<8x16x256xbf16>, vector<8x16x256xbf16> -> vector<8x16x2304xbf16>
    %15 = vector.shape_cast %14 : vector<8x16x2304xbf16> to vector<128x2304xbf16>
    %c0_7 = arith.constant 0 : index
    %c0_8 = arith.constant 0 : index
    %16 = vector.load %arg4[%c0_7, %c0_8] : memref<2304x256xbf16, #tpu.memory_space<vmem>>, vector<2304x256xbf16>
    %cst = arith.constant dense<0.000000e+00> : vector<128x256xf32>
    %17 = tpu.matmul %15, %16, %cst {dimension_numbers = #tpu.dot_dimension_numbers<[1], [0], [0], [1], [0, 0, 1, 1], [], []>} : vector<128x2304xbf16>, vector<2304x256xbf16>, vector<128x256xf32> -> vector<128x256xf32>
    %c0_9 = arith.constant 0 : index
    %c0_10 = arith.constant 0 : index
    %18 = vector.load %arg5[%c0_9, %c0_10] : memref<1x256xf32, #tpu.memory_space<vmem>>, vector<1x256xf32>
    %19 = vector.broadcast %18 : vector<1x256xf32> to vector<128x256xf32>
    %20 = arith.addf %17, %19 : vector<128x256xf32>
    %c0_11 = arith.constant 0 : index
    %c0_12 = arith.constant 0 : index
    %21 = vector.load %arg6[%c0_11, %c0_12] : memref<1x256xf32, #tpu.memory_space<vmem>>, vector<1x256xf32>
    %c0_13 = arith.constant 0 : index
    %c0_14 = arith.constant 0 : index
    %22 = vector.load %arg7[%c0_13, %c0_14] : memref<1x256xf32, #tpu.memory_space<vmem>>, vector<1x256xf32>
    %cst_15 = arith.constant dense<0.000000e+00> : vector<128xf32>
    %23 = vector.multi_reduction <add>, %20, %cst_15 [1] : vector<128x256xf32> to vector<128xf32>
    %24 = vector.shape_cast %23 : vector<128xf32> to vector<128x1xf32>
    %cst_16 = arith.constant 2.560000e+02 : f32
    %25 = vector.broadcast %cst_16 : f32 to vector<128x1xf32>
    %26 = arith.divf %24, %25 : vector<128x1xf32>
    %27 = arith.mulf %20, %20 : vector<128x256xf32>
    %cst_17 = arith.constant dense<0.000000e+00> : vector<128xf32>
    %28 = vector.multi_reduction <add>, %27, %cst_17 [1] : vector<128x256xf32> to vector<128xf32>
    %29 = vector.shape_cast %28 : vector<128xf32> to vector<128x1xf32>
    %cst_18 = arith.constant 2.560000e+02 : f32
    %30 = vector.broadcast %cst_18 : f32 to vector<128x1xf32>
    %31 = arith.divf %29, %30 : vector<128x1xf32>
    %32 = arith.mulf %26, %26 : vector<128x1xf32>
    %33 = arith.subf %31, %32 : vector<128x1xf32>
    %cst_19 = arith.constant 0.000000e+00 : f32
    %34 = vector.broadcast %cst_19 : f32 to vector<128x1xf32>
    %35 = arith.maximumf %33, %34 : vector<128x1xf32>
    %36 = vector.broadcast %26 : vector<128x1xf32> to vector<128x256xf32>
    %37 = arith.subf %20, %36 : vector<128x256xf32>
    %cst_20 = arith.constant 9.99999997E-7 : f32
    %38 = vector.broadcast %cst_20 : f32 to vector<128x1xf32>
    %39 = arith.addf %35, %38 : vector<128x1xf32>
    %40 = math.rsqrt %39 : vector<128x1xf32>
    %41 = vector.broadcast %40 : vector<128x1xf32> to vector<128x256xf32>
    %42 = arith.mulf %37, %41 : vector<128x256xf32>
    %43 = vector.broadcast %21 : vector<1x256xf32> to vector<128x256xf32>
    %44 = arith.mulf %42, %43 : vector<128x256xf32>
    %45 = vector.broadcast %22 : vector<1x256xf32> to vector<128x256xf32>
    %46 = arith.addf %44, %45 : vector<128x256xf32>
    %47 = vector.shape_cast %46 : vector<128x256xf32> to vector<1x8x16x256xf32>
    %c0_21 = arith.constant 0 : index
    %c0_22 = arith.constant 0 : index
    %c0_23 = arith.constant 0 : index
    %c0_24 = arith.constant 0 : index
    %48 = vector.load %arg8[%c0_21, %c0_22, %c0_23, %c0_24] : memref<1x8x16x256xf32, #tpu.memory_space<vmem>>, vector<1x8x16x256xf32>
    tpu.vector_store %arg8[%c0_21, %c0_22, %c0_23, %c0_24], %47 {strides = array<i32>} : memref<1x8x16x256xf32, #tpu.memory_space<vmem>>, vector<1x8x16x256xf32>,
    return
  }
  func.func @transform_0(%arg0: i32, %arg1: i32) -> (i32, i32, i32, i32) {
    %c0_i32 = arith.constant 0 : i32
    %c0_i32_0 = arith.constant 0 : i32
    %c0_i32_1 = arith.constant 0 : i32
    return %arg0, %arg1, %c0_i32, %c0_i32_0 : i32, i32, i32, i32
  }
  func.func @transform_1(%arg0: i32, %arg1: i32) -> (i32, i32, i32, i32) {
    %c1_i32 = arith.constant 1 : i32
    %0 = arith.addi %arg1, %c1_i32 : i32
    %c0_i32 = arith.constant 0 : i32
    %c0_i32_0 = arith.constant 0 : i32
    %c0_i32_1 = arith.constant 0 : i32
    return %arg0, %0, %c0_i32, %c0_i32_0 : i32, i32, i32, i32
  }
  func.func @transform_2(%arg0: i32, %arg1: i32) -> (i32, i32) {
    %c0_i32 = arith.constant 0 : i32
    %c0_i32_0 = arith.constant 0 : i32
    %c0_i32_1 = arith.constant 0 : i32
    return %c0_i32, %c0_i32_0 : i32, i32
  }
  func.func @transform_3(%arg0: i32, %arg1: i32) -> (i32, i32) {
    %c0_i32 = arith.constant 0 : i32
    %c0_i32_0 = arith.constant 0 : i32
    %c0_i32_1 = arith.constant 0 : i32
    return %c0_i32, %c0_i32_0 : i32, i32
  }
  func.func @transform_4(%arg0: i32, %arg1: i32) -> (i32, i32) {
    %c0_i32 = arith.constant 0 : i32
    %c0_i32_0 = arith.constant 0 : i32
    %c0_i32_1 = arith.constant 0 : i32
    return %c0_i32, %c0_i32_0 : i32, i32
  }
  func.func @transform_5(%arg0: i32, %arg1: i32) -> (i32, i32) {
    %c0_i32 = arith.constant 0 : i32
    %c0_i32_0 = arith.constant 0 : i32
    %c0_i32_1 = arith.constant 0 : i32
    return %c0_i32, %c0_i32_0 : i32, i32
  }
  func.func @transform_6(%arg0: i32, %arg1: i32) -> (i32, i32, i32, i32) {
    %c0_i32 = arith.constant 0 : i32
    %c0_i32_0 = arith.constant 0 : i32
    %c0_i32_1 = arith.constant 0 : i32
    return %arg0, %arg1, %c0_i32, %c0_i32_0 : i32, i32, i32, i32
  }
}

</mosaic_0001>

<llo_original>
// kernel: build_neck_forward.3
$region0: #{build_neck_forward.3}
  #allocation0 [shape = 'u32[]', space=smem, size = 0x4, offset = 0x4, fixed_abs, tag = 'smem constant byte address 0x4 - core index']
  #allocation1 [shape = 'u32[144,128]{1,0:T(1,128)}', space=vmem, size = 0x12000, scoped, tag = 'internal scratch']
  %s0 = inlined_call_operand.vmem [shape: bf16[2,24,18,256], index: 0, kind: input, shape index: {}, may-alias: {0,1}]
  %s1 = inlined_call_operand.vmem [shape: bf16[2,24,18,256], index: 1, kind: input, shape index: {}, may-alias: {0,1}]
  %s2 = inlined_call_operand.vmem [shape: bf16[2304,256], index: 2, kind: input, shape index: {}]
  %s3 = inlined_call_operand.vmem [shape: f32[1,256], index: 3, kind: input, shape index: {}]
  %s4 = inlined_call_operand.vmem [shape: f32[1,256], index: 4, kind: input, shape index: {}]
  %s5 = inlined_call_operand.vmem [shape: f32[1,256], index: 5, kind: input, shape index: {}]
  %s6 = inlined_call_operand.hbm [shape: f32[2,16,16,256], index: 6, kind: output, shape index: {}]
  %s7 = sld [smem:[#allocation0]]
  $region57: #{build_neck_forward.3} parent=0
    _
  %s9 = ssub.s32 1, %s7
  %s10 = scalar_select 0, %s9, %s7
  $region1: #{build_neck_forward.3} parent=0
    #allocation2 [shape = 'u8[262144]{0}', space=vmem, size = 0x40000, scoped, tag = 'output window, operand 0']
    #allocation3 [shape = 's32[2]{0}', space=sflag, size = 0x8, scoped, tag = 'scoped memory for build_neck_forward.3']
    %11 = vsyncpa [#allocation3], 0
    %s12 = scalar_lea.sflag [#allocation3], 1
    %13 = vsyncpa %s12, 0
    loop: start=0, step=1, limit=6
    $region2: #{build_neck_forward.3} parent=1 // loop_pre_header
      _
    $region3: #{build_neck_forward.3} parent=1 // loop_header
      %s15 = sphi 0, %s19
      %p16 = scmp.ge.s32.totalorder %s15, 6
      %s22 = sphi 0, %s34
      %s23 = sphi 0, %s30
      %s24 = sphi 0, %s22
      %s25 = sphi 0, %s23
      %s26 = sphi 0, %s24
      %s27 = sphi 0, %s25
      %s39 = sphi 0, %s41
      %s42 = sphi 0, %s39
      %s43 = sphi 0, %s42
      %s59 = sphi 0, %s43
      %s69 = sphi 0, %s71
      %s72 = sphi 0, %s69
      %s73 = sphi 0, %s72
      %s89 = sphi 0, %s73
      %s93 = sphi 0, %s93
      %s95 = sphi 0, %s93
      %s96 = sphi 0, %s95
      %s110 = sphi 0, %s96
      %s114 = sphi 0, %s114
      %s116 = sphi 0, %s114
      %s117 = sphi 0, %s116
      %s131 = sphi 0, %s117
      %s135 = sphi 0, %s135
      %s137 = sphi 0, %s135
      %s138 = sphi 0, %s137
      %s152 = sphi 0, %s138
      %s156 = sphi 0, %s156
      %s158 = sphi 0, %s156
      %s159 = sphi 0, %s158
      %s173 = sphi 0, %s159
      %s181 = sphi 0, %s183
      %s184 = sphi 0, %s181
      %s185 = sphi 0, %s184
      %s201 = sphi 0, %s185
    $region4: #{build_neck_forward.3} parent=1 // loop_header_branch
      %18 = sbr.rel (%p16) target = $region8
    $region5: #{build_neck_forward.3} parent=1 // loop_body
      %s20 = ssub.s32 %s15, 1
      %s21 = ssub.s32 %s15, 2
      %s28 = sadd.s32 1, %s23
      %p29 = scmp.ge.s32.totalorder %s28, 2
      %s30 = scalar_select %p29, 0, %s28
      %s31 = sadd.s32 1, %s22
      %s32 = scalar_select %p29, %s31, %s22
      %p33 = scmp.ge.s32.totalorder %s32, 2
      %s34 = scalar_select %p33, 0, %s32
      %s35 = ssub.s32 %s22, %s34
      %s36 = ssub.s32 %s23, %s30
      %s37 = sor.u32 %s35, %s36
      %p38 = scmp.eq.s32.totalorder %s37, 0
      %s40 = sadd.s32 %s39, 1
      %s41 = scalar_select %p38, %s39, %s40
      %p44 = pneg %p38
      %p45 = scmp.eq.s32.totalorder %s15, 3
      %p46 = por %p44, %p45
      %p47 = scmp.ne.s32.totalorder %s39, %s42
      %p48 = scmp.eq.s32.totalorder %s15, 0
      %p49 = por %p47, %p48
      %p50 = scmp.ne.s32.totalorder %s39, %s42
      %p51 = scmp.eq.s32.totalorder %s20, 3
      %p52 = por %p50, %p51
      %p53 = scmp.ne.s32.totalorder %s42, %s43
      %p54 = scmp.eq.s32.totalorder %s20, 0
      %p55 = por %p53, %p54
      %p56 = scmp.ne.s32.totalorder %s42, %s43
      %p57 = scmp.eq.s32.totalorder %s21, 3
      %p58 = por %p56, %p57
      %p60 = scmp.ne.s32.totalorder %s43, %s59
      %p61 = scmp.eq.s32.totalorder %s21, 0
      %p62 = por %p60, %p61
      %s63 = sadd.s32 %s23, 1
      %s64 = sadd.s32 %s30, 1
      %s65 = ssub.s32 %s22, %s34
      %s66 = ssub.s32 %s63, %s64
      %s67 = sor.u32 %s65, %s66
      %p68 = scmp.eq.s32.totalorder %s67, 0
      %s70 = sadd.s32 %s69, 1
      %s71 = scalar_select %p68, %s69, %s70
      %p74 = pneg %p68
      %p75 = scmp.eq.s32.totalorder %s15, 3
      %p76 = por %p74, %p75
      %p77 = scmp.ne.s32.totalorder %s69, %s72
      %p78 = scmp.eq.s32.totalorder %s15, 0
      %p79 = por %p77, %p78
      %p80 = scmp.ne.s32.totalorder %s69, %s72
      %p81 = scmp.eq.s32.totalorder %s20, 3
      %p82 = por %p80, %p81
      %p83 = scmp.ne.s32.totalorder %s72, %s73
      %p84 = scmp.eq.s32.totalorder %s20, 0
      %p85 = por %p83, %p84
      %p86 = scmp.ne.s32.totalorder %s72, %s73
      %p87 = scmp.eq.s32.totalorder %s21, 3
      %p88 = por %p86, %p87
      %p90 = scmp.ne.s32.totalorder %s73, %s89
      %p91 = scmp.eq.s32.totalorder %s21, 0
      %p92 = por %p90, %p91
      %s94 = sadd.s32 %s93, 1
      %p97 = scmp.eq.s32.totalorder %s15, 3
      %p98 = scmp.ne.s32.totalorder %s93, %s95
      %p99 = scmp.eq.s32.totalorder %s15, 0
      %p100 = por %p98, %p99
      %p101 = scmp.ne.s32.totalorder %s93, %s95
      %p102 = scmp.eq.s32.totalorder %s20, 3
      %p103 = por %p101, %p102
      %p104 = scmp.ne.s32.totalorder %s95, %s96
      %p105 = scmp.eq.s32.totalorder %s20, 0
      %p106 = por %p104, %p105
      %p107 = scmp.ne.s32.totalorder %s95, %s96
      %p108 = scmp.eq.s32.totalorder %s21, 3
      %p109 = por %p107, %p108
      %p111 = scmp.ne.s32.totalorder %s96, %s110
      %p112 = scmp.eq.s32.totalorder %s21, 0
      %p113 = por %p111, %p112
      %s115 = sadd.s32 %s114, 1
      %p118 = scmp.eq.s32.totalorder %s15, 3
      %p119 = scmp.ne.s32.totalorder %s114, %s116
      %p120 = scmp.eq.s32.totalorder %s15, 0
      %p121 = por %p119, %p120
      %p122 = scmp.ne.s32.totalorder %s114, %s116
      %p123 = scmp.eq.s32.totalorder %s20, 3
      %p124 = por %p122, %p123
      %p125 = scmp.ne.s32.totalorder %s116, %s117
      %p126 = scmp.eq.s32.totalorder %s20, 0
      %p127 = por %p125, %p126
      %p128 = scmp.ne.s32.totalorder %s116, %s117
      %p129 = scmp.eq.s32.totalorder %s21, 3
      %p130 = por %p128, %p129
      %p132 = scmp.ne.s32.totalorder %s117, %s131
      %p133 = scmp.eq.s32.totalorder %s21, 0
      %p134 = por %p132, %p133
      %s136 = sadd.s32 %s135, 1
      %p139 = scmp.eq.s32.totalorder %s15, 3
      %p140 = scmp.ne.s32.totalorder %s135, %s137
      %p141 = scmp.eq.s32.totalorder %s15, 0
      %p142 = por %p140, %p141
      %p143 = scmp.ne.s32.totalorder %s135, %s137
      %p144 = scmp.eq.s32.totalorder %s20, 3
      %p145 = por %p143, %p144
      %p146 = scmp.ne.s32.totalorder %s137, %s138
      %p147 = scmp.eq.s32.totalorder %s20, 0
      %p148 = por %p146, %p147
      %p149 = scmp.ne.s32.totalorder %s137, %s138
      %p150 = scmp.eq.s32.totalorder %s21, 3
      %p151 = por %p149, %p150
      %p153 = scmp.ne.s32.totalorder %s138, %s152
      %p154 = scmp.eq.s32.totalorder %s21, 0
      %p155 = por %p153, %p154
      %s157 = sadd.s32 %s156, 1
      %p160 = scmp.eq.s32.totalorder %s15, 3
      %p161 = scmp.ne.s32.totalorder %s156, %s158
      %p162 = scmp.eq.s32.totalorder %s15, 0
      %p163 = por %p161, %p162
      %p164 = scmp.ne.s32.totalorder %s156, %s158
      %p165 = scmp.eq.s32.totalorder %s20, 3
      %p166 = por %p164, %p165
      %p167 = scmp.ne.s32.totalorder %s158, %s159
      %p168 = scmp.eq.s32.totalorder %s20, 0
      %p169 = por %p167, %p168
      %p170 = scmp.ne.s32.totalorder %s158, %s159
      %p171 = scmp.eq.s32.totalorder %s21, 3
      %p172 = por %p170, %p171
      %p174 = scmp.ne.s32.totalorder %s159, %s173
      %p175 = scmp.eq.s32.totalorder %s21, 0
      %p176 = por %p174, %p175
      %s177 = ssub.s32 %s22, %s34
      %s178 = ssub.s32 %s23, %s30
      %s179 = sor.u32 %s177, %s178
      %p180 = scmp.eq.s32.totalorder %s179, 0
      %s182 = sadd.s32 %s181, 1
      %s183 = scalar_select %p180, %s181, %s182
      %p186 = pneg %p180
      %p187 = scmp.eq.s32.totalorder %s15, 3
      %p188 = por %p186, %p187
      %p189 = scmp.ne.s32.totalorder %s181, %s184
      %p190 = scmp.eq.s32.totalorder %s15, 0
      %p191 = por %p189, %p190
      %p192 = scmp.ne.s32.totalorder %s181, %s184
      %p193 = scmp.eq.s32.totalorder %s20, 3
      %p194 = por %p192, %p193
      %p195 = scmp.ne.s32.totalorder %s184, %s185
      %p196 = scmp.eq.s32.totalorder %s20, 0
      %p197 = por %p195, %p196
      %p198 = scmp.ne.s32.totalorder %s184, %s185
      %p199 = scmp.eq.s32.totalorder %s21, 3
      %p200 = por %p198, %p199
      %p202 = scmp.ne.s32.totalorder %s185, %s201
      %p203 = scmp.eq.s32.totalorder %s21, 0
      %p204 = por %p202, %p203
      %p205 = scmp.le.s32.totalorder 1, %s15
      %p206 = scmp.lt.s32.totalorder %s15, 5
      %p207 = pnand %p205, %p206
      %p208 = pneg %p207
      // Predicated region
      $region9: #{build_neck_forward.3} parent=5 // pred_check
        _
      $region10: #{build_neck_forward.3} parent=5 // pred_check_branch
        %210 = sbr.rel (%p207) target = $region12
      $region11: #{build_neck_forward.3} parent=5 // pred_region
        %s211 = ssub.s32 %s15, 1
        // Predicated region
        $region13: #{build_neck_forward.3} parent=11 // pred_check
          %p212 = pneg %p106
        $region14: #{build_neck_forward.3} parent=11 // pred_check_branch
          %214 = sbr.rel (%p212) target = $region16
        $region15: #{build_neck_forward.3} parent=11 // pred_region
          _
        $region16: #{build_neck_forward.3} parent=11 // pred_fallthru
          _
        // Predicated region
        $region17: #{build_neck_forward.3} parent=11 // pred_check
          %p215 = pneg %p127
        $region18: #{build_neck_forward.3} parent=11 // pred_check_branch
          %217 = sbr.rel (%p215) target = $region20
        $region19: #{build_neck_forward.3} parent=11 // pred_region
          _
        $region20: #{build_neck_forward.3} parent=11 // pred_fallthru
          _
        // Predicated region
        $region21: #{build_neck_forward.3} parent=11 // pred_check
          %p218 = pneg %p148
        $region22: #{build_neck_forward.3} parent=11 // pred_check_branch
          %220 = sbr.rel (%p218) target = $region24
        $region23: #{build_neck_forward.3} parent=11 // pred_region
          _
        $region24: #{build_neck_forward.3} parent=11 // pred_fallthru
          _
        // Predicated region
        $region25: #{build_neck_forward.3} parent=11 // pred_check
          %p221 = pneg %p169
        $region26: #{build_neck_forward.3} parent=11 // pred_check_branch
          %223 = sbr.rel (%p221) target = $region28
        $region27: #{build_neck_forward.3} parent=11 // pred_region
          _
        $region28: #{build_neck_forward.3} parent=11 // pred_fallthru
          _
      $region12: #{build_neck_forward.3} parent=5 // pred_fallthru
        _
      %p224 = scmp.lt.s32.totalorder %s15, 4
      // Predicated region
      $region29: #{build_neck_forward.3} parent=5 // pred_check
        %p225 = pneg %p224
      $region30: #{build_neck_forward.3} parent=5 // pred_check_branch
        %227 = sbr.rel (%p225) target = $region32
      $region31: #{build_neck_forward.3} parent=5 // pred_region
        // Predicated region
        $region33: #{build_neck_forward.3} parent=31 // pred_check
          %p228 = pneg %p49
        $region34: #{build_neck_forward.3} parent=31 // pred_check_branch
          %230 = sbr.rel (%p228) target = $region36
        $region35: #{build_neck_forward.3} parent=31 // pred_region
          %s231 = smul.u32 8, %s23
          %p232 = scmp.lt.s32.totalorder %s22, 1
          %s233 = scalar_select %p232, %s22, 1
          %p234 = scmp.lt.s32.totalorder %s231, 23
          %s235 = scalar_select %p234, %s231, 23
          %s236 = smul.addr %s235, 6
          %s237 = smul.addr %s233, 144
          %s238 = sadd.s32 %s236, %s237
          %s239 = smul.addr %s238, 4
          %s240 = scalar_lea.vmem %s0, %s239
          %s241 = smul.u32 8, %s23
        $region36: #{build_neck_forward.3} parent=31 // pred_fallthru
          _
        // Predicated region
        $region37: #{build_neck_forward.3} parent=31 // pred_check
          %p242 = pneg %p79
        $region38: #{build_neck_forward.3} parent=31 // pred_check_branch
          %244 = sbr.rel (%p242) target = $region40
        $region39: #{build_neck_forward.3} parent=31 // pred_region
          %s245 = sadd.s32 %s23, 1
          %s246 = smul.u32 8, %s245
          %p247 = scmp.lt.s32.totalorder %s22, 1
          %s248 = scalar_select %p247, %s22, 1
          %p249 = scmp.lt.s32.totalorder %s246, 23
          %s250 = scalar_select %p249, %s246, 23
          %s251 = smul.addr %s250, 6
          %s252 = smul.addr %s248, 144
          %s253 = sadd.s32 %s251, %s252
          %s254 = smul.addr %s253, 4
          %s255 = scalar_lea.vmem %s1, %s254
          %s256 = sadd.s32 %s23, 1
          %s257 = smul.u32 8, %s256
        $region40: #{build_neck_forward.3} parent=31 // pred_fallthru
          _
      $region32: #{build_neck_forward.3} parent=5 // pred_fallthru
        _
      %p258 = scmp.le.s32.totalorder 1, %s15
      %p259 = scmp.lt.s32.totalorder %s15, 5
      %p260 = pnand %p258, %p259
      %p261 = pneg %p260
      // Predicated region
      $region41: #{build_neck_forward.3} parent=5 // pred_check
        _
      $region42: #{build_neck_forward.3} parent=5 // pred_check_branch
        %263 = sbr.rel (%p260) target = $region44
      $region43: #{build_neck_forward.3} parent=5 // pred_region
        %s264 = ssub.s32 %s15, 1
        %s265 = smul.u32 8, %s25
        %p266 = scmp.lt.s32.totalorder %s24, 1
        %s267 = scalar_select %p266, %s24, 1
        %p268 = scmp.lt.s32.totalorder %s265, 23
        %s269 = scalar_select %p268, %s265, 23
        %s270 = smul.addr %s269, 6
        %s271 = smul.addr %s267, 144
        %s272 = sadd.s32 %s270, %s271
        %s273 = smul.addr %s272, 4
        %s274 = scalar_lea.vmem %s0, %s273
        %p275 = pneg %p55
        %p276 = pneg %p52
        %s277 = sadd.s32 %s25, 1
        %s278 = smul.u32 8, %s277
        %p279 = scmp.lt.s32.totalorder %s24, 1
        %s280 = scalar_select %p279, %s24, 1
        %p281 = scmp.lt.s32.totalorder %s278, 23
        %s282 = scalar_select %p281, %s278, 23
        %s283 = smul.addr %s282, 6
        %s284 = smul.addr %s280, 144
        %s285 = sadd.s32 %s283, %s284
        %s286 = smul.addr %s285, 4
        %s287 = scalar_lea.vmem %s1, %s286
        %p288 = pneg %p85
        %p289 = pneg %p82
        %p290 = pneg %p106
        %p291 = pneg %p103
        %p292 = pneg %p127
        %p293 = pneg %p124
        %p294 = pneg %p148
        %p295 = pneg %p145
        %p296 = pneg %p169
        %p297 = pneg %p166
        %p298 = pneg %p197
        %p299 = pneg %p194
        %s300 = sand.u32 %s184, 1
        %s301 = scalar_lea.sflag [#allocation3], %s300
        %s302 = sand.u32 %s184, 1
        %s303 = smul.addr %s302, 256
        %s304 = scalar_lea.vmem [#allocation2], %s303
        %s305 = smul.u32 8, %s25
        %p306 = scmp.lt.s32.totalorder %s24, 1
        %s307 = scalar_select %p306, %s24, 1
        %p308 = scmp.lt.s32.totalorder %s305, 23
        %s309 = scalar_select %p308, %s305, 23
        %s310 = smul.addr %s309, 6
        %s311 = smul.addr %s307, 144
        %s312 = sadd.s32 %s310, %s311
        %s313 = smul.addr %s312, 4
        %s314 = scalar_lea.vmem %s0, %s313
        %s315 = smul.u32 8, %s25
        %s316 = sadd.s32 %s25, 1
        %s317 = smul.u32 8, %s316
        %p318 = scmp.lt.s32.totalorder %s24, 1
        %s319 = scalar_select %p318, %s24, 1
        %p320 = scmp.lt.s32.totalorder %s317, 23
        %s321 = scalar_select %p320, %s317, 23
        %s322 = smul.addr %s321, 6
        %s323 = smul.addr %s319, 144
        %s324 = sadd.s32 %s322, %s323
        %s325 = smul.addr %s324, 4
        %s326 = scalar_lea.vmem %s1, %s325
        %s327 = sadd.s32 %s25, 1
        %s328 = smul.u32 8, %s327
        %s329 = smul.u32 8, %s25
        %v330 = vld [vmem:[%s314] sm:$0xff]
        %v331 = vld [vmem:[%s314 + $0x8] sm:$0xff]
        %v332 = vld [vmem:[%s314 + $0x10] sm:$0x11]
        %v333 = vld [vmem:[%s314 + $0x18] sm:$0xff]
        %v334 = vld [vmem:[%s314 + $0x20] sm:$0xff]
        %v335 = vld [vmem:[%s314 + $0x28] sm:$0x11]
        %v336 = vld [vmem:[%s314 + $0x30] sm:$0xff]
        %v337 = vld [vmem:[%s314 + $0x38] sm:$0xff]
        %v338 = vld [vmem:[%s314 + $0x40] sm:$0x11]
        %v339 = vld [vmem:[%s314 + $0x48] sm:$0xff]
        %v340 = vld [vmem:[%s314 + $0x50] sm:$0xff]
        %v341 = vld [vmem:[%s314 + $0x58] sm:$0x11]
        %v342 = vld [vmem:[%s314 + $0x60] sm:$0xff]
        %v343 = vld [vmem:[%s314 + $0x68] sm:$0xff]
        %v344 = vld [vmem:[%s314 + $0x70] sm:$0x11]
        %v345 = vld [vmem:[%s314 + $0x78] sm:$0xff]
        %v346 = vld [vmem:[%s314 + $0x80] sm:$0xff]
        %v347 = vld [vmem:[%s314 + $0x88] sm:$0x11]
        %v348 = vld [vmem:[%s314 + $0x90] sm:$0xff]
        %v349 = vld [vmem:[%s314 + $0x98] sm:$0xff]
        %v350 = vld [vmem:[%s314 + $0xa0] sm:$0x11]
        %v351 = vld [vmem:[%s314 + $0xa8] sm:$0xff]
        %v352 = vld [vmem:[%s314 + $0xb0] sm:$0xff]
        %v353 = vld [vmem:[%s314 + $0xb8] sm:$0x11]
        %v354 = vld [vmem:[%s326] sm:$0xff]
        %v355 = vld [vmem:[%s326 + $0x8] sm:$0xff]
        %v356 = vld [vmem:[%s326 + $0x10] sm:$0x11]
        %v357 = vld [vmem:[%s326 + $0x18] sm:$0xff]
        %v358 = vld [vmem:[%s326 + $0x20] sm:$0xff]
        %v359 = vld [vmem:[%s326 + $0x28] sm:$0x11]
        %v376 = vunpack.c.l.b16 %v330
        %v377 = vunpack.c.h.b16 %v330
        %v378 = vunpack.c.l.b16 %v331
        %v379 = vunpack.c.h.b16 %v331
        %v380 = vunpack.c.l.b16 %v333
        %v381 = vunpack.c.h.b16 %v333
        %v382 = vunpack.c.l.b16 %v334
        %v383 = vunpack.c.h.b16 %v334
        %v384 = vunpack.c.l.b16 %v336
        %v385 = vunpack.c.h.b16 %v336
        %v386 = vunpack.c.l.b16 %v337
        %v387 = vunpack.c.h.b16 %v337
        %v388 = vunpack.c.l.b16 %v339
        %v389 = vunpack.c.h.b16 %v339
        %v390 = vunpack.c.l.b16 %v340
        %v391 = vunpack.c.h.b16 %v340
        %v392 = vunpack.c.l.b16 %v342
        %v393 = vunpack.c.h.b16 %v342
        %v394 = vunpack.c.l.b16 %v343
        %v395 = vunpack.c.h.b16 %v343
        %v396 = vunpack.c.l.b16 %v345
        %v397 = vunpack.c.h.b16 %v345
        %v398 = vunpack.c.l.b16 %v346
        %v399 = vunpack.c.h.b16 %v346
        %v400 = vunpack.c.l.b16 %v348
        %v401 = vunpack.c.h.b16 %v348
        %v402 = vunpack.c.l.b16 %v349
        %v403 = vunpack.c.h.b16 %v349
        %v404 = vunpack.c.l.b16 %v351
        %v405 = vunpack.c.h.b16 %v351
        %v406 = vunpack.c.l.b16 %v352
        %v407 = vunpack.c.h.b16 %v352
        %v408 = vpack.c.b16 %v378, %v376
        %v409 = vpack.c.b16 %v379, %v377
        %v410 = vpack.c.b16 %v382, %v380
        %v411 = vpack.c.b16 %v383, %v381
        %v412 = vpack.c.b16 %v386, %v384
        %v413 = vpack.c.b16 %v387, %v385
        %v414 = vpack.c.b16 %v390, %v388
        %v415 = vpack.c.b16 %v391, %v389
        %v416 = vpack.c.b16 %v394, %v392
        %v417 = vpack.c.b16 %v395, %v393
        %v418 = vpack.c.b16 %v398, %v396
        %v419 = vpack.c.b16 %v399, %v397
        %v420 = vpack.c.b16 %v402, %v400
        %v421 = vpack.c.b16 %v403, %v401
        %v422 = vpack.c.b16 %v406, %v404
        %v423 = vpack.c.b16 %v407, %v405
        %v448 = vunpack.c.l.b16 %v332
        %v449 = vunpack.c.h.b16 %v332
        %v450 = vunpack.c.l.b16 %v335
        %v451 = vunpack.c.h.b16 %v335
        %v452 = vunpack.c.l.b16 %v338
        %v453 = vunpack.c.h.b16 %v338
        %v454 = vunpack.c.l.b16 %v341
        %v455 = vunpack.c.h.b16 %v341
        %v456 = vunpack.c.l.b16 %v344
        %v457 = vunpack.c.h.b16 %v344
        %v458 = vunpack.c.l.b16 %v347
        %v459 = vunpack.c.h.b16 %v347
        %v460 = vunpack.c.l.b16 %v350
        %v461 = vunpack.c.h.b16 %v350
        %v462 = vunpack.c.l.b16 %v353
        %v463 = vunpack.c.h.b16 %v353
        %v464 = vpack.c.b16 %v448, %v448
        %v465 = vpack.c.b16 %v449, %v449
        %v466 = vpack.c.b16 %v450, %v450
        %v467 = vpack.c.b16 %v451, %v451
        %v468 = vpack.c.b16 %v452, %v452
        %v469 = vpack.c.b16 %v453, %v453
        %v470 = vpack.c.b16 %v454, %v454
        %v471 = vpack.c.b16 %v455, %v455
        %v472 = vpack.c.b16 %v456, %v456
        %v473 = vpack.c.b16 %v457, %v457
        %v474 = vpack.c.b16 %v458, %v458
        %v475 = vpack.c.b16 %v459, %v459
        %v476 = vpack.c.b16 %v460, %v460
        %v477 = vpack.c.b16 %v461, %v461
        %v478 = vpack.c.b16 %v462, %v462
        %v479 = vpack.c.b16 %v463, %v463
        %vm480 = vsmask.f32 7424
        %v482 = vshrl.u32 %v408, 16
        %v484 = vshll.u32 %v408, 16
        %v486 = vrot.slane %v484, 1
        %v487 = vor.u32 %v482, %v486
        %v489 = vshll.u32 %v464, 16
        %v491 = vrot.slane %v489, 1
        %v492 = vsel %vm480, %v487, %v491
        %v494 = vshrl.u32 %v409, 16
        %v496 = vshll.u32 %v409, 16
        %v498 = vrot.slane %v496, 1
        %v499 = vor.u32 %v494, %v498
        %v501 = vshll.u32 %v465, 16
        %v503 = vrot.slane %v501, 1
        %v504 = vsel %vm480, %v499, %v503
        %v506 = vshrl.u32 %v410, 16
        %v508 = vshll.u32 %v410, 16
        %v510 = vrot.slane %v508, 1
        %v511 = vor.u32 %v506, %v510
        %v513 = vshll.u32 %v466, 16
        %v515 = vrot.slane %v513, 1
        %v516 = vsel %vm480, %v511, %v515
        %v518 = vshrl.u32 %v411, 16
        %v520 = vshll.u32 %v411, 16
        %v522 = vrot.slane %v520, 1
        %v523 = vor.u32 %v518, %v522
        %v525 = vshll.u32 %v467, 16
        %v527 = vrot.slane %v525, 1
        %v528 = vsel %vm480, %v523, %v527
        %v530 = vshrl.u32 %v412, 16
        %v532 = vshll.u32 %v412, 16
        %v534 = vrot.slane %v532, 1
        %v535 = vor.u32 %v530, %v534
        %v537 = vshll.u32 %v468, 16
        %v539 = vrot.slane %v537, 1
        %v540 = vsel %vm480, %v535, %v539
        %v542 = vshrl.u32 %v413, 16
        %v544 = vshll.u32 %v413, 16
        %v546 = vrot.slane %v544, 1
        %v547 = vor.u32 %v542, %v546
        %v549 = vshll.u32 %v469, 16
        %v551 = vrot.slane %v549, 1
        %v552 = vsel %vm480, %v547, %v551
        %v554 = vshrl.u32 %v414, 16
        %v556 = vshll.u32 %v414, 16
        %v558 = vrot.slane %v556, 1
        %v559 = vor.u32 %v554, %v558
        %v561 = vshll.u32 %v470, 16
        %v563 = vrot.slane %v561, 1
        %v564 = vsel %vm480, %v559, %v563
        %v566 = vshrl.u32 %v415, 16
        %v568 = vshll.u32 %v415, 16
        %v570 = vrot.slane %v568, 1
        %v571 = vor.u32 %v566, %v570
        %v573 = vshll.u32 %v471, 16
        %v575 = vrot.slane %v573, 1
        %v576 = vsel %vm480, %v571, %v575
        %v578 = vshrl.u32 %v416, 16
        %v580 = vshll.u32 %v416, 16
        %v582 = vrot.slane %v580, 1
        %v583 = vor.u32 %v578, %v582
        %v585 = vshll.u32 %v472, 16
        %v587 = vrot.slane %v585, 1
        %v588 = vsel %vm480, %v583, %v587
        %v590 = vshrl.u32 %v417, 16
        %v592 = vshll.u32 %v417, 16
        %v594 = vrot.slane %v592, 1
        %v595 = vor.u32 %v590, %v594
        %v597 = vshll.u32 %v473, 16
        %v599 = vrot.slane %v597, 1
        %v600 = vsel %vm480, %v595, %v599
        %v602 = vshrl.u32 %v418, 16
        %v604 = vshll.u32 %v418, 16
        %v606 = vrot.slane %v604, 1
        %v607 = vor.u32 %v602, %v606
        %v609 = vshll.u32 %v474, 16
        %v611 = vrot.slane %v609, 1
        %v612 = vsel %vm480, %v607, %v611
        %v614 = vshrl.u32 %v419, 16
        %v616 = vshll.u32 %v419, 16
        %v618 = vrot.slane %v616, 1
        %v619 = vor.u32 %v614, %v618
        %v621 = vshll.u32 %v475, 16
        %v623 = vrot.slane %v621, 1
        %v624 = vsel %vm480, %v619, %v623
        %v626 = vshrl.u32 %v420, 16
        %v628 = vshll.u32 %v420, 16
        %v630 = vrot.slane %v628, 1
        %v631 = vor.u32 %v626, %v630
        %v633 = vshll.u32 %v476, 16
        %v635 = vrot.slane %v633, 1
        %v636 = vsel %vm480, %v631, %v635
        %v638 = vshrl.u32 %v421, 16
        %v640 = vshll.u32 %v421, 16
        %v642 = vrot.slane %v640, 1
        %v643 = vor.u32 %v638, %v642
        %v645 = vshll.u32 %v477, 16
        %v647 = vrot.slane %v645, 1
        %v648 = vsel %vm480, %v643, %v647
        %v650 = vshrl.u32 %v422, 16
        %v652 = vshll.u32 %v422, 16
        %v654 = vrot.slane %v652, 1
        %v655 = vor.u32 %v650, %v654
        %v657 = vshll.u32 %v478, 16
        %v659 = vrot.slane %v657, 1
        %v660 = vsel %vm480, %v655, %v659
        %v662 = vshrl.u32 %v423, 16
        %v664 = vshll.u32 %v423, 16
        %v666 = vrot.slane %v664, 1
        %v667 = vor.u32 %v662, %v666
        %v669 = vshll.u32 %v479, 16
        %v671 = vrot.slane %v669, 1
        %v672 = vsel %vm480, %v667, %v671
        %vm689 = vcmask 1046528
        %v690 = vrot.slane %v408, 1
        %v691 = vrot.slane %v464, 1
        %v692 = vsel %vm689, %v690, %v691
        %v693 = vrot.slane %v409, 1
        %v694 = vrot.slane %v465, 1
        %v695 = vsel %vm689, %v693, %v694
        %v696 = vrot.slane %v410, 1
        %v697 = vrot.slane %v466, 1
        %v698 = vsel %vm689, %v696, %v697
        %v699 = vrot.slane %v411, 1
        %v700 = vrot.slane %v467, 1
        %v701 = vsel %vm689, %v699, %v700
        %v702 = vrot.slane %v412, 1
        %v703 = vrot.slane %v468, 1
        %v704 = vsel %vm689, %v702, %v703
        %v705 = vrot.slane %v413, 1
        %v706 = vrot.slane %v469, 1
        %v707 = vsel %vm689, %v705, %v706
        %v708 = vrot.slane %v414, 1
        %v709 = vrot.slane %v470, 1
        %v710 = vsel %vm689, %v708, %v709
        %v711 = vrot.slane %v415, 1
        %v712 = vrot.slane %v471, 1
        %v713 = vsel %vm689, %v711, %v712
        %v714 = vrot.slane %v416, 1
        %v715 = vrot.slane %v472, 1
        %v716 = vsel %vm689, %v714, %v715
        %v717 = vrot.slane %v417, 1
        %v718 = vrot.slane %v473, 1
        %v719 = vsel %vm689, %v717, %v718
        %v720 = vrot.slane %v418, 1
        %v721 = vrot.slane %v474, 1
        %v722 = vsel %vm689, %v720, %v721
        %v723 = vrot.slane %v419, 1
        %v724 = vrot.slane %v475, 1
        %v725 = vsel %vm689, %v723, %v724
        %v726 = vrot.slane %v420, 1
        %v727 = vrot.slane %v476, 1
        %v728 = vsel %vm689, %v726, %v727
        %v729 = vrot.slane %v421, 1
        %v730 = vrot.slane %v477, 1
        %v731 = vsel %vm689, %v729, %v730
        %v732 = vrot.slane %v422, 1
        %v733 = vrot.slane %v478, 1
        %v734 = vsel %vm689, %v732, %v733
        %v735 = vrot.slane %v423, 1
        %v736 = vrot.slane %v479, 1
        %v737 = vsel %vm689, %v735, %v736
        %v756 = vunpack.c.l.b16 %v354
        %v757 = vunpack.c.h.b16 %v354
        %v758 = vunpack.c.l.b16 %v355
        %v759 = vunpack.c.h.b16 %v355
        %v760 = vpack.c.b16 %v758, %v756
        %v761 = vpack.c.b16 %v759, %v757
        %v765 = vunpack.c.l.b16 %v356
        %v766 = vunpack.c.h.b16 %v356
        %v767 = vpack.c.b16 %v765, %v765
        %v768 = vpack.c.b16 %v766, %v766
        %v770 = vshrl.u32 %v760, 16
        %v772 = vshll.u32 %v760, 16
        %v774 = vrot.slane %v772, 1
        %v775 = vor.u32 %v770, %v774
        %v777 = vshll.u32 %v767, 16
        %v779 = vrot.slane %v777, 1
        %v780 = vsel %vm480, %v775, %v779
        %v782 = vshrl.u32 %v761, 16
        %v784 = vshll.u32 %v761, 16
        %v786 = vrot.slane %v784, 1
        %v787 = vor.u32 %v782, %v786
        %v789 = vshll.u32 %v768, 16
        %v791 = vrot.slane %v789, 1
        %v792 = vsel %vm480, %v787, %v791
        %v795 = vrot.slane %v760, 1
        %v796 = vrot.slane %v767, 1
        %v797 = vsel %vm689, %v795, %v796
        %v798 = vrot.slane %v761, 1
        %v799 = vrot.slane %v768, 1
        %v800 = vsel %vm689, %v798, %v799
        %v805 = vunpack.c.l.b16 %v357
        %v806 = vunpack.c.h.b16 %v357
        %v807 = vunpack.c.l.b16 %v358
        %v808 = vunpack.c.h.b16 %v358
        %v809 = vpack.c.b16 %v807, %v805
        %v810 = vpack.c.b16 %v808, %v806
        %v814 = vunpack.c.l.b16 %v359
        %v815 = vunpack.c.h.b16 %v359
        %v816 = vpack.c.b16 %v814, %v814
        %v817 = vpack.c.b16 %v815, %v815
        %v819 = vshrl.u32 %v809, 16
        %v821 = vshll.u32 %v809, 16
        %v823 = vrot.slane %v821, 1
        %v824 = vor.u32 %v819, %v823
        %v826 = vshll.u32 %v816, 16
        %v828 = vrot.slane %v826, 1
        %v829 = vsel %vm480, %v824, %v828
        %v831 = vshrl.u32 %v810, 16
        %v833 = vshll.u32 %v810, 16
        %v835 = vrot.slane %v833, 1
        %v836 = vor.u32 %v831, %v835
        %v838 = vshll.u32 %v817, 16
        %v840 = vrot.slane %v838, 1
        %v841 = vsel %vm480, %v836, %v840
        %v844 = vrot.slane %v809, 1
        %v845 = vrot.slane %v816, 1
        %v846 = vsel %vm689, %v844, %v845
        %v847 = vrot.slane %v810, 1
        %v848 = vrot.slane %v817, 1
        %v849 = vsel %vm689, %v847, %v848
        %v852 = vld [vmem:[%s2] sm:$0xff]
        %v853 = vld [vmem:[%s2 + $0x8] sm:$0xff]
        %v854 = vld [vmem:[%s2 + $0x10] sm:$0xff]
        %v855 = vld [vmem:[%s2 + $0x18] sm:$0xff]
        %v856 = vld [vmem:[%s2 + $0x20] sm:$0xff]
        %v857 = vld [vmem:[%s2 + $0x28] sm:$0xff]
        %v858 = vld [vmem:[%s2 + $0x30] sm:$0xff]
        %v859 = vld [vmem:[%s2 + $0x38] sm:$0xff]
        %v860 = vld [vmem:[%s2 + $0x40] sm:$0xff]
        %v861 = vld [vmem:[%s2 + $0x48] sm:$0xff]
        %v862 = vld [vmem:[%s2 + $0x50] sm:$0xff]
        %v863 = vld [vmem:[%s2 + $0x58] sm:$0xff]
        %v864 = vld [vmem:[%s2 + $0x60] sm:$0xff]
        %v865 = vld [vmem:[%s2 + $0x68] sm:$0xff]
        %v866 = vld [vmem:[%s2 + $0x70] sm:$0xff]
        %v867 = vld [vmem:[%s2 + $0x78] sm:$0xff]
        %v868 = vld [vmem:[%s2 + $0x80] sm:$0xff]
        %v869 = vld [vmem:[%s2 + $0x88] sm:$0xff]
        %v870 = vld [vmem:[%s2 + $0x90] sm:$0xff]
        %v871 = vld [vmem:[%s2 + $0x98] sm:$0xff]
        %v872 = vld [vmem:[%s2 + $0xa0] sm:$0xff]
        %v873 = vld [vmem:[%s2 + $0xa8] sm:$0xff]
        %v874 = vld [vmem:[%s2 + $0xb0] sm:$0xff]
        %v875 = vld [vmem:[%s2 + $0xb8] sm:$0xff]
        %v876 = vld [vmem:[%s2 + $0xc0] sm:$0xff]
        %v877 = vld [vmem:[%s2 + $0xc8] sm:$0xff]
        %v878 = vld [vmem:[%s2 + $0xd0] sm:$0xff]
        %v879 = vld [vmem:[%s2 + $0xd8] sm:$0xff]
        %v880 = vld [vmem:[%s2 + $0xe0] sm:$0xff]
        %v881 = vld [vmem:[%s2 + $0xe8] sm:$0xff]
        %v882 = vld [vmem:[%s2 + $0xf0] sm:$0xff]
        %v883 = vld [vmem:[%s2 + $0xf8] sm:$0xff]
        %v884 = vld [vmem:[%s2 + $0x100] sm:$0xff]
        %v885 = vld [vmem:[%s2 + $0x108] sm:$0xff]
        %v886 = vld [vmem:[%s2 + $0x110] sm:$0xff]
        %v887 = vld [vmem:[%s2 + $0x118] sm:$0xff]
        %v888 = vld [vmem:[%s2 + $0x120] sm:$0xff]
        %v889 = vld [vmem:[%s2 + $0x128] sm:$0xff]
        %v890 = vld [vmem:[%s2 + $0x130] sm:$0xff]
        %v891 = vld [vmem:[%s2 + $0x138] sm:$0xff]
        %v892 = vld [vmem:[%s2 + $0x140] sm:$0xff]
        %v893 = vld [vmem:[%s2 + $0x148] sm:$0xff]
        %v894 = vld [vmem:[%s2 + $0x150] sm:$0xff]
        %v895 = vld [vmem:[%s2 + $0x158] sm:$0xff]
        %v896 = vld [vmem:[%s2 + $0x160] sm:$0xff]
        %v897 = vld [vmem:[%s2 + $0x168] sm:$0xff]
        %v898 = vld [vmem:[%s2 + $0x170] sm:$0xff]
        %v899 = vld [vmem:[%s2 + $0x178] sm:$0xff]
        %v900 = vld [vmem:[%s2 + $0x180] sm:$0xff]
        %v901 = vld [vmem:[%s2 + $0x188] sm:$0xff]
        %v902 = vld [vmem:[%s2 + $0x190] sm:$0xff]
        %v903 = vld [vmem:[%s2 + $0x198] sm:$0xff]
        %v904 = vld [vmem:[%s2 + $0x1a0] sm:$0xff]
        %v905 = vld [vmem:[%s2 + $0x1a8] sm:$0xff]
        %v906 = vld [vmem:[%s2 + $0x1b0] sm:$0xff]
        %v907 = vld [vmem:[%s2 + $0x1b8] sm:$0xff]
        %v908 = vld [vmem:[%s2 + $0x1c0] sm:$0xff]
        %v909 = vld [vmem:[%s2 + $0x1c8] sm:$0xff]
        %v910 = vld [vmem:[%s2 + $0x1d0] sm:$0xff]
        %v911 = vld [vmem:[%s2 + $0x1d8] sm:$0xff]
        %v912 = vld [vmem:[%s2 + $0x1e0] sm:$0xff]
        %v913 = vld [vmem:[%s2 + $0x1e8] sm:$0xff]
        %v914 = vld [vmem:[%s2 + $0x1f0] sm:$0xff]
        %v915 = vld [vmem:[%s2 + $0x1f8] sm:$0xff]
        %v916 = vld [vmem:[%s2 + $0x200] sm:$0xff]
        %v917 = vld [vmem:[%s2 + $0x208] sm:$0xff]
        %v918 = vld [vmem:[%s2 + $0x210] sm:$0xff]
        %v919 = vld [vmem:[%s2 + $0x218] sm:$0xff]
        %v920 = vld [vmem:[%s2 + $0x220] sm:$0xff]
        %v921 = vld [vmem:[%s2 + $0x228] sm:$0xff]
        %v922 = vld [vmem:[%s2 + $0x230] sm:$0xff]
        %v923 = vld [vmem:[%s2 + $0x238] sm:$0xff]
        %v924 = vld [vmem:[%s2 + $0x240] sm:$0xff]
        %v925 = vld [vmem:[%s2 + $0x248] sm:$0xff]
        %v926 = vld [vmem:[%s2 + $0x250] sm:$0xff]
        %v927 = vld [vmem:[%s2 + $0x258] sm:$0xff]
        %v928 = vld [vmem:[%s2 + $0x260] sm:$0xff]
        %v929 = vld [vmem:[%s2 + $0x268] sm:$0xff]
        %v930 = vld [vmem:[%s2 + $0x270] sm:$0xff]
        %v931 = vld [vmem:[%s2 + $0x278] sm:$0xff]
        %v932 = vld [vmem:[%s2 + $0x280] sm:$0xff]
        %v933 = vld [vmem:[%s2 + $0x288] sm:$0xff]
        %v934 = vld [vmem:[%s2 + $0x290] sm:$0xff]
        %v935 = vld [vmem:[%s2 + $0x298] sm:$0xff]
        %v936 = vld [vmem:[%s2 + $0x2a0] sm:$0xff]
        %v937 = vld [vmem:[%s2 + $0x2a8] sm:$0xff]
        %v938 = vld [vmem:[%s2 + $0x2b0] sm:$0xff]
        %v939 = vld [vmem:[%s2 + $0x2b8] sm:$0xff]
        %v940 = vld [vmem:[%s2 + $0x2c0] sm:$0xff]
        %v941 = vld [vmem:[%s2 + $0x2c8] sm:$0xff]
        %v942 = vld [vmem:[%s2 + $0x2d0] sm:$0xff]
        %v943 = vld [vmem:[%s2 + $0x2d8] sm:$0xff]
        %v944 = vld [vmem:[%s2 + $0x2e0] sm:$0xff]
        %v945 = vld [vmem:[%s2 + $0x2e8] sm:$0xff]
        %v946 = vld [vmem:[%s2 + $0x2f0] sm:$0xff]
        %v947 = vld [vmem:[%s2 + $0x2f8] sm:$0xff]
        %v948 = vld [vmem:[%s2 + $0x300] sm:$0xff]
        %v949 = vld [vmem:[%s2 + $0x308] sm:$0xff]
        %v950 = vld [vmem:[%s2 + $0x310] sm:$0xff]
        %v951 = vld [vmem:[%s2 + $0x318] sm:$0xff]
        %v952 = vld [vmem:[%s2 + $0x320] sm:$0xff]
        %v953 = vld [vmem:[%s2 + $0x328] sm:$0xff]
        %v954 = vld [vmem:[%s2 + $0x330] sm:$0xff]
        %v955 = vld [vmem:[%s2 + $0x338] sm:$0xff]
        %v956 = vld [vmem:[%s2 + $0x340] sm:$0xff]
        %v957 = vld [vmem:[%s2 + $0x348] sm:$0xff]
        %v958 = vld [vmem:[%s2 + $0x350] sm:$0xff]
        %v959 = vld [vmem:[%s2 + $0x358] sm:$0xff]
        %v960 = vld [vmem:[%s2 + $0x360] sm:$0xff]
        %v961 = vld [vmem:[%s2 + $0x368] sm:$0xff]
        %v962 = vld [vmem:[%s2 + $0x370] sm:$0xff]
        %v963 = vld [vmem:[%s2 + $0x378] sm:$0xff]
        %v964 = vld [vmem:[%s2 + $0x380] sm:$0xff]
        %v965 = vld [vmem:[%s2 + $0x388] sm:$0xff]
        %v966 = vld [vmem:[%s2 + $0x390] sm:$0xff]
        %v967 = vld [vmem:[%s2 + $0x398] sm:$0xff]
        %v968 = vld [vmem:[%s2 + $0x3a0] sm:$0xff]
        %v969 = vld [vmem:[%s2 + $0x3a8] sm:$0xff]
        %v970 = vld [vmem:[%s2 + $0x3b0] sm:$0xff]
        %v971 = vld [vmem:[%s2 + $0x3b8] sm:$0xff]
        %v972 = vld [vmem:[%s2 + $0x3c0] sm:$0xff]
        %v973 = vld [vmem:[%s2 + $0x3c8] sm:$0xff]
        %v974 = vld [vmem:[%s2 + $0x3d0] sm:$0xff]
        %v975 = vld [vmem:[%s2 + $0x3d8] sm:$0xff]
        %v976 = vld [vmem:[%s2 + $0x3e0] sm:$0xff]
        %v977 = vld [vmem:[%s2 + $0x3e8] sm:$0xff]
        %v978 = vld [vmem:[%s2 + $0x3f0] sm:$0xff]
        %v979 = vld [vmem:[%s2 + $0x3f8] sm:$0xff]
        %v980 = vld [vmem:[%s2 + $0x400] sm:$0xff]
        %v981 = vld [vmem:[%s2 + $0x408] sm:$0xff]
        %v982 = vld [vmem:[%s2 + $0x410] sm:$0xff]
        %v983 = vld [vmem:[%s2 + $0x418] sm:$0xff]
        %v984 = vld [vmem:[%s2 + $0x420] sm:$0xff]
        %v985 = vld [vmem:[%s2 + $0x428] sm:$0xff]
        %v986 = vld [vmem:[%s2 + $0x430] sm:$0xff]
        %v987 = vld [vmem:[%s2 + $0x438] sm:$0xff]
        %v988 = vld [vmem:[%s2 + $0x440] sm:$0xff]
        %v989 = vld [vmem:[%s2 + $0x448] sm:$0xff]
        %v990 = vld [vmem:[%s2 + $0x450] sm:$0xff]
        %v991 = vld [vmem:[%s2 + $0x458] sm:$0xff]
        %v992 = vld [vmem:[%s2 + $0x460] sm:$0xff]
        %v993 = vld [vmem:[%s2 + $0x468] sm:$0xff]
        %v994 = vld [vmem:[%s2 + $0x470] sm:$0xff]
        %v995 = vld [vmem:[%s2 + $0x478] sm:$0xff]
        %v996 = vld [vmem:[%s2 + $0x480] sm:$0xff]
        %v997 = vld [vmem:[%s2 + $0x488] sm:$0xff]
        %v998 = vld [vmem:[%s2 + $0x490] sm:$0xff]
        %v999 = vld [vmem:[%s2 + $0x498] sm:$0xff]
        %v1000 = vld [vmem:[%s2 + $0x4a0] sm:$0xff]
        %v1001 = vld [vmem:[%s2 + $0x4a8] sm:$0xff]
        %v1002 = vld [vmem:[%s2 + $0x4b0] sm:$0xff]
        %v1003 = vld [vmem:[%s2 + $0x4b8] sm:$0xff]
        %v1004 = vld [vmem:[%s2 + $0x4c0] sm:$0xff]
        %v1005 = vld [vmem:[%s2 + $0x4c8] sm:$0xff]
        %v1006 = vld [vmem:[%s2 + $0x4d0] sm:$0xff]
        %v1007 = vld [vmem:[%s2 + $0x4d8] sm:$0xff]
        %v1008 = vld [vmem:[%s2 + $0x4e0] sm:$0xff]
        %v1009 = vld [vmem:[%s2 + $0x4e8] sm:$0xff]
        %v1010 = vld [vmem:[%s2 + $0x4f0] sm:$0xff]
        %v1011 = vld [vmem:[%s2 + $0x4f8] sm:$0xff]
        %v1012 = vld [vmem:[%s2 + $0x500] sm:$0xff]
        %v1013 = vld [vmem:[%s2 + $0x508] sm:$0xff]
        %v1014 = vld [vmem:[%s2 + $0x510] sm:$0xff]
        %v1015 = vld [vmem:[%s2 + $0x518] sm:$0xff]
        %v1016 = vld [vmem:[%s2 + $0x520] sm:$0xff]
        %v1017 = vld [vmem:[%s2 + $0x528] sm:$0xff]
        %v1018 = vld [vmem:[%s2 + $0x530] sm:$0xff]
        %v1019 = vld [vmem:[%s2 + $0x538] sm:$0xff]
        %v1020 = vld [vmem:[%s2 + $0x540] sm:$0xff]
        %v1021 = vld [vmem:[%s2 + $0x548] sm:$0xff]
        %v1022 = vld [vmem:[%s2 + $0x550] sm:$0xff]
        %v1023 = vld [vmem:[%s2 + $0x558] sm:$0xff]
        %v1024 = vld [vmem:[%s2 + $0x560] sm:$0xff]
        %v1025 = vld [vmem:[%s2 + $0x568] sm:$0xff]
        %v1026 = vld [vmem:[%s2 + $0x570] sm:$0xff]
        %v1027 = vld [vmem:[%s2 + $0x578] sm:$0xff]
        %v1028 = vld [vmem:[%s2 + $0x580] sm:$0xff]
        %v1029 = vld [vmem:[%s2 + $0x588] sm:$0xff]
        %v1030 = vld [vmem:[%s2 + $0x590] sm:$0xff]
        %v1031 = vld [vmem:[%s2 + $0x598] sm:$0xff]
        %v1032 = vld [vmem:[%s2 + $0x5a0] sm:$0xff]
        %v1033 = vld [vmem:[%s2 + $0x5a8] sm:$0xff]
        %v1034 = vld [vmem:[%s2 + $0x5b0] sm:$0xff]
        %v1035 = vld [vmem:[%s2 + $0x5b8] sm:$0xff]
        %v1036 = vld [vmem:[%s2 + $0x5c0] sm:$0xff]
        %v1037 = vld [vmem:[%s2 + $0x5c8] sm:$0xff]
        %v1038 = vld [vmem:[%s2 + $0x5d0] sm:$0xff]
        %v1039 = vld [vmem:[%s2 + $0x5d8] sm:$0xff]
        %v1040 = vld [vmem:[%s2 + $0x5e0] sm:$0xff]
        %v1041 = vld [vmem:[%s2 + $0x5e8] sm:$0xff]
        %v1042 = vld [vmem:[%s2 + $0x5f0] sm:$0xff]
        %v1043 = vld [vmem:[%s2 + $0x5f8] sm:$0xff]
        %v1044 = vld [vmem:[%s2 + $0x600] sm:$0xff]
        %v1045 = vld [vmem:[%s2 + $0x608] sm:$0xff]
        %v1046 = vld [vmem:[%s2 + $0x610] sm:$0xff]
        %v1047 = vld [vmem:[%s2 + $0x618] sm:$0xff]
        %v1048 = vld [vmem:[%s2 + $0x620] sm:$0xff]
        %v1049 = vld [vmem:[%s2 + $0x628] sm:$0xff]
        %v1050 = vld [vmem:[%s2 + $0x630] sm:$0xff]
        %v1051 = vld [vmem:[%s2 + $0x638] sm:$0xff]
        %v1052 = vld [vmem:[%s2 + $0x640] sm:$0xff]
        %v1053 = vld [vmem:[%s2 + $0x648] sm:$0xff]
        %v1054 = vld [vmem:[%s2 + $0x650] sm:$0xff]
        %v1055 = vld [vmem:[%s2 + $0x658] sm:$0xff]
        %v1056 = vld [vmem:[%s2 + $0x660] sm:$0xff]
        %v1057 = vld [vmem:[%s2 + $0x668] sm:$0xff]
        %v1058 = vld [vmem:[%s2 + $0x670] sm:$0xff]
        %v1059 = vld [vmem:[%s2 + $0x678] sm:$0xff]
        %v1060 = vld [vmem:[%s2 + $0x680] sm:$0xff]
        %v1061 = vld [vmem:[%s2 + $0x688] sm:$0xff]
        %v1062 = vld [vmem:[%s2 + $0x690] sm:$0xff]
        %v1063 = vld [vmem:[%s2 + $0x698] sm:$0xff]
        %v1064 = vld [vmem:[%s2 + $0x6a0] sm:$0xff]
        %v1065 = vld [vmem:[%s2 + $0x6a8] sm:$0xff]
        %v1066 = vld [vmem:[%s2 + $0x6b0] sm:$0xff]
        %v1067 = vld [vmem:[%s2 + $0x6b8] sm:$0xff]
        %v1068 = vld [vmem:[%s2 + $0x6c0] sm:$0xff]
        %v1069 = vld [vmem:[%s2 + $0x6c8] sm:$0xff]
        %v1070 = vld [vmem:[%s2 + $0x6d0] sm:$0xff]
        %v1071 = vld [vmem:[%s2 + $0x6d8] sm:$0xff]
        %v1072 = vld [vmem:[%s2 + $0x6e0] sm:$0xff]
        %v1073 = vld [vmem:[%s2 + $0x6e8] sm:$0xff]
        %v1074 = vld [vmem:[%s2 + $0x6f0] sm:$0xff]
        %v1075 = vld [vmem:[%s2 + $0x6f8] sm:$0xff]
        %v1076 = vld [vmem:[%s2 + $0x700] sm:$0xff]
        %v1077 = vld [vmem:[%s2 + $0x708] sm:$0xff]
        %v1078 = vld [vmem:[%s2 + $0x710] sm:$0xff]
        %v1079 = vld [vmem:[%s2 + $0x718] sm:$0xff]
        %v1080 = vld [vmem:[%s2 + $0x720] sm:$0xff]
        %v1081 = vld [vmem:[%s2 + $0x728] sm:$0xff]
        %v1082 = vld [vmem:[%s2 + $0x730] sm:$0xff]
        %v1083 = vld [vmem:[%s2 + $0x738] sm:$0xff]
        %v1084 = vld [vmem:[%s2 + $0x740] sm:$0xff]
        %v1085 = vld [vmem:[%s2 + $0x748] sm:$0xff]
        %v1086 = vld [vmem:[%s2 + $0x750] sm:$0xff]
        %v1087 = vld [vmem:[%s2 + $0x758] sm:$0xff]
        %v1088 = vld [vmem:[%s2 + $0x760] sm:$0xff]
        %v1089 = vld [vmem:[%s2 + $0x768] sm:$0xff]
        %v1090 = vld [vmem:[%s2 + $0x770] sm:$0xff]
        %v1091 = vld [vmem:[%s2 + $0x778] sm:$0xff]
        %v1092 = vld [vmem:[%s2 + $0x780] sm:$0xff]
        %v1093 = vld [vmem:[%s2 + $0x788] sm:$0xff]
        %v1094 = vld [vmem:[%s2 + $0x790] sm:$0xff]
        %v1095 = vld [vmem:[%s2 + $0x798] sm:$0xff]
        %v1096 = vld [vmem:[%s2 + $0x7a0] sm:$0xff]
        %v1097 = vld [vmem:[%s2 + $0x7a8] sm:$0xff]
        %v1098 = vld [vmem:[%s2 + $0x7b0] sm:$0xff]
        %v1099 = vld [vmem:[%s2 + $0x7b8] sm:$0xff]
        %v1100 = vld [vmem:[%s2 + $0x7c0] sm:$0xff]
        %v1101 = vld [vmem:[%s2 + $0x7c8] sm:$0xff]
        %v1102 = vld [vmem:[%s2 + $0x7d0] sm:$0xff]
        %v1103 = vld [vmem:[%s2 + $0x7d8] sm:$0xff]
        %v1104 = vld [vmem:[%s2 + $0x7e0] sm:$0xff]
        %v1105 = vld [vmem:[%s2 + $0x7e8] sm:$0xff]
        %v1106 = vld [vmem:[%s2 + $0x7f0] sm:$0xff]
        %v1107 = vld [vmem:[%s2 + $0x7f8] sm:$0xff]
        %v1108 = vld [vmem:[%s2 + $0x800] sm:$0xff]
        %v1109 = vld [vmem:[%s2 + $0x808] sm:$0xff]
        %v1110 = vld [vmem:[%s2 + $0x810] sm:$0xff]
        %v1111 = vld [vmem:[%s2 + $0x818] sm:$0xff]
        %v1112 = vld [vmem:[%s2 + $0x820] sm:$0xff]
        %v1113 = vld [vmem:[%s2 + $0x828] sm:$0xff]
        %v1114 = vld [vmem:[%s2 + $0x830] sm:$0xff]
        %v1115 = vld [vmem:[%s2 + $0x838] sm:$0xff]
        %v1116 = vld [vmem:[%s2 + $0x840] sm:$0xff]
        %v1117 = vld [vmem:[%s2 + $0x848] sm:$0xff]
        %v1118 = vld [vmem:[%s2 + $0x850] sm:$0xff]
        %v1119 = vld [vmem:[%s2 + $0x858] sm:$0xff]
        %v1120 = vld [vmem:[%s2 + $0x860] sm:$0xff]
        %v1121 = vld [vmem:[%s2 + $0x868] sm:$0xff]
        %v1122 = vld [vmem:[%s2 + $0x870] sm:$0xff]
        %v1123 = vld [vmem:[%s2 + $0x878] sm:$0xff]
        %v1124 = vld [vmem:[%s2 + $0x880] sm:$0xff]
        %v1125 = vld [vmem:[%s2 + $0x888] sm:$0xff]
        %v1126 = vld [vmem:[%s2 + $0x890] sm:$0xff]
        %v1127 = vld [vmem:[%s2 + $0x898] sm:$0xff]
        %v1128 = vld [vmem:[%s2 + $0x8a0] sm:$0xff]
        %v1129 = vld [vmem:[%s2 + $0x8a8] sm:$0xff]
        %v1130 = vld [vmem:[%s2 + $0x8b0] sm:$0xff]
        %v1131 = vld [vmem:[%s2 + $0x8b8] sm:$0xff]
        %v1132 = vld [vmem:[%s2 + $0x8c0] sm:$0xff]
        %v1133 = vld [vmem:[%s2 + $0x8c8] sm:$0xff]
        %v1134 = vld [vmem:[%s2 + $0x8d0] sm:$0xff]
        %v1135 = vld [vmem:[%s2 + $0x8d8] sm:$0xff]
        %v1136 = vld [vmem:[%s2 + $0x8e0] sm:$0xff]
        %v1137 = vld [vmem:[%s2 + $0x8e8] sm:$0xff]
        %v1138 = vld [vmem:[%s2 + $0x8f0] sm:$0xff]
        %v1139 = vld [vmem:[%s2 + $0x8f8] sm:$0xff]
        %v1140 = vld [vmem:[%s3] sm:$0x3]
        %v1142 = vlaneseq
        %v1143 = vshrl.u32 %v1142, 7
        %v1144 = vsub.s32 0, %v1143
        %v1145 = vrot.slane %v1140, %v1144
        %v1146 = vlaneseq
        %v1147 = vshrl.u32 %v1146, 7
        %v1148 = vsub.s32 1, %v1147
        %v1149 = vrot.slane %v1140, %v1148
        %v1440 = vunpack.c.l.b16 %v852
        %v1441 = vunpack.c.h.b16 %v852
        %v1442 = vunpack.c.l.b16 %v853
        %v1443 = vunpack.c.h.b16 %v853
        %v1444 = vunpack.c.l.b16 %v854
        %v1445 = vunpack.c.h.b16 %v854
        %v1446 = vunpack.c.l.b16 %v855
        %v1447 = vunpack.c.h.b16 %v855
        %v1448 = vunpack.c.l.b16 %v856
        %v1449 = vunpack.c.h.b16 %v856
        %v1450 = vunpack.c.l.b16 %v857
        %v1451 = vunpack.c.h.b16 %v857
        %v1452 = vunpack.c.l.b16 %v858
        %v1453 = vunpack.c.h.b16 %v858
        %v1454 = vunpack.c.l.b16 %v859
        %v1455 = vunpack.c.h.b16 %v859
        %v1456 = vunpack.c.l.b16 %v860
        %v1457 = vunpack.c.h.b16 %v860
        %v1458 = vunpack.c.l.b16 %v861
        %v1459 = vunpack.c.h.b16 %v861
        %v1460 = vunpack.c.l.b16 %v862
        %v1461 = vunpack.c.h.b16 %v862
        %v1462 = vunpack.c.l.b16 %v863
        %v1463 = vunpack.c.h.b16 %v863
        %v1464 = vunpack.c.l.b16 %v864
        %v1465 = vunpack.c.h.b16 %v864
        %v1466 = vunpack.c.l.b16 %v865
        %v1467 = vunpack.c.h.b16 %v865
        %v1468 = vunpack.c.l.b16 %v866
        %v1469 = vunpack.c.h.b16 %v866
        %v1470 = vunpack.c.l.b16 %v867
        %v1471 = vunpack.c.h.b16 %v867
        %v1472 = vunpack.c.l.b16 %v868
        %v1473 = vunpack.c.h.b16 %v868
        %v1474 = vunpack.c.l.b16 %v869
        %v1475 = vunpack.c.h.b16 %v869
        %v1476 = vunpack.c.l.b16 %v870
        %v1477 = vunpack.c.h.b16 %v870
        %v1478 = vunpack.c.l.b16 %v871
        %v1479 = vunpack.c.h.b16 %v871
        %v1480 = vunpack.c.l.b16 %v872
        %v1481 = vunpack.c.h.b16 %v872
        %v1482 = vunpack.c.l.b16 %v873
        %v1483 = vunpack.c.h.b16 %v873
        %v1484 = vunpack.c.l.b16 %v874
        %v1485 = vunpack.c.h.b16 %v874
        %v1486 = vunpack.c.l.b16 %v875
        %v1487 = vunpack.c.h.b16 %v875
        %v1488 = vunpack.c.l.b16 %v876
        %v1489 = vunpack.c.h.b16 %v876
        %v1490 = vunpack.c.l.b16 %v877
        %v1491 = vunpack.c.h.b16 %v877
        %v1492 = vunpack.c.l.b16 %v878
        %v1493 = vunpack.c.h.b16 %v878
        %v1494 = vunpack.c.l.b16 %v879
        %v1495 = vunpack.c.h.b16 %v879
        %v1496 = vunpack.c.l.b16 %v880
        %v1497 = vunpack.c.h.b16 %v880
        %v1498 = vunpack.c.l.b16 %v881
        %v1499 = vunpack.c.h.b16 %v881
        %v1500 = vunpack.c.l.b16 %v882
        %v1501 = vunpack.c.h.b16 %v882
        %v1502 = vunpack.c.l.b16 %v883
        %v1503 = vunpack.c.h.b16 %v883
        %v1504 = vunpack.c.l.b16 %v884
        %v1505 = vunpack.c.h.b16 %v884
        %v1506 = vunpack.c.l.b16 %v885
        %v1507 = vunpack.c.h.b16 %v885
        %v1508 = vunpack.c.l.b16 %v886
        %v1509 = vunpack.c.h.b16 %v886
        %v1510 = vunpack.c.l.b16 %v887
        %v1511 = vunpack.c.h.b16 %v887
        %v1512 = vunpack.c.l.b16 %v888
        %v1513 = vunpack.c.h.b16 %v888
        %v1514 = vunpack.c.l.b16 %v889
        %v1515 = vunpack.c.h.b16 %v889
        %v1516 = vunpack.c.l.b16 %v890
        %v1517 = vunpack.c.h.b16 %v890
        %v1518 = vunpack.c.l.b16 %v891
        %v1519 = vunpack.c.h.b16 %v891
        %v1520 = vunpack.c.l.b16 %v892
        %v1521 = vunpack.c.h.b16 %v892
        %v1522 = vunpack.c.l.b16 %v893
        %v1523 = vunpack.c.h.b16 %v893
        %v1524 = vunpack.c.l.b16 %v894
        %v1525 = vunpack.c.h.b16 %v894
        %v1526 = vunpack.c.l.b16 %v895
        %v1527 = vunpack.c.h.b16 %v895
        %v1528 = vunpack.c.l.b16 %v896
        %v1529 = vunpack.c.h.b16 %v896
        %v1530 = vunpack.c.l.b16 %v897
        %v1531 = vunpack.c.h.b16 %v897
        %v1532 = vunpack.c.l.b16 %v898
        %v1533 = vunpack.c.h.b16 %v898
        %v1534 = vunpack.c.l.b16 %v899
        %v1535 = vunpack.c.h.b16 %v899
        %v1536 = vunpack.c.l.b16 %v900
        %v1537 = vunpack.c.h.b16 %v900
        %v1538 = vunpack.c.l.b16 %v901
        %v1539 = vunpack.c.h.b16 %v901
        %v1540 = vunpack.c.l.b16 %v902
        %v1541 = vunpack.c.h.b16 %v902
        %v1542 = vunpack.c.l.b16 %v903
        %v1543 = vunpack.c.h.b16 %v903
        %v1544 = vunpack.c.l.b16 %v904
        %v1545 = vunpack.c.h.b16 %v904
        %v1546 = vunpack.c.l.b16 %v905
        %v1547 = vunpack.c.h.b16 %v905
        %v1548 = vunpack.c.l.b16 %v906
        %v1549 = vunpack.c.h.b16 %v906
        %v1550 = vunpack.c.l.b16 %v907
        %v1551 = vunpack.c.h.b16 %v907
        %v1552 = vunpack.c.l.b16 %v908
        %v1553 = vunpack.c.h.b16 %v908
        %v1554 = vunpack.c.l.b16 %v909
        %v1555 = vunpack.c.h.b16 %v909
        %v1556 = vunpack.c.l.b16 %v910
        %v1557 = vunpack.c.h.b16 %v910
        %v1558 = vunpack.c.l.b16 %v911
        %v1559 = vunpack.c.h.b16 %v911
        %v1560 = vunpack.c.l.b16 %v912
        %v1561 = vunpack.c.h.b16 %v912
        %v1562 = vunpack.c.l.b16 %v913
        %v1563 = vunpack.c.h.b16 %v913
        %v1564 = vunpack.c.l.b16 %v914
        %v1565 = vunpack.c.h.b16 %v914
        %v1566 = vunpack.c.l.b16 %v915
        %v1567 = vunpack.c.h.b16 %v915
        %v1568 = vunpack.c.l.b16 %v916
        %v1569 = vunpack.c.h.b16 %v916
        %v1570 = vunpack.c.l.b16 %v917
        %v1571 = vunpack.c.h.b16 %v917
        %v1572 = vunpack.c.l.b16 %v918
        %v1573 = vunpack.c.h.b16 %v918
        %v1574 = vunpack.c.l.b16 %v919
        %v1575 = vunpack.c.h.b16 %v919
        %v1576 = vunpack.c.l.b16 %v920
        %v1577 = vunpack.c.h.b16 %v920
        %v1578 = vunpack.c.l.b16 %v921
        %v1579 = vunpack.c.h.b16 %v921
        %v1580 = vunpack.c.l.b16 %v922
        %v1581 = vunpack.c.h.b16 %v922
        %v1582 = vunpack.c.l.b16 %v923
        %v1583 = vunpack.c.h.b16 %v923
        %v1584 = vunpack.c.l.b16 %v924
        %v1585 = vunpack.c.h.b16 %v924
        %v1586 = vunpack.c.l.b16 %v925
        %v1587 = vunpack.c.h.b16 %v925
        %v1588 = vunpack.c.l.b16 %v926
        %v1589 = vunpack.c.h.b16 %v926
        %v1590 = vunpack.c.l.b16 %v927
        %v1591 = vunpack.c.h.b16 %v927
        %v1592 = vunpack.c.l.b16 %v928
        %v1593 = vunpack.c.h.b16 %v928
        %v1594 = vunpack.c.l.b16 %v929
        %v1595 = vunpack.c.h.b16 %v929
        %v1596 = vunpack.c.l.b16 %v930
        %v1597 = vunpack.c.h.b16 %v930
        %v1598 = vunpack.c.l.b16 %v931
        %v1599 = vunpack.c.h.b16 %v931
        %v1600 = vunpack.c.l.b16 %v932
        %v1601 = vunpack.c.h.b16 %v932
        %v1602 = vunpack.c.l.b16 %v933
        %v1603 = vunpack.c.h.b16 %v933
        %v1604 = vunpack.c.l.b16 %v934
        %v1605 = vunpack.c.h.b16 %v934
        %v1606 = vunpack.c.l.b16 %v935
        %v1607 = vunpack.c.h.b16 %v935
        %v1608 = vunpack.c.l.b16 %v936
        %v1609 = vunpack.c.h.b16 %v936
        %v1610 = vunpack.c.l.b16 %v937
        %v1611 = vunpack.c.h.b16 %v937
        %v1612 = vunpack.c.l.b16 %v938
        %v1613 = vunpack.c.h.b16 %v938
        %v1614 = vunpack.c.l.b16 %v939
        %v1615 = vunpack.c.h.b16 %v939
        %v1616 = vunpack.c.l.b16 %v940
        %v1617 = vunpack.c.h.b16 %v940
        %v1618 = vunpack.c.l.b16 %v941
        %v1619 = vunpack.c.h.b16 %v941
        %v1620 = vunpack.c.l.b16 %v942
        %v1621 = vunpack.c.h.b16 %v942
        %v1622 = vunpack.c.l.b16 %v943
        %v1623 = vunpack.c.h.b16 %v943
        %v1624 = vunpack.c.l.b16 %v944
        %v1625 = vunpack.c.h.b16 %v944
        %v1626 = vunpack.c.l.b16 %v945
        %v1627 = vunpack.c.h.b16 %v945
        %v1628 = vunpack.c.l.b16 %v946
        %v1629 = vunpack.c.h.b16 %v946
        %v1630 = vunpack.c.l.b16 %v947
        %v1631 = vunpack.c.h.b16 %v947
        %v1632 = vunpack.c.l.b16 %v948
        %v1633 = vunpack.c.h.b16 %v948
        %v1634 = vunpack.c.l.b16 %v949
        %v1635 = vunpack.c.h.b16 %v949
        %v1636 = vunpack.c.l.b16 %v950
        %v1637 = vunpack.c.h.b16 %v950
        %v1638 = vunpack.c.l.b16 %v951
        %v1639 = vunpack.c.h.b16 %v951
        %v1640 = vunpack.c.l.b16 %v952
        %v1641 = vunpack.c.h.b16 %v952
        %v1642 = vunpack.c.l.b16 %v953
        %v1643 = vunpack.c.h.b16 %v953
        %v1644 = vunpack.c.l.b16 %v954
        %v1645 = vunpack.c.h.b16 %v954
        %v1646 = vunpack.c.l.b16 %v955
        %v1647 = vunpack.c.h.b16 %v955
        %v1648 = vunpack.c.l.b16 %v956
        %v1649 = vunpack.c.h.b16 %v956
        %v1650 = vunpack.c.l.b16 %v957
        %v1651 = vunpack.c.h.b16 %v957
        %v1652 = vunpack.c.l.b16 %v958
        %v1653 = vunpack.c.h.b16 %v958
        %v1654 = vunpack.c.l.b16 %v959
        %v1655 = vunpack.c.h.b16 %v959
        %v1656 = vunpack.c.l.b16 %v960
        %v1657 = vunpack.c.h.b16 %v960
        %v1658 = vunpack.c.l.b16 %v961
        %v1659 = vunpack.c.h.b16 %v961
        %v1660 = vunpack.c.l.b16 %v962
        %v1661 = vunpack.c.h.b16 %v962
        %v1662 = vunpack.c.l.b16 %v963
        %v1663 = vunpack.c.h.b16 %v963
        %v1664 = vunpack.c.l.b16 %v964
        %v1665 = vunpack.c.h.b16 %v964
        %v1666 = vunpack.c.l.b16 %v965
        %v1667 = vunpack.c.h.b16 %v965
        %v1668 = vunpack.c.l.b16 %v966
        %v1669 = vunpack.c.h.b16 %v966
        %v1670 = vunpack.c.l.b16 %v967
        %v1671 = vunpack.c.h.b16 %v967
        %v1672 = vunpack.c.l.b16 %v968
        %v1673 = vunpack.c.h.b16 %v968
        %v1674 = vunpack.c.l.b16 %v969
        %v1675 = vunpack.c.h.b16 %v969
        %v1676 = vunpack.c.l.b16 %v970
        %v1677 = vunpack.c.h.b16 %v970
        %v1678 = vunpack.c.l.b16 %v971
        %v1679 = vunpack.c.h.b16 %v971
        %v1680 = vunpack.c.l.b16 %v972
        %v1681 = vunpack.c.h.b16 %v972
        %v1682 = vunpack.c.l.b16 %v973
        %v1683 = vunpack.c.h.b16 %v973
        %v1684 = vunpack.c.l.b16 %v974
        %v1685 = vunpack.c.h.b16 %v974
        %v1686 = vunpack.c.l.b16 %v975
        %v1687 = vunpack.c.h.b16 %v975
        %v1688 = vunpack.c.l.b16 %v976
        %v1689 = vunpack.c.h.b16 %v976
        %v1690 = vunpack.c.l.b16 %v977
        %v1691 = vunpack.c.h.b16 %v977
        %v1692 = vunpack.c.l.b16 %v978
        %v1693 = vunpack.c.h.b16 %v978
        %v1694 = vunpack.c.l.b16 %v979
        %v1695 = vunpack.c.h.b16 %v979
        %v1696 = vunpack.c.l.b16 %v980
        %v1697 = vunpack.c.h.b16 %v980
        %v1698 = vunpack.c.l.b16 %v981
        %v1699 = vunpack.c.h.b16 %v981
        %v1700 = vunpack.c.l.b16 %v982
        %v1701 = vunpack.c.h.b16 %v982
        %v1702 = vunpack.c.l.b16 %v983
        %v1703 = vunpack.c.h.b16 %v983
        %v1704 = vunpack.c.l.b16 %v984
        %v1705 = vunpack.c.h.b16 %v984
        %v1706 = vunpack.c.l.b16 %v985
        %v1707 = vunpack.c.h.b16 %v985
        %v1708 = vunpack.c.l.b16 %v986
        %v1709 = vunpack.c.h.b16 %v986
        %v1710 = vunpack.c.l.b16 %v987
        %v1711 = vunpack.c.h.b16 %v987
        %v1712 = vunpack.c.l.b16 %v988
        %v1713 = vunpack.c.h.b16 %v988
        %v1714 = vunpack.c.l.b16 %v989
        %v1715 = vunpack.c.h.b16 %v989
        %v1716 = vunpack.c.l.b16 %v990
        %v1717 = vunpack.c.h.b16 %v990
        %v1718 = vunpack.c.l.b16 %v991
        %v1719 = vunpack.c.h.b16 %v991
        %v1720 = vunpack.c.l.b16 %v992
        %v1721 = vunpack.c.h.b16 %v992
        %v1722 = vunpack.c.l.b16 %v993
        %v1723 = vunpack.c.h.b16 %v993
        %v1724 = vunpack.c.l.b16 %v994
        %v1725 = vunpack.c.h.b16 %v994
        %v1726 = vunpack.c.l.b16 %v995
        %v1727 = vunpack.c.h.b16 %v995
        %v1728 = vunpack.c.l.b16 %v996
        %v1729 = vunpack.c.h.b16 %v996
        %v1730 = vunpack.c.l.b16 %v997
        %v1731 = vunpack.c.h.b16 %v997
        %v1732 = vunpack.c.l.b16 %v998
        %v1733 = vunpack.c.h.b16 %v998
        %v1734 = vunpack.c.l.b16 %v999
        %v1735 = vunpack.c.h.b16 %v999
        %v1736 = vunpack.c.l.b16 %v1000
        %v1737 = vunpack.c.h.b16 %v1000
        %v1738 = vunpack.c.l.b16 %v1001
        %v1739 = vunpack.c.h.b16 %v1001
        %v1740 = vunpack.c.l.b16 %v1002
        %v1741 = vunpack.c.h.b16 %v1002
        %v1742 = vunpack.c.l.b16 %v1003
        %v1743 = vunpack.c.h.b16 %v1003
        %v1744 = vunpack.c.l.b16 %v1004
        %v1745 = vunpack.c.h.b16 %v1004
        %v1746 = vunpack.c.l.b16 %v1005
        %v1747 = vunpack.c.h.b16 %v1005
        %v1748 = vunpack.c.l.b16 %v1006
        %v1749 = vunpack.c.h.b16 %v1006
        %v1750 = vunpack.c.l.b16 %v1007
        %v1751 = vunpack.c.h.b16 %v1007
        %v1752 = vunpack.c.l.b16 %v1008
        %v1753 = vunpack.c.h.b16 %v1008
        %v1754 = vunpack.c.l.b16 %v1009
        %v1755 = vunpack.c.h.b16 %v1009
        %v1756 = vunpack.c.l.b16 %v1010
        %v1757 = vunpack.c.h.b16 %v1010
        %v1758 = vunpack.c.l.b16 %v1011
        %v1759 = vunpack.c.h.b16 %v1011
        %v1760 = vunpack.c.l.b16 %v1012
        %v1761 = vunpack.c.h.b16 %v1012
        %v1762 = vunpack.c.l.b16 %v1013
        %v1763 = vunpack.c.h.b16 %v1013
        %v1764 = vunpack.c.l.b16 %v1014
        %v1765 = vunpack.c.h.b16 %v1014
        %v1766 = vunpack.c.l.b16 %v1015
        %v1767 = vunpack.c.h.b16 %v1015
        %v1768 = vunpack.c.l.b16 %v1016
        %v1769 = vunpack.c.h.b16 %v1016
        %v1770 = vunpack.c.l.b16 %v1017
        %v1771 = vunpack.c.h.b16 %v1017
        %v1772 = vunpack.c.l.b16 %v1018
        %v1773 = vunpack.c.h.b16 %v1018
        %v1774 = vunpack.c.l.b16 %v1019
        %v1775 = vunpack.c.h.b16 %v1019
        %v1776 = vunpack.c.l.b16 %v1020
        %v1777 = vunpack.c.h.b16 %v1020
        %v1778 = vunpack.c.l.b16 %v1021
        %v1779 = vunpack.c.h.b16 %v1021
        %v1780 = vunpack.c.l.b16 %v1022
        %v1781 = vunpack.c.h.b16 %v1022
        %v1782 = vunpack.c.l.b16 %v1023
        %v1783 = vunpack.c.h.b16 %v1023
        %v1784 = vunpack.c.l.b16 %v1024
        %v1785 = vunpack.c.h.b16 %v1024
        %v1786 = vunpack.c.l.b16 %v1025
        %v1787 = vunpack.c.h.b16 %v1025
        %v1788 = vunpack.c.l.b16 %v1026
        %v1789 = vunpack.c.h.b16 %v1026
        %v1790 = vunpack.c.l.b16 %v1027
        %v1791 = vunpack.c.h.b16 %v1027
        %v1792 = vunpack.c.l.b16 %v1028
        %v1793 = vunpack.c.h.b16 %v1028
        %v1794 = vunpack.c.l.b16 %v1029
        %v1795 = vunpack.c.h.b16 %v1029
        %v1796 = vunpack.c.l.b16 %v1030
        %v1797 = vunpack.c.h.b16 %v1030
        %v1798 = vunpack.c.l.b16 %v1031
        %v1799 = vunpack.c.h.b16 %v1031
        %v1800 = vunpack.c.l.b16 %v1032
        %v1801 = vunpack.c.h.b16 %v1032
        %v1802 = vunpack.c.l.b16 %v1033
        %v1803 = vunpack.c.h.b16 %v1033
        %v1804 = vunpack.c.l.b16 %v1034
        %v1805 = vunpack.c.h.b16 %v1034
        %v1806 = vunpack.c.l.b16 %v1035
        %v1807 = vunpack.c.h.b16 %v1035
        %v1808 = vunpack.c.l.b16 %v1036
        %v1809 = vunpack.c.h.b16 %v1036
        %v1810 = vunpack.c.l.b16 %v1037
        %v1811 = vunpack.c.h.b16 %v1037
        %v1812 = vunpack.c.l.b16 %v1038
        %v1813 = vunpack.c.h.b16 %v1038
        %v1814 = vunpack.c.l.b16 %v1039
        %v1815 = vunpack.c.h.b16 %v1039
        %v1816 = vunpack.c.l.b16 %v1040
        %v1817 = vunpack.c.h.b16 %v1040
        %v1818 = vunpack.c.l.b16 %v1041
        %v1819 = vunpack.c.h.b16 %v1041
        %v1820 = vunpack.c.l.b16 %v1042
        %v1821 = vunpack.c.h.b16 %v1042
        %v1822 = vunpack.c.l.b16 %v1043
        %v1823 = vunpack.c.h.b16 %v1043
        %v1824 = vunpack.c.l.b16 %v1044
        %v1825 = vunpack.c.h.b16 %v1044
        %v1826 = vunpack.c.l.b16 %v1045
        %v1827 = vunpack.c.h.b16 %v1045
        %v1828 = vunpack.c.l.b16 %v1046
        %v1829 = vunpack.c.h.b16 %v1046
        %v1830 = vunpack.c.l.b16 %v1047
        %v1831 = vunpack.c.h.b16 %v1047
        %v1832 = vunpack.c.l.b16 %v1048
        %v1833 = vunpack.c.h.b16 %v1048
        %v1834 = vunpack.c.l.b16 %v1049
        %v1835 = vunpack.c.h.b16 %v1049
        %v1836 = vunpack.c.l.b16 %v1050
        %v1837 = vunpack.c.h.b16 %v1050
        %v1838 = vunpack.c.l.b16 %v1051
        %v1839 = vunpack.c.h.b16 %v1051
        %v1840 = vunpack.c.l.b16 %v1052
        %v1841 = vunpack.c.h.b16 %v1052
        %v1842 = vunpack.c.l.b16 %v1053
        %v1843 = vunpack.c.h.b16 %v1053
        %v1844 = vunpack.c.l.b16 %v1054
        %v1845 = vunpack.c.h.b16 %v1054
        %v1846 = vunpack.c.l.b16 %v1055
        %v1847 = vunpack.c.h.b16 %v1055
        %v1848 = vunpack.c.l.b16 %v1056
        %v1849 = vunpack.c.h.b16 %v1056
        %v1850 = vunpack.c.l.b16 %v1057
        %v1851 = vunpack.c.h.b16 %v1057
        %v1852 = vunpack.c.l.b16 %v1058
        %v1853 = vunpack.c.h.b16 %v1058
        %v1854 = vunpack.c.l.b16 %v1059
        %v1855 = vunpack.c.h.b16 %v1059
        %v1856 = vunpack.c.l.b16 %v1060
        %v1857 = vunpack.c.h.b16 %v1060
        %v1858 = vunpack.c.l.b16 %v1061
        %v1859 = vunpack.c.h.b16 %v1061
        %v1860 = vunpack.c.l.b16 %v1062
        %v1861 = vunpack.c.h.b16 %v1062
        %v1862 = vunpack.c.l.b16 %v1063
        %v1863 = vunpack.c.h.b16 %v1063
        %v1864 = vunpack.c.l.b16 %v1064
        %v1865 = vunpack.c.h.b16 %v1064
        %v1866 = vunpack.c.l.b16 %v1065
        %v1867 = vunpack.c.h.b16 %v1065
        %v1868 = vunpack.c.l.b16 %v1066
        %v1869 = vunpack.c.h.b16 %v1066
        %v1870 = vunpack.c.l.b16 %v1067
        %v1871 = vunpack.c.h.b16 %v1067
        %v1872 = vunpack.c.l.b16 %v1068
        %v1873 = vunpack.c.h.b16 %v1068
        %v1874 = vunpack.c.l.b16 %v1069
        %v1875 = vunpack.c.h.b16 %v1069
        %v1876 = vunpack.c.l.b16 %v1070
        %v1877 = vunpack.c.h.b16 %v1070
        %v1878 = vunpack.c.l.b16 %v1071
        %v1879 = vunpack.c.h.b16 %v1071
        %v1880 = vunpack.c.l.b16 %v1072
        %v1881 = vunpack.c.h.b16 %v1072
        %v1882 = vunpack.c.l.b16 %v1073
        %v1883 = vunpack.c.h.b16 %v1073
        %v1884 = vunpack.c.l.b16 %v1074
        %v1885 = vunpack.c.h.b16 %v1074
        %v1886 = vunpack.c.l.b16 %v1075
        %v1887 = vunpack.c.h.b16 %v1075
        %v1888 = vunpack.c.l.b16 %v1076
        %v1889 = vunpack.c.h.b16 %v1076
        %v1890 = vunpack.c.l.b16 %v1077
        %v1891 = vunpack.c.h.b16 %v1077
        %v1892 = vunpack.c.l.b16 %v1078
        %v1893 = vunpack.c.h.b16 %v1078
        %v1894 = vunpack.c.l.b16 %v1079
        %v1895 = vunpack.c.h.b16 %v1079
        %v1896 = vunpack.c.l.b16 %v1080
        %v1897 = vunpack.c.h.b16 %v1080
        %v1898 = vunpack.c.l.b16 %v1081
        %v1899 = vunpack.c.h.b16 %v1081
        %v1900 = vunpack.c.l.b16 %v1082
        %v1901 = vunpack.c.h.b16 %v1082
        %v1902 = vunpack.c.l.b16 %v1083
        %v1903 = vunpack.c.h.b16 %v1083
        %v1904 = vunpack.c.l.b16 %v1084
        %v1905 = vunpack.c.h.b16 %v1084
        %v1906 = vunpack.c.l.b16 %v1085
        %v1907 = vunpack.c.h.b16 %v1085
        %v1908 = vunpack.c.l.b16 %v1086
        %v1909 = vunpack.c.h.b16 %v1086
        %v1910 = vunpack.c.l.b16 %v1087
        %v1911 = vunpack.c.h.b16 %v1087
        %v1912 = vunpack.c.l.b16 %v1088
        %v1913 = vunpack.c.h.b16 %v1088
        %v1914 = vunpack.c.l.b16 %v1089
        %v1915 = vunpack.c.h.b16 %v1089
        %v1916 = vunpack.c.l.b16 %v1090
        %v1917 = vunpack.c.h.b16 %v1090
        %v1918 = vunpack.c.l.b16 %v1091
        %v1919 = vunpack.c.h.b16 %v1091
        %v1920 = vunpack.c.l.b16 %v1092
        %v1921 = vunpack.c.h.b16 %v1092
        %v1922 = vunpack.c.l.b16 %v1093
        %v1923 = vunpack.c.h.b16 %v1093
        %v1924 = vunpack.c.l.b16 %v1094
        %v1925 = vunpack.c.h.b16 %v1094
        %v1926 = vunpack.c.l.b16 %v1095
        %v1927 = vunpack.c.h.b16 %v1095
        %v1928 = vunpack.c.l.b16 %v1096
        %v1929 = vunpack.c.h.b16 %v1096
        %v1930 = vunpack.c.l.b16 %v1097
        %v1931 = vunpack.c.h.b16 %v1097
        %v1932 = vunpack.c.l.b16 %v1098
        %v1933 = vunpack.c.h.b16 %v1098
        %v1934 = vunpack.c.l.b16 %v1099
        %v1935 = vunpack.c.h.b16 %v1099
        %v1936 = vunpack.c.l.b16 %v1100
        %v1937 = vunpack.c.h.b16 %v1100
        %v1938 = vunpack.c.l.b16 %v1101
        %v1939 = vunpack.c.h.b16 %v1101
        %v1940 = vunpack.c.l.b16 %v1102
        %v1941 = vunpack.c.h.b16 %v1102
        %v1942 = vunpack.c.l.b16 %v1103
        %v1943 = vunpack.c.h.b16 %v1103
        %v1944 = vunpack.c.l.b16 %v1104
        %v1945 = vunpack.c.h.b16 %v1104
        %v1946 = vunpack.c.l.b16 %v1105
        %v1947 = vunpack.c.h.b16 %v1105
        %v1948 = vunpack.c.l.b16 %v1106
        %v1949 = vunpack.c.h.b16 %v1106
        %v1950 = vunpack.c.l.b16 %v1107
        %v1951 = vunpack.c.h.b16 %v1107
        %v1952 = vunpack.c.l.b16 %v1108
        %v1953 = vunpack.c.h.b16 %v1108
        %v1954 = vunpack.c.l.b16 %v1109
        %v1955 = vunpack.c.h.b16 %v1109
        %v1956 = vunpack.c.l.b16 %v1110
        %v1957 = vunpack.c.h.b16 %v1110
        %v1958 = vunpack.c.l.b16 %v1111
        %v1959 = vunpack.c.h.b16 %v1111
        %v1960 = vunpack.c.l.b16 %v1112
        %v1961 = vunpack.c.h.b16 %v1112
        %v1962 = vunpack.c.l.b16 %v1113
        %v1963 = vunpack.c.h.b16 %v1113
        %v1964 = vunpack.c.l.b16 %v1114
        %v1965 = vunpack.c.h.b16 %v1114
        %v1966 = vunpack.c.l.b16 %v1115
        %v1967 = vunpack.c.h.b16 %v1115
        %v1968 = vunpack.c.l.b16 %v1116
        %v1969 = vunpack.c.h.b16 %v1116
        %v1970 = vunpack.c.l.b16 %v1117
        %v1971 = vunpack.c.h.b16 %v1117
        %v1972 = vunpack.c.l.b16 %v1118
        %v1973 = vunpack.c.h.b16 %v1118
        %v1974 = vunpack.c.l.b16 %v1119
        %v1975 = vunpack.c.h.b16 %v1119
        %v1976 = vunpack.c.l.b16 %v1120
        %v1977 = vunpack.c.h.b16 %v1120
        %v1978 = vunpack.c.l.b16 %v1121
        %v1979 = vunpack.c.h.b16 %v1121
        %v1980 = vunpack.c.l.b16 %v1122
        %v1981 = vunpack.c.h.b16 %v1122
        %v1982 = vunpack.c.l.b16 %v1123
        %v1983 = vunpack.c.h.b16 %v1123
        %v1984 = vunpack.c.l.b16 %v1124
        %v1985 = vunpack.c.h.b16 %v1124
        %v1986 = vunpack.c.l.b16 %v1125
        %v1987 = vunpack.c.h.b16 %v1125
        %v1988 = vunpack.c.l.b16 %v1126
        %v1989 = vunpack.c.h.b16 %v1126
        %v1990 = vunpack.c.l.b16 %v1127
        %v1991 = vunpack.c.h.b16 %v1127
        %v1992 = vunpack.c.l.b16 %v1128
        %v1993 = vunpack.c.h.b16 %v1128
        %v1994 = vunpack.c.l.b16 %v1129
        %v1995 = vunpack.c.h.b16 %v1129
        %v1996 = vunpack.c.l.b16 %v1130
        %v1997 = vunpack.c.h.b16 %v1130
        %v1998 = vunpack.c.l.b16 %v1131
        %v1999 = vunpack.c.h.b16 %v1131
        %v2000 = vunpack.c.l.b16 %v1132
        %v2001 = vunpack.c.h.b16 %v1132
        %v2002 = vunpack.c.l.b16 %v1133
        %v2003 = vunpack.c.h.b16 %v1133
        %v2004 = vunpack.c.l.b16 %v1134
        %v2005 = vunpack.c.h.b16 %v1134
        %v2006 = vunpack.c.l.b16 %v1135
        %v2007 = vunpack.c.h.b16 %v1135
        %v2008 = vunpack.c.l.b16 %v1136
        %v2009 = vunpack.c.h.b16 %v1136
        %v2010 = vunpack.c.l.b16 %v1137
        %v2011 = vunpack.c.h.b16 %v1137
        %v2012 = vunpack.c.l.b16 %v1138
        %v2013 = vunpack.c.h.b16 %v1138
        %v2014 = vunpack.c.l.b16 %v1139
        %v2015 = vunpack.c.h.b16 %v1139
        %v2016 = vpack.c.b16 %v1442, %v1440
        %v2017 = vpack.c.b16 %v1443, %v1441
        %v2018 = vpack.c.b16 %v1446, %v1444
        %v2019 = vpack.c.b16 %v1447, %v1445
        %v2020 = vpack.c.b16 %v1450, %v1448
        %v2021 = vpack.c.b16 %v1451, %v1449
        %v2022 = vpack.c.b16 %v1454, %v1452
        %v2023 = vpack.c.b16 %v1455, %v1453
        %v2024 = vpack.c.b16 %v1458, %v1456
        %v2025 = vpack.c.b16 %v1459, %v1457
        %v2026 = vpack.c.b16 %v1462, %v1460
        %v2027 = vpack.c.b16 %v1463, %v1461
        %v2028 = vpack.c.b16 %v1466, %v1464
        %v2029 = vpack.c.b16 %v1467, %v1465
        %v2030 = vpack.c.b16 %v1470, %v1468
        %v2031 = vpack.c.b16 %v1471, %v1469
        %v2032 = vpack.c.b16 %v1474, %v1472
        %v2033 = vpack.c.b16 %v1475, %v1473
        %v2034 = vpack.c.b16 %v1478, %v1476
        %v2035 = vpack.c.b16 %v1479, %v1477
        %v2036 = vpack.c.b16 %v1482, %v1480
        %v2037 = vpack.c.b16 %v1483, %v1481
        %v2038 = vpack.c.b16 %v1486, %v1484
        %v2039 = vpack.c.b16 %v1487, %v1485
        %v2040 = vpack.c.b16 %v1490, %v1488
        %v2041 = vpack.c.b16 %v1491, %v1489
        %v2042 = vpack.c.b16 %v1494, %v1492
        %v2043 = vpack.c.b16 %v1495, %v1493
        %v2044 = vpack.c.b16 %v1498, %v1496
        %v2045 = vpack.c.b16 %v1499, %v1497
        %v2046 = vpack.c.b16 %v1502, %v1500
        %v2047 = vpack.c.b16 %v1503, %v1501
        %v2048 = vpack.c.b16 %v1506, %v1504
        %v2049 = vpack.c.b16 %v1507, %v1505
        %v2050 = vpack.c.b16 %v1510, %v1508
        %v2051 = vpack.c.b16 %v1511, %v1509
        %v2052 = vpack.c.b16 %v1514, %v1512
        %v2053 = vpack.c.b16 %v1515, %v1513
        %v2054 = vpack.c.b16 %v1518, %v1516
        %v2055 = vpack.c.b16 %v1519, %v1517
        %v2056 = vpack.c.b16 %v1522, %v1520
        %v2057 = vpack.c.b16 %v1523, %v1521
        %v2058 = vpack.c.b16 %v1526, %v1524
        %v2059 = vpack.c.b16 %v1527, %v1525
        %v2060 = vpack.c.b16 %v1530, %v1528
        %v2061 = vpack.c.b16 %v1531, %v1529
        %v2062 = vpack.c.b16 %v1534, %v1532
        %v2063 = vpack.c.b16 %v1535, %v1533
        %v2064 = vpack.c.b16 %v1538, %v1536
        %v2065 = vpack.c.b16 %v1539, %v1537
        %v2066 = vpack.c.b16 %v1542, %v1540
        %v2067 = vpack.c.b16 %v1543, %v1541
        %v2068 = vpack.c.b16 %v1546, %v1544
        %v2069 = vpack.c.b16 %v1547, %v1545
        %v2070 = vpack.c.b16 %v1550, %v1548
        %v2071 = vpack.c.b16 %v1551, %v1549
        %v2072 = vpack.c.b16 %v1554, %v1552
        %v2073 = vpack.c.b16 %v1555, %v1553
        %v2074 = vpack.c.b16 %v1558, %v1556
        %v2075 = vpack.c.b16 %v1559, %v1557
        %v2076 = vpack.c.b16 %v1562, %v1560
        %v2077 = vpack.c.b16 %v1563, %v1561
        %v2078 = vpack.c.b16 %v1566, %v1564
        %v2079 = vpack.c.b16 %v1567, %v1565
        %v2080 = vpack.c.b16 %v1570, %v1568
        %v2081 = vpack.c.b16 %v1571, %v1569
        %v2082 = vpack.c.b16 %v1574, %v1572
        %v2083 = vpack.c.b16 %v1575, %v1573
        %v2084 = vpack.c.b16 %v1578, %v1576
        %v2085 = vpack.c.b16 %v1579, %v1577
        %v2086 = vpack.c.b16 %v1582, %v1580
        %v2087 = vpack.c.b16 %v1583, %v1581
        %v2088 = vpack.c.b16 %v1586, %v1584
        %v2089 = vpack.c.b16 %v1587, %v1585
        %v2090 = vpack.c.b16 %v1590, %v1588
        %v2091 = vpack.c.b16 %v1591, %v1589
        %v2092 = vpack.c.b16 %v1594, %v1592
        %v2093 = vpack.c.b16 %v1595, %v1593
        %v2094 = vpack.c.b16 %v1598, %v1596
        %v2095 = vpack.c.b16 %v1599, %v1597
        %v2096 = vpack.c.b16 %v1602, %v1600
        %v2097 = vpack.c.b16 %v1603, %v1601
        %v2098 = vpack.c.b16 %v1606, %v1604
        %v2099 = vpack.c.b16 %v1607, %v1605
        %v2100 = vpack.c.b16 %v1610, %v1608
        %v2101 = vpack.c.b16 %v1611, %v1609
        %v2102 = vpack.c.b16 %v1614, %v1612
        %v2103 = vpack.c.b16 %v1615, %v1613
        %v2104 = vpack.c.b16 %v1618, %v1616
        %v2105 = vpack.c.b16 %v1619, %v1617
        %v2106 = vpack.c.b16 %v1622, %v1620
        %v2107 = vpack.c.b16 %v1623, %v1621
        %v2108 = vpack.c.b16 %v1626, %v1624
        %v2109 = vpack.c.b16 %v1627, %v1625
        %v2110 = vpack.c.b16 %v1630, %v1628
        %v2111 = vpack.c.b16 %v1631, %v1629
        %v2112 = vpack.c.b16 %v1634, %v1632
        %v2113 = vpack.c.b16 %v1635, %v1633
        %v2114 = vpack.c.b16 %v1638, %v1636
        %v2115 = vpack.c.b16 %v1639, %v1637
        %v2116 = vpack.c.b16 %v1642, %v1640
        %v2117 = vpack.c.b16 %v1643, %v1641
        %v2118 = vpack.c.b16 %v1646, %v1644
        %v2119 = vpack.c.b16 %v1647, %v1645
        %v2120 = vpack.c.b16 %v1650, %v1648
        %v2121 = vpack.c.b16 %v1651, %v1649
        %v2122 = vpack.c.b16 %v1654, %v1652
        %v2123 = vpack.c.b16 %v1655, %v1653
        %v2124 = vpack.c.b16 %v1658, %v1656
        %v2125 = vpack.c.b16 %v1659, %v1657
        %v2126 = vpack.c.b16 %v1662, %v1660
        %v2127 = vpack.c.b16 %v1663, %v1661
        %v2128 = vpack.c.b16 %v1666, %v1664
        %v2129 = vpack.c.b16 %v1667, %v1665
        %v2130 = vpack.c.b16 %v1670, %v1668
        %v2131 = vpack.c.b16 %v1671, %v1669
        %v2132 = vpack.c.b16 %v1674, %v1672
        %v2133 = vpack.c.b16 %v1675, %v1673
        %v2134 = vpack.c.b16 %v1678, %v1676
        %v2135 = vpack.c.b16 %v1679, %v1677
        %v2136 = vpack.c.b16 %v1682, %v1680
        %v2137 = vpack.c.b16 %v1683, %v1681
        %v2138 = vpack.c.b16 %v1686, %v1684
        %v2139 = vpack.c.b16 %v1687, %v1685
        %v2140 = vpack.c.b16 %v1690, %v1688
        %v2141 = vpack.c.b16 %v1691, %v1689
        %v2142 = vpack.c.b16 %v1694, %v1692
        %v2143 = vpack.c.b16 %v1695, %v1693
        %v2144 = vpack.c.b16 %v1698, %v1696
        %v2145 = vpack.c.b16 %v1699, %v1697
        %v2146 = vpack.c.b16 %v1702, %v1700
        %v2147 = vpack.c.b16 %v1703, %v1701
        %v2148 = vpack.c.b16 %v1706, %v1704
        %v2149 = vpack.c.b16 %v1707, %v1705
        %v2150 = vpack.c.b16 %v1710, %v1708
        %v2151 = vpack.c.b16 %v1711, %v1709
        %v2152 = vpack.c.b16 %v1714, %v1712
        %v2153 = vpack.c.b16 %v1715, %v1713
        %v2154 = vpack.c.b16 %v1718, %v1716
        %v2155 = vpack.c.b16 %v1719, %v1717
        %v2156 = vpack.c.b16 %v1722, %v1720
        %v2157 = vpack.c.b16 %v1723, %v1721
        %v2158 = vpack.c.b16 %v1726, %v1724
        %v2159 = vpack.c.b16 %v1727, %v1725
        %v2160 = vpack.c.b16 %v1730, %v1728
        %v2161 = vpack.c.b16 %v1731, %v1729
        %v2162 = vpack.c.b16 %v1734, %v1732
        %v2163 = vpack.c.b16 %v1735, %v1733
        %v2164 = vpack.c.b16 %v1738, %v1736
        %v2165 = vpack.c.b16 %v1739, %v1737
        %v2166 = vpack.c.b16 %v1742, %v1740
        %v2167 = vpack.c.b16 %v1743, %v1741
        %v2168 = vpack.c.b16 %v1746, %v1744
        %v2169 = vpack.c.b16 %v1747, %v1745
        %v2170 = vpack.c.b16 %v1750, %v1748
        %v2171 = vpack.c.b16 %v1751, %v1749
        %v2172 = vpack.c.b16 %v1754, %v1752
        %v2173 = vpack.c.b16 %v1755, %v1753
        %v2174 = vpack.c.b16 %v1758, %v1756
        %v2175 = vpack.c.b16 %v1759, %v1757
        %v2176 = vpack.c.b16 %v1762, %v1760
        %v2177 = vpack.c.b16 %v1763, %v1761
        %v2178 = vpack.c.b16 %v1766, %v1764
        %v2179 = vpack.c.b16 %v1767, %v1765
        %v2180 = vpack.c.b16 %v1770, %v1768
        %v2181 = vpack.c.b16 %v1771, %v1769
        %v2182 = vpack.c.b16 %v1774, %v1772
        %v2183 = vpack.c.b16 %v1775, %v1773
        %v2184 = vpack.c.b16 %v1778, %v1776
        %v2185 = vpack.c.b16 %v1779, %v1777
        %v2186 = vpack.c.b16 %v1782, %v1780
        %v2187 = vpack.c.b16 %v1783, %v1781
        %v2188 = vpack.c.b16 %v1786, %v1784
        %v2189 = vpack.c.b16 %v1787, %v1785
        %v2190 = vpack.c.b16 %v1790, %v1788
        %v2191 = vpack.c.b16 %v1791, %v1789
        %v2192 = vpack.c.b16 %v1794, %v1792
        %v2193 = vpack.c.b16 %v1795, %v1793
        %v2194 = vpack.c.b16 %v1798, %v1796
        %v2195 = vpack.c.b16 %v1799, %v1797
        %v2196 = vpack.c.b16 %v1802, %v1800
        %v2197 = vpack.c.b16 %v1803, %v1801
        %v2198 = vpack.c.b16 %v1806, %v1804
        %v2199 = vpack.c.b16 %v1807, %v1805
        %v2200 = vpack.c.b16 %v1810, %v1808
        %v2201 = vpack.c.b16 %v1811, %v1809
        %v2202 = vpack.c.b16 %v1814, %v1812
        %v2203 = vpack.c.b16 %v1815, %v1813
        %v2204 = vpack.c.b16 %v1818, %v1816
        %v2205 = vpack.c.b16 %v1819, %v1817
        %v2206 = vpack.c.b16 %v1822, %v1820
        %v2207 = vpack.c.b16 %v1823, %v1821
        %v2208 = vpack.c.b16 %v1826, %v1824
        %v2209 = vpack.c.b16 %v1827, %v1825
        %v2210 = vpack.c.b16 %v1830, %v1828
        %v2211 = vpack.c.b16 %v1831, %v1829
        %v2212 = vpack.c.b16 %v1834, %v1832
        %v2213 = vpack.c.b16 %v1835, %v1833
        %v2214 = vpack.c.b16 %v1838, %v1836
        %v2215 = vpack.c.b16 %v1839, %v1837
        %v2216 = vpack.c.b16 %v1842, %v1840
        %v2217 = vpack.c.b16 %v1843, %v1841
        %v2218 = vpack.c.b16 %v1846, %v1844
        %v2219 = vpack.c.b16 %v1847, %v1845
        %v2220 = vpack.c.b16 %v1850, %v1848
        %v2221 = vpack.c.b16 %v1851, %v1849
        %v2222 = vpack.c.b16 %v1854, %v1852
        %v2223 = vpack.c.b16 %v1855, %v1853
        %v2224 = vpack.c.b16 %v1858, %v1856
        %v2225 = vpack.c.b16 %v1859, %v1857
        %v2226 = vpack.c.b16 %v1862, %v1860
        %v2227 = vpack.c.b16 %v1863, %v1861
        %v2228 = vpack.c.b16 %v1866, %v1864
        %v2229 = vpack.c.b16 %v1867, %v1865
        %v2230 = vpack.c.b16 %v1870, %v1868
        %v2231 = vpack.c.b16 %v1871, %v1869
        %v2232 = vpack.c.b16 %v1874, %v1872
        %v2233 = vpack.c.b16 %v1875, %v1873
        %v2234 = vpack.c.b16 %v1878, %v1876
        %v2235 = vpack.c.b16 %v1879, %v1877
        %v2236 = vpack.c.b16 %v1882, %v1880
        %v2237 = vpack.c.b16 %v1883, %v1881
        %v2238 = vpack.c.b16 %v1886, %v1884
        %v2239 = vpack.c.b16 %v1887, %v1885
        %v2240 = vpack.c.b16 %v1890, %v1888
        %v2241 = vpack.c.b16 %v1891, %v1889
        %v2242 = vpack.c.b16 %v1894, %v1892
        %v2243 = vpack.c.b16 %v1895, %v1893
        %v2244 = vpack.c.b16 %v1898, %v1896
        %v2245 = vpack.c.b16 %v1899, %v1897
        %v2246 = vpack.c.b16 %v1902, %v1900
        %v2247 = vpack.c.b16 %v1903, %v1901
        %v2248 = vpack.c.b16 %v1906, %v1904
        %v2249 = vpack.c.b16 %v1907, %v1905
        %v2250 = vpack.c.b16 %v1910, %v1908
        %v2251 = vpack.c.b16 %v1911, %v1909
        %v2252 = vpack.c.b16 %v1914, %v1912
        %v2253 = vpack.c.b16 %v1915, %v1913
        %v2254 = vpack.c.b16 %v1918, %v1916
        %v2255 = vpack.c.b16 %v1919, %v1917
        %v2256 = vpack.c.b16 %v1922, %v1920
        %v2257 = vpack.c.b16 %v1923, %v1921
        %v2258 = vpack.c.b16 %v1926, %v1924
        %v2259 = vpack.c.b16 %v1927, %v1925
        %v2260 = vpack.c.b16 %v1930, %v1928
        %v2261 = vpack.c.b16 %v1931, %v1929
        %v2262 = vpack.c.b16 %v1934, %v1932
        %v2263 = vpack.c.b16 %v1935, %v1933
        %v2264 = vpack.c.b16 %v1938, %v1936
        %v2265 = vpack.c.b16 %v1939, %v1937
        %v2266 = vpack.c.b16 %v1942, %v1940
        %v2267 = vpack.c.b16 %v1943, %v1941
        %v2268 = vpack.c.b16 %v1946, %v1944
        %v2269 = vpack.c.b16 %v1947, %v1945
        %v2270 = vpack.c.b16 %v1950, %v1948
        %v2271 = vpack.c.b16 %v1951, %v1949
        %v2272 = vpack.c.b16 %v1954, %v1952
        %v2273 = vpack.c.b16 %v1955, %v1953
        %v2274 = vpack.c.b16 %v1958, %v1956
        %v2275 = vpack.c.b16 %v1959, %v1957
        %v2276 = vpack.c.b16 %v1962, %v1960
        %v2277 = vpack.c.b16 %v1963, %v1961
        %v2278 = vpack.c.b16 %v1966, %v1964
        %v2279 = vpack.c.b16 %v1967, %v1965
        %v2280 = vpack.c.b16 %v1970, %v1968
        %v2281 = vpack.c.b16 %v1971, %v1969
        %v2282 = vpack.c.b16 %v1974, %v1972
        %v2283 = vpack.c.b16 %v1975, %v1973
        %v2284 = vpack.c.b16 %v1978, %v1976
        %v2285 = vpack.c.b16 %v1979, %v1977
        %v2286 = vpack.c.b16 %v1982, %v1980
        %v2287 = vpack.c.b16 %v1983, %v1981
        %v2288 = vpack.c.b16 %v1986, %v1984
        %v2289 = vpack.c.b16 %v1987, %v1985
        %v2290 = vpack.c.b16 %v1990, %v1988
        %v2291 = vpack.c.b16 %v1991, %v1989
        %v2292 = vpack.c.b16 %v1994, %v1992
        %v2293 = vpack.c.b16 %v1995, %v1993
        %v2294 = vpack.c.b16 %v1998, %v1996
        %v2295 = vpack.c.b16 %v1999, %v1997
        %v2296 = vpack.c.b16 %v2002, %v2000
        %v2297 = vpack.c.b16 %v2003, %v2001
        %v2298 = vpack.c.b16 %v2006, %v2004
        %v2299 = vpack.c.b16 %v2007, %v2005
        %v2300 = vpack.c.b16 %v2010, %v2008
        %v2301 = vpack.c.b16 %v2011, %v2009
        %v2302 = vpack.c.b16 %v2014, %v2012
        %v2303 = vpack.c.b16 %v2015, %v2013
        %2592 = vmatprep.subr.bf16.mxu0 %v2017
        %2593 = vmatpush1.bf16.msra.mxu0 %v2016
        %2594 = vmatprep.subr.bf16.mxu0 %v2019
        %2595 = vmatpush1.bf16.msra.mxu0 %v2018
        %2596 = vmatprep.subr.bf16.mxu0 %v2021
        %2597 = vmatpush1.bf16.msra.mxu0 %v2020
        %2598 = vmatprep.subr.bf16.mxu0 %v2023
        %2599 = vmatpush1.bf16.msra.mxu0 %v2022
        %2600 = vmatprep.subr.bf16.mxu0 %v2025
        %2601 = vmatpush1.bf16.msra.mxu0 %v2024
        %2602 = vmatprep.subr.bf16.mxu0 %v2027
        %2603 = vmatpush1.bf16.msra.mxu0 %v2026
        %2604 = vmatprep.subr.bf16.mxu0 %v2029
        %2605 = vmatpush1.bf16.msra.mxu0 %v2028
        %2606 = vmatprep.subr.bf16.mxu0 %v2031
        %2607 = vmatpush1.bf16.msra.mxu0 %v2030
        %2608 = vmatprep.subr.bf16.mxu0 %v2033
        %2609 = vmatpush1.bf16.msra.mxu0 %v2032
        %2610 = vmatprep.subr.bf16.mxu0 %v2035
        %2611 = vmatpush1.bf16.msra.mxu0 %v2034
        %2612 = vmatprep.subr.bf16.mxu0 %v2037
        %2613 = vmatpush1.bf16.msra.mxu0 %v2036
        %2614 = vmatprep.subr.bf16.mxu0 %v2039
        %2615 = vmatpush1.bf16.msra.mxu0 %v2038
        %2616 = vmatprep.subr.bf16.mxu0 %v2041
        %2617 = vmatpush1.bf16.msra.mxu0 %v2040
        %2618 = vmatprep.subr.bf16.mxu0 %v2043
        %2619 = vmatpush1.bf16.msra.mxu0 %v2042
        %2620 = vmatprep.subr.bf16.mxu0 %v2045
        %2621 = vmatpush1.bf16.msra.mxu0 %v2044
        %2622 = vmatprep.subr.bf16.mxu0 %v2047
        %2623 = vmatpush1.bf16.msra.mxu0 %v2046
        %2624 = vmatprep.mubr.bf16.mxu0 %v409
        %2625 = vmatmul.mubr.bf16.gmra.mrb[0].mxu0 %v408
        %v2626 = vpop.f32.mrb[0].mxu0
        %v2627 = vadd.f32 %v1145, %v2626
        %v2628 = vpop.f32.mrb[0].mxu0
        %v2629 = vadd.f32 %v1149, %v2628
        %v2630 = vpop.f32.mrb[0].mxu0
        %v2631 = vadd.f32 %v1145, %v2630
        %v2632 = vpop.f32.mrb[0].mxu0
        %v2633 = vadd.f32 %v1149, %v2632
        %2634 = vmatprep.mubr.bf16.mxu0 %v411
        %2635 = vmatmul.mubr.bf16.gmra.mrb[0].mxu0 %v410
        %v2636 = vpop.f32.mrb[0].mxu0
        %v2637 = vadd.f32 %v1145, %v2636
        %v2638 = vpop.f32.mrb[0].mxu0
        %v2639 = vadd.f32 %v1149, %v2638
        %v2640 = vpop.f32.mrb[0].mxu0
        %v2641 = vadd.f32 %v1145, %v2640
        %v2642 = vpop.f32.mrb[0].mxu0
        %v2643 = vadd.f32 %v1149, %v2642
        %2644 = vmatprep.mubr.bf16.mxu0 %v413
        %2645 = vmatmul.mubr.bf16.gmra.mrb[0].mxu0 %v412
        %v2646 = vpop.f32.mrb[0].mxu0
        %v2647 = vadd.f32 %v1145, %v2646
        %v2648 = vpop.f32.mrb[0].mxu0
        %v2649 = vadd.f32 %v1149, %v2648
        %v2650 = vpop.f32.mrb[0].mxu0
        %v2651 = vadd.f32 %v1145, %v2650
        %v2652 = vpop.f32.mrb[0].mxu0
        %v2653 = vadd.f32 %v1149, %v2652
        %2654 = vmatprep.mubr.bf16.mxu0 %v415
        %2655 = vmatmul.mubr.bf16.gmra.mrb[0].mxu0 %v414
        %v2656 = vpop.f32.mrb[0].mxu0
        %v2657 = vadd.f32 %v1145, %v2656
        %v2658 = vpop.f32.mrb[0].mxu0
        %v2659 = vadd.f32 %v1149, %v2658
        %v2660 = vpop.f32.mrb[0].mxu0
        %v2661 = vadd.f32 %v1145, %v2660
        %v2662 = vpop.f32.mrb[0].mxu0
        %v2663 = vadd.f32 %v1149, %v2662
        %2664 = vmatprep.mubr.bf16.mxu0 %v417
        %2665 = vmatmul.mubr.bf16.gmra.mrb[0].mxu0 %v416
        %v2666 = vpop.f32.mrb[0].mxu0
        %v2667 = vadd.f32 %v1145, %v2666
        %v2668 = vpop.f32.mrb[0].mxu0
        %v2669 = vadd.f32 %v1149, %v2668
        %v2670 = vpop.f32.mrb[0].mxu0
        %v2671 = vadd.f32 %v1145, %v2670
        %v2672 = vpop.f32.mrb[0].mxu0
        %v2673 = vadd.f32 %v1149, %v2672
        %2674 = vmatprep.mubr.bf16.mxu0 %v419
        %2675 = vmatmul.mubr.bf16.gmra.mrb[0].mxu0 %v418
        %v2676 = vpop.f32.mrb[0].mxu0
        %v2677 = vadd.f32 %v1145, %v2676
        %v2678 = vpop.f32.mrb[0].mxu0
        %v2679 = vadd.f32 %v1149, %v2678
        %v2680 = vpop.f32.mrb[0].mxu0
        %v2681 = vadd.f32 %v1145, %v2680
        %v2682 = vpop.f32.mrb[0].mxu0
        %v2683 = vadd.f32 %v1149, %v2682
        %2684 = vmatprep.mubr.bf16.mxu0 %v421
        %2685 = vmatmul.mubr.bf16.gmra.mrb[0].mxu0 %v420
        %v2686 = vpop.f32.mrb[0].mxu0
        %v2687 = vadd.f32 %v1145, %v2686
        %v2688 = vpop.f32.mrb[0].mxu0
        %v2689 = vadd.f32 %v1149, %v2688
        %v2690 = vpop.f32.mrb[0].mxu0
        %v2691 = vadd.f32 %v1145, %v2690
        %v2692 = vpop.f32.mrb[0].mxu0
        %v2693 = vadd.f32 %v1149, %v2692
        %2694 = vmatprep.mubr.bf16.mxu0 %v423
        %2695 = vmatmul.mubr.bf16.gmra.mrb[0].mxu0 %v422
        %v2696 = vpop.f32.mrb[0].mxu0
        %v2697 = vadd.f32 %v1145, %v2696
        %v2698 = vpop.f32.mrb[0].mxu0
        %v2699 = vadd.f32 %v1149, %v2698
        %v2700 = vpop.f32.mrb[0].mxu0
        %v2701 = vadd.f32 %v1145, %v2700
        %v2702 = vpop.f32.mrb[0].mxu0
        %v2703 = vadd.f32 %v1149, %v2702
        %2704 = vdwg.mxu0
        %2705 = vmatprep.subr.bf16.mxu0 %v2049
        %2706 = vmatpush1.bf16.msra.mxu0 %v2048
        %2707 = vmatprep.subr.bf16.mxu0 %v2051
        %2708 = vmatpush1.bf16.msra.mxu0 %v2050
        %2709 = vmatprep.subr.bf16.mxu0 %v2053
        %2710 = vmatpush1.bf16.msra.mxu0 %v2052
        %2711 = vmatprep.subr.bf16.mxu0 %v2055
        %2712 = vmatpush1.bf16.msra.mxu0 %v2054
        %2713 = vmatprep.subr.bf16.mxu0 %v2057
        %2714 = vmatpush1.bf16.msra.mxu0 %v2056
        %2715 = vmatprep.subr.bf16.mxu0 %v2059
        %2716 = vmatpush1.bf16.msra.mxu0 %v2058
        %2717 = vmatprep.subr.bf16.mxu0 %v2061
        %2718 = vmatpush1.bf16.msra.mxu0 %v2060
        %2719 = vmatprep.subr.bf16.mxu0 %v2063
        %2720 = vmatpush1.bf16.msra.mxu0 %v2062
        %2721 = vmatprep.subr.bf16.mxu0 %v2065
        %2722 = vmatpush1.bf16.msra.mxu0 %v2064
        %2723 = vmatprep.subr.bf16.mxu0 %v2067
        %2724 = vmatpush1.bf16.msra.mxu0 %v2066
        %2725 = vmatprep.subr.bf16.mxu0 %v2069
        %2726 = vmatpush1.bf16.msra.mxu0 %v2068
        %2727 = vmatprep.subr.bf16.mxu0 %v2071
        %2728 = vmatpush1.bf16.msra.mxu0 %v2070
        %2729 = vmatprep.subr.bf16.mxu0 %v2073
        %2730 = vmatpush1.bf16.msra.mxu0 %v2072
        %2731 = vmatprep.subr.bf16.mxu0 %v2075
        %2732 = vmatpush1.bf16.msra.mxu0 %v2074
        %2733 = vmatprep.subr.bf16.mxu0 %v2077
        %2734 = vmatpush1.bf16.msra.mxu0 %v2076
        %2735 = vmatprep.subr.bf16.mxu0 %v2079
        %2736 = vmatpush1.bf16.msra.mxu0 %v2078
        %2737 = vmatprep.mubr.bf16.mxu0 %v504
        %2738 = vmatmul.mubr.bf16.gmra.mrb[0].mxu0 %v492
        %v2739 = vpop.f32.mrb[0].mxu0
        %v2740 = vadd.f32 %v2627, %v2739
        %v2741 = vpop.f32.mrb[0].mxu0
        %v2742 = vadd.f32 %v2629, %v2741
        %v2743 = vpop.f32.mrb[0].mxu0
        %v2744 = vadd.f32 %v2631, %v2743
        %v2745 = vpop.f32.mrb[0].mxu0
        %v2746 = vadd.f32 %v2633, %v2745
        %2747 = vmatprep.mubr.bf16.mxu0 %v528
        %2748 = vmatmul.mubr.bf16.gmra.mrb[0].mxu0 %v516
        %v2749 = vpop.f32.mrb[0].mxu0
        %v2750 = vadd.f32 %v2637, %v2749
        %v2751 = vpop.f32.mrb[0].mxu0
        %v2752 = vadd.f32 %v2639, %v2751
        %v2753 = vpop.f32.mrb[0].mxu0
        %v2754 = vadd.f32 %v2641, %v2753
        %v2755 = vpop.f32.mrb[0].mxu0
        %v2756 = vadd.f32 %v2643, %v2755
        %2757 = vmatprep.mubr.bf16.mxu0 %v552
        %2758 = vmatmul.mubr.bf16.gmra.mrb[0].mxu0 %v540
        %v2759 = vpop.f32.mrb[0].mxu0
        %v2760 = vadd.f32 %v2647, %v2759
        %v2761 = vpop.f32.mrb[0].mxu0
        %v2762 = vadd.f32 %v2649, %v2761
        %v2763 = vpop.f32.mrb[0].mxu0
        %v2764 = vadd.f32 %v2651, %v2763
        %v2765 = vpop.f32.mrb[0].mxu0
        %v2766 = vadd.f32 %v2653, %v2765
        %2767 = vmatprep.mubr.bf16.mxu0 %v576
        %2768 = vmatmul.mubr.bf16.gmra.mrb[0].mxu0 %v564
        %v2769 = vpop.f32.mrb[0].mxu0
        %v2770 = vadd.f32 %v2657, %v2769
        %v2771 = vpop.f32.mrb[0].mxu0
        %v2772 = vadd.f32 %v2659, %v2771
        %v2773 = vpop.f32.mrb[0].mxu0
        %v2774 = vadd.f32 %v2661, %v2773
        %v2775 = vpop.f32.mrb[0].mxu0
        %v2776 = vadd.f32 %v2663, %v2775
        %2777 = vmatprep.mubr.bf16.mxu0 %v600
        %2778 = vmatmul.mubr.bf16.gmra.mrb[0].mxu0 %v588
        %v2779 = vpop.f32.mrb[0].mxu0
        %v2780 = vadd.f32 %v2667, %v2779
        %v2781 = vpop.f32.mrb[0].mxu0
        %v2782 = vadd.f32 %v2669, %v2781
        %v2783 = vpop.f32.mrb[0].mxu0
        %v2784 = vadd.f32 %v2671, %v2783
        %v2785 = vpop.f32.mrb[0].mxu0
        %v2786 = vadd.f32 %v2673, %v2785
        %2787 = vmatprep.mubr.bf16.mxu0 %v624
        %2788 = vmatmul.mubr.bf16.gmra.mrb[0].mxu0 %v612
        %v2789 = vpop.f32.mrb[0].mxu0
        %v2790 = vadd.f32 %v2677, %v2789
        %v2791 = vpop.f32.mrb[0].mxu0
        %v2792 = vadd.f32 %v2679, %v2791
        %v2793 = vpop.f32.mrb[0].mxu0
        %v2794 = vadd.f32 %v2681, %v2793
        %v2795 = vpop.f32.mrb[0].mxu0
        %v2796 = vadd.f32 %v2683, %v2795
        %2797 = vmatprep.mubr.bf16.mxu0 %v648
        %2798 = vmatmul.mubr.bf16.gmra.mrb[0].mxu0 %v636
        %v2799 = vpop.f32.mrb[0].mxu0
        %v2800 = vadd.f32 %v2687, %v2799
        %v2801 = vpop.f32.mrb[0].mxu0
        %v2802 = vadd.f32 %v2689, %v2801
        %v2803 = vpop.f32.mrb[0].mxu0
        %v2804 = vadd.f32 %v2691, %v2803
        %v2805 = vpop.f32.mrb[0].mxu0
        %v2806 = vadd.f32 %v2693, %v2805
        %2807 = vmatprep.mubr.bf16.mxu0 %v672
        %2808 = vmatmul.mubr.bf16.gmra.mrb[0].mxu0 %v660
        %v2809 = vpop.f32.mrb[0].mxu0
        %v2810 = vadd.f32 %v2697, %v2809
        %v2811 = vpop.f32.mrb[0].mxu0
        %v2812 = vadd.f32 %v2699, %v2811
        %v2813 = vpop.f32.mrb[0].mxu0
        %v2814 = vadd.f32 %v2701, %v2813
        %v2815 = vpop.f32.mrb[0].mxu0
        %v2816 = vadd.f32 %v2703, %v2815
        %2817 = vdwg.mxu0
        %2818 = vmatprep.subr.bf16.mxu0 %v2081
        %2819 = vmatpush1.bf16.msra.mxu0 %v2080
        %2820 = vmatprep.subr.bf16.mxu0 %v2083
        %2821 = vmatpush1.bf16.msra.mxu0 %v2082
        %2822 = vmatprep.subr.bf16.mxu0 %v2085
        %2823 = vmatpush1.bf16.msra.mxu0 %v2084
        %2824 = vmatprep.subr.bf16.mxu0 %v2087
        %2825 = vmatpush1.bf16.msra.mxu0 %v2086
        %2826 = vmatprep.subr.bf16.mxu0 %v2089
        %2827 = vmatpush1.bf16.msra.mxu0 %v2088
        %2828 = vmatprep.subr.bf16.mxu0 %v2091
        %2829 = vmatpush1.bf16.msra.mxu0 %v2090
        %2830 = vmatprep.subr.bf16.mxu0 %v2093
        %2831 = vmatpush1.bf16.msra.mxu0 %v2092
        %2832 = vmatprep.subr.bf16.mxu0 %v2095
        %2833 = vmatpush1.bf16.msra.mxu0 %v2094
        %2834 = vmatprep.subr.bf16.mxu0 %v2097
        %2835 = vmatpush1.bf16.msra.mxu0 %v2096
        %2836 = vmatprep.subr.bf16.mxu0 %v2099
        %2837 = vmatpush1.bf16.msra.mxu0 %v2098
        %2838 = vmatprep.subr.bf16.mxu0 %v2101
        %2839 = vmatpush1.bf16.msra.mxu0 %v2100
        %2840 = vmatprep.subr.bf16.mxu0 %v2103
        %2841 = vmatpush1.bf16.msra.mxu0 %v2102
        %2842 = vmatprep.subr.bf16.mxu0 %v2105
        %2843 = vmatpush1.bf16.msra.mxu0 %v2104
        %2844 = vmatprep.subr.bf16.mxu0 %v2107
        %2845 = vmatpush1.bf16.msra.mxu0 %v2106
        %2846 = vmatprep.subr.bf16.mxu0 %v2109
        %2847 = vmatpush1.bf16.msra.mxu0 %v2108
        %2848 = vmatprep.subr.bf16.mxu0 %v2111
        %2849 = vmatpush1.bf16.msra.mxu0 %v2110
        %2850 = vmatprep.mubr.bf16.mxu0 %v695
        %2851 = vmatmul.mubr.bf16.gmra.mrb[0].mxu0 %v692
        %v2852 = vpop.f32.mrb[0].mxu0
        %v2853 = vadd.f32 %v2740, %v2852
        %v2854 = vpop.f32.mrb[0].mxu0
        %v2855 = vadd.f32 %v2742, %v2854
        %v2856 = vpop.f32.mrb[0].mxu0
        %v2857 = vadd.f32 %v2744, %v2856
        %v2858 = vpop.f32.mrb[0].mxu0
        %v2859 = vadd.f32 %v2746, %v2858
        %2860 = vmatprep.mubr.bf16.mxu0 %v701
        %2861 = vmatmul.mubr.bf16.gmra.mrb[0].mxu0 %v698
        %v2862 = vpop.f32.mrb[0].mxu0
        %v2863 = vadd.f32 %v2750, %v2862
        %v2864 = vpop.f32.mrb[0].mxu0
        %v2865 = vadd.f32 %v2752, %v2864
        %v2866 = vpop.f32.mrb[0].mxu0
        %v2867 = vadd.f32 %v2754, %v2866
        %v2868 = vpop.f32.mrb[0].mxu0
        %v2869 = vadd.f32 %v2756, %v2868
        %2870 = vmatprep.mubr.bf16.mxu0 %v707
        %2871 = vmatmul.mubr.bf16.gmra.mrb[0].mxu0 %v704
        %v2872 = vpop.f32.mrb[0].mxu0
        %v2873 = vadd.f32 %v2760, %v2872
        %v2874 = vpop.f32.mrb[0].mxu0
        %v2875 = vadd.f32 %v2762, %v2874
        %v2876 = vpop.f32.mrb[0].mxu0
        %v2877 = vadd.f32 %v2764, %v2876
        %v2878 = vpop.f32.mrb[0].mxu0
        %v2879 = vadd.f32 %v2766, %v2878
        %2880 = vmatprep.mubr.bf16.mxu0 %v713
        %2881 = vmatmul.mubr.bf16.gmra.mrb[0].mxu0 %v710
        %v2882 = vpop.f32.mrb[0].mxu0
        %v2883 = vadd.f32 %v2770, %v2882
        %v2884 = vpop.f32.mrb[0].mxu0
        %v2885 = vadd.f32 %v2772, %v2884
        %v2886 = vpop.f32.mrb[0].mxu0
        %v2887 = vadd.f32 %v2774, %v2886
        %v2888 = vpop.f32.mrb[0].mxu0
        %v2889 = vadd.f32 %v2776, %v2888
        %2890 = vmatprep.mubr.bf16.mxu0 %v719
        %2891 = vmatmul.mubr.bf16.gmra.mrb[0].mxu0 %v716
        %v2892 = vpop.f32.mrb[0].mxu0
        %v2893 = vadd.f32 %v2780, %v2892
        %v2894 = vpop.f32.mrb[0].mxu0
        %v2895 = vadd.f32 %v2782, %v2894
        %v2896 = vpop.f32.mrb[0].mxu0
        %v2897 = vadd.f32 %v2784, %v2896
        %v2898 = vpop.f32.mrb[0].mxu0
        %v2899 = vadd.f32 %v2786, %v2898
        %2900 = vmatprep.mubr.bf16.mxu0 %v725
        %2901 = vmatmul.mubr.bf16.gmra.mrb[0].mxu0 %v722
        %v2902 = vpop.f32.mrb[0].mxu0
        %v2903 = vadd.f32 %v2790, %v2902
        %v2904 = vpop.f32.mrb[0].mxu0
        %v2905 = vadd.f32 %v2792, %v2904
        %v2906 = vpop.f32.mrb[0].mxu0
        %v2907 = vadd.f32 %v2794, %v2906
        %v2908 = vpop.f32.mrb[0].mxu0
        %v2909 = vadd.f32 %v2796, %v2908
        %2910 = vmatprep.mubr.bf16.mxu0 %v731
        %2911 = vmatmul.mubr.bf16.gmra.mrb[0].mxu0 %v728
        %v2912 = vpop.f32.mrb[0].mxu0
        %v2913 = vadd.f32 %v2800, %v2912
        %v2914 = vpop.f32.mrb[0].mxu0
        %v2915 = vadd.f32 %v2802, %v2914
        %v2916 = vpop.f32.mrb[0].mxu0
        %v2917 = vadd.f32 %v2804, %v2916
        %v2918 = vpop.f32.mrb[0].mxu0
        %v2919 = vadd.f32 %v2806, %v2918
        %2920 = vmatprep.mubr.bf16.mxu0 %v737
        %2921 = vmatmul.mubr.bf16.gmra.mrb[0].mxu0 %v734
        %v2922 = vpop.f32.mrb[0].mxu0
        %v2923 = vadd.f32 %v2810, %v2922
        %v2924 = vpop.f32.mrb[0].mxu0
        %v2925 = vadd.f32 %v2812, %v2924
        %v2926 = vpop.f32.mrb[0].mxu0
        %v2927 = vadd.f32 %v2814, %v2926
        %v2928 = vpop.f32.mrb[0].mxu0
        %v2929 = vadd.f32 %v2816, %v2928
        %2930 = vdwg.mxu0
        %2931 = vmatprep.subr.bf16.mxu0 %v2113
        %2932 = vmatpush1.bf16.msra.mxu0 %v2112
        %2933 = vmatprep.subr.bf16.mxu0 %v2115
        %2934 = vmatpush1.bf16.msra.mxu0 %v2114
        %2935 = vmatprep.subr.bf16.mxu0 %v2117
        %2936 = vmatpush1.bf16.msra.mxu0 %v2116
        %2937 = vmatprep.subr.bf16.mxu0 %v2119
        %2938 = vmatpush1.bf16.msra.mxu0 %v2118
        %2939 = vmatprep.subr.bf16.mxu0 %v2121
        %2940 = vmatpush1.bf16.msra.mxu0 %v2120
        %2941 = vmatprep.subr.bf16.mxu0 %v2123
        %2942 = vmatpush1.bf16.msra.mxu0 %v2122
        %2943 = vmatprep.subr.bf16.mxu0 %v2125
        %2944 = vmatpush1.bf16.msra.mxu0 %v2124
        %2945 = vmatprep.subr.bf16.mxu0 %v2127
        %2946 = vmatpush1.bf16.msra.mxu0 %v2126
        %2947 = vmatprep.subr.bf16.mxu0 %v2129
        %2948 = vmatpush1.bf16.msra.mxu0 %v2128
        %2949 = vmatprep.subr.bf16.mxu0 %v2131
        %2950 = vmatpush1.bf16.msra.mxu0 %v2130
        %2951 = vmatprep.subr.bf16.mxu0 %v2133
        %2952 = vmatpush1.bf16.msra.mxu0 %v2132
        %2953 = vmatprep.subr.bf16.mxu0 %v2135
        %2954 = vmatpush1.bf16.msra.mxu0 %v2134
        %2955 = vmatprep.subr.bf16.mxu0 %v2137
        %2956 = vmatpush1.bf16.msra.mxu0 %v2136
        %2957 = vmatprep.subr.bf16.mxu0 %v2139
        %2958 = vmatpush1.bf16.msra.mxu0 %v2138
        %2959 = vmatprep.subr.bf16.mxu0 %v2141
        %2960 = vmatpush1.bf16.msra.mxu0 %v2140
        %2961 = vmatprep.subr.bf16.mxu0 %v2143
        %2962 = vmatpush1.bf16.msra.mxu0 %v2142
        %2963 = vmatprep.mubr.bf16.mxu0 %v411
        %2964 = vmatmul.mubr.bf16.gmra.mrb[0].mxu0 %v410
        %v2965 = vpop.f32.mrb[0].mxu0
        %v2966 = vadd.f32 %v2853, %v2965
        %v2967 = vpop.f32.mrb[0].mxu0
        %v2968 = vadd.f32 %v2855, %v2967
        %v2969 = vpop.f32.mrb[0].mxu0
        %v2970 = vadd.f32 %v2857, %v2969
        %v2971 = vpop.f32.mrb[0].mxu0
        %v2972 = vadd.f32 %v2859, %v2971
        %2973 = vmatprep.mubr.bf16.mxu0 %v413
        %2974 = vmatmul.mubr.bf16.gmra.mrb[0].mxu0 %v412
        %v2975 = vpop.f32.mrb[0].mxu0
        %v2976 = vadd.f32 %v2863, %v2975
        %v2977 = vpop.f32.mrb[0].mxu0
        %v2978 = vadd.f32 %v2865, %v2977
        %v2979 = vpop.f32.mrb[0].mxu0
        %v2980 = vadd.f32 %v2867, %v2979
        %v2981 = vpop.f32.mrb[0].mxu0
        %v2982 = vadd.f32 %v2869, %v2981
        %2983 = vmatprep.mubr.bf16.mxu0 %v415
        %2984 = vmatmul.mubr.bf16.gmra.mrb[0].mxu0 %v414
        %v2985 = vpop.f32.mrb[0].mxu0
        %v2986 = vadd.f32 %v2873, %v2985
        %v2987 = vpop.f32.mrb[0].mxu0
        %v2988 = vadd.f32 %v2875, %v2987
        %v2989 = vpop.f32.mrb[0].mxu0
        %v2990 = vadd.f32 %v2877, %v2989
        %v2991 = vpop.f32.mrb[0].mxu0
        %v2992 = vadd.f32 %v2879, %v2991
        %2993 = vmatprep.mubr.bf16.mxu0 %v417
        %2994 = vmatmul.mubr.bf16.gmra.mrb[0].mxu0 %v416
        %v2995 = vpop.f32.mrb[0].mxu0
        %v2996 = vadd.f32 %v2883, %v2995
        %v2997 = vpop.f32.mrb[0].mxu0
        %v2998 = vadd.f32 %v2885, %v2997
        %v2999 = vpop.f32.mrb[0].mxu0
        %v3000 = vadd.f32 %v2887, %v2999
        %v3001 = vpop.f32.mrb[0].mxu0
        %v3002 = vadd.f32 %v2889, %v3001
        %3003 = vmatprep.mubr.bf16.mxu0 %v419
        %3004 = vmatmul.mubr.bf16.gmra.mrb[0].mxu0 %v418
        %v3005 = vpop.f32.mrb[0].mxu0
        %v3006 = vadd.f32 %v2893, %v3005
        %v3007 = vpop.f32.mrb[0].mxu0
        %v3008 = vadd.f32 %v2895, %v3007
        %v3009 = vpop.f32.mrb[0].mxu0
        %v3010 = vadd.f32 %v2897, %v3009
        %v3011 = vpop.f32.mrb[0].mxu0
        %v3012 = vadd.f32 %v2899, %v3011
        %3013 = vmatprep.mubr.bf16.mxu0 %v421
        %3014 = vmatmul.mubr.bf16.gmra.mrb[0].mxu0 %v420
        %v3015 = vpop.f32.mrb[0].mxu0
        %v3016 = vadd.f32 %v2903, %v3015
        %v3017 = vpop.f32.mrb[0].mxu0
        %v3018 = vadd.f32 %v2905, %v3017
        %v3019 = vpop.f32.mrb[0].mxu0
        %v3020 = vadd.f32 %v2907, %v3019
        %v3021 = vpop.f32.mrb[0].mxu0
        %v3022 = vadd.f32 %v2909, %v3021
        %3023 = vmatprep.mubr.bf16.mxu0 %v423
        %3024 = vmatmul.mubr.bf16.gmra.mrb[0].mxu0 %v422
        %v3025 = vpop.f32.mrb[0].mxu0
        %v3026 = vadd.f32 %v2913, %v3025
        %v3027 = vpop.f32.mrb[0].mxu0
        %v3028 = vadd.f32 %v2915, %v3027
        %v3029 = vpop.f32.mrb[0].mxu0
        %v3030 = vadd.f32 %v2917, %v3029
        %v3031 = vpop.f32.mrb[0].mxu0
        %v3032 = vadd.f32 %v2919, %v3031
        %3033 = vmatprep.mubr.bf16.mxu0 %v761
        %3034 = vmatmul.mubr.bf16.gmra.mrb[0].mxu0 %v760
        %v3035 = vpop.f32.mrb[0].mxu0
        %v3036 = vadd.f32 %v2923, %v3035
        %v3037 = vpop.f32.mrb[0].mxu0
        %v3038 = vadd.f32 %v2925, %v3037
        %v3039 = vpop.f32.mrb[0].mxu0
        %v3040 = vadd.f32 %v2927, %v3039
        %v3041 = vpop.f32.mrb[0].mxu0
        %v3042 = vadd.f32 %v2929, %v3041
        %3043 = vdwg.mxu0
        %3044 = vmatprep.subr.bf16.mxu0 %v2145
        %3045 = vmatpush1.bf16.msra.mxu0 %v2144
        %3046 = vmatprep.subr.bf16.mxu0 %v2147
        %3047 = vmatpush1.bf16.msra.mxu0 %v2146
        %3048 = vmatprep.subr.bf16.mxu0 %v2149
        %3049 = vmatpush1.bf16.msra.mxu0 %v2148
        %3050 = vmatprep.subr.bf16.mxu0 %v2151
        %3051 = vmatpush1.bf16.msra.mxu0 %v2150
        %3052 = vmatprep.subr.bf16.mxu0 %v2153
        %3053 = vmatpush1.bf16.msra.mxu0 %v2152
        %3054 = vmatprep.subr.bf16.mxu0 %v2155
        %3055 = vmatpush1.bf16.msra.mxu0 %v2154
        %3056 = vmatprep.subr.bf16.mxu0 %v2157
        %3057 = vmatpush1.bf16.msra.mxu0 %v2156
        %3058 = vmatprep.subr.bf16.mxu0 %v2159
        %3059 = vmatpush1.bf16.msra.mxu0 %v2158
        %3060 = vmatprep.subr.bf16.mxu0 %v2161
        %3061 = vmatpush1.bf16.msra.mxu0 %v2160
        %3062 = vmatprep.subr.bf16.mxu0 %v2163
        %3063 = vmatpush1.bf16.msra.mxu0 %v2162
        %3064 = vmatprep.subr.bf16.mxu0 %v2165
        %3065 = vmatpush1.bf16.msra.mxu0 %v2164
        %3066 = vmatprep.subr.bf16.mxu0 %v2167
        %3067 = vmatpush1.bf16.msra.mxu0 %v2166
        %3068 = vmatprep.subr.bf16.mxu0 %v2169
        %3069 = vmatpush1.bf16.msra.mxu0 %v2168
        %3070 = vmatprep.subr.bf16.mxu0 %v2171
        %3071 = vmatpush1.bf16.msra.mxu0 %v2170
        %3072 = vmatprep.subr.bf16.mxu0 %v2173
        %3073 = vmatpush1.bf16.msra.mxu0 %v2172
        %3074 = vmatprep.subr.bf16.mxu0 %v2175
        %3075 = vmatpush1.bf16.msra.mxu0 %v2174
        %3076 = vmatprep.mubr.bf16.mxu0 %v528
        %3077 = vmatmul.mubr.bf16.gmra.mrb[0].mxu0 %v516
        %v3078 = vpop.f32.mrb[0].mxu0
        %v3079 = vadd.f32 %v2966, %v3078
        %v3080 = vpop.f32.mrb[0].mxu0
        %v3081 = vadd.f32 %v2968, %v3080
        %v3082 = vpop.f32.mrb[0].mxu0
        %v3083 = vadd.f32 %v2970, %v3082
        %v3084 = vpop.f32.mrb[0].mxu0
        %v3085 = vadd.f32 %v2972, %v3084
        %3086 = vmatprep.mubr.bf16.mxu0 %v552
        %3087 = vmatmul.mubr.bf16.gmra.mrb[0].mxu0 %v540
        %v3088 = vpop.f32.mrb[0].mxu0
        %v3089 = vadd.f32 %v2976, %v3088
        %v3090 = vpop.f32.mrb[0].mxu0
        %v3091 = vadd.f32 %v2978, %v3090
        %v3092 = vpop.f32.mrb[0].mxu0
        %v3093 = vadd.f32 %v2980, %v3092
        %v3094 = vpop.f32.mrb[0].mxu0
        %v3095 = vadd.f32 %v2982, %v3094
        %3096 = vmatprep.mubr.bf16.mxu0 %v576
        %3097 = vmatmul.mubr.bf16.gmra.mrb[0].mxu0 %v564
        %v3098 = vpop.f32.mrb[0].mxu0
        %v3099 = vadd.f32 %v2986, %v3098
        %v3100 = vpop.f32.mrb[0].mxu0
        %v3101 = vadd.f32 %v2988, %v3100
        %v3102 = vpop.f32.mrb[0].mxu0
        %v3103 = vadd.f32 %v2990, %v3102
        %v3104 = vpop.f32.mrb[0].mxu0
        %v3105 = vadd.f32 %v2992, %v3104
        %3106 = vmatprep.mubr.bf16.mxu0 %v600
        %3107 = vmatmul.mubr.bf16.gmra.mrb[0].mxu0 %v588
        %v3108 = vpop.f32.mrb[0].mxu0
        %v3109 = vadd.f32 %v2996, %v3108
        %v3110 = vpop.f32.mrb[0].mxu0
        %v3111 = vadd.f32 %v2998, %v3110
        %v3112 = vpop.f32.mrb[0].mxu0
        %v3113 = vadd.f32 %v3000, %v3112
        %v3114 = vpop.f32.mrb[0].mxu0
        %v3115 = vadd.f32 %v3002, %v3114
        %3116 = vmatprep.mubr.bf16.mxu0 %v624
        %3117 = vmatmul.mubr.bf16.gmra.mrb[0].mxu0 %v612
        %v3118 = vpop.f32.mrb[0].mxu0
        %v3119 = vadd.f32 %v3006, %v3118
        %v3120 = vpop.f32.mrb[0].mxu0
        %v3121 = vadd.f32 %v3008, %v3120
        %v3122 = vpop.f32.mrb[0].mxu0
        %v3123 = vadd.f32 %v3010, %v3122
        %v3124 = vpop.f32.mrb[0].mxu0
        %v3125 = vadd.f32 %v3012, %v3124
        %3126 = vmatprep.mubr.bf16.mxu0 %v648
        %3127 = vmatmul.mubr.bf16.gmra.mrb[0].mxu0 %v636
        %v3128 = vpop.f32.mrb[0].mxu0
        %v3129 = vadd.f32 %v3016, %v3128
        %v3130 = vpop.f32.mrb[0].mxu0
        %v3131 = vadd.f32 %v3018, %v3130
        %v3132 = vpop.f32.mrb[0].mxu0
        %v3133 = vadd.f32 %v3020, %v3132
        %v3134 = vpop.f32.mrb[0].mxu0
        %v3135 = vadd.f32 %v3022, %v3134
        %3136 = vmatprep.mubr.bf16.mxu0 %v672
        %3137 = vmatmul.mubr.bf16.gmra.mrb[0].mxu0 %v660
        %v3138 = vpop.f32.mrb[0].mxu0
        %v3139 = vadd.f32 %v3026, %v3138
        %v3140 = vpop.f32.mrb[0].mxu0
        %v3141 = vadd.f32 %v3028, %v3140
        %v3142 = vpop.f32.mrb[0].mxu0
        %v3143 = vadd.f32 %v3030, %v3142
        %v3144 = vpop.f32.mrb[0].mxu0
        %v3145 = vadd.f32 %v3032, %v3144
        %3146 = vmatprep.mubr.bf16.mxu0 %v792
        %3147 = vmatmul.mubr.bf16.gmra.mrb[0].mxu0 %v780
        %v3148 = vpop.f32.mrb[0].mxu0
        %v3149 = vadd.f32 %v3036, %v3148
        %v3150 = vpop.f32.mrb[0].mxu0
        %v3151 = vadd.f32 %v3038, %v3150
        %v3152 = vpop.f32.mrb[0].mxu0
        %v3153 = vadd.f32 %v3040, %v3152
        %v3154 = vpop.f32.mrb[0].mxu0
        %v3155 = vadd.f32 %v3042, %v3154
        %3156 = vdwg.mxu0
        %3157 = vmatprep.subr.bf16.mxu0 %v2177
        %3158 = vmatpush1.bf16.msra.mxu0 %v2176
        %3159 = vmatprep.subr.bf16.mxu0 %v2179
        %3160 = vmatpush1.bf16.msra.mxu0 %v2178
        %3161 = vmatprep.subr.bf16.mxu0 %v2181
        %3162 = vmatpush1.bf16.msra.mxu0 %v2180
        %3163 = vmatprep.subr.bf16.mxu0 %v2183
        %3164 = vmatpush1.bf16.msra.mxu0 %v2182
        %3165 = vmatprep.subr.bf16.mxu0 %v2185
        %3166 = vmatpush1.bf16.msra.mxu0 %v2184
        %3167 = vmatprep.subr.bf16.mxu0 %v2187
        %3168 = vmatpush1.bf16.msra.mxu0 %v2186
        %3169 = vmatprep.subr.bf16.mxu0 %v2189
        %3170 = vmatpush1.bf16.msra.mxu0 %v2188
        %3171 = vmatprep.subr.bf16.mxu0 %v2191
        %3172 = vmatpush1.bf16.msra.mxu0 %v2190
        %3173 = vmatprep.subr.bf16.mxu0 %v2193
        %3174 = vmatpush1.bf16.msra.mxu0 %v2192
        %3175 = vmatprep.subr.bf16.mxu0 %v2195
        %3176 = vmatpush1.bf16.msra.mxu0 %v2194
        %3177 = vmatprep.subr.bf16.mxu0 %v2197
        %3178 = vmatpush1.bf16.msra.mxu0 %v2196
        %3179 = vmatprep.subr.bf16.mxu0 %v2199
        %3180 = vmatpush1.bf16.msra.mxu0 %v2198
        %3181 = vmatprep.subr.bf16.mxu0 %v2201
        %3182 = vmatpush1.bf16.msra.mxu0 %v2200
        %3183 = vmatprep.subr.bf16.mxu0 %v2203
        %3184 = vmatpush1.bf16.msra.mxu0 %v2202
        %3185 = vmatprep.subr.bf16.mxu0 %v2205
        %3186 = vmatpush1.bf16.msra.mxu0 %v2204
        %3187 = vmatprep.subr.bf16.mxu0 %v2207
        %3188 = vmatpush1.bf16.msra.mxu0 %v2206
        %3189 = vmatprep.mubr.bf16.mxu0 %v701
        %3190 = vmatmul.mubr.bf16.gmra.mrb[0].mxu0 %v698
        %v3191 = vpop.f32.mrb[0].mxu0
        %v3192 = vadd.f32 %v3079, %v3191
        %v3193 = vpop.f32.mrb[0].mxu0
        %v3194 = vadd.f32 %v3081, %v3193
        %v3195 = vpop.f32.mrb[0].mxu0
        %v3196 = vadd.f32 %v3083, %v3195
        %v3197 = vpop.f32.mrb[0].mxu0
        %v3198 = vadd.f32 %v3085, %v3197
        %3199 = vmatprep.mubr.bf16.mxu0 %v707
        %3200 = vmatmul.mubr.bf16.gmra.mrb[0].mxu0 %v704
        %v3201 = vpop.f32.mrb[0].mxu0
        %v3202 = vadd.f32 %v3089, %v3201
        %v3203 = vpop.f32.mrb[0].mxu0
        %v3204 = vadd.f32 %v3091, %v3203
        %v3205 = vpop.f32.mrb[0].mxu0
        %v3206 = vadd.f32 %v3093, %v3205
        %v3207 = vpop.f32.mrb[0].mxu0
        %v3208 = vadd.f32 %v3095, %v3207
        %3209 = vmatprep.mubr.bf16.mxu0 %v713
        %3210 = vmatmul.mubr.bf16.gmra.mrb[0].mxu0 %v710
        %v3211 = vpop.f32.mrb[0].mxu0
        %v3212 = vadd.f32 %v3099, %v3211
        %v3213 = vpop.f32.mrb[0].mxu0
        %v3214 = vadd.f32 %v3101, %v3213
        %v3215 = vpop.f32.mrb[0].mxu0
        %v3216 = vadd.f32 %v3103, %v3215
        %v3217 = vpop.f32.mrb[0].mxu0
        %v3218 = vadd.f32 %v3105, %v3217
        %3219 = vmatprep.mubr.bf16.mxu0 %v719
        %3220 = vmatmul.mubr.bf16.gmra.mrb[0].mxu0 %v716
        %v3221 = vpop.f32.mrb[0].mxu0
        %v3222 = vadd.f32 %v3109, %v3221
        %v3223 = vpop.f32.mrb[0].mxu0
        %v3224 = vadd.f32 %v3111, %v3223
        %v3225 = vpop.f32.mrb[0].mxu0
        %v3226 = vadd.f32 %v3113, %v3225
        %v3227 = vpop.f32.mrb[0].mxu0
        %v3228 = vadd.f32 %v3115, %v3227
        %3229 = vmatprep.mubr.bf16.mxu0 %v725
        %3230 = vmatmul.mubr.bf16.gmra.mrb[0].mxu0 %v722
        %v3231 = vpop.f32.mrb[0].mxu0
        %v3232 = vadd.f32 %v3119, %v3231
        %v3233 = vpop.f32.mrb[0].mxu0
        %v3234 = vadd.f32 %v3121, %v3233
        %v3235 = vpop.f32.mrb[0].mxu0
        %v3236 = vadd.f32 %v3123, %v3235
        %v3237 = vpop.f32.mrb[0].mxu0
        %v3238 = vadd.f32 %v3125, %v3237
        %3239 = vmatprep.mubr.bf16.mxu0 %v731
        %3240 = vmatmul.mubr.bf16.gmra.mrb[0].mxu0 %v728
        %v3241 = vpop.f32.mrb[0].mxu0
        %v3242 = vadd.f32 %v3129, %v3241
        %v3243 = vpop.f32.mrb[0].mxu0
        %v3244 = vadd.f32 %v3131, %v3243
        %v3245 = vpop.f32.mrb[0].mxu0
        %v3246 = vadd.f32 %v3133, %v3245
        %v3247 = vpop.f32.mrb[0].mxu0
        %v3248 = vadd.f32 %v3135, %v3247
        %3249 = vmatprep.mubr.bf16.mxu0 %v737
        %3250 = vmatmul.mubr.bf16.gmra.mrb[0].mxu0 %v734
        %v3251 = vpop.f32.mrb[0].mxu0
        %v3252 = vadd.f32 %v3139, %v3251
        %v3253 = vpop.f32.mrb[0].mxu0
        %v3254 = vadd.f32 %v3141, %v3253
        %v3255 = vpop.f32.mrb[0].mxu0
        %v3256 = vadd.f32 %v3143, %v3255
        %v3257 = vpop.f32.mrb[0].mxu0
        %v3258 = vadd.f32 %v3145, %v3257
        %3259 = vmatprep.mubr.bf16.mxu0 %v800
        %3260 = vmatmul.mubr.bf16.gmra.mrb[0].mxu0 %v797
        %v3261 = vpop.f32.mrb[0].mxu0
        %v3262 = vadd.f32 %v3149, %v3261
        %v3263 = vpop.f32.mrb[0].mxu0
        %v3264 = vadd.f32 %v3151, %v3263
        %v3265 = vpop.f32.mrb[0].mxu0
        %v3266 = vadd.f32 %v3153, %v3265
        %v3267 = vpop.f32.mrb[0].mxu0
        %v3268 = vadd.f32 %v3155, %v3267
        %3269 = vdwg.mxu0
        %3270 = vmatprep.subr.bf16.mxu0 %v2209
        %3271 = vmatpush1.bf16.msra.mxu0 %v2208
        %3272 = vmatprep.subr.bf16.mxu0 %v2211
        %3273 = vmatpush1.bf16.msra.mxu0 %v2210
        %3274 = vmatprep.subr.bf16.mxu0 %v2213
        %3275 = vmatpush1.bf16.msra.mxu0 %v2212
        %3276 = vmatprep.subr.bf16.mxu0 %v2215
        %3277 = vmatpush1.bf16.msra.mxu0 %v2214
        %3278 = vmatprep.subr.bf16.mxu0 %v2217
        %3279 = vmatpush1.bf16.msra.mxu0 %v2216
        %3280 = vmatprep.subr.bf16.mxu0 %v2219
        %3281 = vmatpush1.bf16.msra.mxu0 %v2218
        %3282 = vmatprep.subr.bf16.mxu0 %v2221
        %3283 = vmatpush1.bf16.msra.mxu0 %v2220
        %3284 = vmatprep.subr.bf16.mxu0 %v2223
        %3285 = vmatpush1.bf16.msra.mxu0 %v2222
        %3286 = vmatprep.subr.bf16.mxu0 %v2225
        %3287 = vmatpush1.bf16.msra.mxu0 %v2224
        %3288 = vmatprep.subr.bf16.mxu0 %v2227
        %3289 = vmatpush1.bf16.msra.mxu0 %v2226
        %3290 = vmatprep.subr.bf16.mxu0 %v2229
        %3291 = vmatpush1.bf16.msra.mxu0 %v2228
        %3292 = vmatprep.subr.bf16.mxu0 %v2231
        %3293 = vmatpush1.bf16.msra.mxu0 %v2230
        %3294 = vmatprep.subr.bf16.mxu0 %v2233
        %3295 = vmatpush1.bf16.msra.mxu0 %v2232
        %3296 = vmatprep.subr.bf16.mxu0 %v2235
        %3297 = vmatpush1.bf16.msra.mxu0 %v2234
        %3298 = vmatprep.subr.bf16.mxu0 %v2237
        %3299 = vmatpush1.bf16.msra.mxu0 %v2236
        %3300 = vmatprep.subr.bf16.mxu0 %v2239
        %3301 = vmatpush1.bf16.msra.mxu0 %v2238
        %3302 = vmatprep.mubr.bf16.mxu0 %v413
        %3303 = vmatmul.mubr.bf16.gmra.mrb[0].mxu0 %v412
        %v3304 = vpop.f32.mrb[0].mxu0
        %v3305 = vadd.f32 %v3192, %v3304
        %v3306 = vpop.f32.mrb[0].mxu0
        %v3307 = vadd.f32 %v3194, %v3306
        %v3308 = vpop.f32.mrb[0].mxu0
        %v3309 = vadd.f32 %v3196, %v3308
        %v3310 = vpop.f32.mrb[0].mxu0
        %v3311 = vadd.f32 %v3198, %v3310
        %3312 = vmatprep.mubr.bf16.mxu0 %v415
        %3313 = vmatmul.mubr.bf16.gmra.mrb[0].mxu0 %v414
        %v3314 = vpop.f32.mrb[0].mxu0
        %v3315 = vadd.f32 %v3202, %v3314
        %v3316 = vpop.f32.mrb[0].mxu0
        %v3317 = vadd.f32 %v3204, %v3316
        %v3318 = vpop.f32.mrb[0].mxu0
        %v3319 = vadd.f32 %v3206, %v3318
        %v3320 = vpop.f32.mrb[0].mxu0
        %v3321 = vadd.f32 %v3208, %v3320
        %3322 = vmatprep.mubr.bf16.mxu0 %v417
        %3323 = vmatmul.mubr.bf16.gmra.mrb[0].mxu0 %v416
        %v3324 = vpop.f32.mrb[0].mxu0
        %v3325 = vadd.f32 %v3212, %v3324
        %v3326 = vpop.f32.mrb[0].mxu0
        %v3327 = vadd.f32 %v3214, %v3326
        %v3328 = vpop.f32.mrb[0].mxu0
        %v3329 = vadd.f32 %v3216, %v3328
        %v3330 = vpop.f32.mrb[0].mxu0
        %v3331 = vadd.f32 %v3218, %v3330
        %3332 = vmatprep.mubr.bf16.mxu0 %v419
        %3333 = vmatmul.mubr.bf16.gmra.mrb[0].mxu0 %v418
        %v3334 = vpop.f32.mrb[0].mxu0
        %v3335 = vadd.f32 %v3222, %v3334
        %v3336 = vpop.f32.mrb[0].mxu0
        %v3337 = vadd.f32 %v3224, %v3336
        %v3338 = vpop.f32.mrb[0].mxu0
        %v3339 = vadd.f32 %v3226, %v3338
        %v3340 = vpop.f32.mrb[0].mxu0
        %v3341 = vadd.f32 %v3228, %v3340
        %3342 = vmatprep.mubr.bf16.mxu0 %v421
        %3343 = vmatmul.mubr.bf16.gmra.mrb[0].mxu0 %v420
        %v3344 = vpop.f32.mrb[0].mxu0
        %v3345 = vadd.f32 %v3232, %v3344
        %v3346 = vpop.f32.mrb[0].mxu0
        %v3347 = vadd.f32 %v3234, %v3346
        %v3348 = vpop.f32.mrb[0].mxu0
        %v3349 = vadd.f32 %v3236, %v3348
        %v3350 = vpop.f32.mrb[0].mxu0
        %v3351 = vadd.f32 %v3238, %v3350
        %3352 = vmatprep.mubr.bf16.mxu0 %v423
        %3353 = vmatmul.mubr.bf16.gmra.mrb[0].mxu0 %v422
        %v3354 = vpop.f32.mrb[0].mxu0
        %v3355 = vadd.f32 %v3242, %v3354
        %v3356 = vpop.f32.mrb[0].mxu0
        %v3357 = vadd.f32 %v3244, %v3356
        %v3358 = vpop.f32.mrb[0].mxu0
        %v3359 = vadd.f32 %v3246, %v3358
        %v3360 = vpop.f32.mrb[0].mxu0
        %v3361 = vadd.f32 %v3248, %v3360
        %3362 = vmatprep.mubr.bf16.mxu0 %v761
        %3363 = vmatmul.mubr.bf16.gmra.mrb[0].mxu0 %v760
        %v3364 = vpop.f32.mrb[0].mxu0
        %v3365 = vadd.f32 %v3252, %v3364
        %v3366 = vpop.f32.mrb[0].mxu0
        %v3367 = vadd.f32 %v3254, %v3366
        %v3368 = vpop.f32.mrb[0].mxu0
        %v3369 = vadd.f32 %v3256, %v3368
        %v3370 = vpop.f32.mrb[0].mxu0
        %v3371 = vadd.f32 %v3258, %v3370
        %3372 = vmatprep.mubr.bf16.mxu0 %v810
        %3373 = vmatmul.mubr.bf16.gmra.mrb[0].mxu0 %v809
        %v3374 = vpop.f32.mrb[0].mxu0
        %v3375 = vadd.f32 %v3262, %v3374
        %v3376 = vpop.f32.mrb[0].mxu0
        %v3377 = vadd.f32 %v3264, %v3376
        %v3378 = vpop.f32.mrb[0].mxu0
        %v3379 = vadd.f32 %v3266, %v3378
        %v3380 = vpop.f32.mrb[0].mxu0
        %v3381 = vadd.f32 %v3268, %v3380
        %3382 = vdwg.mxu0
        %3383 = vmatprep.subr.bf16.mxu0 %v2241
        %3384 = vmatpush1.bf16.msra.mxu0 %v2240
        %3385 = vmatprep.subr.bf16.mxu0 %v2243
        %3386 = vmatpush1.bf16.msra.mxu0 %v2242
        %3387 = vmatprep.subr.bf16.mxu0 %v2245
        %3388 = vmatpush1.bf16.msra.mxu0 %v2244
        %3389 = vmatprep.subr.bf16.mxu0 %v2247
        %3390 = vmatpush1.bf16.msra.mxu0 %v2246
        %3391 = vmatprep.subr.bf16.mxu0 %v2249
        %3392 = vmatpush1.bf16.msra.mxu0 %v2248
        %3393 = vmatprep.subr.bf16.mxu0 %v2251
        %3394 = vmatpush1.bf16.msra.mxu0 %v2250
        %3395 = vmatprep.subr.bf16.mxu0 %v2253
        %3396 = vmatpush1.bf16.msra.mxu0 %v2252
        %3397 = vmatprep.subr.bf16.mxu0 %v2255
        %3398 = vmatpush1.bf16.msra.mxu0 %v2254
        %3399 = vmatprep.subr.bf16.mxu0 %v2257
        %3400 = vmatpush1.bf16.msra.mxu0 %v2256
        %3401 = vmatprep.subr.bf16.mxu0 %v2259
        %3402 = vmatpush1.bf16.msra.mxu0 %v2258
        %3403 = vmatprep.subr.bf16.mxu0 %v2261
        %3404 = vmatpush1.bf16.msra.mxu0 %v2260
        %3405 = vmatprep.subr.bf16.mxu0 %v2263
        %3406 = vmatpush1.bf16.msra.mxu0 %v2262
        %3407 = vmatprep.subr.bf16.mxu0 %v2265
        %3408 = vmatpush1.bf16.msra.mxu0 %v2264
        %3409 = vmatprep.subr.bf16.mxu0 %v2267
        %3410 = vmatpush1.bf16.msra.mxu0 %v2266
        %3411 = vmatprep.subr.bf16.mxu0 %v2269
        %3412 = vmatpush1.bf16.msra.mxu0 %v2268
        %3413 = vmatprep.subr.bf16.mxu0 %v2271
        %3414 = vmatpush1.bf16.msra.mxu0 %v2270
        %3415 = vmatprep.mubr.bf16.mxu0 %v552
        %3416 = vmatmul.mubr.bf16.gmra.mrb[0].mxu0 %v540
        %v3417 = vpop.f32.mrb[0].mxu0
        %v3418 = vadd.f32 %v3305, %v3417
        %v3419 = vpop.f32.mrb[0].mxu0
        %v3420 = vadd.f32 %v3307, %v3419
        %v3421 = vpop.f32.mrb[0].mxu0
        %v3422 = vadd.f32 %v3309, %v3421
        %v3423 = vpop.f32.mrb[0].mxu0
        %v3424 = vadd.f32 %v3311, %v3423
        %3425 = vmatprep.mubr.bf16.mxu0 %v576
        %3426 = vmatmul.mubr.bf16.gmra.mrb[0].mxu0 %v564
        %v3427 = vpop.f32.mrb[0].mxu0
        %v3428 = vadd.f32 %v3315, %v3427
        %v3429 = vpop.f32.mrb[0].mxu0
        %v3430 = vadd.f32 %v3317, %v3429
        %v3431 = vpop.f32.mrb[0].mxu0
        %v3432 = vadd.f32 %v3319, %v3431
        %v3433 = vpop.f32.mrb[0].mxu0
        %v3434 = vadd.f32 %v3321, %v3433
        %3435 = vmatprep.mubr.bf16.mxu0 %v600
        %3436 = vmatmul.mubr.bf16.gmra.mrb[0].mxu0 %v588
        %v3437 = vpop.f32.mrb[0].mxu0
        %v3438 = vadd.f32 %v3325, %v3437
        %v3439 = vpop.f32.mrb[0].mxu0
        %v3440 = vadd.f32 %v3327, %v3439
        %v3441 = vpop.f32.mrb[0].mxu0
        %v3442 = vadd.f32 %v3329, %v3441
        %v3443 = vpop.f32.mrb[0].mxu0
        %v3444 = vadd.f32 %v3331, %v3443
        %3445 = vmatprep.mubr.bf16.mxu0 %v624
        %3446 = vmatmul.mubr.bf16.gmra.mrb[0].mxu0 %v612
        %v3447 = vpop.f32.mrb[0].mxu0
        %v3448 = vadd.f32 %v3335, %v3447
        %v3449 = vpop.f32.mrb[0].mxu0
        %v3450 = vadd.f32 %v3337, %v3449
        %v3451 = vpop.f32.mrb[0].mxu0
        %v3452 = vadd.f32 %v3339, %v3451
        %v3453 = vpop.f32.mrb[0].mxu0
        %v3454 = vadd.f32 %v3341, %v3453
        %3455 = vmatprep.mubr.bf16.mxu0 %v648
        %3456 = vmatmul.mubr.bf16.gmra.mrb[0].mxu0 %v636
        %v3457 = vpop.f32.mrb[0].mxu0
        %v3458 = vadd.f32 %v3345, %v3457
        %v3459 = vpop.f32.mrb[0].mxu0
        %v3460 = vadd.f32 %v3347, %v3459
        %v3461 = vpop.f32.mrb[0].mxu0
        %v3462 = vadd.f32 %v3349, %v3461
        %v3463 = vpop.f32.mrb[0].mxu0
        %v3464 = vadd.f32 %v3351, %v3463
        %3465 = vmatprep.mubr.bf16.mxu0 %v672
        %3466 = vmatmul.mubr.bf16.gmra.mrb[0].mxu0 %v660
        %v3467 = vpop.f32.mrb[0].mxu0
        %v3468 = vadd.f32 %v3355, %v3467
        %v3469 = vpop.f32.mrb[0].mxu0
        %v3470 = vadd.f32 %v3357, %v3469
        %v3471 = vpop.f32.mrb[0].mxu0
        %v3472 = vadd.f32 %v3359, %v3471
        %v3473 = vpop.f32.mrb[0].mxu0
        %v3474 = vadd.f32 %v3361, %v3473
        %3475 = vmatprep.mubr.bf16.mxu0 %v792
        %3476 = vmatmul.mubr.bf16.gmra.mrb[0].mxu0 %v780
        %v3477 = vpop.f32.mrb[0].mxu0
        %v3478 = vadd.f32 %v3365, %v3477
        %v3479 = vpop.f32.mrb[0].mxu0
        %v3480 = vadd.f32 %v3367, %v3479
        %v3481 = vpop.f32.mrb[0].mxu0
        %v3482 = vadd.f32 %v3369, %v3481
        %v3483 = vpop.f32.mrb[0].mxu0
        %v3484 = vadd.f32 %v3371, %v3483
        %3485 = vmatprep.mubr.bf16.mxu0 %v841
        %3486 = vmatmul.mubr.bf16.gmra.mrb[0].mxu0 %v829
        %v3487 = vpop.f32.mrb[0].mxu0
        %v3488 = vadd.f32 %v3375, %v3487
        %v3489 = vpop.f32.mrb[0].mxu0
        %v3490 = vadd.f32 %v3377, %v3489
        %v3491 = vpop.f32.mrb[0].mxu0
        %v3492 = vadd.f32 %v3379, %v3491
        %v3493 = vpop.f32.mrb[0].mxu0
        %v3494 = vadd.f32 %v3381, %v3493
        %3495 = vdwg.mxu0
        %3496 = vmatprep.subr.bf16.mxu0 %v2273
        %3497 = vmatpush1.bf16.msra.mxu0 %v2272
        %3498 = vmatprep.subr.bf16.mxu0 %v2275
        %3499 = vmatpush1.bf16.msra.mxu0 %v2274
        %3500 = vmatprep.subr.bf16.mxu0 %v2277
        %3501 = vmatpush1.bf16.msra.mxu0 %v2276
        %3502 = vmatprep.subr.bf16.mxu0 %v2279
        %3503 = vmatpush1.bf16.msra.mxu0 %v2278
        %3504 = vmatprep.subr.bf16.mxu0 %v2281
        %3505 = vmatpush1.bf16.msra.mxu0 %v2280
        %3506 = vmatprep.subr.bf16.mxu0 %v2283
        %3507 = vmatpush1.bf16.msra.mxu0 %v2282
        %3508 = vmatprep.subr.bf16.mxu0 %v2285
        %3509 = vmatpush1.bf16.msra.mxu0 %v2284
        %3510 = vmatprep.subr.bf16.mxu0 %v2287
        %3511 = vmatpush1.bf16.msra.mxu0 %v2286
        %3512 = vmatprep.subr.bf16.mxu0 %v2289
        %3513 = vmatpush1.bf16.msra.mxu0 %v2288
        %3514 = vmatprep.subr.bf16.mxu0 %v2291
        %3515 = vmatpush1.bf16.msra.mxu0 %v2290
        %3516 = vmatprep.subr.bf16.mxu0 %v2293
        %3517 = vmatpush1.bf16.msra.mxu0 %v2292
        %3518 = vmatprep.subr.bf16.mxu0 %v2295
        %3519 = vmatpush1.bf16.msra.mxu0 %v2294
        %3520 = vmatprep.subr.bf16.mxu0 %v2297
        %3521 = vmatpush1.bf16.msra.mxu0 %v2296
        %3522 = vmatprep.subr.bf16.mxu0 %v2299
        %3523 = vmatpush1.bf16.msra.mxu0 %v2298
        %3524 = vmatprep.subr.bf16.mxu0 %v2301
        %3525 = vmatpush1.bf16.msra.mxu0 %v2300
        %3526 = vmatprep.subr.bf16.mxu0 %v2303
        %3527 = vmatpush1.bf16.msra.mxu0 %v2302
        %3528 = vmatprep.mubr.bf16.mxu0 %v707
        %3529 = vmatmul.mubr.bf16.gmra.mrb[0].mxu0 %v704
        %v3530 = vpop.f32.mrb[0].mxu0
        %v3531 = vadd.f32 %v3418, %v3530
        %v3532 = vpop.f32.mrb[0].mxu0
        %v3533 = vadd.f32 %v3420, %v3532
        %v3534 = vpop.f32.mrb[0].mxu0
        %v3535 = vadd.f32 %v3422, %v3534
        %v3536 = vpop.f32.mrb[0].mxu0
        %v3537 = vadd.f32 %v3424, %v3536
        %3538 = vmatprep.mubr.bf16.mxu0 %v713
        %3539 = vmatmul.mubr.bf16.gmra.mrb[0].mxu0 %v710
        %v3540 = vpop.f32.mrb[0].mxu0
        %v3541 = vadd.f32 %v3428, %v3540
        %v3542 = vpop.f32.mrb[0].mxu0
        %v3543 = vadd.f32 %v3430, %v3542
        %v3544 = vpop.f32.mrb[0].mxu0
        %v3545 = vadd.f32 %v3432, %v3544
        %v3546 = vpop.f32.mrb[0].mxu0
        %v3547 = vadd.f32 %v3434, %v3546
        %3548 = vmatprep.mubr.bf16.mxu0 %v719
        %3549 = vmatmul.mubr.bf16.gmra.mrb[0].mxu0 %v716
        %v3550 = vpop.f32.mrb[0].mxu0
        %v3551 = vadd.f32 %v3438, %v3550
        %v3552 = vpop.f32.mrb[0].mxu0
        %v3553 = vadd.f32 %v3440, %v3552
        %v3554 = vpop.f32.mrb[0].mxu0
        %v3555 = vadd.f32 %v3442, %v3554
        %v3556 = vpop.f32.mrb[0].mxu0
        %v3557 = vadd.f32 %v3444, %v3556
        %3558 = vmatprep.mubr.bf16.mxu0 %v725
        %3559 = vmatmul.mubr.bf16.gmra.mrb[0].mxu0 %v722
        %v3560 = vpop.f32.mrb[0].mxu0
        %v3561 = vadd.f32 %v3448, %v3560
        %v3562 = vpop.f32.mrb[0].mxu0
        %v3563 = vadd.f32 %v3450, %v3562
        %v3564 = vpop.f32.mrb[0].mxu0
        %v3565 = vadd.f32 %v3452, %v3564
        %v3566 = vpop.f32.mrb[0].mxu0
        %v3567 = vadd.f32 %v3454, %v3566
        %3568 = vmatprep.mubr.bf16.mxu0 %v731
        %3569 = vmatmul.mubr.bf16.gmra.mrb[0].mxu0 %v728
        %v3570 = vpop.f32.mrb[0].mxu0
        %v3571 = vadd.f32 %v3458, %v3570
        %v3572 = vpop.f32.mrb[0].mxu0
        %v3573 = vadd.f32 %v3460, %v3572
        %v3574 = vpop.f32.mrb[0].mxu0
        %v3575 = vadd.f32 %v3462, %v3574
        %v3576 = vpop.f32.mrb[0].mxu0
        %v3577 = vadd.f32 %v3464, %v3576
        %3578 = vmatprep.mubr.bf16.mxu0 %v737
        %3579 = vmatmul.mubr.bf16.gmra.mrb[0].mxu0 %v734
        %v3580 = vpop.f32.mrb[0].mxu0
        %v3581 = vadd.f32 %v3468, %v3580
        %v3582 = vpop.f32.mrb[0].mxu0
        %v3583 = vadd.f32 %v3470, %v3582
        %v3584 = vpop.f32.mrb[0].mxu0
        %v3585 = vadd.f32 %v3472, %v3584
        %v3586 = vpop.f32.mrb[0].mxu0
        %v3587 = vadd.f32 %v3474, %v3586
        %3588 = vmatprep.mubr.bf16.mxu0 %v800
        %3589 = vmatmul.mubr.bf16.gmra.mrb[0].mxu0 %v797
        %v3590 = vpop.f32.mrb[0].mxu0
        %v3591 = vadd.f32 %v3478, %v3590
        %v3592 = vpop.f32.mrb[0].mxu0
        %v3593 = vadd.f32 %v3480, %v3592
        %v3594 = vpop.f32.mrb[0].mxu0
        %v3595 = vadd.f32 %v3482, %v3594
        %v3596 = vpop.f32.mrb[0].mxu0
        %v3597 = vadd.f32 %v3484, %v3596
        %3598 = vmatprep.mubr.bf16.mxu0 %v849
        %3599 = vmatmul.mubr.bf16.gmra.mrb[0].mxu0 %v846
        %v3600 = vpop.f32.mrb[0].mxu0
        %v3601 = vadd.f32 %v3488, %v3600
        %v3602 = vpop.f32.mrb[0].mxu0
        %v3603 = vadd.f32 %v3490, %v3602
        %v3604 = vpop.f32.mrb[0].mxu0
        %v3605 = vadd.f32 %v3492, %v3604
        %v3606 = vpop.f32.mrb[0].mxu0
        %v3607 = vadd.f32 %v3494, %v3606
        %3608 = vdwg.mxu0
        %v3609 = vld [vmem:[%s4] sm:$0x3]
        %v3610 = vld [vmem:[%s5] sm:$0x3]
        %v3611 = vadd.f32 %v3531, %v3533
        %3612 = vadd.xlane.f32.xlu0 %v3611
        %v3613 = vpop.xlane.xlu0 %3612
        %v3614 = vadd.f32 %v3535, %v3537
        %3615 = vadd.xlane.f32.xlu0 %v3614
        %v3616 = vpop.xlane.xlu0 %3615
        %v3617 = vadd.f32 %v3541, %v3543
        %3618 = vadd.xlane.f32.xlu0 %v3617
        %v3619 = vpop.xlane.xlu0 %3618
        %v3620 = vadd.f32 %v3545, %v3547
        %3621 = vadd.xlane.f32.xlu0 %v3620
        %v3622 = vpop.xlane.xlu0 %3621
        %v3623 = vadd.f32 %v3551, %v3553
        %3624 = vadd.xlane.f32.xlu0 %v3623
        %v3625 = vpop.xlane.xlu0 %3624
        %v3626 = vadd.f32 %v3555, %v3557
        %3627 = vadd.xlane.f32.xlu0 %v3626
        %v3628 = vpop.xlane.xlu0 %3627
        %v3629 = vadd.f32 %v3561, %v3563
        %3630 = vadd.xlane.f32.xlu0 %v3629
        %v3631 = vpop.xlane.xlu0 %3630
        %v3632 = vadd.f32 %v3565, %v3567
        %3633 = vadd.xlane.f32.xlu0 %v3632
        %v3634 = vpop.xlane.xlu0 %3633
        %v3635 = vadd.f32 %v3571, %v3573
        %3636 = vadd.xlane.f32.xlu0 %v3635
        %v3637 = vpop.xlane.xlu0 %3636
        %v3638 = vadd.f32 %v3575, %v3577
        %3639 = vadd.xlane.f32.xlu0 %v3638
        %v3640 = vpop.xlane.xlu0 %3639
        %v3641 = vadd.f32 %v3581, %v3583
        %3642 = vadd.xlane.f32.xlu0 %v3641
        %v3643 = vpop.xlane.xlu0 %3642
        %v3644 = vadd.f32 %v3585, %v3587
        %3645 = vadd.xlane.f32.xlu0 %v3644
        %v3646 = vpop.xlane.xlu0 %3645
        %v3647 = vadd.f32 %v3591, %v3593
        %3648 = vadd.xlane.f32.xlu0 %v3647
        %v3649 = vpop.xlane.xlu0 %3648
        %v3650 = vadd.f32 %v3595, %v3597
        %3651 = vadd.xlane.f32.xlu0 %v3650
        %v3652 = vpop.xlane.xlu0 %3651
        %v3653 = vadd.f32 %v3601, %v3603
        %3654 = vadd.xlane.f32.xlu0 %v3653
        %v3655 = vpop.xlane.xlu0 %3654
        %v3656 = vadd.f32 %v3605, %v3607
        %3657 = vadd.xlane.f32.xlu0 %v3656
        %v3658 = vpop.xlane.xlu0 %3657
        %v3659 = vrcp.pop 256.0
        %v3660 = vmul.f32 %v3613, %v3659
        %v3661 = vmul.f32 %v3616, %v3659
        %v3662 = vmul.f32 %v3619, %v3659
        %v3663 = vmul.f32 %v3622, %v3659
        %v3664 = vmul.f32 %v3625, %v3659
        %v3665 = vmul.f32 %v3628, %v3659
        %v3666 = vmul.f32 %v3631, %v3659
        %v3667 = vmul.f32 %v3634, %v3659
        %v3668 = vmul.f32 %v3637, %v3659
        %v3669 = vmul.f32 %v3640, %v3659
        %v3670 = vmul.f32 %v3643, %v3659
        %v3671 = vmul.f32 %v3646, %v3659
        %v3672 = vmul.f32 %v3649, %v3659
        %v3673 = vmul.f32 %v3652, %v3659
        %v3674 = vmul.f32 %v3655, %v3659
        %v3675 = vmul.f32 %v3658, %v3659
        %v3676 = vmul.f32 %v3531, %v3531
        %v3677 = vmul.f32 %v3533, %v3533
        %v3678 = vmul.f32 %v3535, %v3535
        %v3679 = vmul.f32 %v3537, %v3537
        %v3680 = vmul.f32 %v3541, %v3541
        %v3681 = vmul.f32 %v3543, %v3543
        %v3682 = vmul.f32 %v3545, %v3545
        %v3683 = vmul.f32 %v3547, %v3547
        %v3684 = vmul.f32 %v3551, %v3551
        %v3685 = vmul.f32 %v3553, %v3553
        %v3686 = vmul.f32 %v3555, %v3555
        %v3687 = vmul.f32 %v3557, %v3557
        %v3688 = vmul.f32 %v3561, %v3561
        %v3689 = vmul.f32 %v3563, %v3563
        %v3690 = vmul.f32 %v3565, %v3565
        %v3691 = vmul.f32 %v3567, %v3567
        %v3692 = vmul.f32 %v3571, %v3571
        %v3693 = vmul.f32 %v3573, %v3573
        %v3694 = vmul.f32 %v3575, %v3575
        %v3695 = vmul.f32 %v3577, %v3577
        %v3696 = vmul.f32 %v3581, %v3581
        %v3697 = vmul.f32 %v3583, %v3583
        %v3698 = vmul.f32 %v3585, %v3585
        %v3699 = vmul.f32 %v3587, %v3587
        %v3700 = vmul.f32 %v3591, %v3591
        %v3701 = vmul.f32 %v3593, %v3593
        %v3702 = vmul.f32 %v3595, %v3595
        %v3703 = vmul.f32 %v3597, %v3597
        %v3704 = vmul.f32 %v3601, %v3601
        %v3705 = vmul.f32 %v3603, %v3603
        %v3706 = vmul.f32 %v3605, %v3605
        %v3707 = vmul.f32 %v3607, %v3607
        %v3708 = vadd.f32 %v3676, %v3677
        %3709 = vadd.xlane.f32.xlu0 %v3708
        %v3710 = vpop.xlane.xlu0 %3709
        %v3711 = vadd.f32 %v3678, %v3679
        %3712 = vadd.xlane.f32.xlu0 %v3711
        %v3713 = vpop.xlane.xlu0 %3712
        %v3714 = vadd.f32 %v3680, %v3681
        %3715 = vadd.xlane.f32.xlu0 %v3714
        %v3716 = vpop.xlane.xlu0 %3715
        %v3717 = vadd.f32 %v3682, %v3683
        %3718 = vadd.xlane.f32.xlu0 %v3717
        %v3719 = vpop.xlane.xlu0 %3718
        %v3720 = vadd.f32 %v3684, %v3685
        %3721 = vadd.xlane.f32.xlu0 %v3720
        %v3722 = vpop.xlane.xlu0 %3721
        %v3723 = vadd.f32 %v3686, %v3687
        %3724 = vadd.xlane.f32.xlu0 %v3723
        %v3725 = vpop.xlane.xlu0 %3724
        %v3726 = vadd.f32 %v3688, %v3689
        %3727 = vadd.xlane.f32.xlu0 %v3726
        %v3728 = vpop.xlane.xlu0 %3727
        %v3729 = vadd.f32 %v3690, %v3691
        %3730 = vadd.xlane.f32.xlu0 %v3729
        %v3731 = vpop.xlane.xlu0 %3730
        %v3732 = vadd.f32 %v3692, %v3693
        %3733 = vadd.xlane.f32.xlu0 %v3732
        %v3734 = vpop.xlane.xlu0 %3733
        %v3735 = vadd.f32 %v3694, %v3695
        %3736 = vadd.xlane.f32.xlu0 %v3735
        %v3737 = vpop.xlane.xlu0 %3736
        %v3738 = vadd.f32 %v3696, %v3697
        %3739 = vadd.xlane.f32.xlu0 %v3738
        %v3740 = vpop.xlane.xlu0 %3739
        %v3741 = vadd.f32 %v3698, %v3699
        %3742 = vadd.xlane.f32.xlu0 %v3741
        %v3743 = vpop.xlane.xlu0 %3742
        %v3744 = vadd.f32 %v3700, %v3701
        %3745 = vadd.xlane.f32.xlu0 %v3744
        %v3746 = vpop.xlane.xlu0 %3745
        %v3747 = vadd.f32 %v3702, %v3703
        %3748 = vadd.xlane.f32.xlu0 %v3747
        %v3749 = vpop.xlane.xlu0 %3748
        %v3750 = vadd.f32 %v3704, %v3705
        %3751 = vadd.xlane.f32.xlu0 %v3750
        %v3752 = vpop.xlane.xlu0 %3751
        %v3753 = vadd.f32 %v3706, %v3707
        %3754 = vadd.xlane.f32.xlu0 %v3753
        %v3755 = vpop.xlane.xlu0 %3754
        %v3756 = vmul.f32 %v3710, %v3659
        %v3757 = vmul.f32 %v3713, %v3659
        %v3758 = vmul.f32 %v3716, %v3659
        %v3759 = vmul.f32 %v3719, %v3659
        %v3760 = vmul.f32 %v3722, %v3659
        %v3761 = vmul.f32 %v3725, %v3659
        %v3762 = vmul.f32 %v3728, %v3659
        %v3763 = vmul.f32 %v3731, %v3659
        %v3764 = vmul.f32 %v3734, %v3659
        %v3765 = vmul.f32 %v3737, %v3659
        %v3766 = vmul.f32 %v3740, %v3659
        %v3767 = vmul.f32 %v3743, %v3659
        %v3768 = vmul.f32 %v3746, %v3659
        %v3769 = vmul.f32 %v3749, %v3659
        %v3770 = vmul.f32 %v3752, %v3659
        %v3771 = vmul.f32 %v3755, %v3659
        %v3772 = vmul.f32 %v3660, %v3660
        %v3773 = vmul.f32 %v3661, %v3661
        %v3774 = vmul.f32 %v3662, %v3662
        %v3775 = vmul.f32 %v3663, %v3663
        %v3776 = vmul.f32 %v3664, %v3664
        %v3777 = vmul.f32 %v3665, %v3665
        %v3778 = vmul.f32 %v3666, %v3666
        %v3779 = vmul.f32 %v3667, %v3667
        %v3780 = vmul.f32 %v3668, %v3668
        %v3781 = vmul.f32 %v3669, %v3669
        %v3782 = vmul.f32 %v3670, %v3670
        %v3783 = vmul.f32 %v3671, %v3671
        %v3784 = vmul.f32 %v3672, %v3672
        %v3785 = vmul.f32 %v3673, %v3673
        %v3786 = vmul.f32 %v3674, %v3674
        %v3787 = vmul.f32 %v3675, %v3675
        %v3788 = vsub.f32 %v3756, %v3772
        %v3789 = vsub.f32 %v3757, %v3773
        %v3790 = vsub.f32 %v3758, %v3774
        %v3791 = vsub.f32 %v3759, %v3775
        %v3792 = vsub.f32 %v3760, %v3776
        %v3793 = vsub.f32 %v3761, %v3777
        %v3794 = vsub.f32 %v3762, %v3778
        %v3795 = vsub.f32 %v3763, %v3779
        %v3796 = vsub.f32 %v3764, %v3780
        %v3797 = vsub.f32 %v3765, %v3781
        %v3798 = vsub.f32 %v3766, %v3782
        %v3799 = vsub.f32 %v3767, %v3783
        %v3800 = vsub.f32 %v3768, %v3784
        %v3801 = vsub.f32 %v3769, %v3785
        %v3802 = vsub.f32 %v3770, %v3786
        %v3803 = vsub.f32 %v3771, %v3787
        %v3804 = vmax.f32 %v3788, 0.0
        %v3805 = vmax.f32 %v3789, 0.0
        %v3806 = vmax.f32 %v3790, 0.0
        %v3807 = vmax.f32 %v3791, 0.0
        %v3808 = vmax.f32 %v3792, 0.0
        %v3809 = vmax.f32 %v3793, 0.0
        %v3810 = vmax.f32 %v3794, 0.0
        %v3811 = vmax.f32 %v3795, 0.0
        %v3812 = vmax.f32 %v3796, 0.0
        %v3813 = vmax.f32 %v3797, 0.0
        %v3814 = vmax.f32 %v3798, 0.0
        %v3815 = vmax.f32 %v3799, 0.0
        %v3816 = vmax.f32 %v3800, 0.0
        %v3817 = vmax.f32 %v3801, 0.0
        %v3818 = vmax.f32 %v3802, 0.0
        %v3819 = vmax.f32 %v3803, 0.0
        %v3820 = vsub.f32 %v3531, %v3660
        %v3821 = vsub.f32 %v3533, %v3660
        %v3822 = vsub.f32 %v3535, %v3661
        %v3823 = vsub.f32 %v3537, %v3661
        %v3824 = vsub.f32 %v3541, %v3662
        %v3825 = vsub.f32 %v3543, %v3662
        %v3826 = vsub.f32 %v3545, %v3663
        %v3827 = vsub.f32 %v3547, %v3663
        %v3828 = vsub.f32 %v3551, %v3664
        %v3829 = vsub.f32 %v3553, %v3664
        %v3830 = vsub.f32 %v3555, %v3665
        %v3831 = vsub.f32 %v3557, %v3665
        %v3832 = vsub.f32 %v3561, %v3666
        %v3833 = vsub.f32 %v3563, %v3666
        %v3834 = vsub.f32 %v3565, %v3667
        %v3835 = vsub.f32 %v3567, %v3667
        %v3836 = vsub.f32 %v3571, %v3668
        %v3837 = vsub.f32 %v3573, %v3668
        %v3838 = vsub.f32 %v3575, %v3669
        %v3839 = vsub.f32 %v3577, %v3669
        %v3840 = vsub.f32 %v3581, %v3670
        %v3841 = vsub.f32 %v3583, %v3670
        %v3842 = vsub.f32 %v3585, %v3671
        %v3843 = vsub.f32 %v3587, %v3671
        %v3844 = vsub.f32 %v3591, %v3672
        %v3845 = vsub.f32 %v3593, %v3672
        %v3846 = vsub.f32 %v3595, %v3673
        %v3847 = vsub.f32 %v3597, %v3673
        %v3848 = vsub.f32 %v3601, %v3674
        %v3849 = vsub.f32 %v3603, %v3674
        %v3850 = vsub.f32 %v3605, %v3675
        %v3851 = vsub.f32 %v3607, %v3675
        %v3852 = vadd.f32 %v3804, 1e-06
        %v3853 = vadd.f32 %v3805, 1e-06
        %v3854 = vadd.f32 %v3806, 1e-06
        %v3855 = vadd.f32 %v3807, 1e-06
        %v3856 = vadd.f32 %v3808, 1e-06
        %v3857 = vadd.f32 %v3809, 1e-06
        %v3858 = vadd.f32 %v3810, 1e-06
        %v3859 = vadd.f32 %v3811, 1e-06
        %v3860 = vadd.f32 %v3812, 1e-06
        %v3861 = vadd.f32 %v3813, 1e-06
        %v3862 = vadd.f32 %v3814, 1e-06
        %v3863 = vadd.f32 %v3815, 1e-06
        %v3864 = vadd.f32 %v3816, 1e-06
        %v3865 = vadd.f32 %v3817, 1e-06
        %v3866 = vadd.f32 %v3818, 1e-06
        %v3867 = vadd.f32 %v3819, 1e-06
        %v3868 = vrsqrt.pop %v3852
        %v3869 = vrsqrt.pop %v3853
        %v3870 = vrsqrt.pop %v3854
        %v3871 = vrsqrt.pop %v3855
        %v3872 = vrsqrt.pop %v3856
        %v3873 = vrsqrt.pop %v3857
        %v3874 = vrsqrt.pop %v3858
        %v3875 = vrsqrt.pop %v3859
        %v3876 = vrsqrt.pop %v3860
        %v3877 = vrsqrt.pop %v3861
        %v3878 = vrsqrt.pop %v3862
        %v3879 = vrsqrt.pop %v3863
        %v3880 = vrsqrt.pop %v3864
        %v3881 = vrsqrt.pop %v3865
        %v3882 = vrsqrt.pop %v3866
        %v3883 = vrsqrt.pop %v3867
        %v3884 = vmul.f32 %v3820, %v3868
        %v3885 = vmul.f32 %v3821, %v3868
        %v3886 = vmul.f32 %v3822, %v3869
        %v3887 = vmul.f32 %v3823, %v3869
        %v3888 = vmul.f32 %v3824, %v3870
        %v3889 = vmul.f32 %v3825, %v3870
        %v3890 = vmul.f32 %v3826, %v3871
        %v3891 = vmul.f32 %v3827, %v3871
        %v3892 = vmul.f32 %v3828, %v3872
        %v3893 = vmul.f32 %v3829, %v3872
        %v3894 = vmul.f32 %v3830, %v3873
        %v3895 = vmul.f32 %v3831, %v3873
        %v3896 = vmul.f32 %v3832, %v3874
        %v3897 = vmul.f32 %v3833, %v3874
        %v3898 = vmul.f32 %v3834, %v3875
        %v3899 = vmul.f32 %v3835, %v3875
        %v3900 = vmul.f32 %v3836, %v3876
        %v3901 = vmul.f32 %v3837, %v3876
        %v3902 = vmul.f32 %v3838, %v3877
        %v3903 = vmul.f32 %v3839, %v3877
        %v3904 = vmul.f32 %v3840, %v3878
        %v3905 = vmul.f32 %v3841, %v3878
        %v3906 = vmul.f32 %v3842, %v3879
        %v3907 = vmul.f32 %v3843, %v3879
        %v3908 = vmul.f32 %v3844, %v3880
        %v3909 = vmul.f32 %v3845, %v3880
        %v3910 = vmul.f32 %v3846, %v3881
        %v3911 = vmul.f32 %v3847, %v3881
        %v3912 = vmul.f32 %v3848, %v3882
        %v3913 = vmul.f32 %v3849, %v3882
        %v3914 = vmul.f32 %v3850, %v3883
        %v3915 = vmul.f32 %v3851, %v3883
        %v3917 = vlaneseq
        %v3918 = vshrl.u32 %v3917, 7
        %v3919 = vsub.s32 0, %v3918
        %v3920 = vrot.slane %v3609, %v3919
        %v3921 = vlaneseq
        %v3922 = vshrl.u32 %v3921, 7
        %v3923 = vsub.s32 1, %v3922
        %v3924 = vrot.slane %v3609, %v3923
        %v3927 = vmul.f32 %v3884, %v3920
        %v3928 = vmul.f32 %v3885, %v3924
        %v3929 = vmul.f32 %v3886, %v3920
        %v3930 = vmul.f32 %v3887, %v3924
        %v3931 = vmul.f32 %v3888, %v3920
        %v3932 = vmul.f32 %v3889, %v3924
        %v3933 = vmul.f32 %v3890, %v3920
        %v3934 = vmul.f32 %v3891, %v3924
        %v3935 = vmul.f32 %v3892, %v3920
        %v3936 = vmul.f32 %v3893, %v3924
        %v3937 = vmul.f32 %v3894, %v3920
        %v3938 = vmul.f32 %v3895, %v3924
        %v3939 = vmul.f32 %v3896, %v3920
        %v3940 = vmul.f32 %v3897, %v3924
        %v3941 = vmul.f32 %v3898, %v3920
        %v3942 = vmul.f32 %v3899, %v3924
        %v3943 = vmul.f32 %v3900, %v3920
        %v3944 = vmul.f32 %v3901, %v3924
        %v3945 = vmul.f32 %v3902, %v3920
        %v3946 = vmul.f32 %v3903, %v3924
        %v3947 = vmul.f32 %v3904, %v3920
        %v3948 = vmul.f32 %v3905, %v3924
        %v3949 = vmul.f32 %v3906, %v3920
        %v3950 = vmul.f32 %v3907, %v3924
        %v3951 = vmul.f32 %v3908, %v3920
        %v3952 = vmul.f32 %v3909, %v3924
        %v3953 = vmul.f32 %v3910, %v3920
        %v3954 = vmul.f32 %v3911, %v3924
        %v3955 = vmul.f32 %v3912, %v3920
        %v3956 = vmul.f32 %v3913, %v3924
        %v3957 = vmul.f32 %v3914, %v3920
        %v3958 = vmul.f32 %v3915, %v3924
        %v3960 = vlaneseq
        %v3961 = vshrl.u32 %v3960, 7
        %v3962 = vsub.s32 0, %v3961
        %v3963 = vrot.slane %v3610, %v3962
        %v3964 = vlaneseq
        %v3965 = vshrl.u32 %v3964, 7
        %v3966 = vsub.s32 1, %v3965
        %v3967 = vrot.slane %v3610, %v3966
        %v3970 = vadd.f32 %v3927, %v3963
        %v3971 = vadd.f32 %v3928, %v3967
        %v3972 = vadd.f32 %v3929, %v3963
        %v3973 = vadd.f32 %v3930, %v3967
        %v3974 = vadd.f32 %v3931, %v3963
        %v3975 = vadd.f32 %v3932, %v3967
        %v3976 = vadd.f32 %v3933, %v3963
        %v3977 = vadd.f32 %v3934, %v3967
        %v3978 = vadd.f32 %v3935, %v3963
        %v3979 = vadd.f32 %v3936, %v3967
        %v3980 = vadd.f32 %v3937, %v3963
        %v3981 = vadd.f32 %v3938, %v3967
        %v3982 = vadd.f32 %v3939, %v3963
        %v3983 = vadd.f32 %v3940, %v3967
        %v3984 = vadd.f32 %v3941, %v3963
        %v3985 = vadd.f32 %v3942, %v3967
        %v3986 = vadd.f32 %v3943, %v3963
        %v3987 = vadd.f32 %v3944, %v3967
        %v3988 = vadd.f32 %v3945, %v3963
        %v3989 = vadd.f32 %v3946, %v3967
        %v3990 = vadd.f32 %v3947, %v3963
        %v3991 = vadd.f32 %v3948, %v3967
        %v3992 = vadd.f32 %v3949, %v3963
        %v3993 = vadd.f32 %v3950, %v3967
        %v3994 = vadd.f32 %v3951, %v3963
        %v3995 = vadd.f32 %v3952, %v3967
        %v3996 = vadd.f32 %v3953, %v3963
        %v3997 = vadd.f32 %v3954, %v3967
        %v3998 = vadd.f32 %v3955, %v3963
        %v3999 = vadd.f32 %v3956, %v3967
        %v4000 = vadd.f32 %v3957, %v3963
        %v4001 = vadd.f32 %v3958, %v3967
        %4002 = vst [vmem:[%s304] sm:$0xff] %v3970
        %4003 = vst [vmem:[%s304 + $0x8] sm:$0xff] %v3971
        %4004 = vst [vmem:[%s304 + $0x10] sm:$0xff] %v3972
        %4005 = vst [vmem:[%s304 + $0x18] sm:$0xff] %v3973
        %4006 = vst [vmem:[%s304 + $0x20] sm:$0xff] %v3974
        %4007 = vst [vmem:[%s304 + $0x28] sm:$0xff] %v3975
        %4008 = vst [vmem:[%s304 + $0x30] sm:$0xff] %v3976
        %4009 = vst [vmem:[%s304 + $0x38] sm:$0xff] %v3977
        %4010 = vst [vmem:[%s304 + $0x40] sm:$0xff] %v3978
        %4011 = vst [vmem:[%s304 + $0x48] sm:$0xff] %v3979
        %4012 = vst [vmem:[%s304 + $0x50] sm:$0xff] %v3980
        %4013 = vst [vmem:[%s304 + $0x58] sm:$0xff] %v3981
        %4014 = vst [vmem:[%s304 + $0x60] sm:$0xff] %v3982
        %4015 = vst [vmem:[%s304 + $0x68] sm:$0xff] %v3983
        %4016 = vst [vmem:[%s304 + $0x70] sm:$0xff] %v3984
        %4017 = vst [vmem:[%s304 + $0x78] sm:$0xff] %v3985
        %4018 = vst [vmem:[%s304 + $0x80] sm:$0xff] %v3986
        %4019 = vst [vmem:[%s304 + $0x88] sm:$0xff] %v3987
        %4020 = vst [vmem:[%s304 + $0x90] sm:$0xff] %v3988
        %4021 = vst [vmem:[%s304 + $0x98] sm:$0xff] %v3989
        %4022 = vst [vmem:[%s304 + $0xa0] sm:$0xff] %v3990
        %4023 = vst [vmem:[%s304 + $0xa8] sm:$0xff] %v3991
        %4024 = vst [vmem:[%s304 + $0xb0] sm:$0xff] %v3992
        %4025 = vst [vmem:[%s304 + $0xb8] sm:$0xff] %v3993
        %4026 = vst [vmem:[%s304 + $0xc0] sm:$0xff] %v3994
        %4027 = vst [vmem:[%s304 + $0xc8] sm:$0xff] %v3995
        %4028 = vst [vmem:[%s304 + $0xd0] sm:$0xff] %v3996
        %4029 = vst [vmem:[%s304 + $0xd8] sm:$0xff] %v3997
        %4030 = vst [vmem:[%s304 + $0xe0] sm:$0xff] %v3998
        %4031 = vst [vmem:[%s304 + $0xe8] sm:$0xff] %v3999
        %4032 = vst [vmem:[%s304 + $0xf0] sm:$0xff] %v4000
        %4033 = vst [vmem:[%s304 + $0xf8] sm:$0xff] %v4001
        %s4034 = sand.u32 %s184, 1
        %s4035 = scalar_lea.sflag [#allocation3], %s4034
        %s4036 = sand.u32 %s184, 1
        %s4037 = smul.addr %s4036, 256
        %s4038 = scalar_lea.vmem [#allocation2], %s4037
        // Predicated region
        $region45: #{build_neck_forward.3} parent=43 // pred_check
          %p4039 = pneg %p194
        $region46: #{build_neck_forward.3} parent=43 // pred_check_branch
          %4041 = sbr.rel (%p4039) target = $region48
        $region47: #{build_neck_forward.3} parent=43 // pred_region
          %s4042 = smul.u32 8, %s25
          %s4044 = ssub.s32 4096, 4096
          %4045 = vsyncadd %s4035, %s4044
          %s4046 = smul.addr %s4042, 4
          %s4047 = smul.addr %s24, 64
          %s4048 = sadd.s32 %s4046, %s4047
          %s4049 = smul.addr %s4048, 128
          %s4050 = scalar_lea.hbm %s6, %s4049
          %s4051 = sshll.u32 %s4038, 4
          %s4052 = int_to_ptr.vmem [resolvable:$true] %s4051
          %4057 = dma.vmem_to_hbm [thread:$0]  %s4052, 4096, %s4050, %s4035, 256, 256, 16
        $region48: #{build_neck_forward.3} parent=43 // pred_fallthru
          _
      $region44: #{build_neck_forward.3} parent=5 // pred_fallthru
        _
      %p4058 = scmp.le.s32.totalorder 2, %s15
      // Predicated region
      $region49: #{build_neck_forward.3} parent=5 // pred_check
        %p4059 = pneg %p4058
      $region50: #{build_neck_forward.3} parent=5 // pred_check_branch
        %4061 = sbr.rel (%p4059) target = $region52
      $region51: #{build_neck_forward.3} parent=5 // pred_region
        %s4062 = ssub.s32 %s15, 2
        // Predicated region
        $region53: #{build_neck_forward.3} parent=51 // pred_check
          %p4063 = pneg %p200
        $region54: #{build_neck_forward.3} parent=51 // pred_check_branch
          %4065 = sbr.rel (%p4063) target = $region56
        $region55: #{build_neck_forward.3} parent=51 // pred_region
          %s4066 = sand.u32 %s185, 1
          %s4067 = scalar_lea.sflag [#allocation3], %s4066
          %s4068 = sand.u32 %s185, 1
          %s4069 = smul.addr %s4068, 256
          %s4070 = scalar_lea.vmem [#allocation2], %s4069
          %4071 = dma.done %s4067, 4096
        $region56: #{build_neck_forward.3} parent=51 // pred_fallthru
          _
      $region52: #{build_neck_forward.3} parent=5 // pred_fallthru
        _
    $region6: #{build_neck_forward.3} parent=1 // loop_footer
      %s19 = sadd.s32 1, %s15
    $region7: #{build_neck_forward.3} parent=1 // loop_footer_branch
      %14 = sbr.rel target = $region3
    $region8: #{build_neck_forward.3} parent=1 // loop_exit
      _
    %4072 = vsyncpa [#allocation3], 1
    %s4073 = scalar_lea.sflag [#allocation3], 1
    %4074 = vsyncpa %s4073, 1

// kernel: build_neck_forward.2
$region0: #{build_neck_forward.2}
  #allocation0 [shape = 'u32[]', space=smem, size = 0x4, offset = 0x4, fixed_abs, tag = 'smem constant byte address 0x4 - core index']
  #allocation1 [shape = 'u32[144,128]{1,0:T(1,128)}', space=vmem, size = 0x12000, scoped, tag = 'internal scratch']
  %s0 = inlined_call_operand.vmem [shape: f32[16,8,4], index: 0, kind: input, shape index: {}]
  %s1 = inlined_call_operand.vmem [shape: f32[16,2,8,16], index: 1, kind: input, shape index: {}]
  %s2 = inlined_call_operand.hbm [shape: f32[4,256], index: 2, kind: input, shape index: {}]
  %s3 = inlined_call_operand.hbm [shape: f32[1,256], index: 3, kind: input, shape index: {}]
  %s4 = inlined_call_operand.hbm [shape: f32[1,256], index: 4, kind: input, shape index: {}]
  %s5 = inlined_call_operand.hbm [shape: bf16[256,512], index: 5, kind: input, shape index: {}]
  %s6 = inlined_call_operand.hbm [shape: bf16[256,512], index: 6, kind: input, shape index: {}]
  %s7 = inlined_call_operand.hbm [shape: f32[1,512], index: 7, kind: input, shape index: {}]
  %s8 = inlined_call_operand.hbm [shape: f32[16,512], index: 8, kind: input, shape index: {}]
  %s9 = inlined_call_operand.hbm [shape: f32[1,256], index: 9, kind: input, shape index: {}]
  %s10 = inlined_call_operand.hbm [shape: f32[1,256], index: 10, kind: input, shape index: {}]
  %s11 = inlined_call_operand.vmem [shape: bf16[16,2,8,512], index: 11, kind: output, shape index: {}]
  %s12 = sld [smem:[#allocation0]]
  $region90: #{build_neck_forward.2} parent=0
    _
  %s14 = ssub.s32 1, %s12
  %s15 = scalar_select 0, %s14, %s12
  $region1: #{build_neck_forward.2} parent=0
    #allocation2 [shape = 'u8[4096]{0}', space=vmem, size = 0x1000, scoped, tag = 'input window, operand 2, single buffered']
    #allocation3 [shape = 's32[1]{0}', space=sflag, size = 0x4, scoped, tag = 'scoped memory for build_neck_forward.2']
    #allocation4 [shape = 'u8[1024]{0}', space=vmem, size = 0x400, scoped, tag = 'input window, operand 3, single buffered']
    #allocation5 [shape = 's32[1]{0}', space=sflag, size = 0x4, scoped, tag = 'scoped memory for build_neck_forward.2']
    #allocation6 [shape = 'u8[1024]{0}', space=vmem, size = 0x400, scoped, tag = 'input window, operand 4, single buffered']
    #allocation7 [shape = 'u8[262144]{0}', space=vmem, size = 0x40000, scoped, tag = 'input window, operand 5, single buffered']
    #allocation8 [shape = 's32[1]{0}', space=sflag, size = 0x4, scoped, tag = 'scoped memory for build_neck_forward.2']
    #allocation9 [shape = 'u8[262144]{0}', space=vmem, size = 0x40000, scoped, tag = 'input window, operand 6, single buffered']
    #allocation10 [shape = 'u8[2048]{0}', space=vmem, size = 0x800, scoped, tag = 'input window, operand 7, single buffered']
    #allocation11 [shape = 's32[1]{0}', space=sflag, size = 0x4, scoped, tag = 'scoped memory for build_neck_forward.2']
    #allocation12 [shape = 'u8[32768]{0}', space=vmem, size = 0x8000, scoped, tag = 'input window, operand 8, single buffered']
    #allocation13 [shape = 'u8[1024]{0}', space=vmem, size = 0x400, scoped, tag = 'input window, operand 9, single buffered']
    #allocation14 [shape = 's32[1]{0}', space=sflag, size = 0x4, scoped, tag = 'scoped memory for build_neck_forward.2']
    #allocation15 [shape = 'u8[1024]{0}', space=vmem, size = 0x400, scoped, tag = 'input window, operand 10, single buffered']
    %16 = vsyncpa [#allocation3], 0
    %17 = vsyncpa [#allocation5], 0
    %18 = vsyncpa [#allocation8], 0
    %19 = vsyncpa [#allocation11], 0
    %20 = vsyncpa [#allocation14], 0
    // Predicated region
    $region2: #{build_neck_forward.2} parent=1 // pred_check
      _
    $region3: #{build_neck_forward.2} parent=1 // pred_check_branch
      %22 = sbr.rel (0) target = $region5
    $region4: #{build_neck_forward.2} parent=1 // pred_region
      _
    $region5: #{build_neck_forward.2} parent=1 // pred_fallthru
      _
    // Predicated region
    $region6: #{build_neck_forward.2} parent=1 // pred_check
      _
    $region7: #{build_neck_forward.2} parent=1 // pred_check_branch
      %24 = sbr.rel (0) target = $region9
    $region8: #{build_neck_forward.2} parent=1 // pred_region
      _
    $region9: #{build_neck_forward.2} parent=1 // pred_fallthru
      _
    // Predicated region
    $region10: #{build_neck_forward.2} parent=1 // pred_check
      _
    $region11: #{build_neck_forward.2} parent=1 // pred_check_branch
      %26 = sbr.rel (0) target = $region13
    $region12: #{build_neck_forward.2} parent=1 // pred_region
      %s28 = ssub.s32 128, 128
      %29 = vsyncadd [#allocation3], %s28
      %s31 = sshll.u32 [#allocation2], 4
      %s32 = int_to_ptr.vmem [resolvable:$true] %s31
      %34 = dma.hbm_to_vmem [thread:$0]  %s2, 128, %s32, [#allocation3]
    $region13: #{build_neck_forward.2} parent=1 // pred_fallthru
      _
    // Predicated region
    $region14: #{build_neck_forward.2} parent=1 // pred_check
      _
    $region15: #{build_neck_forward.2} parent=1 // pred_check_branch
      %36 = sbr.rel (0) target = $region17
    $region16: #{build_neck_forward.2} parent=1 // pred_region
      %s38 = ssub.s32 32, 32
      %39 = vsyncadd [#allocation5], %s38
      %s41 = sshll.u32 [#allocation4], 4
      %s42 = int_to_ptr.vmem [resolvable:$true] %s41
      %44 = dma.hbm_to_vmem [thread:$0]  %s3, 32, %s42, [#allocation5]
    $region17: #{build_neck_forward.2} parent=1 // pred_fallthru
      _
    // Predicated region
    $region18: #{build_neck_forward.2} parent=1 // pred_check
      _
    $region19: #{build_neck_forward.2} parent=1 // pred_check_branch
      %46 = sbr.rel (0) target = $region21
    $region20: #{build_neck_forward.2} parent=1 // pred_region
      %s48 = ssub.s32 32, 32
      %49 = vsyncadd [#allocation5], %s48
      %s51 = sshll.u32 [#allocation6], 4
      %s52 = int_to_ptr.vmem [resolvable:$true] %s51
      %54 = dma.hbm_to_vmem [thread:$0]  %s4, 32, %s52, [#allocation5]
    $region21: #{build_neck_forward.2} parent=1 // pred_fallthru
      _
    // Predicated region
    $region22: #{build_neck_forward.2} parent=1 // pred_check
      _
    $region23: #{build_neck_forward.2} parent=1 // pred_check_branch
      %56 = sbr.rel (0) target = $region25
    $region24: #{build_neck_forward.2} parent=1 // pred_region
      %s58 = ssub.s32 8192, 8192
      %59 = vsyncadd [#allocation8], %s58
      %s60 = sshll.u32 [#allocation7], 4
      %s61 = int_to_ptr.vmem [resolvable:$true] %s60
      %66 = dma.hbm_to_vmem [thread:$0]  %s5, 8192, %s61, [#allocation8], 256, 256, 16
    $region25: #{build_neck_forward.2} parent=1 // pred_fallthru
      _
    // Predicated region
    $region26: #{build_neck_forward.2} parent=1 // pred_check
      _
    $region27: #{build_neck_forward.2} parent=1 // pred_check_branch
      %68 = sbr.rel (0) target = $region29
    $region28: #{build_neck_forward.2} parent=1 // pred_region
      %s70 = ssub.s32 8192, 8192
      %71 = vsyncadd [#allocation8], %s70
      %s72 = sshll.u32 [#allocation9], 4
      %s73 = int_to_ptr.vmem [resolvable:$true] %s72
      %78 = dma.hbm_to_vmem [thread:$0]  %s6, 8192, %s73, [#allocation8], 256, 256, 16
    $region29: #{build_neck_forward.2} parent=1 // pred_fallthru
      _
    // Predicated region
    $region30: #{build_neck_forward.2} parent=1 // pred_check
      _
    $region31: #{build_neck_forward.2} parent=1 // pred_check_branch
      %80 = sbr.rel (0) target = $region33
    $region32: #{build_neck_forward.2} parent=1 // pred_region
      %s82 = ssub.s32 64, 64
      %83 = vsyncadd [#allocation11], %s82
      %s85 = sshll.u32 [#allocation10], 4
      %s86 = int_to_ptr.vmem [resolvable:$true] %s85
      %88 = dma.hbm_to_vmem [thread:$0]  %s7, 64, %s86, [#allocation11]
    $region33: #{build_neck_forward.2} parent=1 // pred_fallthru
      _
    // Predicated region
    $region34: #{build_neck_forward.2} parent=1 // pred_check
      _
    $region35: #{build_neck_forward.2} parent=1 // pred_check_branch
      %90 = sbr.rel (0) target = $region37
    $region36: #{build_neck_forward.2} parent=1 // pred_region
      %s92 = ssub.s32 1024, 1024
      %93 = vsyncadd [#allocation11], %s92
      %s94 = sshll.u32 [#allocation12], 4
      %s95 = int_to_ptr.vmem [resolvable:$true] %s94
      %100 = dma.hbm_to_vmem [thread:$0]  %s8, 1024, %s95, [#allocation11], 512, 512, 32
    $region37: #{build_neck_forward.2} parent=1 // pred_fallthru
      _
    // Predicated region
    $region38: #{build_neck_forward.2} parent=1 // pred_check
      _
    $region39: #{build_neck_forward.2} parent=1 // pred_check_branch
      %102 = sbr.rel (0) target = $region41
    $region40: #{build_neck_forward.2} parent=1 // pred_region
      %s104 = ssub.s32 32, 32
      %105 = vsyncadd [#allocation14], %s104
      %s107 = sshll.u32 [#allocation13], 4
      %s108 = int_to_ptr.vmem [resolvable:$true] %s107
      %110 = dma.hbm_to_vmem [thread:$0]  %s9, 32, %s108, [#allocation14]
    $region41: #{build_neck_forward.2} parent=1 // pred_fallthru
      _
    // Predicated region
    $region42: #{build_neck_forward.2} parent=1 // pred_check
      _
    $region43: #{build_neck_forward.2} parent=1 // pred_check_branch
      %112 = sbr.rel (0) target = $region45
    $region44: #{build_neck_forward.2} parent=1 // pred_region
      %s114 = ssub.s32 32, 32
      %115 = vsyncadd [#allocation14], %s114
      %s117 = sshll.u32 [#allocation15], 4
      %s118 = int_to_ptr.vmem [resolvable:$true] %s117
      %120 = dma.hbm_to_vmem [thread:$0]  %s10, 32, %s118, [#allocation14]
    $region45: #{build_neck_forward.2} parent=1 // pred_fallthru
      _
    // Predicated region
    $region46: #{build_neck_forward.2} parent=1 // pred_check
      _
    $region47: #{build_neck_forward.2} parent=1 // pred_check_branch
      %122 = sbr.rel (0) target = $region49
    $region48: #{build_neck_forward.2} parent=1 // pred_region
      %123 = dma.done [#allocation3], 128
    $region49: #{build_neck_forward.2} parent=1 // pred_fallthru
      _
    // Predicated region
    $region50: #{build_neck_forward.2} parent=1 // pred_check
      _
    $region51: #{build_neck_forward.2} parent=1 // pred_check_branch
      %125 = sbr.rel (0) target = $region53
    $region52: #{build_neck_forward.2} parent=1 // pred_region
      %126 = dma.done [#allocation5], 32
    $region53: #{build_neck_forward.2} parent=1 // pred_fallthru
      _
    // Predicated region
    $region54: #{build_neck_forward.2} parent=1 // pred_check
      _
    $region55: #{build_neck_forward.2} parent=1 // pred_check_branch
      %128 = sbr.rel (0) target = $region57
    $region56: #{build_neck_forward.2} parent=1 // pred_region
      %129 = dma.done [#allocation5], 32
    $region57: #{build_neck_forward.2} parent=1 // pred_fallthru
      _
    // Predicated region
    $region58: #{build_neck_forward.2} parent=1 // pred_check
      _
    $region59: #{build_neck_forward.2} parent=1 // pred_check_branch
      %131 = sbr.rel (0) target = $region61
    $region60: #{build_neck_forward.2} parent=1 // pred_region
      %132 = dma.done [#allocation8], 8192
    $region61: #{build_neck_forward.2} parent=1 // pred_fallthru
      _
    // Predicated region
    $region62: #{build_neck_forward.2} parent=1 // pred_check
      _
    $region63: #{build_neck_forward.2} parent=1 // pred_check_branch
      %134 = sbr.rel (0) target = $region65
    $region64: #{build_neck_forward.2} parent=1 // pred_region
      %135 = dma.done [#allocation8], 8192
    $region65: #{build_neck_forward.2} parent=1 // pred_fallthru
      _
    // Predicated region
    $region66: #{build_neck_forward.2} parent=1 // pred_check
      _
    $region67: #{build_neck_forward.2} parent=1 // pred_check_branch
      %137 = sbr.rel (0) target = $region69
    $region68: #{build_neck_forward.2} parent=1 // pred_region
      %138 = dma.done [#allocation11], 64
    $region69: #{build_neck_forward.2} parent=1 // pred_fallthru
      _
    // Predicated region
    $region70: #{build_neck_forward.2} parent=1 // pred_check
      _
    $region71: #{build_neck_forward.2} parent=1 // pred_check_branch
      %140 = sbr.rel (0) target = $region73
    $region72: #{build_neck_forward.2} parent=1 // pred_region
      %141 = dma.done [#allocation11], 1024
    $region73: #{build_neck_forward.2} parent=1 // pred_fallthru
      _
    // Predicated region
    $region74: #{build_neck_forward.2} parent=1 // pred_check
      _
    $region75: #{build_neck_forward.2} parent=1 // pred_check_branch
      %143 = sbr.rel (0) target = $region77
    $region76: #{build_neck_forward.2} parent=1 // pred_region
      %144 = dma.done [#allocation14], 32
    $region77: #{build_neck_forward.2} parent=1 // pred_fallthru
      _
    // Predicated region
    $region78: #{build_neck_forward.2} parent=1 // pred_check
      _
    $region79: #{build_neck_forward.2} parent=1 // pred_check_branch
      %146 = sbr.rel (0) target = $region81
    $region80: #{build_neck_forward.2} parent=1 // pred_region
      %147 = dma.done [#allocation14], 32
    $region81: #{build_neck_forward.2} parent=1 // pred_fallthru
      _
    %v148 = vld [vmem:[%s0] sm:$0xff]
    %v149 = vld [vmem:[%s0 + $0x8] sm:$0xff]
    %v150 = vld [vmem:[%s0 + $0x10] sm:$0xff]
    %v151 = vld [vmem:[%s0 + $0x18] sm:$0xff]
    %v152 = vld [vmem:[%s0 + $0x20] sm:$0xff]
    %v153 = vld [vmem:[%s0 + $0x28] sm:$0xff]
    %v154 = vld [vmem:[%s0 + $0x30] sm:$0xff]
    %v155 = vld [vmem:[%s0 + $0x38] sm:$0xff]
    %v156 = vld [vmem:[%s0 + $0x40] sm:$0xff]
    %v157 = vld [vmem:[%s0 + $0x48] sm:$0xff]
    %v158 = vld [vmem:[%s0 + $0x50] sm:$0xff]
    %v159 = vld [vmem:[%s0 + $0x58] sm:$0xff]
    %v160 = vld [vmem:[%s0 + $0x60] sm:$0xff]
    %v161 = vld [vmem:[%s0 + $0x68] sm:$0xff]
    %v162 = vld [vmem:[%s0 + $0x70] sm:$0xff]
    %v163 = vld [vmem:[%s0 + $0x78] sm:$0xff]
    %v164 = vld [vmem:[#allocation2] sm:$0xff]
    %v166 = vcombine.high %v164, %v164
    %vm167 = vcmask 31744
    %v169 = vsel %vm167, %v148, 0
    %v172 = vsel %vm167, %v149, 0
    %v175 = vsel %vm167, %v150, 0
    %v178 = vsel %vm167, %v151, 0
    %v181 = vsel %vm167, %v152, 0
    %v184 = vsel %vm167, %v153, 0
    %v187 = vsel %vm167, %v154, 0
    %v190 = vsel %vm167, %v155, 0
    %v193 = vsel %vm167, %v156, 0
    %v196 = vsel %vm167, %v157, 0
    %v199 = vsel %vm167, %v158, 0
    %v202 = vsel %vm167, %v159, 0
    %v205 = vsel %vm167, %v160, 0
    %v208 = vsel %vm167, %v161, 0
    %v211 = vsel %vm167, %v162, 0
    %v214 = vsel %vm167, %v163, 0
    %vm216 = vcmask 1043456
    %v217 = vsel %vm216, %v164, 0
    %v219 = vsel %vm216, %v166, 0
    %221 = vmatprep.subr.mxu0 %v219
    %222 = vmatpush1.msra.mxu0 %v217
    %223 = vmatprep.subr.mxu0 0.0
    %224 = vmatpush1.msra.mxu0 0.0
    %225 = vmatprep.subr.mxu0 0.0
    %226 = vmatpush1.msra.mxu0 0.0
    %227 = vmatprep.subr.mxu0 0.0
    %228 = vmatpush1.msra.mxu0 0.0
    %229 = vmatprep.subr.mxu0 0.0
    %230 = vmatpush1.msra.mxu0 0.0
    %231 = vmatprep.subr.mxu0 0.0
    %232 = vmatpush1.msra.mxu0 0.0
    %233 = vmatprep.subr.mxu0 0.0
    %234 = vmatpush1.msra.mxu0 0.0
    %235 = vmatprep.subr.mxu0 0.0
    %236 = vmatpush1.msra.mxu0 0.0
    %237 = vmatprep.subr.mxu0 0.0
    %238 = vmatpush1.msra.mxu0 0.0
    %239 = vmatprep.subr.mxu0 0.0
    %240 = vmatpush1.msra.mxu0 0.0
    %241 = vmatprep.subr.mxu0 0.0
    %242 = vmatpush1.msra.mxu0 0.0
    %243 = vmatprep.subr.mxu0 0.0
    %244 = vmatpush1.msra.mxu0 0.0
    %245 = vmatprep.subr.mxu0 0.0
    %246 = vmatpush1.msra.mxu0 0.0
    %247 = vmatprep.subr.mxu0 0.0
    %248 = vmatpush1.msra.mxu0 0.0
    %249 = vmatprep.subr.mxu0 0.0
    %250 = vmatpush1.msra.mxu0 0.0
    %251 = vmatprep.subr.mxu0 0.0
    %252 = vmatpush1.msra.mxu0 0.0
    %253 = vmatprep.subr.mxu0 0.0
    %254 = vmatpush1.msra.mxu0 0.0
    %255 = vmatprep.subr.mxu0 0.0
    %256 = vmatpush1.msra.mxu0 0.0
    %257 = vmatprep.subr.mxu0 0.0
    %258 = vmatpush1.msra.mxu0 0.0
    %259 = vmatprep.subr.mxu0 0.0
    %260 = vmatpush1.msra.mxu0 0.0
    %261 = vmatprep.subr.mxu0 0.0
    %262 = vmatpush1.msra.mxu0 0.0
    %263 = vmatprep.subr.mxu0 0.0
    %264 = vmatpush1.msra.mxu0 0.0
    %265 = vmatprep.subr.mxu0 0.0
    %266 = vmatpush1.msra.mxu0 0.0
    %267 = vmatprep.subr.mxu0 0.0
    %268 = vmatpush1.msra.mxu0 0.0
    %269 = vmatprep.subr.mxu0 0.0
    %270 = vmatpush1.msra.mxu0 0.0
    %271 = vmatprep.subr.mxu0 0.0
    %272 = vmatpush1.msra.mxu0 0.0
    %273 = vmatprep.subr.mxu0 0.0
    %274 = vmatpush1.msra.mxu0 0.0
    %275 = vmatprep.subr.mxu0 0.0
    %276 = vmatpush1.msra.mxu0 0.0
    %277 = vmatprep.subr.mxu0 0.0
    %278 = vmatpush1.msra.mxu0 0.0
    %279 = vmatprep.subr.mxu0 0.0
    %280 = vmatpush1.msra.mxu0 0.0
    %281 = vmatprep.subr.mxu0 0.0
    %282 = vmatpush1.msra.mxu0 0.0
    %283 = vmatprep.subr.mxu0 0.0
    %284 = vmatpush1.msra.mxu0 0.0
    %285 = vmatprep.mubr.f32.mxu0 0.0
    %286 = vmatmul.mubr.f32.gmra.mrb[0].mxu0 %v169
    %v287 = vpop.f32.mrb[0].mxu0
    %v288 = vadd.f32 0.0, %v287
    %v289 = vpop.f32.mrb[0].mxu0
    %v290 = vadd.f32 0.0, %v289
    %291 = vmatprep.mubr.f32.mxu0 0.0
    %292 = vmatmul.mubr.f32.gmra.mrb[0].mxu0 %v172
    %v293 = vpop.f32.mrb[0].mxu0
    %v294 = vadd.f32 0.0, %v293
    %v295 = vpop.f32.mrb[0].mxu0
    %v296 = vadd.f32 0.0, %v295
    %297 = vmatprep.mubr.f32.mxu0 0.0
    %298 = vmatmul.mubr.f32.gmra.mrb[0].mxu0 %v175
    %v299 = vpop.f32.mrb[0].mxu0
    %v300 = vadd.f32 0.0, %v299
    %v301 = vpop.f32.mrb[0].mxu0
    %v302 = vadd.f32 0.0, %v301
    %303 = vmatprep.mubr.f32.mxu0 0.0
    %304 = vmatmul.mubr.f32.gmra.mrb[0].mxu0 %v178
    %v305 = vpop.f32.mrb[0].mxu0
    %v306 = vadd.f32 0.0, %v305
    %v307 = vpop.f32.mrb[0].mxu0
    %v308 = vadd.f32 0.0, %v307
    %309 = vmatprep.mubr.f32.mxu0 0.0
    %310 = vmatmul.mubr.f32.gmra.mrb[0].mxu0 %v181
    %v311 = vpop.f32.mrb[0].mxu0
    %v312 = vadd.f32 0.0, %v311
    %v313 = vpop.f32.mrb[0].mxu0
    %v314 = vadd.f32 0.0, %v313
    %315 = vmatprep.mubr.f32.mxu0 0.0
    %316 = vmatmul.mubr.f32.gmra.mrb[0].mxu0 %v184
    %v317 = vpop.f32.mrb[0].mxu0
    %v318 = vadd.f32 0.0, %v317
    %v319 = vpop.f32.mrb[0].mxu0
    %v320 = vadd.f32 0.0, %v319
    %321 = vmatprep.mubr.f32.mxu0 0.0
    %322 = vmatmul.mubr.f32.gmra.mrb[0].mxu0 %v187
    %v323 = vpop.f32.mrb[0].mxu0
    %v324 = vadd.f32 0.0, %v323
    %v325 = vpop.f32.mrb[0].mxu0
    %v326 = vadd.f32 0.0, %v325
    %327 = vmatprep.mubr.f32.mxu0 0.0
    %328 = vmatmul.mubr.f32.gmra.mrb[0].mxu0 %v190
    %v329 = vpop.f32.mrb[0].mxu0
    %v330 = vadd.f32 0.0, %v329
    %v331 = vpop.f32.mrb[0].mxu0
    %v332 = vadd.f32 0.0, %v331
    %333 = vmatprep.mubr.f32.mxu0 0.0
    %334 = vmatmul.mubr.f32.gmra.mrb[0].mxu0 %v193
    %v335 = vpop.f32.mrb[0].mxu0
    %v336 = vadd.f32 0.0, %v335
    %v337 = vpop.f32.mrb[0].mxu0
    %v338 = vadd.f32 0.0, %v337
    %339 = vmatprep.mubr.f32.mxu0 0.0
    %340 = vmatmul.mubr.f32.gmra.mrb[0].mxu0 %v196
    %v341 = vpop.f32.mrb[0].mxu0
    %v342 = vadd.f32 0.0, %v341
    %v343 = vpop.f32.mrb[0].mxu0
    %v344 = vadd.f32 0.0, %v343
    %345 = vmatprep.mubr.f32.mxu0 0.0
    %346 = vmatmul.mubr.f32.gmra.mrb[0].mxu0 %v199
    %v347 = vpop.f32.mrb[0].mxu0
    %v348 = vadd.f32 0.0, %v347
    %v349 = vpop.f32.mrb[0].mxu0
    %v350 = vadd.f32 0.0, %v349
    %351 = vmatprep.mubr.f32.mxu0 0.0
    %352 = vmatmul.mubr.f32.gmra.mrb[0].mxu0 %v202
    %v353 = vpop.f32.mrb[0].mxu0
    %v354 = vadd.f32 0.0, %v353
    %v355 = vpop.f32.mrb[0].mxu0
    %v356 = vadd.f32 0.0, %v355
    %357 = vmatprep.mubr.f32.mxu0 0.0
    %358 = vmatmul.mubr.f32.gmra.mrb[0].mxu0 %v205
    %v359 = vpop.f32.mrb[0].mxu0
    %v360 = vadd.f32 0.0, %v359
    %v361 = vpop.f32.mrb[0].mxu0
    %v362 = vadd.f32 0.0, %v361
    %363 = vmatprep.mubr.f32.mxu0 0.0
    %364 = vmatmul.mubr.f32.gmra.mrb[0].mxu0 %v208
    %v365 = vpop.f32.mrb[0].mxu0
    %v366 = vadd.f32 0.0, %v365
    %v367 = vpop.f32.mrb[0].mxu0
    %v368 = vadd.f32 0.0, %v367
    %369 = vmatprep.mubr.f32.mxu0 0.0
    %370 = vmatmul.mubr.f32.gmra.mrb[0].mxu0 %v211
    %v371 = vpop.f32.mrb[0].mxu0
    %v372 = vadd.f32 0.0, %v371
    %v373 = vpop.f32.mrb[0].mxu0
    %v374 = vadd.f32 0.0, %v373
    %375 = vmatprep.mubr.f32.mxu0 0.0
    %376 = vmatmul.mubr.f32.gmra.mrb[0].mxu0 %v214
    %v377 = vpop.f32.mrb[0].mxu0
    %v378 = vadd.f32 0.0, %v377
    %v379 = vpop.f32.mrb[0].mxu0
    %v380 = vadd.f32 0.0, %v379
    %381 = vdwg.mxu0
    %v382 = vld [vmem:[#allocation4] sm:$0x3]
    %v383 = vld [vmem:[#allocation6] sm:$0x3]
    %v384 = vadd.f32 %v288, %v290
    %385 = vadd.xlane.f32.xlu0 %v384
    %v386 = vpop.xlane.xlu0 %385
    %v387 = vadd.f32 %v294, %v296
    %388 = vadd.xlane.f32.xlu0 %v387
    %v389 = vpop.xlane.xlu0 %388
    %v390 = vadd.f32 %v300, %v302
    %391 = vadd.xlane.f32.xlu0 %v390
    %v392 = vpop.xlane.xlu0 %391
    %v393 = vadd.f32 %v306, %v308
    %394 = vadd.xlane.f32.xlu0 %v393
    %v395 = vpop.xlane.xlu0 %394
    %v396 = vadd.f32 %v312, %v314
    %397 = vadd.xlane.f32.xlu0 %v396
    %v398 = vpop.xlane.xlu0 %397
    %v399 = vadd.f32 %v318, %v320
    %400 = vadd.xlane.f32.xlu0 %v399
    %v401 = vpop.xlane.xlu0 %400
    %v402 = vadd.f32 %v324, %v326
    %403 = vadd.xlane.f32.xlu0 %v402
    %v404 = vpop.xlane.xlu0 %403
    %v405 = vadd.f32 %v330, %v332
    %406 = vadd.xlane.f32.xlu0 %v405
    %v407 = vpop.xlane.xlu0 %406
    %v408 = vadd.f32 %v336, %v338
    %409 = vadd.xlane.f32.xlu0 %v408
    %v410 = vpop.xlane.xlu0 %409
    %v411 = vadd.f32 %v342, %v344
    %412 = vadd.xlane.f32.xlu0 %v411
    %v413 = vpop.xlane.xlu0 %412
    %v414 = vadd.f32 %v348, %v350
    %415 = vadd.xlane.f32.xlu0 %v414
    %v416 = vpop.xlane.xlu0 %415
    %v417 = vadd.f32 %v354, %v356
    %418 = vadd.xlane.f32.xlu0 %v417
    %v419 = vpop.xlane.xlu0 %418
    %v420 = vadd.f32 %v360, %v362
    %421 = vadd.xlane.f32.xlu0 %v420
    %v422 = vpop.xlane.xlu0 %421
    %v423 = vadd.f32 %v366, %v368
    %424 = vadd.xlane.f32.xlu0 %v423
    %v425 = vpop.xlane.xlu0 %424
    %v426 = vadd.f32 %v372, %v374
    %427 = vadd.xlane.f32.xlu0 %v426
    %v428 = vpop.xlane.xlu0 %427
    %v429 = vadd.f32 %v378, %v380
    %430 = vadd.xlane.f32.xlu0 %v429
    %v431 = vpop.xlane.xlu0 %430
    %v432 = vrcp.pop 256.0
    %v433 = vmul.f32 %v386, %v432
    %v434 = vmul.f32 %v389, %v432
    %v435 = vmul.f32 %v392, %v432
    %v436 = vmul.f32 %v395, %v432
    %v437 = vmul.f32 %v398, %v432
    %v438 = vmul.f32 %v401, %v432
    %v439 = vmul.f32 %v404, %v432
    %v440 = vmul.f32 %v407, %v432
    %v441 = vmul.f32 %v410, %v432
    %v442 = vmul.f32 %v413, %v432
    %v443 = vmul.f32 %v416, %v432
    %v444 = vmul.f32 %v419, %v432
    %v445 = vmul.f32 %v422, %v432
    %v446 = vmul.f32 %v425, %v432
    %v447 = vmul.f32 %v428, %v432
    %v448 = vmul.f32 %v431, %v432
    %v449 = vmul.f32 %v288, %v288
    %v450 = vmul.f32 %v290, %v290
    %v451 = vmul.f32 %v294, %v294
    %v452 = vmul.f32 %v296, %v296
    %v453 = vmul.f32 %v300, %v300
    %v454 = vmul.f32 %v302, %v302
    %v455 = vmul.f32 %v306, %v306
    %v456 = vmul.f32 %v308, %v308
    %v457 = vmul.f32 %v312, %v312
    %v458 = vmul.f32 %v314, %v314
    %v459 = vmul.f32 %v318, %v318
    %v460 = vmul.f32 %v320, %v320
    %v461 = vmul.f32 %v324, %v324
    %v462 = vmul.f32 %v326, %v326
    %v463 = vmul.f32 %v330, %v330
    %v464 = vmul.f32 %v332, %v332
    %v465 = vmul.f32 %v336, %v336
    %v466 = vmul.f32 %v338, %v338
    %v467 = vmul.f32 %v342, %v342
    %v468 = vmul.f32 %v344, %v344
    %v469 = vmul.f32 %v348, %v348
    %v470 = vmul.f32 %v350, %v350
    %v471 = vmul.f32 %v354, %v354
    %v472 = vmul.f32 %v356, %v356
    %v473 = vmul.f32 %v360, %v360
    %v474 = vmul.f32 %v362, %v362
    %v475 = vmul.f32 %v366, %v366
    %v476 = vmul.f32 %v368, %v368
    %v477 = vmul.f32 %v372, %v372
    %v478 = vmul.f32 %v374, %v374
    %v479 = vmul.f32 %v378, %v378
    %v480 = vmul.f32 %v380, %v380
    %v481 = vadd.f32 %v449, %v450
    %482 = vadd.xlane.f32.xlu0 %v481
    %v483 = vpop.xlane.xlu0 %482
    %v484 = vadd.f32 %v451, %v452
    %485 = vadd.xlane.f32.xlu0 %v484
    %v486 = vpop.xlane.xlu0 %485
    %v487 = vadd.f32 %v453, %v454
    %488 = vadd.xlane.f32.xlu0 %v487
    %v489 = vpop.xlane.xlu0 %488
    %v490 = vadd.f32 %v455, %v456
    %491 = vadd.xlane.f32.xlu0 %v490
    %v492 = vpop.xlane.xlu0 %491
    %v493 = vadd.f32 %v457, %v458
    %494 = vadd.xlane.f32.xlu0 %v493
    %v495 = vpop.xlane.xlu0 %494
    %v496 = vadd.f32 %v459, %v460
    %497 = vadd.xlane.f32.xlu0 %v496
    %v498 = vpop.xlane.xlu0 %497
    %v499 = vadd.f32 %v461, %v462
    %500 = vadd.xlane.f32.xlu0 %v499
    %v501 = vpop.xlane.xlu0 %500
    %v502 = vadd.f32 %v463, %v464
    %503 = vadd.xlane.f32.xlu0 %v502
    %v504 = vpop.xlane.xlu0 %503
    %v505 = vadd.f32 %v465, %v466
    %506 = vadd.xlane.f32.xlu0 %v505
    %v507 = vpop.xlane.xlu0 %506
    %v508 = vadd.f32 %v467, %v468
    %509 = vadd.xlane.f32.xlu0 %v508
    %v510 = vpop.xlane.xlu0 %509
    %v511 = vadd.f32 %v469, %v470
    %512 = vadd.xlane.f32.xlu0 %v511
    %v513 = vpop.xlane.xlu0 %512
    %v514 = vadd.f32 %v471, %v472
    %515 = vadd.xlane.f32.xlu0 %v514
    %v516 = vpop.xlane.xlu0 %515
    %v517 = vadd.f32 %v473, %v474
    %518 = vadd.xlane.f32.xlu0 %v517
    %v519 = vpop.xlane.xlu0 %518
    %v520 = vadd.f32 %v475, %v476
    %521 = vadd.xlane.f32.xlu0 %v520
    %v522 = vpop.xlane.xlu0 %521
    %v523 = vadd.f32 %v477, %v478
    %524 = vadd.xlane.f32.xlu0 %v523
    %v525 = vpop.xlane.xlu0 %524
    %v526 = vadd.f32 %v479, %v480
    %527 = vadd.xlane.f32.xlu0 %v526
    %v528 = vpop.xlane.xlu0 %527
    %v529 = vmul.f32 %v483, %v432
    %v530 = vmul.f32 %v486, %v432
    %v531 = vmul.f32 %v489, %v432
    %v532 = vmul.f32 %v492, %v432
    %v533 = vmul.f32 %v495, %v432
    %v534 = vmul.f32 %v498, %v432
    %v535 = vmul.f32 %v501, %v432
    %v536 = vmul.f32 %v504, %v432
    %v537 = vmul.f32 %v507, %v432
    %v538 = vmul.f32 %v510, %v432
    %v539 = vmul.f32 %v513, %v432
    %v540 = vmul.f32 %v516, %v432
    %v541 = vmul.f32 %v519, %v432
    %v542 = vmul.f32 %v522, %v432
    %v543 = vmul.f32 %v525, %v432
    %v544 = vmul.f32 %v528, %v432
    %v545 = vmul.f32 %v433, %v433
    %v546 = vmul.f32 %v434, %v434
    %v547 = vmul.f32 %v435, %v435
    %v548 = vmul.f32 %v436, %v436
    %v549 = vmul.f32 %v437, %v437
    %v550 = vmul.f32 %v438, %v438
    %v551 = vmul.f32 %v439, %v439
    %v552 = vmul.f32 %v440, %v440
    %v553 = vmul.f32 %v441, %v441
    %v554 = vmul.f32 %v442, %v442
    %v555 = vmul.f32 %v443, %v443
    %v556 = vmul.f32 %v444, %v444
    %v557 = vmul.f32 %v445, %v445
    %v558 = vmul.f32 %v446, %v446
    %v559 = vmul.f32 %v447, %v447
    %v560 = vmul.f32 %v448, %v448
    %v561 = vsub.f32 %v529, %v545
    %v562 = vsub.f32 %v530, %v546
    %v563 = vsub.f32 %v531, %v547
    %v564 = vsub.f32 %v532, %v548
    %v565 = vsub.f32 %v533, %v549
    %v566 = vsub.f32 %v534, %v550
    %v567 = vsub.f32 %v535, %v551
    %v568 = vsub.f32 %v536, %v552
    %v569 = vsub.f32 %v537, %v553
    %v570 = vsub.f32 %v538, %v554
    %v571 = vsub.f32 %v539, %v555
    %v572 = vsub.f32 %v540, %v556
    %v573 = vsub.f32 %v541, %v557
    %v574 = vsub.f32 %v542, %v558
    %v575 = vsub.f32 %v543, %v559
    %v576 = vsub.f32 %v544, %v560
    %v577 = vmax.f32 %v561, 0.0
    %v578 = vmax.f32 %v562, 0.0
    %v579 = vmax.f32 %v563, 0.0
    %v580 = vmax.f32 %v564, 0.0
    %v581 = vmax.f32 %v565, 0.0
    %v582 = vmax.f32 %v566, 0.0
    %v583 = vmax.f32 %v567, 0.0
    %v584 = vmax.f32 %v568, 0.0
    %v585 = vmax.f32 %v569, 0.0
    %v586 = vmax.f32 %v570, 0.0
    %v587 = vmax.f32 %v571, 0.0
    %v588 = vmax.f32 %v572, 0.0
    %v589 = vmax.f32 %v573, 0.0
    %v590 = vmax.f32 %v574, 0.0
    %v591 = vmax.f32 %v575, 0.0
    %v592 = vmax.f32 %v576, 0.0
    %v593 = vsub.f32 %v288, %v433
    %v594 = vsub.f32 %v290, %v433
    %v595 = vsub.f32 %v294, %v434
    %v596 = vsub.f32 %v296, %v434
    %v597 = vsub.f32 %v300, %v435
    %v598 = vsub.f32 %v302, %v435
    %v599 = vsub.f32 %v306, %v436
    %v600 = vsub.f32 %v308, %v436
    %v601 = vsub.f32 %v312, %v437
    %v602 = vsub.f32 %v314, %v437
    %v603 = vsub.f32 %v318, %v438
    %v604 = vsub.f32 %v320, %v438
    %v605 = vsub.f32 %v324, %v439
    %v606 = vsub.f32 %v326, %v439
    %v607 = vsub.f32 %v330, %v440
    %v608 = vsub.f32 %v332, %v440
    %v609 = vsub.f32 %v336, %v441
    %v610 = vsub.f32 %v338, %v441
    %v611 = vsub.f32 %v342, %v442
    %v612 = vsub.f32 %v344, %v442
    %v613 = vsub.f32 %v348, %v443
    %v614 = vsub.f32 %v350, %v443
    %v615 = vsub.f32 %v354, %v444
    %v616 = vsub.f32 %v356, %v444
    %v617 = vsub.f32 %v360, %v445
    %v618 = vsub.f32 %v362, %v445
    %v619 = vsub.f32 %v366, %v446
    %v620 = vsub.f32 %v368, %v446
    %v621 = vsub.f32 %v372, %v447
    %v622 = vsub.f32 %v374, %v447
    %v623 = vsub.f32 %v378, %v448
    %v624 = vsub.f32 %v380, %v448
    %v625 = vadd.f32 %v577, 1e-06
    %v626 = vadd.f32 %v578, 1e-06
    %v627 = vadd.f32 %v579, 1e-06
    %v628 = vadd.f32 %v580, 1e-06
    %v629 = vadd.f32 %v581, 1e-06
    %v630 = vadd.f32 %v582, 1e-06
    %v631 = vadd.f32 %v583, 1e-06
    %v632 = vadd.f32 %v584, 1e-06
    %v633 = vadd.f32 %v585, 1e-06
    %v634 = vadd.f32 %v586, 1e-06
    %v635 = vadd.f32 %v587, 1e-06
    %v636 = vadd.f32 %v588, 1e-06
    %v637 = vadd.f32 %v589, 1e-06
    %v638 = vadd.f32 %v590, 1e-06
    %v639 = vadd.f32 %v591, 1e-06
    %v640 = vadd.f32 %v592, 1e-06
    %v641 = vrsqrt.pop %v625
    %v642 = vrsqrt.pop %v626
    %v643 = vrsqrt.pop %v627
    %v644 = vrsqrt.pop %v628
    %v645 = vrsqrt.pop %v629
    %v646 = vrsqrt.pop %v630
    %v647 = vrsqrt.pop %v631
    %v648 = vrsqrt.pop %v632
    %v649 = vrsqrt.pop %v633
    %v650 = vrsqrt.pop %v634
    %v651 = vrsqrt.pop %v635
    %v652 = vrsqrt.pop %v636
    %v653 = vrsqrt.pop %v637
    %v654 = vrsqrt.pop %v638
    %v655 = vrsqrt.pop %v639
    %v656 = vrsqrt.pop %v640
    %v657 = vmul.f32 %v593, %v641
    %v658 = vmul.f32 %v594, %v641
    %v659 = vmul.f32 %v595, %v642
    %v660 = vmul.f32 %v596, %v642
    %v661 = vmul.f32 %v597, %v643
    %v662 = vmul.f32 %v598, %v643
    %v663 = vmul.f32 %v599, %v644
    %v664 = vmul.f32 %v600, %v644
    %v665 = vmul.f32 %v601, %v645
    %v666 = vmul.f32 %v602, %v645
    %v667 = vmul.f32 %v603, %v646
    %v668 = vmul.f32 %v604, %v646
    %v669 = vmul.f32 %v605, %v647
    %v670 = vmul.f32 %v606, %v647
    %v671 = vmul.f32 %v607, %v648
    %v672 = vmul.f32 %v608, %v648
    %v673 = vmul.f32 %v609, %v649
    %v674 = vmul.f32 %v610, %v649
    %v675 = vmul.f32 %v611, %v650
    %v676 = vmul.f32 %v612, %v650
    %v677 = vmul.f32 %v613, %v651
    %v678 = vmul.f32 %v614, %v651
    %v679 = vmul.f32 %v615, %v652
    %v680 = vmul.f32 %v616, %v652
    %v681 = vmul.f32 %v617, %v653
    %v682 = vmul.f32 %v618, %v653
    %v683 = vmul.f32 %v619, %v654
    %v684 = vmul.f32 %v620, %v654
    %v685 = vmul.f32 %v621, %v655
    %v686 = vmul.f32 %v622, %v655
    %v687 = vmul.f32 %v623, %v656
    %v688 = vmul.f32 %v624, %v656
    %v690 = vlaneseq
    %v691 = vshrl.u32 %v690, 7
    %v692 = vsub.s32 0, %v691
    %v693 = vrot.slane %v382, %v692
    %v694 = vlaneseq
    %v695 = vshrl.u32 %v694, 7
    %v696 = vsub.s32 1, %v695
    %v697 = vrot.slane %v382, %v696
    %v700 = vmul.f32 %v657, %v693
    %v701 = vmul.f32 %v658, %v697
    %v702 = vmul.f32 %v659, %v693
    %v703 = vmul.f32 %v660, %v697
    %v704 = vmul.f32 %v661, %v693
    %v705 = vmul.f32 %v662, %v697
    %v706 = vmul.f32 %v663, %v693
    %v707 = vmul.f32 %v664, %v697
    %v708 = vmul.f32 %v665, %v693
    %v709 = vmul.f32 %v666, %v697
    %v710 = vmul.f32 %v667, %v693
    %v711 = vmul.f32 %v668, %v697
    %v712 = vmul.f32 %v669, %v693
    %v713 = vmul.f32 %v670, %v697
    %v714 = vmul.f32 %v671, %v693
    %v715 = vmul.f32 %v672, %v697
    %v716 = vmul.f32 %v673, %v693
    %v717 = vmul.f32 %v674, %v697
    %v718 = vmul.f32 %v675, %v693
    %v719 = vmul.f32 %v676, %v697
    %v720 = vmul.f32 %v677, %v693
    %v721 = vmul.f32 %v678, %v697
    %v722 = vmul.f32 %v679, %v693
    %v723 = vmul.f32 %v680, %v697
    %v724 = vmul.f32 %v681, %v693
    %v725 = vmul.f32 %v682, %v697
    %v726 = vmul.f32 %v683, %v693
    %v727 = vmul.f32 %v684, %v697
    %v728 = vmul.f32 %v685, %v693
    %v729 = vmul.f32 %v686, %v697
    %v730 = vmul.f32 %v687, %v693
    %v731 = vmul.f32 %v688, %v697
    %v733 = vlaneseq
    %v734 = vshrl.u32 %v733, 7
    %v735 = vsub.s32 0, %v734
    %v736 = vrot.slane %v383, %v735
    %v737 = vlaneseq
    %v738 = vshrl.u32 %v737, 7
    %v739 = vsub.s32 1, %v738
    %v740 = vrot.slane %v383, %v739
    %v743 = vadd.f32 %v700, %v736
    %v744 = vadd.f32 %v701, %v740
    %v745 = vadd.f32 %v702, %v736
    %v746 = vadd.f32 %v703, %v740
    %v747 = vadd.f32 %v704, %v736
    %v748 = vadd.f32 %v705, %v740
    %v749 = vadd.f32 %v706, %v736
    %v750 = vadd.f32 %v707, %v740
    %v751 = vadd.f32 %v708, %v736
    %v752 = vadd.f32 %v709, %v740
    %v753 = vadd.f32 %v710, %v736
    %v754 = vadd.f32 %v711, %v740
    %v755 = vadd.f32 %v712, %v736
    %v756 = vadd.f32 %v713, %v740
    %v757 = vadd.f32 %v714, %v736
    %v758 = vadd.f32 %v715, %v740
    %v759 = vadd.f32 %v716, %v736
    %v760 = vadd.f32 %v717, %v740
    %v761 = vadd.f32 %v718, %v736
    %v762 = vadd.f32 %v719, %v740
    %v763 = vadd.f32 %v720, %v736
    %v764 = vadd.f32 %v721, %v740
    %v765 = vadd.f32 %v722, %v736
    %v766 = vadd.f32 %v723, %v740
    %v767 = vadd.f32 %v724, %v736
    %v768 = vadd.f32 %v725, %v740
    %v769 = vadd.f32 %v726, %v736
    %v770 = vadd.f32 %v727, %v740
    %v771 = vadd.f32 %v728, %v736
    %v772 = vadd.f32 %v729, %v740
    %v773 = vadd.f32 %v730, %v736
    %v774 = vadd.f32 %v731, %v740
    %v775 = vpack.c.bf16 %v745, %v743
    %v776 = vpack.c.bf16 %v746, %v744
    %v777 = vpack.c.bf16 %v749, %v747
    %v778 = vpack.c.bf16 %v750, %v748
    %v779 = vpack.c.bf16 %v753, %v751
    %v780 = vpack.c.bf16 %v754, %v752
    %v781 = vpack.c.bf16 %v757, %v755
    %v782 = vpack.c.bf16 %v758, %v756
    %v783 = vpack.c.bf16 %v761, %v759
    %v784 = vpack.c.bf16 %v762, %v760
    %v785 = vpack.c.bf16 %v765, %v763
    %v786 = vpack.c.bf16 %v766, %v764
    %v787 = vpack.c.bf16 %v769, %v767
    %v788 = vpack.c.bf16 %v770, %v768
    %v789 = vpack.c.bf16 %v773, %v771
    %v790 = vpack.c.bf16 %v774, %v772
    %v791 = vld [vmem:[#allocation7] sm:$0xff]
    %v792 = vld [vmem:[#allocation7 + $0x8] sm:$0xff]
    %v793 = vld [vmem:[#allocation7 + $0x10] sm:$0xff]
    %v794 = vld [vmem:[#allocation7 + $0x18] sm:$0xff]
    %v795 = vld [vmem:[#allocation7 + $0x20] sm:$0xff]
    %v796 = vld [vmem:[#allocation7 + $0x28] sm:$0xff]
    %v797 = vld [vmem:[#allocation7 + $0x30] sm:$0xff]
    %v798 = vld [vmem:[#allocation7 + $0x38] sm:$0xff]
    %v799 = vld [vmem:[#allocation7 + $0x40] sm:$0xff]
    %v800 = vld [vmem:[#allocation7 + $0x48] sm:$0xff]
    %v801 = vld [vmem:[#allocation7 + $0x50] sm:$0xff]
    %v802 = vld [vmem:[#allocation7 + $0x58] sm:$0xff]
    %v803 = vld [vmem:[#allocation7 + $0x60] sm:$0xff]
    %v804 = vld [vmem:[#allocation7 + $0x68] sm:$0xff]
    %v805 = vld [vmem:[#allocation7 + $0x70] sm:$0xff]
    %v806 = vld [vmem:[#allocation7 + $0x78] sm:$0xff]
    %v807 = vld [vmem:[#allocation7 + $0x80] sm:$0xff]
    %v808 = vld [vmem:[#allocation7 + $0x88] sm:$0xff]
    %v809 = vld [vmem:[#allocation7 + $0x90] sm:$0xff]
    %v810 = vld [vmem:[#allocation7 + $0x98] sm:$0xff]
    %v811 = vld [vmem:[#allocation7 + $0xa0] sm:$0xff]
    %v812 = vld [vmem:[#allocation7 + $0xa8] sm:$0xff]
    %v813 = vld [vmem:[#allocation7 + $0xb0] sm:$0xff]
    %v814 = vld [vmem:[#allocation7 + $0xb8] sm:$0xff]
    %v815 = vld [vmem:[#allocation7 + $0xc0] sm:$0xff]
    %v816 = vld [vmem:[#allocation7 + $0xc8] sm:$0xff]
    %v817 = vld [vmem:[#allocation7 + $0xd0] sm:$0xff]
    %v818 = vld [vmem:[#allocation7 + $0xd8] sm:$0xff]
    %v819 = vld [vmem:[#allocation7 + $0xe0] sm:$0xff]
    %v820 = vld [vmem:[#allocation7 + $0xe8] sm:$0xff]
    %v821 = vld [vmem:[#allocation7 + $0xf0] sm:$0xff]
    %v822 = vld [vmem:[#allocation7 + $0xf8] sm:$0xff]
    %v823 = vld [vmem:[#allocation7 + $0x100] sm:$0xff]
    %v824 = vld [vmem:[#allocation7 + $0x108] sm:$0xff]
    %v825 = vld [vmem:[#allocation7 + $0x110] sm:$0xff]
    %v826 = vld [vmem:[#allocation7 + $0x118] sm:$0xff]
    %v827 = vld [vmem:[#allocation7 + $0x120] sm:$0xff]
    %v828 = vld [vmem:[#allocation7 + $0x128] sm:$0xff]
    %v829 = vld [vmem:[#allocation7 + $0x130] sm:$0xff]
    %v830 = vld [vmem:[#allocation7 + $0x138] sm:$0xff]
    %v831 = vld [vmem:[#allocation7 + $0x140] sm:$0xff]
    %v832 = vld [vmem:[#allocation7 + $0x148] sm:$0xff]
    %v833 = vld [vmem:[#allocation7 + $0x150] sm:$0xff]
    %v834 = vld [vmem:[#allocation7 + $0x158] sm:$0xff]
    %v835 = vld [vmem:[#allocation7 + $0x160] sm:$0xff]
    %v836 = vld [vmem:[#allocation7 + $0x168] sm:$0xff]
    %v837 = vld [vmem:[#allocation7 + $0x170] sm:$0xff]
    %v838 = vld [vmem:[#allocation7 + $0x178] sm:$0xff]
    %v839 = vld [vmem:[#allocation7 + $0x180] sm:$0xff]
    %v840 = vld [vmem:[#allocation7 + $0x188] sm:$0xff]
    %v841 = vld [vmem:[#allocation7 + $0x190] sm:$0xff]
    %v842 = vld [vmem:[#allocation7 + $0x198] sm:$0xff]
    %v843 = vld [vmem:[#allocation7 + $0x1a0] sm:$0xff]
    %v844 = vld [vmem:[#allocation7 + $0x1a8] sm:$0xff]
    %v845 = vld [vmem:[#allocation7 + $0x1b0] sm:$0xff]
    %v846 = vld [vmem:[#allocation7 + $0x1b8] sm:$0xff]
    %v847 = vld [vmem:[#allocation7 + $0x1c0] sm:$0xff]
    %v848 = vld [vmem:[#allocation7 + $0x1c8] sm:$0xff]
    %v849 = vld [vmem:[#allocation7 + $0x1d0] sm:$0xff]
    %v850 = vld [vmem:[#allocation7 + $0x1d8] sm:$0xff]
    %v851 = vld [vmem:[#allocation7 + $0x1e0] sm:$0xff]
    %v852 = vld [vmem:[#allocation7 + $0x1e8] sm:$0xff]
    %v853 = vld [vmem:[#allocation7 + $0x1f0] sm:$0xff]
    %v854 = vld [vmem:[#allocation7 + $0x1f8] sm:$0xff]
    %v855 = vld [vmem:[#allocation10] sm:$0xf]
    %v857 = vlaneseq
    %v858 = vshrl.u32 %v857, 7
    %v859 = vsub.s32 0, %v858
    %v860 = vrot.slane %v855, %v859
    %v861 = vlaneseq
    %v862 = vshrl.u32 %v861, 7
    %v863 = vsub.s32 1, %v862
    %v864 = vrot.slane %v855, %v863
    %v865 = vlaneseq
    %v866 = vshrl.u32 %v865, 7
    %v867 = vsub.s32 2, %v866
    %v868 = vrot.slane %v855, %v867
    %v869 = vlaneseq
    %v870 = vshrl.u32 %v869, 7
    %v871 = vsub.s32 3, %v870
    %v872 = vrot.slane %v855, %v871
    %v941 = vunpack.c.l.b16 %v791
    %v942 = vunpack.c.h.b16 %v791
    %v943 = vunpack.c.l.b16 %v792
    %v944 = vunpack.c.h.b16 %v792
    %v945 = vunpack.c.l.b16 %v793
    %v946 = vunpack.c.h.b16 %v793
    %v947 = vunpack.c.l.b16 %v794
    %v948 = vunpack.c.h.b16 %v794
    %v949 = vunpack.c.l.b16 %v795
    %v950 = vunpack.c.h.b16 %v795
    %v951 = vunpack.c.l.b16 %v796
    %v952 = vunpack.c.h.b16 %v796
    %v953 = vunpack.c.l.b16 %v797
    %v954 = vunpack.c.h.b16 %v797
    %v955 = vunpack.c.l.b16 %v798
    %v956 = vunpack.c.h.b16 %v798
    %v957 = vunpack.c.l.b16 %v799
    %v958 = vunpack.c.h.b16 %v799
    %v959 = vunpack.c.l.b16 %v800
    %v960 = vunpack.c.h.b16 %v800
    %v961 = vunpack.c.l.b16 %v801
    %v962 = vunpack.c.h.b16 %v801
    %v963 = vunpack.c.l.b16 %v802
    %v964 = vunpack.c.h.b16 %v802
    %v965 = vunpack.c.l.b16 %v803
    %v966 = vunpack.c.h.b16 %v803
    %v967 = vunpack.c.l.b16 %v804
    %v968 = vunpack.c.h.b16 %v804
    %v969 = vunpack.c.l.b16 %v805
    %v970 = vunpack.c.h.b16 %v805
    %v971 = vunpack.c.l.b16 %v806
    %v972 = vunpack.c.h.b16 %v806
    %v973 = vunpack.c.l.b16 %v807
    %v974 = vunpack.c.h.b16 %v807
    %v975 = vunpack.c.l.b16 %v808
    %v976 = vunpack.c.h.b16 %v808
    %v977 = vunpack.c.l.b16 %v809
    %v978 = vunpack.c.h.b16 %v809
    %v979 = vunpack.c.l.b16 %v810
    %v980 = vunpack.c.h.b16 %v810
    %v981 = vunpack.c.l.b16 %v811
    %v982 = vunpack.c.h.b16 %v811
    %v983 = vunpack.c.l.b16 %v812
    %v984 = vunpack.c.h.b16 %v812
    %v985 = vunpack.c.l.b16 %v813
    %v986 = vunpack.c.h.b16 %v813
    %v987 = vunpack.c.l.b16 %v814
    %v988 = vunpack.c.h.b16 %v814
    %v989 = vunpack.c.l.b16 %v815
    %v990 = vunpack.c.h.b16 %v815
    %v991 = vunpack.c.l.b16 %v816
    %v992 = vunpack.c.h.b16 %v816
    %v993 = vunpack.c.l.b16 %v817
    %v994 = vunpack.c.h.b16 %v817
    %v995 = vunpack.c.l.b16 %v818
    %v996 = vunpack.c.h.b16 %v818
    %v997 = vunpack.c.l.b16 %v819
    %v998 = vunpack.c.h.b16 %v819
    %v999 = vunpack.c.l.b16 %v820
    %v1000 = vunpack.c.h.b16 %v820
    %v1001 = vunpack.c.l.b16 %v821
    %v1002 = vunpack.c.h.b16 %v821
    %v1003 = vunpack.c.l.b16 %v822
    %v1004 = vunpack.c.h.b16 %v822
    %v1005 = vunpack.c.l.b16 %v823
    %v1006 = vunpack.c.h.b16 %v823
    %v1007 = vunpack.c.l.b16 %v824
    %v1008 = vunpack.c.h.b16 %v824
    %v1009 = vunpack.c.l.b16 %v825
    %v1010 = vunpack.c.h.b16 %v825
    %v1011 = vunpack.c.l.b16 %v826
    %v1012 = vunpack.c.h.b16 %v826
    %v1013 = vunpack.c.l.b16 %v827
    %v1014 = vunpack.c.h.b16 %v827
    %v1015 = vunpack.c.l.b16 %v828
    %v1016 = vunpack.c.h.b16 %v828
    %v1017 = vunpack.c.l.b16 %v829
    %v1018 = vunpack.c.h.b16 %v829
    %v1019 = vunpack.c.l.b16 %v830
    %v1020 = vunpack.c.h.b16 %v830
    %v1021 = vunpack.c.l.b16 %v831
    %v1022 = vunpack.c.h.b16 %v831
    %v1023 = vunpack.c.l.b16 %v832
    %v1024 = vunpack.c.h.b16 %v832
    %v1025 = vunpack.c.l.b16 %v833
    %v1026 = vunpack.c.h.b16 %v833
    %v1027 = vunpack.c.l.b16 %v834
    %v1028 = vunpack.c.h.b16 %v834
    %v1029 = vunpack.c.l.b16 %v835
    %v1030 = vunpack.c.h.b16 %v835
    %v1031 = vunpack.c.l.b16 %v836
    %v1032 = vunpack.c.h.b16 %v836
    %v1033 = vunpack.c.l.b16 %v837
    %v1034 = vunpack.c.h.b16 %v837
    %v1035 = vunpack.c.l.b16 %v838
    %v1036 = vunpack.c.h.b16 %v838
    %v1037 = vunpack.c.l.b16 %v839
    %v1038 = vunpack.c.h.b16 %v839
    %v1039 = vunpack.c.l.b16 %v840
    %v1040 = vunpack.c.h.b16 %v840
    %v1041 = vunpack.c.l.b16 %v841
    %v1042 = vunpack.c.h.b16 %v841
    %v1043 = vunpack.c.l.b16 %v842
    %v1044 = vunpack.c.h.b16 %v842
    %v1045 = vunpack.c.l.b16 %v843
    %v1046 = vunpack.c.h.b16 %v843
    %v1047 = vunpack.c.l.b16 %v844
    %v1048 = vunpack.c.h.b16 %v844
    %v1049 = vunpack.c.l.b16 %v845
    %v1050 = vunpack.c.h.b16 %v845
    %v1051 = vunpack.c.l.b16 %v846
    %v1052 = vunpack.c.h.b16 %v846
    %v1053 = vunpack.c.l.b16 %v847
    %v1054 = vunpack.c.h.b16 %v847
    %v1055 = vunpack.c.l.b16 %v848
    %v1056 = vunpack.c.h.b16 %v848
    %v1057 = vunpack.c.l.b16 %v849
    %v1058 = vunpack.c.h.b16 %v849
    %v1059 = vunpack.c.l.b16 %v850
    %v1060 = vunpack.c.h.b16 %v850
    %v1061 = vunpack.c.l.b16 %v851
    %v1062 = vunpack.c.h.b16 %v851
    %v1063 = vunpack.c.l.b16 %v852
    %v1064 = vunpack.c.h.b16 %v852
    %v1065 = vunpack.c.l.b16 %v853
    %v1066 = vunpack.c.h.b16 %v853
    %v1067 = vunpack.c.l.b16 %v854
    %v1068 = vunpack.c.h.b16 %v854
    %v1069 = vpack.c.b16 %v945, %v941
    %v1070 = vpack.c.b16 %v946, %v942
    %v1071 = vpack.c.b16 %v947, %v943
    %v1072 = vpack.c.b16 %v948, %v944
    %v1073 = vpack.c.b16 %v953, %v949
    %v1074 = vpack.c.b16 %v954, %v950
    %v1075 = vpack.c.b16 %v955, %v951
    %v1076 = vpack.c.b16 %v956, %v952
    %v1077 = vpack.c.b16 %v961, %v957
    %v1078 = vpack.c.b16 %v962, %v958
    %v1079 = vpack.c.b16 %v963, %v959
    %v1080 = vpack.c.b16 %v964, %v960
    %v1081 = vpack.c.b16 %v969, %v965
    %v1082 = vpack.c.b16 %v970, %v966
    %v1083 = vpack.c.b16 %v971, %v967
    %v1084 = vpack.c.b16 %v972, %v968
    %v1085 = vpack.c.b16 %v977, %v973
    %v1086 = vpack.c.b16 %v978, %v974
    %v1087 = vpack.c.b16 %v979, %v975
    %v1088 = vpack.c.b16 %v980, %v976
    %v1089 = vpack.c.b16 %v985, %v981
    %v1090 = vpack.c.b16 %v986, %v982
    %v1091 = vpack.c.b16 %v987, %v983
    %v1092 = vpack.c.b16 %v988, %v984
    %v1093 = vpack.c.b16 %v993, %v989
    %v1094 = vpack.c.b16 %v994, %v990
    %v1095 = vpack.c.b16 %v995, %v991
    %v1096 = vpack.c.b16 %v996, %v992
    %v1097 = vpack.c.b16 %v1001, %v997
    %v1098 = vpack.c.b16 %v1002, %v998
    %v1099 = vpack.c.b16 %v1003, %v999
    %v1100 = vpack.c.b16 %v1004, %v1000
    %v1101 = vpack.c.b16 %v1009, %v1005
    %v1102 = vpack.c.b16 %v1010, %v1006
    %v1103 = vpack.c.b16 %v1011, %v1007
    %v1104 = vpack.c.b16 %v1012, %v1008
    %v1105 = vpack.c.b16 %v1017, %v1013
    %v1106 = vpack.c.b16 %v1018, %v1014
    %v1107 = vpack.c.b16 %v1019, %v1015
    %v1108 = vpack.c.b16 %v1020, %v1016
    %v1109 = vpack.c.b16 %v1025, %v1021
    %v1110 = vpack.c.b16 %v1026, %v1022
    %v1111 = vpack.c.b16 %v1027, %v1023
    %v1112 = vpack.c.b16 %v1028, %v1024
    %v1113 = vpack.c.b16 %v1033, %v1029
    %v1114 = vpack.c.b16 %v1034, %v1030
    %v1115 = vpack.c.b16 %v1035, %v1031
    %v1116 = vpack.c.b16 %v1036, %v1032
    %v1117 = vpack.c.b16 %v1041, %v1037
    %v1118 = vpack.c.b16 %v1042, %v1038
    %v1119 = vpack.c.b16 %v1043, %v1039
    %v1120 = vpack.c.b16 %v1044, %v1040
    %v1121 = vpack.c.b16 %v1049, %v1045
    %v1122 = vpack.c.b16 %v1050, %v1046
    %v1123 = vpack.c.b16 %v1051, %v1047
    %v1124 = vpack.c.b16 %v1052, %v1048
    %v1125 = vpack.c.b16 %v1057, %v1053
    %v1126 = vpack.c.b16 %v1058, %v1054
    %v1127 = vpack.c.b16 %v1059, %v1055
    %v1128 = vpack.c.b16 %v1060, %v1056
    %v1129 = vpack.c.b16 %v1065, %v1061
    %v1130 = vpack.c.b16 %v1066, %v1062
    %v1131 = vpack.c.b16 %v1067, %v1063
    %v1132 = vpack.c.b16 %v1068, %v1064
    %1197 = vmatprep.subr.bf16.mxu0 %v1070
    %1198 = vmatpush1.bf16.msra.mxu0 %v1069
    %1199 = vmatprep.subr.bf16.mxu0 %v1074
    %1200 = vmatpush1.bf16.msra.mxu0 %v1073
    %1201 = vmatprep.subr.bf16.mxu0 %v1078
    %1202 = vmatpush1.bf16.msra.mxu0 %v1077
    %1203 = vmatprep.subr.bf16.mxu0 %v1082
    %1204 = vmatpush1.bf16.msra.mxu0 %v1081
    %1205 = vmatprep.subr.bf16.mxu0 %v1086
    %1206 = vmatpush1.bf16.msra.mxu0 %v1085
    %1207 = vmatprep.subr.bf16.mxu0 %v1090
    %1208 = vmatpush1.bf16.msra.mxu0 %v1089
    %1209 = vmatprep.subr.bf16.mxu0 %v1094
    %1210 = vmatpush1.bf16.msra.mxu0 %v1093
    %1211 = vmatprep.subr.bf16.mxu0 %v1098
    %1212 = vmatpush1.bf16.msra.mxu0 %v1097
    %1213 = vmatprep.subr.bf16.mxu0 %v1102
    %1214 = vmatpush1.bf16.msra.mxu0 %v1101
    %1215 = vmatprep.subr.bf16.mxu0 %v1106
    %1216 = vmatpush1.bf16.msra.mxu0 %v1105
    %1217 = vmatprep.subr.bf16.mxu0 %v1110
    %1218 = vmatpush1.bf16.msra.mxu0 %v1109
    %1219 = vmatprep.subr.bf16.mxu0 %v1114
    %1220 = vmatpush1.bf16.msra.mxu0 %v1113
    %1221 = vmatprep.subr.bf16.mxu0 %v1118
    %1222 = vmatpush1.bf16.msra.mxu0 %v1117
    %1223 = vmatprep.subr.bf16.mxu0 %v1122
    %1224 = vmatpush1.bf16.msra.mxu0 %v1121
    %1225 = vmatprep.subr.bf16.mxu0 %v1126
    %1226 = vmatpush1.bf16.msra.mxu0 %v1125
    %1227 = vmatprep.subr.bf16.mxu0 %v1130
    %1228 = vmatpush1.bf16.msra.mxu0 %v1129
    %1229 = vmatprep.mubr.bf16.mxu0 %v776
    %1230 = vmatmul.mubr.bf16.gmra.mrb[0].mxu0 %v775
    %v1231 = vpop.f32.mrb[0].mxu0
    %v1232 = vadd.f32 %v860, %v1231
    %v1233 = vpop.f32.mrb[0].mxu0
    %v1234 = vadd.f32 %v864, %v1233
    %v1235 = vpop.f32.mrb[0].mxu0
    %v1236 = vadd.f32 %v860, %v1235
    %v1237 = vpop.f32.mrb[0].mxu0
    %v1238 = vadd.f32 %v864, %v1237
    %1239 = vmatprep.mubr.bf16.mxu0 %v778
    %1240 = vmatmul.mubr.bf16.gmra.mrb[0].mxu0 %v777
    %v1241 = vpop.f32.mrb[0].mxu0
    %v1242 = vadd.f32 %v860, %v1241
    %v1243 = vpop.f32.mrb[0].mxu0
    %v1244 = vadd.f32 %v864, %v1243
    %v1245 = vpop.f32.mrb[0].mxu0
    %v1246 = vadd.f32 %v860, %v1245
    %v1247 = vpop.f32.mrb[0].mxu0
    %v1248 = vadd.f32 %v864, %v1247
    %1249 = vmatprep.mubr.bf16.mxu0 %v780
    %1250 = vmatmul.mubr.bf16.gmra.mrb[0].mxu0 %v779
    %v1251 = vpop.f32.mrb[0].mxu0
    %v1252 = vadd.f32 %v860, %v1251
    %v1253 = vpop.f32.mrb[0].mxu0
    %v1254 = vadd.f32 %v864, %v1253
    %v1255 = vpop.f32.mrb[0].mxu0
    %v1256 = vadd.f32 %v860, %v1255
    %v1257 = vpop.f32.mrb[0].mxu0
    %v1258 = vadd.f32 %v864, %v1257
    %1259 = vmatprep.mubr.bf16.mxu0 %v782
    %1260 = vmatmul.mubr.bf16.gmra.mrb[0].mxu0 %v781
    %v1261 = vpop.f32.mrb[0].mxu0
    %v1262 = vadd.f32 %v860, %v1261
    %v1263 = vpop.f32.mrb[0].mxu0
    %v1264 = vadd.f32 %v864, %v1263
    %v1265 = vpop.f32.mrb[0].mxu0
    %v1266 = vadd.f32 %v860, %v1265
    %v1267 = vpop.f32.mrb[0].mxu0
    %v1268 = vadd.f32 %v864, %v1267
    %1269 = vmatprep.mubr.bf16.mxu0 %v784
    %1270 = vmatmul.mubr.bf16.gmra.mrb[0].mxu0 %v783
    %v1271 = vpop.f32.mrb[0].mxu0
    %v1272 = vadd.f32 %v860, %v1271
    %v1273 = vpop.f32.mrb[0].mxu0
    %v1274 = vadd.f32 %v864, %v1273
    %v1275 = vpop.f32.mrb[0].mxu0
    %v1276 = vadd.f32 %v860, %v1275
    %v1277 = vpop.f32.mrb[0].mxu0
    %v1278 = vadd.f32 %v864, %v1277
    %1279 = vmatprep.mubr.bf16.mxu0 %v786
    %1280 = vmatmul.mubr.bf16.gmra.mrb[0].mxu0 %v785
    %v1281 = vpop.f32.mrb[0].mxu0
    %v1282 = vadd.f32 %v860, %v1281
    %v1283 = vpop.f32.mrb[0].mxu0
    %v1284 = vadd.f32 %v864, %v1283
    %v1285 = vpop.f32.mrb[0].mxu0
    %v1286 = vadd.f32 %v860, %v1285
    %v1287 = vpop.f32.mrb[0].mxu0
    %v1288 = vadd.f32 %v864, %v1287
    %1289 = vmatprep.mubr.bf16.mxu0 %v788
    %1290 = vmatmul.mubr.bf16.gmra.mrb[0].mxu0 %v787
    %v1291 = vpop.f32.mrb[0].mxu0
    %v1292 = vadd.f32 %v860, %v1291
    %v1293 = vpop.f32.mrb[0].mxu0
    %v1294 = vadd.f32 %v864, %v1293
    %v1295 = vpop.f32.mrb[0].mxu0
    %v1296 = vadd.f32 %v860, %v1295
    %v1297 = vpop.f32.mrb[0].mxu0
    %v1298 = vadd.f32 %v864, %v1297
    %1299 = vmatprep.mubr.bf16.mxu0 %v790
    %1300 = vmatmul.mubr.bf16.gmra.mrb[0].mxu0 %v789
    %v1301 = vpop.f32.mrb[0].mxu0
    %v1302 = vadd.f32 %v860, %v1301
    %v1303 = vpop.f32.mrb[0].mxu0
    %v1304 = vadd.f32 %v864, %v1303
    %v1305 = vpop.f32.mrb[0].mxu0
    %v1306 = vadd.f32 %v860, %v1305
    %v1307 = vpop.f32.mrb[0].mxu0
    %v1308 = vadd.f32 %v864, %v1307
    %1309 = vdwg.mxu0
    %1310 = vmatprep.subr.bf16.mxu0 %v1072
    %1311 = vmatpush1.bf16.msra.mxu0 %v1071
    %1312 = vmatprep.subr.bf16.mxu0 %v1076
    %1313 = vmatpush1.bf16.msra.mxu0 %v1075
    %1314 = vmatprep.subr.bf16.mxu0 %v1080
    %1315 = vmatpush1.bf16.msra.mxu0 %v1079
    %1316 = vmatprep.subr.bf16.mxu0 %v1084
    %1317 = vmatpush1.bf16.msra.mxu0 %v1083
    %1318 = vmatprep.subr.bf16.mxu0 %v1088
    %1319 = vmatpush1.bf16.msra.mxu0 %v1087
    %1320 = vmatprep.subr.bf16.mxu0 %v1092
    %1321 = vmatpush1.bf16.msra.mxu0 %v1091
    %1322 = vmatprep.subr.bf16.mxu0 %v1096
    %1323 = vmatpush1.bf16.msra.mxu0 %v1095
    %1324 = vmatprep.subr.bf16.mxu0 %v1100
    %1325 = vmatpush1.bf16.msra.mxu0 %v1099
    %1326 = vmatprep.subr.bf16.mxu0 %v1104
    %1327 = vmatpush1.bf16.msra.mxu0 %v1103
    %1328 = vmatprep.subr.bf16.mxu0 %v1108
    %1329 = vmatpush1.bf16.msra.mxu0 %v1107
    %1330 = vmatprep.subr.bf16.mxu0 %v1112
    %1331 = vmatpush1.bf16.msra.mxu0 %v1111
    %1332 = vmatprep.subr.bf16.mxu0 %v1116
    %1333 = vmatpush1.bf16.msra.mxu0 %v1115
    %1334 = vmatprep.subr.bf16.mxu0 %v1120
    %1335 = vmatpush1.bf16.msra.mxu0 %v1119
    %1336 = vmatprep.subr.bf16.mxu0 %v1124
    %1337 = vmatpush1.bf16.msra.mxu0 %v1123
    %1338 = vmatprep.subr.bf16.mxu0 %v1128
    %1339 = vmatpush1.bf16.msra.mxu0 %v1127
    %1340 = vmatprep.subr.bf16.mxu0 %v1132
    %1341 = vmatpush1.bf16.msra.mxu0 %v1131
    %1342 = vmatprep.mubr.bf16.mxu0 %v776
    %1343 = vmatmul.mubr.bf16.gmra.mrb[0].mxu0 %v775
    %v1344 = vpop.f32.mrb[0].mxu0
    %v1345 = vadd.f32 %v868, %v1344
    %v1346 = vpop.f32.mrb[0].mxu0
    %v1347 = vadd.f32 %v872, %v1346
    %v1348 = vpop.f32.mrb[0].mxu0
    %v1349 = vadd.f32 %v868, %v1348
    %v1350 = vpop.f32.mrb[0].mxu0
    %v1351 = vadd.f32 %v872, %v1350
    %1352 = vmatprep.mubr.bf16.mxu0 %v778
    %1353 = vmatmul.mubr.bf16.gmra.mrb[0].mxu0 %v777
    %v1354 = vpop.f32.mrb[0].mxu0
    %v1355 = vadd.f32 %v868, %v1354
    %v1356 = vpop.f32.mrb[0].mxu0
    %v1357 = vadd.f32 %v872, %v1356
    %v1358 = vpop.f32.mrb[0].mxu0
    %v1359 = vadd.f32 %v868, %v1358
    %v1360 = vpop.f32.mrb[0].mxu0
    %v1361 = vadd.f32 %v872, %v1360
    %1362 = vmatprep.mubr.bf16.mxu0 %v780
    %1363 = vmatmul.mubr.bf16.gmra.mrb[0].mxu0 %v779
    %v1364 = vpop.f32.mrb[0].mxu0
    %v1365 = vadd.f32 %v868, %v1364
    %v1366 = vpop.f32.mrb[0].mxu0
    %v1367 = vadd.f32 %v872, %v1366
    %v1368 = vpop.f32.mrb[0].mxu0
    %v1369 = vadd.f32 %v868, %v1368
    %v1370 = vpop.f32.mrb[0].mxu0
    %v1371 = vadd.f32 %v872, %v1370
    %1372 = vmatprep.mubr.bf16.mxu0 %v782
    %1373 = vmatmul.mubr.bf16.gmra.mrb[0].mxu0 %v781
    %v1374 = vpop.f32.mrb[0].mxu0
    %v1375 = vadd.f32 %v868, %v1374
    %v1376 = vpop.f32.mrb[0].mxu0
    %v1377 = vadd.f32 %v872, %v1376
    %v1378 = vpop.f32.mrb[0].mxu0
    %v1379 = vadd.f32 %v868, %v1378
    %v1380 = vpop.f32.mrb[0].mxu0
    %v1381 = vadd.f32 %v872, %v1380
    %1382 = vmatprep.mubr.bf16.mxu0 %v784
    %1383 = vmatmul.mubr.bf16.gmra.mrb[0].mxu0 %v783
    %v1384 = vpop.f32.mrb[0].mxu0
    %v1385 = vadd.f32 %v868, %v1384
    %v1386 = vpop.f32.mrb[0].mxu0
    %v1387 = vadd.f32 %v872, %v1386
    %v1388 = vpop.f32.mrb[0].mxu0
    %v1389 = vadd.f32 %v868, %v1388
    %v1390 = vpop.f32.mrb[0].mxu0
    %v1391 = vadd.f32 %v872, %v1390
    %1392 = vmatprep.mubr.bf16.mxu0 %v786
    %1393 = vmatmul.mubr.bf16.gmra.mrb[0].mxu0 %v785
    %v1394 = vpop.f32.mrb[0].mxu0
    %v1395 = vadd.f32 %v868, %v1394
    %v1396 = vpop.f32.mrb[0].mxu0
    %v1397 = vadd.f32 %v872, %v1396
    %v1398 = vpop.f32.mrb[0].mxu0
    %v1399 = vadd.f32 %v868, %v1398
    %v1400 = vpop.f32.mrb[0].mxu0
    %v1401 = vadd.f32 %v872, %v1400
    %1402 = vmatprep.mubr.bf16.mxu0 %v788
    %1403 = vmatmul.mubr.bf16.gmra.mrb[0].mxu0 %v787
    %v1404 = vpop.f32.mrb[0].mxu0
    %v1405 = vadd.f32 %v868, %v1404
    %v1406 = vpop.f32.mrb[0].mxu0
    %v1407 = vadd.f32 %v872, %v1406
    %v1408 = vpop.f32.mrb[0].mxu0
    %v1409 = vadd.f32 %v868, %v1408
    %v1410 = vpop.f32.mrb[0].mxu0
    %v1411 = vadd.f32 %v872, %v1410
    %1412 = vmatprep.mubr.bf16.mxu0 %v790
    %1413 = vmatmul.mubr.bf16.gmra.mrb[0].mxu0 %v789
    %v1414 = vpop.f32.mrb[0].mxu0
    %v1415 = vadd.f32 %v868, %v1414
    %v1416 = vpop.f32.mrb[0].mxu0
    %v1417 = vadd.f32 %v872, %v1416
    %v1418 = vpop.f32.mrb[0].mxu0
    %v1419 = vadd.f32 %v868, %v1418
    %v1420 = vpop.f32.mrb[0].mxu0
    %v1421 = vadd.f32 %v872, %v1420
    %1422 = vdwg.mxu0
    %v1423 = vld [vmem:[#allocation9] sm:$0xff]
    %v1424 = vld [vmem:[#allocation9 + $0x8] sm:$0xff]
    %v1425 = vld [vmem:[#allocation9 + $0x10] sm:$0xff]
    %v1426 = vld [vmem:[#allocation9 + $0x18] sm:$0xff]
    %v1427 = vld [vmem:[#allocation9 + $0x20] sm:$0xff]
    %v1428 = vld [vmem:[#allocation9 + $0x28] sm:$0xff]
    %v1429 = vld [vmem:[#allocation9 + $0x30] sm:$0xff]
    %v1430 = vld [vmem:[#allocation9 + $0x38] sm:$0xff]
    %v1431 = vld [vmem:[#allocation9 + $0x40] sm:$0xff]
    %v1432 = vld [vmem:[#allocation9 + $0x48] sm:$0xff]
    %v1433 = vld [vmem:[#allocation9 + $0x50] sm:$0xff]
    %v1434 = vld [vmem:[#allocation9 + $0x58] sm:$0xff]
    %v1435 = vld [vmem:[#allocation9 + $0x60] sm:$0xff]
    %v1436 = vld [vmem:[#allocation9 + $0x68] sm:$0xff]
    %v1437 = vld [vmem:[#allocation9 + $0x70] sm:$0xff]
    %v1438 = vld [vmem:[#allocation9 + $0x78] sm:$0xff]
    %v1439 = vld [vmem:[#allocation9 + $0x80] sm:$0xff]
    %v1440 = vld [vmem:[#allocation9 + $0x88] sm:$0xff]
    %v1441 = vld [vmem:[#allocation9 + $0x90] sm:$0xff]
    %v1442 = vld [vmem:[#allocation9 + $0x98] sm:$0xff]
    %v1443 = vld [vmem:[#allocation9 + $0xa0] sm:$0xff]
    %v1444 = vld [vmem:[#allocation9 + $0xa8] sm:$0xff]
    %v1445 = vld [vmem:[#allocation9 + $0xb0] sm:$0xff]
    %v1446 = vld [vmem:[#allocation9 + $0xb8] sm:$0xff]
    %v1447 = vld [vmem:[#allocation9 + $0xc0] sm:$0xff]
    %v1448 = vld [vmem:[#allocation9 + $0xc8] sm:$0xff]
    %v1449 = vld [vmem:[#allocation9 + $0xd0] sm:$0xff]
    %v1450 = vld [vmem:[#allocation9 + $0xd8] sm:$0xff]
    %v1451 = vld [vmem:[#allocation9 + $0xe0] sm:$0xff]
    %v1452 = vld [vmem:[#allocation9 + $0xe8] sm:$0xff]
    %v1453 = vld [vmem:[#allocation9 + $0xf0] sm:$0xff]
    %v1454 = vld [vmem:[#allocation9 + $0xf8] sm:$0xff]
    %v1455 = vld [vmem:[#allocation9 + $0x100] sm:$0xff]
    %v1456 = vld [vmem:[#allocation9 + $0x108] sm:$0xff]
    %v1457 = vld [vmem:[#allocation9 + $0x110] sm:$0xff]
    %v1458 = vld [vmem:[#allocation9 + $0x118] sm:$0xff]
    %v1459 = vld [vmem:[#allocation9 + $0x120] sm:$0xff]
    %v1460 = vld [vmem:[#allocation9 + $0x128] sm:$0xff]
    %v1461 = vld [vmem:[#allocation9 + $0x130] sm:$0xff]
    %v1462 = vld [vmem:[#allocation9 + $0x138] sm:$0xff]
    %v1463 = vld [vmem:[#allocation9 + $0x140] sm:$0xff]
    %v1464 = vld [vmem:[#allocation9 + $0x148] sm:$0xff]
    %v1465 = vld [vmem:[#allocation9 + $0x150] sm:$0xff]
    %v1466 = vld [vmem:[#allocation9 + $0x158] sm:$0xff]
    %v1467 = vld [vmem:[#allocation9 + $0x160] sm:$0xff]
    %v1468 = vld [vmem:[#allocation9 + $0x168] sm:$0xff]
    %v1469 = vld [vmem:[#allocation9 + $0x170] sm:$0xff]
    %v1470 = vld [vmem:[#allocation9 + $0x178] sm:$0xff]
    %v1471 = vld [vmem:[#allocation9 + $0x180] sm:$0xff]
    %v1472 = vld [vmem:[#allocation9 + $0x188] sm:$0xff]
    %v1473 = vld [vmem:[#allocation9 + $0x190] sm:$0xff]
    %v1474 = vld [vmem:[#allocation9 + $0x198] sm:$0xff]
    %v1475 = vld [vmem:[#allocation9 + $0x1a0] sm:$0xff]
    %v1476 = vld [vmem:[#allocation9 + $0x1a8] sm:$0xff]
    %v1477 = vld [vmem:[#allocation9 + $0x1b0] sm:$0xff]
    %v1478 = vld [vmem:[#allocation9 + $0x1b8] sm:$0xff]
    %v1479 = vld [vmem:[#allocation9 + $0x1c0] sm:$0xff]
    %v1480 = vld [vmem:[#allocation9 + $0x1c8] sm:$0xff]
    %v1481 = vld [vmem:[#allocation9 + $0x1d0] sm:$0xff]
    %v1482 = vld [vmem:[#allocation9 + $0x1d8] sm:$0xff]
    %v1483 = vld [vmem:[#allocation9 + $0x1e0] sm:$0xff]
    %v1484 = vld [vmem:[#allocation9 + $0x1e8] sm:$0xff]
    %v1485 = vld [vmem:[#allocation9 + $0x1f0] sm:$0xff]
    %v1486 = vld [vmem:[#allocation9 + $0x1f8] sm:$0xff]
    %v1551 = vunpack.c.l.b16 %v1423
    %v1552 = vunpack.c.h.b16 %v1423
    %v1553 = vunpack.c.l.b16 %v1424
    %v1554 = vunpack.c.h.b16 %v1424
    %v1555 = vunpack.c.l.b16 %v1425
    %v1556 = vunpack.c.h.b16 %v1425
    %v1557 = vunpack.c.l.b16 %v1426
    %v1558 = vunpack.c.h.b16 %v1426
    %v1559 = vunpack.c.l.b16 %v1427
    %v1560 = vunpack.c.h.b16 %v1427
    %v1561 = vunpack.c.l.b16 %v1428
    %v1562 = vunpack.c.h.b16 %v1428
    %v1563 = vunpack.c.l.b16 %v1429
    %v1564 = vunpack.c.h.b16 %v1429
    %v1565 = vunpack.c.l.b16 %v1430
    %v1566 = vunpack.c.h.b16 %v1430
    %v1567 = vunpack.c.l.b16 %v1431
    %v1568 = vunpack.c.h.b16 %v1431
    %v1569 = vunpack.c.l.b16 %v1432
    %v1570 = vunpack.c.h.b16 %v1432
    %v1571 = vunpack.c.l.b16 %v1433
    %v1572 = vunpack.c.h.b16 %v1433
    %v1573 = vunpack.c.l.b16 %v1434
    %v1574 = vunpack.c.h.b16 %v1434
    %v1575 = vunpack.c.l.b16 %v1435
    %v1576 = vunpack.c.h.b16 %v1435
    %v1577 = vunpack.c.l.b16 %v1436
    %v1578 = vunpack.c.h.b16 %v1436
    %v1579 = vunpack.c.l.b16 %v1437
    %v1580 = vunpack.c.h.b16 %v1437
    %v1581 = vunpack.c.l.b16 %v1438
    %v1582 = vunpack.c.h.b16 %v1438
    %v1583 = vunpack.c.l.b16 %v1439
    %v1584 = vunpack.c.h.b16 %v1439
    %v1585 = vunpack.c.l.b16 %v1440
    %v1586 = vunpack.c.h.b16 %v1440
    %v1587 = vunpack.c.l.b16 %v1441
    %v1588 = vunpack.c.h.b16 %v1441
    %v1589 = vunpack.c.l.b16 %v1442
    %v1590 = vunpack.c.h.b16 %v1442
    %v1591 = vunpack.c.l.b16 %v1443
    %v1592 = vunpack.c.h.b16 %v1443
    %v1593 = vunpack.c.l.b16 %v1444
    %v1594 = vunpack.c.h.b16 %v1444
    %v1595 = vunpack.c.l.b16 %v1445
    %v1596 = vunpack.c.h.b16 %v1445
    %v1597 = vunpack.c.l.b16 %v1446
    %v1598 = vunpack.c.h.b16 %v1446
    %v1599 = vunpack.c.l.b16 %v1447
    %v1600 = vunpack.c.h.b16 %v1447
    %v1601 = vunpack.c.l.b16 %v1448
    %v1602 = vunpack.c.h.b16 %v1448
    %v1603 = vunpack.c.l.b16 %v1449
    %v1604 = vunpack.c.h.b16 %v1449
    %v1605 = vunpack.c.l.b16 %v1450
    %v1606 = vunpack.c.h.b16 %v1450
    %v1607 = vunpack.c.l.b16 %v1451
    %v1608 = vunpack.c.h.b16 %v1451
    %v1609 = vunpack.c.l.b16 %v1452
    %v1610 = vunpack.c.h.b16 %v1452
    %v1611 = vunpack.c.l.b16 %v1453
    %v1612 = vunpack.c.h.b16 %v1453
    %v1613 = vunpack.c.l.b16 %v1454
    %v1614 = vunpack.c.h.b16 %v1454
    %v1615 = vunpack.c.l.b16 %v1455
    %v1616 = vunpack.c.h.b16 %v1455
    %v1617 = vunpack.c.l.b16 %v1456
    %v1618 = vunpack.c.h.b16 %v1456
    %v1619 = vunpack.c.l.b16 %v1457
    %v1620 = vunpack.c.h.b16 %v1457
    %v1621 = vunpack.c.l.b16 %v1458
    %v1622 = vunpack.c.h.b16 %v1458
    %v1623 = vunpack.c.l.b16 %v1459
    %v1624 = vunpack.c.h.b16 %v1459
    %v1625 = vunpack.c.l.b16 %v1460
    %v1626 = vunpack.c.h.b16 %v1460
    %v1627 = vunpack.c.l.b16 %v1461
    %v1628 = vunpack.c.h.b16 %v1461
    %v1629 = vunpack.c.l.b16 %v1462
    %v1630 = vunpack.c.h.b16 %v1462
    %v1631 = vunpack.c.l.b16 %v1463
    %v1632 = vunpack.c.h.b16 %v1463
    %v1633 = vunpack.c.l.b16 %v1464
    %v1634 = vunpack.c.h.b16 %v1464
    %v1635 = vunpack.c.l.b16 %v1465
    %v1636 = vunpack.c.h.b16 %v1465
    %v1637 = vunpack.c.l.b16 %v1466
    %v1638 = vunpack.c.h.b16 %v1466
    %v1639 = vunpack.c.l.b16 %v1467
    %v1640 = vunpack.c.h.b16 %v1467
    %v1641 = vunpack.c.l.b16 %v1468
    %v1642 = vunpack.c.h.b16 %v1468
    %v1643 = vunpack.c.l.b16 %v1469
    %v1644 = vunpack.c.h.b16 %v1469
    %v1645 = vunpack.c.l.b16 %v1470
    %v1646 = vunpack.c.h.b16 %v1470
    %v1647 = vunpack.c.l.b16 %v1471
    %v1648 = vunpack.c.h.b16 %v1471
    %v1649 = vunpack.c.l.b16 %v1472
    %v1650 = vunpack.c.h.b16 %v1472
    %v1651 = vunpack.c.l.b16 %v1473
    %v1652 = vunpack.c.h.b16 %v1473
    %v1653 = vunpack.c.l.b16 %v1474
    %v1654 = vunpack.c.h.b16 %v1474
    %v1655 = vunpack.c.l.b16 %v1475
    %v1656 = vunpack.c.h.b16 %v1475
    %v1657 = vunpack.c.l.b16 %v1476
    %v1658 = vunpack.c.h.b16 %v1476
    %v1659 = vunpack.c.l.b16 %v1477
    %v1660 = vunpack.c.h.b16 %v1477
    %v1661 = vunpack.c.l.b16 %v1478
    %v1662 = vunpack.c.h.b16 %v1478
    %v1663 = vunpack.c.l.b16 %v1479
    %v1664 = vunpack.c.h.b16 %v1479
    %v1665 = vunpack.c.l.b16 %v1480
    %v1666 = vunpack.c.h.b16 %v1480
    %v1667 = vunpack.c.l.b16 %v1481
    %v1668 = vunpack.c.h.b16 %v1481
    %v1669 = vunpack.c.l.b16 %v1482
    %v1670 = vunpack.c.h.b16 %v1482
    %v1671 = vunpack.c.l.b16 %v1483
    %v1672 = vunpack.c.h.b16 %v1483
    %v1673 = vunpack.c.l.b16 %v1484
    %v1674 = vunpack.c.h.b16 %v1484
    %v1675 = vunpack.c.l.b16 %v1485
    %v1676 = vunpack.c.h.b16 %v1485
    %v1677 = vunpack.c.l.b16 %v1486
    %v1678 = vunpack.c.h.b16 %v1486
    %v1679 = vpack.c.b16 %v1555, %v1551
    %v1680 = vpack.c.b16 %v1556, %v1552
    %v1681 = vpack.c.b16 %v1557, %v1553
    %v1682 = vpack.c.b16 %v1558, %v1554
    %v1683 = vpack.c.b16 %v1563, %v1559
    %v1684 = vpack.c.b16 %v1564, %v1560
    %v1685 = vpack.c.b16 %v1565, %v1561
    %v1686 = vpack.c.b16 %v1566, %v1562
    %v1687 = vpack.c.b16 %v1571, %v1567
    %v1688 = vpack.c.b16 %v1572, %v1568
    %v1689 = vpack.c.b16 %v1573, %v1569
    %v1690 = vpack.c.b16 %v1574, %v1570
    %v1691 = vpack.c.b16 %v1579, %v1575
    %v1692 = vpack.c.b16 %v1580, %v1576
    %v1693 = vpack.c.b16 %v1581, %v1577
    %v1694 = vpack.c.b16 %v1582, %v1578
    %v1695 = vpack.c.b16 %v1587, %v1583
    %v1696 = vpack.c.b16 %v1588, %v1584
    %v1697 = vpack.c.b16 %v1589, %v1585
    %v1698 = vpack.c.b16 %v1590, %v1586
    %v1699 = vpack.c.b16 %v1595, %v1591
    %v1700 = vpack.c.b16 %v1596, %v1592
    %v1701 = vpack.c.b16 %v1597, %v1593
    %v1702 = vpack.c.b16 %v1598, %v1594
    %v1703 = vpack.c.b16 %v1603, %v1599
    %v1704 = vpack.c.b16 %v1604, %v1600
    %v1705 = vpack.c.b16 %v1605, %v1601
    %v1706 = vpack.c.b16 %v1606, %v1602
    %v1707 = vpack.c.b16 %v1611, %v1607
    %v1708 = vpack.c.b16 %v1612, %v1608
    %v1709 = vpack.c.b16 %v1613, %v1609
    %v1710 = vpack.c.b16 %v1614, %v1610
    %v1711 = vpack.c.b16 %v1619, %v1615
    %v1712 = vpack.c.b16 %v1620, %v1616
    %v1713 = vpack.c.b16 %v1621, %v1617
    %v1714 = vpack.c.b16 %v1622, %v1618
    %v1715 = vpack.c.b16 %v1627, %v1623
    %v1716 = vpack.c.b16 %v1628, %v1624
    %v1717 = vpack.c.b16 %v1629, %v1625
    %v1718 = vpack.c.b16 %v1630, %v1626
    %v1719 = vpack.c.b16 %v1635, %v1631
    %v1720 = vpack.c.b16 %v1636, %v1632
    %v1721 = vpack.c.b16 %v1637, %v1633
    %v1722 = vpack.c.b16 %v1638, %v1634
    %v1723 = vpack.c.b16 %v1643, %v1639
    %v1724 = vpack.c.b16 %v1644, %v1640
    %v1725 = vpack.c.b16 %v1645, %v1641
    %v1726 = vpack.c.b16 %v1646, %v1642
    %v1727 = vpack.c.b16 %v1651, %v1647
    %v1728 = vpack.c.b16 %v1652, %v1648
    %v1729 = vpack.c.b16 %v1653, %v1649
    %v1730 = vpack.c.b16 %v1654, %v1650
    %v1731 = vpack.c.b16 %v1659, %v1655
    %v1732 = vpack.c.b16 %v1660, %v1656
    %v1733 = vpack.c.b16 %v1661, %v1657
    %v1734 = vpack.c.b16 %v1662, %v1658
    %v1735 = vpack.c.b16 %v1667, %v1663
    %v1736 = vpack.c.b16 %v1668, %v1664
    %v1737 = vpack.c.b16 %v1669, %v1665
    %v1738 = vpack.c.b16 %v1670, %v1666
    %v1739 = vpack.c.b16 %v1675, %v1671
    %v1740 = vpack.c.b16 %v1676, %v1672
    %v1741 = vpack.c.b16 %v1677, %v1673
    %v1742 = vpack.c.b16 %v1678, %v1674
    %1807 = vmatprep.subr.bf16.mxu0 %v1680
    %1808 = vmatpush1.bf16.msra.mxu0 %v1679
    %1809 = vmatprep.subr.bf16.mxu0 %v1684
    %1810 = vmatpush1.bf16.msra.mxu0 %v1683
    %1811 = vmatprep.subr.bf16.mxu0 %v1688
    %1812 = vmatpush1.bf16.msra.mxu0 %v1687
    %1813 = vmatprep.subr.bf16.mxu0 %v1692
    %1814 = vmatpush1.bf16.msra.mxu0 %v1691
    %1815 = vmatprep.subr.bf16.mxu0 %v1696
    %1816 = vmatpush1.bf16.msra.mxu0 %v1695
    %1817 = vmatprep.subr.bf16.mxu0 %v1700
    %1818 = vmatpush1.bf16.msra.mxu0 %v1699
    %1819 = vmatprep.subr.bf16.mxu0 %v1704
    %1820 = vmatpush1.bf16.msra.mxu0 %v1703
    %1821 = vmatprep.subr.bf16.mxu0 %v1708
    %1822 = vmatpush1.bf16.msra.mxu0 %v1707
    %1823 = vmatprep.subr.bf16.mxu0 %v1712
    %1824 = vmatpush1.bf16.msra.mxu0 %v1711
    %1825 = vmatprep.subr.bf16.mxu0 %v1716
    %1826 = vmatpush1.bf16.msra.mxu0 %v1715
    %1827 = vmatprep.subr.bf16.mxu0 %v1720
    %1828 = vmatpush1.bf16.msra.mxu0 %v1719
    %1829 = vmatprep.subr.bf16.mxu0 %v1724
    %1830 = vmatpush1.bf16.msra.mxu0 %v1723
    %1831 = vmatprep.subr.bf16.mxu0 %v1728
    %1832 = vmatpush1.bf16.msra.mxu0 %v1727
    %1833 = vmatprep.subr.bf16.mxu0 %v1732
    %1834 = vmatpush1.bf16.msra.mxu0 %v1731
    %1835 = vmatprep.subr.bf16.mxu0 %v1736
    %1836 = vmatpush1.bf16.msra.mxu0 %v1735
    %1837 = vmatprep.subr.bf16.mxu0 %v1740
    %1838 = vmatpush1.bf16.msra.mxu0 %v1739
    %1839 = vmatprep.mubr.bf16.mxu0 %v776
    %1840 = vmatmul.mubr.bf16.gmra.mrb[0].mxu0 %v775
    %v1841 = vpop.f32.mrb[0].mxu0
    %v1842 = vadd.f32 %v860, %v1841
    %v1843 = vpop.f32.mrb[0].mxu0
    %v1844 = vadd.f32 %v864, %v1843
    %v1845 = vpop.f32.mrb[0].mxu0
    %v1846 = vadd.f32 %v860, %v1845
    %v1847 = vpop.f32.mrb[0].mxu0
    %v1848 = vadd.f32 %v864, %v1847
    %1849 = vmatprep.mubr.bf16.mxu0 %v778
    %1850 = vmatmul.mubr.bf16.gmra.mrb[0].mxu0 %v777
    %v1851 = vpop.f32.mrb[0].mxu0
    %v1852 = vadd.f32 %v860, %v1851
    %v1853 = vpop.f32.mrb[0].mxu0
    %v1854 = vadd.f32 %v864, %v1853
    %v1855 = vpop.f32.mrb[0].mxu0
    %v1856 = vadd.f32 %v860, %v1855
    %v1857 = vpop.f32.mrb[0].mxu0
    %v1858 = vadd.f32 %v864, %v1857
    %1859 = vmatprep.mubr.bf16.mxu0 %v780
    %1860 = vmatmul.mubr.bf16.gmra.mrb[0].mxu0 %v779
    %v1861 = vpop.f32.mrb[0].mxu0
    %v1862 = vadd.f32 %v860, %v1861
    %v1863 = vpop.f32.mrb[0].mxu0
    %v1864 = vadd.f32 %v864, %v1863
    %v1865 = vpop.f32.mrb[0].mxu0
    %v1866 = vadd.f32 %v860, %v1865
    %v1867 = vpop.f32.mrb[0].mxu0
    %v1868 = vadd.f32 %v864, %v1867
    %1869 = vmatprep.mubr.bf16.mxu0 %v782
    %1870 = vmatmul.mubr.bf16.gmra.mrb[0].mxu0 %v781
    %v1871 = vpop.f32.mrb[0].mxu0
    %v1872 = vadd.f32 %v860, %v1871
    %v1873 = vpop.f32.mrb[0].mxu0
    %v1874 = vadd.f32 %v864, %v1873
    %v1875 = vpop.f32.mrb[0].mxu0
    %v1876 = vadd.f32 %v860, %v1875
    %v1877 = vpop.f32.mrb[0].mxu0
    %v1878 = vadd.f32 %v864, %v1877
    %1879 = vmatprep.mubr.bf16.mxu0 %v784
    %1880 = vmatmul.mubr.bf16.gmra.mrb[0].mxu0 %v783
    %v1881 = vpop.f32.mrb[0].mxu0
    %v1882 = vadd.f32 %v860, %v1881
    %v1883 = vpop.f32.mrb[0].mxu0
    %v1884 = vadd.f32 %v864, %v1883
    %v1885 = vpop.f32.mrb[0].mxu0
    %v1886 = vadd.f32 %v860, %v1885
    %v1887 = vpop.f32.mrb[0].mxu0
    %v1888 = vadd.f32 %v864, %v1887
    %1889 = vmatprep.mubr.bf16.mxu0 %v786
    %1890 = vmatmul.mubr.bf16.gmra.mrb[0].mxu0 %v785
    %v1891 = vpop.f32.mrb[0].mxu0
    %v1892 = vadd.f32 %v860, %v1891
    %v1893 = vpop.f32.mrb[0].mxu0
    %v1894 = vadd.f32 %v864, %v1893
    %v1895 = vpop.f32.mrb[0].mxu0
    %v1896 = vadd.f32 %v860, %v1895
    %v1897 = vpop.f32.mrb[0].mxu0
    %v1898 = vadd.f32 %v864, %v1897
    %1899 = vmatprep.mubr.bf16.mxu0 %v788
    %1900 = vmatmul.mubr.bf16.gmra.mrb[0].mxu0 %v787
    %v1901 = vpop.f32.mrb[0].mxu0
    %v1902 = vadd.f32 %v860, %v1901
    %v1903 = vpop.f32.mrb[0].mxu0
    %v1904 = vadd.f32 %v864, %v1903
    %v1905 = vpop.f32.mrb[0].mxu0
    %v1906 = vadd.f32 %v860, %v1905
    %v1907 = vpop.f32.mrb[0].mxu0
    %v1908 = vadd.f32 %v864, %v1907
    %1909 = vmatprep.mubr.bf16.mxu0 %v790
    %1910 = vmatmul.mubr.bf16.gmra.mrb[0].mxu0 %v789
    %v1911 = vpop.f32.mrb[0].mxu0
    %v1912 = vadd.f32 %v860, %v1911
    %v1913 = vpop.f32.mrb[0].mxu0
    %v1914 = vadd.f32 %v864, %v1913
    %v1915 = vpop.f32.mrb[0].mxu0
    %v1916 = vadd.f32 %v860, %v1915
    %v1917 = vpop.f32.mrb[0].mxu0
    %v1918 = vadd.f32 %v864, %v1917
    %1919 = vdwg.mxu0
    %1920 = vmatprep.subr.bf16.mxu0 %v1682
    %1921 = vmatpush1.bf16.msra.mxu0 %v1681
    %1922 = vmatprep.subr.bf16.mxu0 %v1686
    %1923 = vmatpush1.bf16.msra.mxu0 %v1685
    %1924 = vmatprep.subr.bf16.mxu0 %v1690
    %1925 = vmatpush1.bf16.msra.mxu0 %v1689
    %1926 = vmatprep.subr.bf16.mxu0 %v1694
    %1927 = vmatpush1.bf16.msra.mxu0 %v1693
    %1928 = vmatprep.subr.bf16.mxu0 %v1698
    %1929 = vmatpush1.bf16.msra.mxu0 %v1697
    %1930 = vmatprep.subr.bf16.mxu0 %v1702
    %1931 = vmatpush1.bf16.msra.mxu0 %v1701
    %1932 = vmatprep.subr.bf16.mxu0 %v1706
    %1933 = vmatpush1.bf16.msra.mxu0 %v1705
    %1934 = vmatprep.subr.bf16.mxu0 %v1710
    %1935 = vmatpush1.bf16.msra.mxu0 %v1709
    %1936 = vmatprep.subr.bf16.mxu0 %v1714
    %1937 = vmatpush1.bf16.msra.mxu0 %v1713
    %1938 = vmatprep.subr.bf16.mxu0 %v1718
    %1939 = vmatpush1.bf16.msra.mxu0 %v1717
    %1940 = vmatprep.subr.bf16.mxu0 %v1722
    %1941 = vmatpush1.bf16.msra.mxu0 %v1721
    %1942 = vmatprep.subr.bf16.mxu0 %v1726
    %1943 = vmatpush1.bf16.msra.mxu0 %v1725
    %1944 = vmatprep.subr.bf16.mxu0 %v1730
    %1945 = vmatpush1.bf16.msra.mxu0 %v1729
    %1946 = vmatprep.subr.bf16.mxu0 %v1734
    %1947 = vmatpush1.bf16.msra.mxu0 %v1733
    %1948 = vmatprep.subr.bf16.mxu0 %v1738
    %1949 = vmatpush1.bf16.msra.mxu0 %v1737
    %1950 = vmatprep.subr.bf16.mxu0 %v1742
    %1951 = vmatpush1.bf16.msra.mxu0 %v1741
    %1952 = vmatprep.mubr.bf16.mxu0 %v776
    %1953 = vmatmul.mubr.bf16.gmra.mrb[0].mxu0 %v775
    %v1954 = vpop.f32.mrb[0].mxu0
    %v1955 = vadd.f32 %v868, %v1954
    %v1956 = vpop.f32.mrb[0].mxu0
    %v1957 = vadd.f32 %v872, %v1956
    %v1958 = vpop.f32.mrb[0].mxu0
    %v1959 = vadd.f32 %v868, %v1958
    %v1960 = vpop.f32.mrb[0].mxu0
    %v1961 = vadd.f32 %v872, %v1960
    %1962 = vmatprep.mubr.bf16.mxu0 %v778
    %1963 = vmatmul.mubr.bf16.gmra.mrb[0].mxu0 %v777
    %v1964 = vpop.f32.mrb[0].mxu0
    %v1965 = vadd.f32 %v868, %v1964
    %v1966 = vpop.f32.mrb[0].mxu0
    %v1967 = vadd.f32 %v872, %v1966
    %v1968 = vpop.f32.mrb[0].mxu0
    %v1969 = vadd.f32 %v868, %v1968
    %v1970 = vpop.f32.mrb[0].mxu0
    %v1971 = vadd.f32 %v872, %v1970
    %1972 = vmatprep.mubr.bf16.mxu0 %v780
    %1973 = vmatmul.mubr.bf16.gmra.mrb[0].mxu0 %v779
    %v1974 = vpop.f32.mrb[0].mxu0
    %v1975 = vadd.f32 %v868, %v1974
    %v1976 = vpop.f32.mrb[0].mxu0
    %v1977 = vadd.f32 %v872, %v1976
    %v1978 = vpop.f32.mrb[0].mxu0
    %v1979 = vadd.f32 %v868, %v1978
    %v1980 = vpop.f32.mrb[0].mxu0
    %v1981 = vadd.f32 %v872, %v1980
    %1982 = vmatprep.mubr.bf16.mxu0 %v782
    %1983 = vmatmul.mubr.bf16.gmra.mrb[0].mxu0 %v781
    %v1984 = vpop.f32.mrb[0].mxu0
    %v1985 = vadd.f32 %v868, %v1984
    %v1986 = vpop.f32.mrb[0].mxu0
    %v1987 = vadd.f32 %v872, %v1986
    %v1988 = vpop.f32.mrb[0].mxu0
    %v1989 = vadd.f32 %v868, %v1988
    %v1990 = vpop.f32.mrb[0].mxu0
    %v1991 = vadd.f32 %v872, %v1990
    %1992 = vmatprep.mubr.bf16.mxu0 %v784
    %1993 = vmatmul.mubr.bf16.gmra.mrb[0].mxu0 %v783
    %v1994 = vpop.f32.mrb[0].mxu0
    %v1995 = vadd.f32 %v868, %v1994
    %v1996 = vpop.f32.mrb[0].mxu0
    %v1997 = vadd.f32 %v872, %v1996
    %v1998 = vpop.f32.mrb[0].mxu0
    %v1999 = vadd.f32 %v868, %v1998
    %v2000 = vpop.f32.mrb[0].mxu0
    %v2001 = vadd.f32 %v872, %v2000
    %2002 = vmatprep.mubr.bf16.mxu0 %v786
    %2003 = vmatmul.mubr.bf16.gmra.mrb[0].mxu0 %v785
    %v2004 = vpop.f32.mrb[0].mxu0
    %v2005 = vadd.f32 %v868, %v2004
    %v2006 = vpop.f32.mrb[0].mxu0
    %v2007 = vadd.f32 %v872, %v2006
    %v2008 = vpop.f32.mrb[0].mxu0
    %v2009 = vadd.f32 %v868, %v2008
    %v2010 = vpop.f32.mrb[0].mxu0
    %v2011 = vadd.f32 %v872, %v2010
    %2012 = vmatprep.mubr.bf16.mxu0 %v788
    %2013 = vmatmul.mubr.bf16.gmra.mrb[0].mxu0 %v787
    %v2014 = vpop.f32.mrb[0].mxu0
    %v2015 = vadd.f32 %v868, %v2014
    %v2016 = vpop.f32.mrb[0].mxu0
    %v2017 = vadd.f32 %v872, %v2016
    %v2018 = vpop.f32.mrb[0].mxu0
    %v2019 = vadd.f32 %v868, %v2018
    %v2020 = vpop.f32.mrb[0].mxu0
    %v2021 = vadd.f32 %v872, %v2020
    %2022 = vmatprep.mubr.bf16.mxu0 %v790
    %2023 = vmatmul.mubr.bf16.gmra.mrb[0].mxu0 %v789
    %v2024 = vpop.f32.mrb[0].mxu0
    %v2025 = vadd.f32 %v868, %v2024
    %v2026 = vpop.f32.mrb[0].mxu0
    %v2027 = vadd.f32 %v872, %v2026
    %v2028 = vpop.f32.mrb[0].mxu0
    %v2029 = vadd.f32 %v868, %v2028
    %v2030 = vpop.f32.mrb[0].mxu0
    %v2031 = vadd.f32 %v872, %v2030
    %2032 = vdwg.mxu0
    %v2033 = vld [vmem:[%s1] sm:$0xff]
    %v2034 = vld [vmem:[%s1 + $0x8] sm:$0xff]
    %v2035 = vld [vmem:[%s1 + $0x10] sm:$0xff]
    %v2036 = vld [vmem:[%s1 + $0x18] sm:$0xff]
    %v2037 = vld [vmem:[%s1 + $0x20] sm:$0xff]
    %v2038 = vld [vmem:[%s1 + $0x28] sm:$0xff]
    %v2039 = vld [vmem:[%s1 + $0x30] sm:$0xff]
    %v2040 = vld [vmem:[%s1 + $0x38] sm:$0xff]
    %v2041 = vld [vmem:[%s1 + $0x40] sm:$0xff]
    %v2042 = vld [vmem:[%s1 + $0x48] sm:$0xff]
    %v2043 = vld [vmem:[%s1 + $0x50] sm:$0xff]
    %v2044 = vld [vmem:[%s1 + $0x58] sm:$0xff]
    %v2045 = vld [vmem:[%s1 + $0x60] sm:$0xff]
    %v2046 = vld [vmem:[%s1 + $0x68] sm:$0xff]
    %v2047 = vld [vmem:[%s1 + $0x70] sm:$0xff]
    %v2048 = vld [vmem:[%s1 + $0x78] sm:$0xff]
    %v2049 = vld [vmem:[%s1 + $0x80] sm:$0xff]
    %v2050 = vld [vmem:[%s1 + $0x88] sm:$0xff]
    %v2051 = vld [vmem:[%s1 + $0x90] sm:$0xff]
    %v2052 = vld [vmem:[%s1 + $0x98] sm:$0xff]
    %v2053 = vld [vmem:[%s1 + $0xa0] sm:$0xff]
    %v2054 = vld [vmem:[%s1 + $0xa8] sm:$0xff]
    %v2055 = vld [vmem:[%s1 + $0xb0] sm:$0xff]
    %v2056 = vld [vmem:[%s1 + $0xb8] sm:$0xff]
    %v2057 = vld [vmem:[%s1 + $0xc0] sm:$0xff]
    %v2058 = vld [vmem:[%s1 + $0xc8] sm:$0xff]
    %v2059 = vld [vmem:[%s1 + $0xd0] sm:$0xff]
    %v2060 = vld [vmem:[%s1 + $0xd8] sm:$0xff]
    %v2061 = vld [vmem:[%s1 + $0xe0] sm:$0xff]
    %v2062 = vld [vmem:[%s1 + $0xe8] sm:$0xff]
    %v2063 = vld [vmem:[%s1 + $0xf0] sm:$0xff]
    %v2064 = vld [vmem:[%s1 + $0xf8] sm:$0xff]
    %v2065 = vld [vmem:[#allocation12] sm:$0xff]
    %v2066 = vld [vmem:[#allocation12 + $0x8] sm:$0xff]
    %v2067 = vld [vmem:[#allocation12 + $0x10] sm:$0xff]
    %v2068 = vld [vmem:[#allocation12 + $0x18] sm:$0xff]
    %v2069 = vld [vmem:[#allocation12 + $0x20] sm:$0xff]
    %v2070 = vld [vmem:[#allocation12 + $0x28] sm:$0xff]
    %v2071 = vld [vmem:[#allocation12 + $0x30] sm:$0xff]
    %v2072 = vld [vmem:[#allocation12 + $0x38] sm:$0xff]
    %vm2073 = vcmask 130048
    %v2075 = vsel %vm2073, %v2033, 0
    %v2078 = vsel %vm2073, %v2034, 0
    %v2081 = vsel %vm2073, %v2035, 0
    %v2084 = vsel %vm2073, %v2036, 0
    %v2087 = vsel %vm2073, %v2037, 0
    %v2090 = vsel %vm2073, %v2038, 0
    %v2093 = vsel %vm2073, %v2039, 0
    %v2096 = vsel %vm2073, %v2040, 0
    %v2099 = vsel %vm2073, %v2041, 0
    %v2102 = vsel %vm2073, %v2042, 0
    %v2105 = vsel %vm2073, %v2043, 0
    %v2108 = vsel %vm2073, %v2044, 0
    %v2111 = vsel %vm2073, %v2045, 0
    %v2114 = vsel %vm2073, %v2046, 0
    %v2117 = vsel %vm2073, %v2047, 0
    %v2120 = vsel %vm2073, %v2048, 0
    %v2123 = vsel %vm2073, %v2049, 0
    %v2126 = vsel %vm2073, %v2050, 0
    %v2129 = vsel %vm2073, %v2051, 0
    %v2132 = vsel %vm2073, %v2052, 0
    %v2135 = vsel %vm2073, %v2053, 0
    %v2138 = vsel %vm2073, %v2054, 0
    %v2141 = vsel %vm2073, %v2055, 0
    %v2144 = vsel %vm2073, %v2056, 0
    %v2147 = vsel %vm2073, %v2057, 0
    %v2150 = vsel %vm2073, %v2058, 0
    %v2153 = vsel %vm2073, %v2059, 0
    %v2156 = vsel %vm2073, %v2060, 0
    %v2159 = vsel %vm2073, %v2061, 0
    %v2162 = vsel %vm2073, %v2062, 0
    %v2165 = vsel %vm2073, %v2063, 0
    %v2168 = vsel %vm2073, %v2064, 0
    %2170 = vmatprep.subr.mxu0 %v2066
    %2171 = vmatpush1.msra.mxu0 %v2065
    %2172 = vmatprep.subr.mxu0 %v2070
    %2173 = vmatpush1.msra.mxu0 %v2069
    %2174 = vmatprep.subr.mxu0 0.0
    %2175 = vmatpush1.msra.mxu0 0.0
    %2176 = vmatprep.subr.mxu0 0.0
    %2177 = vmatpush1.msra.mxu0 0.0
    %2178 = vmatprep.subr.mxu0 0.0
    %2179 = vmatpush1.msra.mxu0 0.0
    %2180 = vmatprep.subr.mxu0 0.0
    %2181 = vmatpush1.msra.mxu0 0.0
    %2182 = vmatprep.subr.mxu0 0.0
    %2183 = vmatpush1.msra.mxu0 0.0
    %2184 = vmatprep.subr.mxu0 0.0
    %2185 = vmatpush1.msra.mxu0 0.0
    %2186 = vmatprep.subr.mxu0 0.0
    %2187 = vmatpush1.msra.mxu0 0.0
    %2188 = vmatprep.subr.mxu0 0.0
    %2189 = vmatpush1.msra.mxu0 0.0
    %2190 = vmatprep.subr.mxu0 0.0
    %2191 = vmatpush1.msra.mxu0 0.0
    %2192 = vmatprep.subr.mxu0 0.0
    %2193 = vmatpush1.msra.mxu0 0.0
    %2194 = vmatprep.subr.mxu0 0.0
    %2195 = vmatpush1.msra.mxu0 0.0
    %2196 = vmatprep.subr.mxu0 0.0
    %2197 = vmatpush1.msra.mxu0 0.0
    %2198 = vmatprep.subr.mxu0 0.0
    %2199 = vmatpush1.msra.mxu0 0.0
    %2200 = vmatprep.subr.mxu0 0.0
    %2201 = vmatpush1.msra.mxu0 0.0
    %2202 = vmatprep.subr.mxu0 0.0
    %2203 = vmatpush1.msra.mxu0 0.0
    %2204 = vmatprep.subr.mxu0 0.0
    %2205 = vmatpush1.msra.mxu0 0.0
    %2206 = vmatprep.subr.mxu0 0.0
    %2207 = vmatpush1.msra.mxu0 0.0
    %2208 = vmatprep.subr.mxu0 0.0
    %2209 = vmatpush1.msra.mxu0 0.0
    %2210 = vmatprep.subr.mxu0 0.0
    %2211 = vmatpush1.msra.mxu0 0.0
    %2212 = vmatprep.subr.mxu0 0.0
    %2213 = vmatpush1.msra.mxu0 0.0
    %2214 = vmatprep.subr.mxu0 0.0
    %2215 = vmatpush1.msra.mxu0 0.0
    %2216 = vmatprep.subr.mxu0 0.0
    %2217 = vmatpush1.msra.mxu0 0.0
    %2218 = vmatprep.subr.mxu0 0.0
    %2219 = vmatpush1.msra.mxu0 0.0
    %2220 = vmatprep.subr.mxu0 0.0
    %2221 = vmatpush1.msra.mxu0 0.0
    %2222 = vmatprep.subr.mxu0 0.0
    %2223 = vmatpush1.msra.mxu0 0.0
    %2224 = vmatprep.subr.mxu0 0.0
    %2225 = vmatpush1.msra.mxu0 0.0
    %2226 = vmatprep.subr.mxu0 0.0
    %2227 = vmatpush1.msra.mxu0 0.0
    %2228 = vmatprep.subr.mxu0 0.0
    %2229 = vmatpush1.msra.mxu0 0.0
    %2230 = vmatprep.subr.mxu0 0.0
    %2231 = vmatpush1.msra.mxu0 0.0
    %2232 = vmatprep.subr.mxu0 0.0
    %2233 = vmatpush1.msra.mxu0 0.0
    %2234 = vmatprep.mubr.f32.mxu0 0.0
    %2235 = vmatmul.mubr.f32.gmra.mrb[0].mxu0 %v2075
    %v2236 = vpop.f32.mrb[0].mxu0
    %v2237 = vadd.f32 0.0, %v2236
    %v2238 = vpop.f32.mrb[0].mxu0
    %v2239 = vadd.f32 0.0, %v2238
    %2240 = vmatprep.mubr.f32.mxu0 0.0
    %2241 = vmatmul.mubr.f32.gmra.mrb[0].mxu0 %v2078
    %v2242 = vpop.f32.mrb[0].mxu0
    %v2243 = vadd.f32 0.0, %v2242
    %v2244 = vpop.f32.mrb[0].mxu0
    %v2245 = vadd.f32 0.0, %v2244
    %2246 = vmatprep.mubr.f32.mxu0 0.0
    %2247 = vmatmul.mubr.f32.gmra.mrb[0].mxu0 %v2081
    %v2248 = vpop.f32.mrb[0].mxu0
    %v2249 = vadd.f32 0.0, %v2248
    %v2250 = vpop.f32.mrb[0].mxu0
    %v2251 = vadd.f32 0.0, %v2250
    %2252 = vmatprep.mubr.f32.mxu0 0.0
    %2253 = vmatmul.mubr.f32.gmra.mrb[0].mxu0 %v2084
    %v2254 = vpop.f32.mrb[0].mxu0
    %v2255 = vadd.f32 0.0, %v2254
    %v2256 = vpop.f32.mrb[0].mxu0
    %v2257 = vadd.f32 0.0, %v2256
    %2258 = vmatprep.mubr.f32.mxu0 0.0
    %2259 = vmatmul.mubr.f32.gmra.mrb[0].mxu0 %v2087
    %v2260 = vpop.f32.mrb[0].mxu0
    %v2261 = vadd.f32 0.0, %v2260
    %v2262 = vpop.f32.mrb[0].mxu0
    %v2263 = vadd.f32 0.0, %v2262
    %2264 = vmatprep.mubr.f32.mxu0 0.0
    %2265 = vmatmul.mubr.f32.gmra.mrb[0].mxu0 %v2090
    %v2266 = vpop.f32.mrb[0].mxu0
    %v2267 = vadd.f32 0.0, %v2266
    %v2268 = vpop.f32.mrb[0].mxu0
    %v2269 = vadd.f32 0.0, %v2268
    %2270 = vmatprep.mubr.f32.mxu0 0.0
    %2271 = vmatmul.mubr.f32.gmra.mrb[0].mxu0 %v2093
    %v2272 = vpop.f32.mrb[0].mxu0
    %v2273 = vadd.f32 0.0, %v2272
    %v2274 = vpop.f32.mrb[0].mxu0
    %v2275 = vadd.f32 0.0, %v2274
    %2276 = vmatprep.mubr.f32.mxu0 0.0
    %2277 = vmatmul.mubr.f32.gmra.mrb[0].mxu0 %v2096
    %v2278 = vpop.f32.mrb[0].mxu0
    %v2279 = vadd.f32 0.0, %v2278
    %v2280 = vpop.f32.mrb[0].mxu0
    %v2281 = vadd.f32 0.0, %v2280
    %2282 = vmatprep.mubr.f32.mxu0 0.0
    %2283 = vmatmul.mubr.f32.gmra.mrb[0].mxu0 %v2099
    %v2284 = vpop.f32.mrb[0].mxu0
    %v2285 = vadd.f32 0.0, %v2284
    %v2286 = vpop.f32.mrb[0].mxu0
    %v2287 = vadd.f32 0.0, %v2286
    %2288 = vmatprep.mubr.f32.mxu0 0.0
    %2289 = vmatmul.mubr.f32.gmra.mrb[0].mxu0 %v2102
    %v2290 = vpop.f32.mrb[0].mxu0
    %v2291 = vadd.f32 0.0, %v2290
    %v2292 = vpop.f32.mrb[0].mxu0
    %v2293 = vadd.f32 0.0, %v2292
    %2294 = vmatprep.mubr.f32.mxu0 0.0
    %2295 = vmatmul.mubr.f32.gmra.mrb[0].mxu0 %v2105
    %v2296 = vpop.f32.mrb[0].mxu0
    %v2297 = vadd.f32 0.0, %v2296
    %v2298 = vpop.f32.mrb[0].mxu0
    %v2299 = vadd.f32 0.0, %v2298
    %2300 = vmatprep.mubr.f32.mxu0 0.0
    %2301 = vmatmul.mubr.f32.gmra.mrb[0].mxu0 %v2108
    %v2302 = vpop.f32.mrb[0].mxu0
    %v2303 = vadd.f32 0.0, %v2302
    %v2304 = vpop.f32.mrb[0].mxu0
    %v2305 = vadd.f32 0.0, %v2304
    %2306 = vmatprep.mubr.f32.mxu0 0.0
    %2307 = vmatmul.mubr.f32.gmra.mrb[0].mxu0 %v2111
    %v2308 = vpop.f32.mrb[0].mxu0
    %v2309 = vadd.f32 0.0, %v2308
    %v2310 = vpop.f32.mrb[0].mxu0
    %v2311 = vadd.f32 0.0, %v2310
    %2312 = vmatprep.mubr.f32.mxu0 0.0
    %2313 = vmatmul.mubr.f32.gmra.mrb[0].mxu0 %v2114
    %v2314 = vpop.f32.mrb[0].mxu0
    %v2315 = vadd.f32 0.0, %v2314
    %v2316 = vpop.f32.mrb[0].mxu0
    %v2317 = vadd.f32 0.0, %v2316
    %2318 = vmatprep.mubr.f32.mxu0 0.0
    %2319 = vmatmul.mubr.f32.gmra.mrb[0].mxu0 %v2117
    %v2320 = vpop.f32.mrb[0].mxu0
    %v2321 = vadd.f32 0.0, %v2320
    %v2322 = vpop.f32.mrb[0].mxu0
    %v2323 = vadd.f32 0.0, %v2322
    %2324 = vmatprep.mubr.f32.mxu0 0.0
    %2325 = vmatmul.mubr.f32.gmra.mrb[0].mxu0 %v2120
    %v2326 = vpop.f32.mrb[0].mxu0
    %v2327 = vadd.f32 0.0, %v2326
    %v2328 = vpop.f32.mrb[0].mxu0
    %v2329 = vadd.f32 0.0, %v2328
    %2330 = vmatprep.mubr.f32.mxu0 0.0
    %2331 = vmatmul.mubr.f32.gmra.mrb[0].mxu0 %v2123
    %v2332 = vpop.f32.mrb[0].mxu0
    %v2333 = vadd.f32 0.0, %v2332
    %v2334 = vpop.f32.mrb[0].mxu0
    %v2335 = vadd.f32 0.0, %v2334
    %2336 = vmatprep.mubr.f32.mxu0 0.0
    %2337 = vmatmul.mubr.f32.gmra.mrb[0].mxu0 %v2126
    %v2338 = vpop.f32.mrb[0].mxu0
    %v2339 = vadd.f32 0.0, %v2338
    %v2340 = vpop.f32.mrb[0].mxu0
    %v2341 = vadd.f32 0.0, %v2340
    %2342 = vmatprep.mubr.f32.mxu0 0.0
    %2343 = vmatmul.mubr.f32.gmra.mrb[0].mxu0 %v2129
    %v2344 = vpop.f32.mrb[0].mxu0
    %v2345 = vadd.f32 0.0, %v2344
    %v2346 = vpop.f32.mrb[0].mxu0
    %v2347 = vadd.f32 0.0, %v2346
    %2348 = vmatprep.mubr.f32.mxu0 0.0
    %2349 = vmatmul.mubr.f32.gmra.mrb[0].mxu0 %v2132
    %v2350 = vpop.f32.mrb[0].mxu0
    %v2351 = vadd.f32 0.0, %v2350
    %v2352 = vpop.f32.mrb[0].mxu0
    %v2353 = vadd.f32 0.0, %v2352
    %2354 = vmatprep.mubr.f32.mxu0 0.0
    %2355 = vmatmul.mubr.f32.gmra.mrb[0].mxu0 %v2135
    %v2356 = vpop.f32.mrb[0].mxu0
    %v2357 = vadd.f32 0.0, %v2356
    %v2358 = vpop.f32.mrb[0].mxu0
    %v2359 = vadd.f32 0.0, %v2358
    %2360 = vmatprep.mubr.f32.mxu0 0.0
    %2361 = vmatmul.mubr.f32.gmra.mrb[0].mxu0 %v2138
    %v2362 = vpop.f32.mrb[0].mxu0
    %v2363 = vadd.f32 0.0, %v2362
    %v2364 = vpop.f32.mrb[0].mxu0
    %v2365 = vadd.f32 0.0, %v2364
    %2366 = vmatprep.mubr.f32.mxu0 0.0
    %2367 = vmatmul.mubr.f32.gmra.mrb[0].mxu0 %v2141
    %v2368 = vpop.f32.mrb[0].mxu0
    %v2369 = vadd.f32 0.0, %v2368
    %v2370 = vpop.f32.mrb[0].mxu0
    %v2371 = vadd.f32 0.0, %v2370
    %2372 = vmatprep.mubr.f32.mxu0 0.0
    %2373 = vmatmul.mubr.f32.gmra.mrb[0].mxu0 %v2144
    %v2374 = vpop.f32.mrb[0].mxu0
    %v2375 = vadd.f32 0.0, %v2374
    %v2376 = vpop.f32.mrb[0].mxu0
    %v2377 = vadd.f32 0.0, %v2376
    %2378 = vmatprep.mubr.f32.mxu0 0.0
    %2379 = vmatmul.mubr.f32.gmra.mrb[0].mxu0 %v2147
    %v2380 = vpop.f32.mrb[0].mxu0
    %v2381 = vadd.f32 0.0, %v2380
    %v2382 = vpop.f32.mrb[0].mxu0
    %v2383 = vadd.f32 0.0, %v2382
    %2384 = vmatprep.mubr.f32.mxu0 0.0
    %2385 = vmatmul.mubr.f32.gmra.mrb[0].mxu0 %v2150
    %v2386 = vpop.f32.mrb[0].mxu0
    %v2387 = vadd.f32 0.0, %v2386
    %v2388 = vpop.f32.mrb[0].mxu0
    %v2389 = vadd.f32 0.0, %v2388
    %2390 = vmatprep.mubr.f32.mxu0 0.0
    %2391 = vmatmul.mubr.f32.gmra.mrb[0].mxu0 %v2153
    %v2392 = vpop.f32.mrb[0].mxu0
    %v2393 = vadd.f32 0.0, %v2392
    %v2394 = vpop.f32.mrb[0].mxu0
    %v2395 = vadd.f32 0.0, %v2394
    %2396 = vmatprep.mubr.f32.mxu0 0.0
    %2397 = vmatmul.mubr.f32.gmra.mrb[0].mxu0 %v2156
    %v2398 = vpop.f32.mrb[0].mxu0
    %v2399 = vadd.f32 0.0, %v2398
    %v2400 = vpop.f32.mrb[0].mxu0
    %v2401 = vadd.f32 0.0, %v2400
    %2402 = vmatprep.mubr.f32.mxu0 0.0
    %2403 = vmatmul.mubr.f32.gmra.mrb[0].mxu0 %v2159
    %v2404 = vpop.f32.mrb[0].mxu0
    %v2405 = vadd.f32 0.0, %v2404
    %v2406 = vpop.f32.mrb[0].mxu0
    %v2407 = vadd.f32 0.0, %v2406
    %2408 = vmatprep.mubr.f32.mxu0 0.0
    %2409 = vmatmul.mubr.f32.gmra.mrb[0].mxu0 %v2162
    %v2410 = vpop.f32.mrb[0].mxu0
    %v2411 = vadd.f32 0.0, %v2410
    %v2412 = vpop.f32.mrb[0].mxu0
    %v2413 = vadd.f32 0.0, %v2412
    %2414 = vmatprep.mubr.f32.mxu0 0.0
    %2415 = vmatmul.mubr.f32.gmra.mrb[0].mxu0 %v2165
    %v2416 = vpop.f32.mrb[0].mxu0
    %v2417 = vadd.f32 0.0, %v2416
    %v2418 = vpop.f32.mrb[0].mxu0
    %v2419 = vadd.f32 0.0, %v2418
    %2420 = vmatprep.mubr.f32.mxu0 0.0
    %2421 = vmatmul.mubr.f32.gmra.mrb[0].mxu0 %v2168
    %v2422 = vpop.f32.mrb[0].mxu0
    %v2423 = vadd.f32 0.0, %v2422
    %v2424 = vpop.f32.mrb[0].mxu0
    %v2425 = vadd.f32 0.0, %v2424
    %2426 = vdwg.mxu0
    %2427 = vmatprep.subr.mxu0 %v2068
    %2428 = vmatpush1.msra.mxu0 %v2067
    %2429 = vmatprep.subr.mxu0 %v2072
    %2430 = vmatpush1.msra.mxu0 %v2071
    %2431 = vmatprep.subr.mxu0 0.0
    %2432 = vmatpush1.msra.mxu0 0.0
    %2433 = vmatprep.subr.mxu0 0.0
    %2434 = vmatpush1.msra.mxu0 0.0
    %2435 = vmatprep.subr.mxu0 0.0
    %2436 = vmatpush1.msra.mxu0 0.0
    %2437 = vmatprep.subr.mxu0 0.0
    %2438 = vmatpush1.msra.mxu0 0.0
    %2439 = vmatprep.subr.mxu0 0.0
    %2440 = vmatpush1.msra.mxu0 0.0
    %2441 = vmatprep.subr.mxu0 0.0
    %2442 = vmatpush1.msra.mxu0 0.0
    %2443 = vmatprep.subr.mxu0 0.0
    %2444 = vmatpush1.msra.mxu0 0.0
    %2445 = vmatprep.subr.mxu0 0.0
    %2446 = vmatpush1.msra.mxu0 0.0
    %2447 = vmatprep.subr.mxu0 0.0
    %2448 = vmatpush1.msra.mxu0 0.0
    %2449 = vmatprep.subr.mxu0 0.0
    %2450 = vmatpush1.msra.mxu0 0.0
    %2451 = vmatprep.subr.mxu0 0.0
    %2452 = vmatpush1.msra.mxu0 0.0
    %2453 = vmatprep.subr.mxu0 0.0
    %2454 = vmatpush1.msra.mxu0 0.0
    %2455 = vmatprep.subr.mxu0 0.0
    %2456 = vmatpush1.msra.mxu0 0.0
    %2457 = vmatprep.subr.mxu0 0.0
    %2458 = vmatpush1.msra.mxu0 0.0
    %2459 = vmatprep.subr.mxu0 0.0
    %2460 = vmatpush1.msra.mxu0 0.0
    %2461 = vmatprep.subr.mxu0 0.0
    %2462 = vmatpush1.msra.mxu0 0.0
    %2463 = vmatprep.subr.mxu0 0.0
    %2464 = vmatpush1.msra.mxu0 0.0
    %2465 = vmatprep.subr.mxu0 0.0
    %2466 = vmatpush1.msra.mxu0 0.0
    %2467 = vmatprep.subr.mxu0 0.0
    %2468 = vmatpush1.msra.mxu0 0.0
    %2469 = vmatprep.subr.mxu0 0.0
    %2470 = vmatpush1.msra.mxu0 0.0
    %2471 = vmatprep.subr.mxu0 0.0
    %2472 = vmatpush1.msra.mxu0 0.0
    %2473 = vmatprep.subr.mxu0 0.0
    %2474 = vmatpush1.msra.mxu0 0.0
    %2475 = vmatprep.subr.mxu0 0.0
    %2476 = vmatpush1.msra.mxu0 0.0
    %2477 = vmatprep.subr.mxu0 0.0
    %2478 = vmatpush1.msra.mxu0 0.0
    %2479 = vmatprep.subr.mxu0 0.0
    %2480 = vmatpush1.msra.mxu0 0.0
    %2481 = vmatprep.subr.mxu0 0.0
    %2482 = vmatpush1.msra.mxu0 0.0
    %2483 = vmatprep.subr.mxu0 0.0
    %2484 = vmatpush1.msra.mxu0 0.0
    %2485 = vmatprep.subr.mxu0 0.0
    %2486 = vmatpush1.msra.mxu0 0.0
    %2487 = vmatprep.subr.mxu0 0.0
    %2488 = vmatpush1.msra.mxu0 0.0
    %2489 = vmatprep.subr.mxu0 0.0
    %2490 = vmatpush1.msra.mxu0 0.0
    %2491 = vmatprep.mubr.f32.mxu0 0.0
    %2492 = vmatmul.mubr.f32.gmra.mrb[0].mxu0 %v2075
    %v2493 = vpop.f32.mrb[0].mxu0
    %v2494 = vadd.f32 0.0, %v2493
    %v2495 = vpop.f32.mrb[0].mxu0
    %v2496 = vadd.f32 0.0, %v2495
    %2497 = vmatprep.mubr.f32.mxu0 0.0
    %2498 = vmatmul.mubr.f32.gmra.mrb[0].mxu0 %v2078
    %v2499 = vpop.f32.mrb[0].mxu0
    %v2500 = vadd.f32 0.0, %v2499
    %v2501 = vpop.f32.mrb[0].mxu0
    %v2502 = vadd.f32 0.0, %v2501
    %2503 = vmatprep.mubr.f32.mxu0 0.0
    %2504 = vmatmul.mubr.f32.gmra.mrb[0].mxu0 %v2081
    %v2505 = vpop.f32.mrb[0].mxu0
    %v2506 = vadd.f32 0.0, %v2505
    %v2507 = vpop.f32.mrb[0].mxu0
    %v2508 = vadd.f32 0.0, %v2507
    %2509 = vmatprep.mubr.f32.mxu0 0.0
    %2510 = vmatmul.mubr.f32.gmra.mrb[0].mxu0 %v2084
    %v2511 = vpop.f32.mrb[0].mxu0
    %v2512 = vadd.f32 0.0, %v2511
    %v2513 = vpop.f32.mrb[0].mxu0
    %v2514 = vadd.f32 0.0, %v2513
    %2515 = vmatprep.mubr.f32.mxu0 0.0
    %2516 = vmatmul.mubr.f32.gmra.mrb[0].mxu0 %v2087
    %v2517 = vpop.f32.mrb[0].mxu0
    %v2518 = vadd.f32 0.0, %v2517
    %v2519 = vpop.f32.mrb[0].mxu0
    %v2520 = vadd.f32 0.0, %v2519
    %2521 = vmatprep.mubr.f32.mxu0 0.0
    %2522 = vmatmul.mubr.f32.gmra.mrb[0].mxu0 %v2090
    %v2523 = vpop.f32.mrb[0].mxu0
    %v2524 = vadd.f32 0.0, %v2523
    %v2525 = vpop.f32.mrb[0].mxu0
    %v2526 = vadd.f32 0.0, %v2525
    %2527 = vmatprep.mubr.f32.mxu0 0.0
    %2528 = vmatmul.mubr.f32.gmra.mrb[0].mxu0 %v2093
    %v2529 = vpop.f32.mrb[0].mxu0
    %v2530 = vadd.f32 0.0, %v2529
    %v2531 = vpop.f32.mrb[0].mxu0
    %v2532 = vadd.f32 0.0, %v2531
    %2533 = vmatprep.mubr.f32.mxu0 0.0
    %2534 = vmatmul.mubr.f32.gmra.mrb[0].mxu0 %v2096
    %v2535 = vpop.f32.mrb[0].mxu0
    %v2536 = vadd.f32 0.0, %v2535
    %v2537 = vpop.f32.mrb[0].mxu0
    %v2538 = vadd.f32 0.0, %v2537
    %2539 = vmatprep.mubr.f32.mxu0 0.0
    %2540 = vmatmul.mubr.f32.gmra.mrb[0].mxu0 %v2099
    %v2541 = vpop.f32.mrb[0].mxu0
    %v2542 = vadd.f32 0.0, %v2541
    %v2543 = vpop.f32.mrb[0].mxu0
    %v2544 = vadd.f32 0.0, %v2543
    %2545 = vmatprep.mubr.f32.mxu0 0.0
    %2546 = vmatmul.mubr.f32.gmra.mrb[0].mxu0 %v2102
    %v2547 = vpop.f32.mrb[0].mxu0
    %v2548 = vadd.f32 0.0, %v2547
    %v2549 = vpop.f32.mrb[0].mxu0
    %v2550 = vadd.f32 0.0, %v2549
    %2551 = vmatprep.mubr.f32.mxu0 0.0
    %2552 = vmatmul.mubr.f32.gmra.mrb[0].mxu0 %v2105
    %v2553 = vpop.f32.mrb[0].mxu0
    %v2554 = vadd.f32 0.0, %v2553
    %v2555 = vpop.f32.mrb[0].mxu0
    %v2556 = vadd.f32 0.0, %v2555
    %2557 = vmatprep.mubr.f32.mxu0 0.0
    %2558 = vmatmul.mubr.f32.gmra.mrb[0].mxu0 %v2108
    %v2559 = vpop.f32.mrb[0].mxu0
    %v2560 = vadd.f32 0.0, %v2559
    %v2561 = vpop.f32.mrb[0].mxu0
    %v2562 = vadd.f32 0.0, %v2561
    %2563 = vmatprep.mubr.f32.mxu0 0.0
    %2564 = vmatmul.mubr.f32.gmra.mrb[0].mxu0 %v2111
    %v2565 = vpop.f32.mrb[0].mxu0
    %v2566 = vadd.f32 0.0, %v2565
    %v2567 = vpop.f32.mrb[0].mxu0
    %v2568 = vadd.f32 0.0, %v2567
    %2569 = vmatprep.mubr.f32.mxu0 0.0
    %2570 = vmatmul.mubr.f32.gmra.mrb[0].mxu0 %v2114
    %v2571 = vpop.f32.mrb[0].mxu0
    %v2572 = vadd.f32 0.0, %v2571
    %v2573 = vpop.f32.mrb[0].mxu0
    %v2574 = vadd.f32 0.0, %v2573
    %2575 = vmatprep.mubr.f32.mxu0 0.0
    %2576 = vmatmul.mubr.f32.gmra.mrb[0].mxu0 %v2117
    %v2577 = vpop.f32.mrb[0].mxu0
    %v2578 = vadd.f32 0.0, %v2577
    %v2579 = vpop.f32.mrb[0].mxu0
    %v2580 = vadd.f32 0.0, %v2579
    %2581 = vmatprep.mubr.f32.mxu0 0.0
    %2582 = vmatmul.mubr.f32.gmra.mrb[0].mxu0 %v2120
    %v2583 = vpop.f32.mrb[0].mxu0
    %v2584 = vadd.f32 0.0, %v2583
    %v2585 = vpop.f32.mrb[0].mxu0
    %v2586 = vadd.f32 0.0, %v2585
    %2587 = vmatprep.mubr.f32.mxu0 0.0
    %2588 = vmatmul.mubr.f32.gmra.mrb[0].mxu0 %v2123
    %v2589 = vpop.f32.mrb[0].mxu0
    %v2590 = vadd.f32 0.0, %v2589
    %v2591 = vpop.f32.mrb[0].mxu0
    %v2592 = vadd.f32 0.0, %v2591
    %2593 = vmatprep.mubr.f32.mxu0 0.0
    %2594 = vmatmul.mubr.f32.gmra.mrb[0].mxu0 %v2126
    %v2595 = vpop.f32.mrb[0].mxu0
    %v2596 = vadd.f32 0.0, %v2595
    %v2597 = vpop.f32.mrb[0].mxu0
    %v2598 = vadd.f32 0.0, %v2597
    %2599 = vmatprep.mubr.f32.mxu0 0.0
    %2600 = vmatmul.mubr.f32.gmra.mrb[0].mxu0 %v2129
    %v2601 = vpop.f32.mrb[0].mxu0
    %v2602 = vadd.f32 0.0, %v2601
    %v2603 = vpop.f32.mrb[0].mxu0
    %v2604 = vadd.f32 0.0, %v2603
    %2605 = vmatprep.mubr.f32.mxu0 0.0
    %2606 = vmatmul.mubr.f32.gmra.mrb[0].mxu0 %v2132
    %v2607 = vpop.f32.mrb[0].mxu0
    %v2608 = vadd.f32 0.0, %v2607
    %v2609 = vpop.f32.mrb[0].mxu0
    %v2610 = vadd.f32 0.0, %v2609
    %2611 = vmatprep.mubr.f32.mxu0 0.0
    %2612 = vmatmul.mubr.f32.gmra.mrb[0].mxu0 %v2135
    %v2613 = vpop.f32.mrb[0].mxu0
    %v2614 = vadd.f32 0.0, %v2613
    %v2615 = vpop.f32.mrb[0].mxu0
    %v2616 = vadd.f32 0.0, %v2615
    %2617 = vmatprep.mubr.f32.mxu0 0.0
    %2618 = vmatmul.mubr.f32.gmra.mrb[0].mxu0 %v2138
    %v2619 = vpop.f32.mrb[0].mxu0
    %v2620 = vadd.f32 0.0, %v2619
    %v2621 = vpop.f32.mrb[0].mxu0
    %v2622 = vadd.f32 0.0, %v2621
    %2623 = vmatprep.mubr.f32.mxu0 0.0
    %2624 = vmatmul.mubr.f32.gmra.mrb[0].mxu0 %v2141
    %v2625 = vpop.f32.mrb[0].mxu0
    %v2626 = vadd.f32 0.0, %v2625
    %v2627 = vpop.f32.mrb[0].mxu0
    %v2628 = vadd.f32 0.0, %v2627
    %2629 = vmatprep.mubr.f32.mxu0 0.0
    %2630 = vmatmul.mubr.f32.gmra.mrb[0].mxu0 %v2144
    %v2631 = vpop.f32.mrb[0].mxu0
    %v2632 = vadd.f32 0.0, %v2631
    %v2633 = vpop.f32.mrb[0].mxu0
    %v2634 = vadd.f32 0.0, %v2633
    %2635 = vmatprep.mubr.f32.mxu0 0.0
    %2636 = vmatmul.mubr.f32.gmra.mrb[0].mxu0 %v2147
    %v2637 = vpop.f32.mrb[0].mxu0
    %v2638 = vadd.f32 0.0, %v2637
    %v2639 = vpop.f32.mrb[0].mxu0
    %v2640 = vadd.f32 0.0, %v2639
    %2641 = vmatprep.mubr.f32.mxu0 0.0
    %2642 = vmatmul.mubr.f32.gmra.mrb[0].mxu0 %v2150
    %v2643 = vpop.f32.mrb[0].mxu0
    %v2644 = vadd.f32 0.0, %v2643
    %v2645 = vpop.f32.mrb[0].mxu0
    %v2646 = vadd.f32 0.0, %v2645
    %2647 = vmatprep.mubr.f32.mxu0 0.0
    %2648 = vmatmul.mubr.f32.gmra.mrb[0].mxu0 %v2153
    %v2649 = vpop.f32.mrb[0].mxu0
    %v2650 = vadd.f32 0.0, %v2649
    %v2651 = vpop.f32.mrb[0].mxu0
    %v2652 = vadd.f32 0.0, %v2651
    %2653 = vmatprep.mubr.f32.mxu0 0.0
    %2654 = vmatmul.mubr.f32.gmra.mrb[0].mxu0 %v2156
    %v2655 = vpop.f32.mrb[0].mxu0
    %v2656 = vadd.f32 0.0, %v2655
    %v2657 = vpop.f32.mrb[0].mxu0
    %v2658 = vadd.f32 0.0, %v2657
    %2659 = vmatprep.mubr.f32.mxu0 0.0
    %2660 = vmatmul.mubr.f32.gmra.mrb[0].mxu0 %v2159
    %v2661 = vpop.f32.mrb[0].mxu0
    %v2662 = vadd.f32 0.0, %v2661
    %v2663 = vpop.f32.mrb[0].mxu0
    %v2664 = vadd.f32 0.0, %v2663
    %2665 = vmatprep.mubr.f32.mxu0 0.0
    %2666 = vmatmul.mubr.f32.gmra.mrb[0].mxu0 %v2162
    %v2667 = vpop.f32.mrb[0].mxu0
    %v2668 = vadd.f32 0.0, %v2667
    %v2669 = vpop.f32.mrb[0].mxu0
    %v2670 = vadd.f32 0.0, %v2669
    %2671 = vmatprep.mubr.f32.mxu0 0.0
    %2672 = vmatmul.mubr.f32.gmra.mrb[0].mxu0 %v2165
    %v2673 = vpop.f32.mrb[0].mxu0
    %v2674 = vadd.f32 0.0, %v2673
    %v2675 = vpop.f32.mrb[0].mxu0
    %v2676 = vadd.f32 0.0, %v2675
    %2677 = vmatprep.mubr.f32.mxu0 0.0
    %2678 = vmatmul.mubr.f32.gmra.mrb[0].mxu0 %v2168
    %v2679 = vpop.f32.mrb[0].mxu0
    %v2680 = vadd.f32 0.0, %v2679
    %v2681 = vpop.f32.mrb[0].mxu0
    %v2682 = vadd.f32 0.0, %v2681
    %2683 = vdwg.mxu0
    %v2684 = vld [vmem:[#allocation13] sm:$0x3]
    %v2685 = vld [vmem:[#allocation15] sm:$0x3]
    %v2686 = vadd.f32 %v2237, %v2239
    %2687 = vadd.xlane.f32.xlu0 %v2686
    %v2688 = vpop.xlane.xlu0 %2687
    %v2689 = vadd.f32 %v2243, %v2245
    %2690 = vadd.xlane.f32.xlu0 %v2689
    %v2691 = vpop.xlane.xlu0 %2690
    %v2692 = vadd.f32 %v2249, %v2251
    %2693 = vadd.xlane.f32.xlu0 %v2692
    %v2694 = vpop.xlane.xlu0 %2693
    %v2695 = vadd.f32 %v2255, %v2257
    %2696 = vadd.xlane.f32.xlu0 %v2695
    %v2697 = vpop.xlane.xlu0 %2696
    %v2698 = vadd.f32 %v2261, %v2263
    %2699 = vadd.xlane.f32.xlu0 %v2698
    %v2700 = vpop.xlane.xlu0 %2699
    %v2701 = vadd.f32 %v2267, %v2269
    %2702 = vadd.xlane.f32.xlu0 %v2701
    %v2703 = vpop.xlane.xlu0 %2702
    %v2704 = vadd.f32 %v2273, %v2275
    %2705 = vadd.xlane.f32.xlu0 %v2704
    %v2706 = vpop.xlane.xlu0 %2705
    %v2707 = vadd.f32 %v2279, %v2281
    %2708 = vadd.xlane.f32.xlu0 %v2707
    %v2709 = vpop.xlane.xlu0 %2708
    %v2710 = vadd.f32 %v2285, %v2287
    %2711 = vadd.xlane.f32.xlu0 %v2710
    %v2712 = vpop.xlane.xlu0 %2711
    %v2713 = vadd.f32 %v2291, %v2293
    %2714 = vadd.xlane.f32.xlu0 %v2713
    %v2715 = vpop.xlane.xlu0 %2714
    %v2716 = vadd.f32 %v2297, %v2299
    %2717 = vadd.xlane.f32.xlu0 %v2716
    %v2718 = vpop.xlane.xlu0 %2717
    %v2719 = vadd.f32 %v2303, %v2305
    %2720 = vadd.xlane.f32.xlu0 %v2719
    %v2721 = vpop.xlane.xlu0 %2720
    %v2722 = vadd.f32 %v2309, %v2311
    %2723 = vadd.xlane.f32.xlu0 %v2722
    %v2724 = vpop.xlane.xlu0 %2723
    %v2725 = vadd.f32 %v2315, %v2317
    %2726 = vadd.xlane.f32.xlu0 %v2725
    %v2727 = vpop.xlane.xlu0 %2726
    %v2728 = vadd.f32 %v2321, %v2323
    %2729 = vadd.xlane.f32.xlu0 %v2728
    %v2730 = vpop.xlane.xlu0 %2729
    %v2731 = vadd.f32 %v2327, %v2329
    %2732 = vadd.xlane.f32.xlu0 %v2731
    %v2733 = vpop.xlane.xlu0 %2732
    %v2734 = vadd.f32 %v2333, %v2335
    %2735 = vadd.xlane.f32.xlu0 %v2734
    %v2736 = vpop.xlane.xlu0 %2735
    %v2737 = vadd.f32 %v2339, %v2341
    %2738 = vadd.xlane.f32.xlu0 %v2737
    %v2739 = vpop.xlane.xlu0 %2738
    %v2740 = vadd.f32 %v2345, %v2347
    %2741 = vadd.xlane.f32.xlu0 %v2740
    %v2742 = vpop.xlane.xlu0 %2741
    %v2743 = vadd.f32 %v2351, %v2353
    %2744 = vadd.xlane.f32.xlu0 %v2743
    %v2745 = vpop.xlane.xlu0 %2744
    %v2746 = vadd.f32 %v2357, %v2359
    %2747 = vadd.xlane.f32.xlu0 %v2746
    %v2748 = vpop.xlane.xlu0 %2747
    %v2749 = vadd.f32 %v2363, %v2365
    %2750 = vadd.xlane.f32.xlu0 %v2749
    %v2751 = vpop.xlane.xlu0 %2750
    %v2752 = vadd.f32 %v2369, %v2371
    %2753 = vadd.xlane.f32.xlu0 %v2752
    %v2754 = vpop.xlane.xlu0 %2753
    %v2755 = vadd.f32 %v2375, %v2377
    %2756 = vadd.xlane.f32.xlu0 %v2755
    %v2757 = vpop.xlane.xlu0 %2756
    %v2758 = vadd.f32 %v2381, %v2383
    %2759 = vadd.xlane.f32.xlu0 %v2758
    %v2760 = vpop.xlane.xlu0 %2759
    %v2761 = vadd.f32 %v2387, %v2389
    %2762 = vadd.xlane.f32.xlu0 %v2761
    %v2763 = vpop.xlane.xlu0 %2762
    %v2764 = vadd.f32 %v2393, %v2395
    %2765 = vadd.xlane.f32.xlu0 %v2764
    %v2766 = vpop.xlane.xlu0 %2765
    %v2767 = vadd.f32 %v2399, %v2401
    %2768 = vadd.xlane.f32.xlu0 %v2767
    %v2769 = vpop.xlane.xlu0 %2768
    %v2770 = vadd.f32 %v2405, %v2407
    %2771 = vadd.xlane.f32.xlu0 %v2770
    %v2772 = vpop.xlane.xlu0 %2771
    %v2773 = vadd.f32 %v2411, %v2413
    %2774 = vadd.xlane.f32.xlu0 %v2773
    %v2775 = vpop.xlane.xlu0 %2774
    %v2776 = vadd.f32 %v2417, %v2419
    %2777 = vadd.xlane.f32.xlu0 %v2776
    %v2778 = vpop.xlane.xlu0 %2777
    %v2779 = vadd.f32 %v2423, %v2425
    %2780 = vadd.xlane.f32.xlu0 %v2779
    %v2781 = vpop.xlane.xlu0 %2780
    %v2782 = vmul.f32 %v2688, %v432
    %v2783 = vmul.f32 %v2691, %v432
    %v2784 = vmul.f32 %v2694, %v432
    %v2785 = vmul.f32 %v2697, %v432
    %v2786 = vmul.f32 %v2700, %v432
    %v2787 = vmul.f32 %v2703, %v432
    %v2788 = vmul.f32 %v2706, %v432
    %v2789 = vmul.f32 %v2709, %v432
    %v2790 = vmul.f32 %v2712, %v432
    %v2791 = vmul.f32 %v2715, %v432
    %v2792 = vmul.f32 %v2718, %v432
    %v2793 = vmul.f32 %v2721, %v432
    %v2794 = vmul.f32 %v2724, %v432
    %v2795 = vmul.f32 %v2727, %v432
    %v2796 = vmul.f32 %v2730, %v432
    %v2797 = vmul.f32 %v2733, %v432
    %v2798 = vmul.f32 %v2736, %v432
    %v2799 = vmul.f32 %v2739, %v432
    %v2800 = vmul.f32 %v2742, %v432
    %v2801 = vmul.f32 %v2745, %v432
    %v2802 = vmul.f32 %v2748, %v432
    %v2803 = vmul.f32 %v2751, %v432
    %v2804 = vmul.f32 %v2754, %v432
    %v2805 = vmul.f32 %v2757, %v432
    %v2806 = vmul.f32 %v2760, %v432
    %v2807 = vmul.f32 %v2763, %v432
    %v2808 = vmul.f32 %v2766, %v432
    %v2809 = vmul.f32 %v2769, %v432
    %v2810 = vmul.f32 %v2772, %v432
    %v2811 = vmul.f32 %v2775, %v432
    %v2812 = vmul.f32 %v2778, %v432
    %v2813 = vmul.f32 %v2781, %v432
    %v2814 = vmul.f32 %v2237, %v2237
    %v2815 = vmul.f32 %v2239, %v2239
    %v2816 = vmul.f32 %v2243, %v2243
    %v2817 = vmul.f32 %v2245, %v2245
    %v2818 = vmul.f32 %v2249, %v2249
    %v2819 = vmul.f32 %v2251, %v2251
    %v2820 = vmul.f32 %v2255, %v2255
    %v2821 = vmul.f32 %v2257, %v2257
    %v2822 = vmul.f32 %v2261, %v2261
    %v2823 = vmul.f32 %v2263, %v2263
    %v2824 = vmul.f32 %v2267, %v2267
    %v2825 = vmul.f32 %v2269, %v2269
    %v2826 = vmul.f32 %v2273, %v2273
    %v2827 = vmul.f32 %v2275, %v2275
    %v2828 = vmul.f32 %v2279, %v2279
    %v2829 = vmul.f32 %v2281, %v2281
    %v2830 = vmul.f32 %v2285, %v2285
    %v2831 = vmul.f32 %v2287, %v2287
    %v2832 = vmul.f32 %v2291, %v2291
    %v2833 = vmul.f32 %v2293, %v2293
    %v2834 = vmul.f32 %v2297, %v2297
    %v2835 = vmul.f32 %v2299, %v2299
    %v2836 = vmul.f32 %v2303, %v2303
    %v2837 = vmul.f32 %v2305, %v2305
    %v2838 = vmul.f32 %v2309, %v2309
    %v2839 = vmul.f32 %v2311, %v2311
    %v2840 = vmul.f32 %v2315, %v2315
    %v2841 = vmul.f32 %v2317, %v2317
    %v2842 = vmul.f32 %v2321, %v2321
    %v2843 = vmul.f32 %v2323, %v2323
    %v2844 = vmul.f32 %v2327, %v2327
    %v2845 = vmul.f32 %v2329, %v2329
    %v2846 = vmul.f32 %v2333, %v2333
    %v2847 = vmul.f32 %v2335, %v2335
    %v2848 = vmul.f32 %v2339, %v2339
    %v2849 = vmul.f32 %v2341, %v2341
    %v2850 = vmul.f32 %v2345, %v2345
    %v2851 = vmul.f32 %v2347, %v2347
    %v2852 = vmul.f32 %v2351, %v2351
    %v2853 = vmul.f32 %v2353, %v2353
    %v2854 = vmul.f32 %v2357, %v2357
    %v2855 = vmul.f32 %v2359, %v2359
    %v2856 = vmul.f32 %v2363, %v2363
    %v2857 = vmul.f32 %v2365, %v2365
    %v2858 = vmul.f32 %v2369, %v2369
    %v2859 = vmul.f32 %v2371, %v2371
    %v2860 = vmul.f32 %v2375, %v2375
    %v2861 = vmul.f32 %v2377, %v2377
    %v2862 = vmul.f32 %v2381, %v2381
    %v2863 = vmul.f32 %v2383, %v2383
    %v2864 = vmul.f32 %v2387, %v2387
    %v2865 = vmul.f32 %v2389, %v2389
    %v2866 = vmul.f32 %v2393, %v2393
    %v2867 = vmul.f32 %v2395, %v2395
    %v2868 = vmul.f32 %v2399, %v2399
    %v2869 = vmul.f32 %v2401, %v2401
    %v2870 = vmul.f32 %v2405, %v2405
    %v2871 = vmul.f32 %v2407, %v2407
    %v2872 = vmul.f32 %v2411, %v2411
    %v2873 = vmul.f32 %v2413, %v2413
    %v2874 = vmul.f32 %v2417, %v2417
    %v2875 = vmul.f32 %v2419, %v2419
    %v2876 = vmul.f32 %v2423, %v2423
    %v2877 = vmul.f32 %v2425, %v2425
    %v2878 = vadd.f32 %v2814, %v2815
    %2879 = vadd.xlane.f32.xlu0 %v2878
    %v2880 = vpop.xlane.xlu0 %2879
    %v2881 = vadd.f32 %v2816, %v2817
    %2882 = vadd.xlane.f32.xlu0 %v2881
    %v2883 = vpop.xlane.xlu0 %2882
    %v2884 = vadd.f32 %v2818, %v2819
    %2885 = vadd.xlane.f32.xlu0 %v2884
    %v2886 = vpop.xlane.xlu0 %2885
    %v2887 = vadd.f32 %v2820, %v2821
    %2888 = vadd.xlane.f32.xlu0 %v2887
    %v2889 = vpop.xlane.xlu0 %2888
    %v2890 = vadd.f32 %v2822, %v2823
    %2891 = vadd.xlane.f32.xlu0 %v2890
    %v2892 = vpop.xlane.xlu0 %2891
    %v2893 = vadd.f32 %v2824, %v2825
    %2894 = vadd.xlane.f32.xlu0 %v2893
    %v2895 = vpop.xlane.xlu0 %2894
    %v2896 = vadd.f32 %v2826, %v2827
    %2897 = vadd.xlane.f32.xlu0 %v2896
    %v2898 = vpop.xlane.xlu0 %2897
    %v2899 = vadd.f32 %v2828, %v2829
    %2900 = vadd.xlane.f32.xlu0 %v2899
    %v2901 = vpop.xlane.xlu0 %2900
    %v2902 = vadd.f32 %v2830, %v2831
    %2903 = vadd.xlane.f32.xlu0 %v2902
    %v2904 = vpop.xlane.xlu0 %2903
    %v2905 = vadd.f32 %v2832, %v2833
    %2906 = vadd.xlane.f32.xlu0 %v2905
    %v2907 = vpop.xlane.xlu0 %2906
    %v2908 = vadd.f32 %v2834, %v2835
    %2909 = vadd.xlane.f32.xlu0 %v2908
    %v2910 = vpop.xlane.xlu0 %2909
    %v2911 = vadd.f32 %v2836, %v2837
    %2912 = vadd.xlane.f32.xlu0 %v2911
    %v2913 = vpop.xlane.xlu0 %2912
    %v2914 = vadd.f32 %v2838, %v2839
    %2915 = vadd.xlane.f32.xlu0 %v2914
    %v2916 = vpop.xlane.xlu0 %2915
    %v2917 = vadd.f32 %v2840, %v2841
    %2918 = vadd.xlane.f32.xlu0 %v2917
    %v2919 = vpop.xlane.xlu0 %2918
    %v2920 = vadd.f32 %v2842, %v2843
    %2921 = vadd.xlane.f32.xlu0 %v2920
    %v2922 = vpop.xlane.xlu0 %2921
    %v2923 = vadd.f32 %v2844, %v2845
    %2924 = vadd.xlane.f32.xlu0 %v2923
    %v2925 = vpop.xlane.xlu0 %2924
    %v2926 = vadd.f32 %v2846, %v2847
    %2927 = vadd.xlane.f32.xlu0 %v2926
    %v2928 = vpop.xlane.xlu0 %2927
    %v2929 = vadd.f32 %v2848, %v2849
    %2930 = vadd.xlane.f32.xlu0 %v2929
    %v2931 = vpop.xlane.xlu0 %2930
    %v2932 = vadd.f32 %v2850, %v2851
    %2933 = vadd.xlane.f32.xlu0 %v2932
    %v2934 = vpop.xlane.xlu0 %2933
    %v2935 = vadd.f32 %v2852, %v2853
    %2936 = vadd.xlane.f32.xlu0 %v2935
    %v2937 = vpop.xlane.xlu0 %2936
    %v2938 = vadd.f32 %v2854, %v2855
    %2939 = vadd.xlane.f32.xlu0 %v2938
    %v2940 = vpop.xlane.xlu0 %2939
    %v2941 = vadd.f32 %v2856, %v2857
    %2942 = vadd.xlane.f32.xlu0 %v2941
    %v2943 = vpop.xlane.xlu0 %2942
    %v2944 = vadd.f32 %v2858, %v2859
    %2945 = vadd.xlane.f32.xlu0 %v2944
    %v2946 = vpop.xlane.xlu0 %2945
    %v2947 = vadd.f32 %v2860, %v2861
    %2948 = vadd.xlane.f32.xlu0 %v2947
    %v2949 = vpop.xlane.xlu0 %2948
    %v2950 = vadd.f32 %v2862, %v2863
    %2951 = vadd.xlane.f32.xlu0 %v2950
    %v2952 = vpop.xlane.xlu0 %2951
    %v2953 = vadd.f32 %v2864, %v2865
    %2954 = vadd.xlane.f32.xlu0 %v2953
    %v2955 = vpop.xlane.xlu0 %2954
    %v2956 = vadd.f32 %v2866, %v2867
    %2957 = vadd.xlane.f32.xlu0 %v2956
    %v2958 = vpop.xlane.xlu0 %2957
    %v2959 = vadd.f32 %v2868, %v2869
    %2960 = vadd.xlane.f32.xlu0 %v2959
    %v2961 = vpop.xlane.xlu0 %2960
    %v2962 = vadd.f32 %v2870, %v2871
    %2963 = vadd.xlane.f32.xlu0 %v2962
    %v2964 = vpop.xlane.xlu0 %2963
    %v2965 = vadd.f32 %v2872, %v2873
    %2966 = vadd.xlane.f32.xlu0 %v2965
    %v2967 = vpop.xlane.xlu0 %2966
    %v2968 = vadd.f32 %v2874, %v2875
    %2969 = vadd.xlane.f32.xlu0 %v2968
    %v2970 = vpop.xlane.xlu0 %2969
    %v2971 = vadd.f32 %v2876, %v2877
    %2972 = vadd.xlane.f32.xlu0 %v2971
    %v2973 = vpop.xlane.xlu0 %2972
    %v2974 = vmul.f32 %v2880, %v432
    %v2975 = vmul.f32 %v2883, %v432
    %v2976 = vmul.f32 %v2886, %v432
    %v2977 = vmul.f32 %v2889, %v432
    %v2978 = vmul.f32 %v2892, %v432
    %v2979 = vmul.f32 %v2895, %v432
    %v2980 = vmul.f32 %v2898, %v432
    %v2981 = vmul.f32 %v2901, %v432
    %v2982 = vmul.f32 %v2904, %v432
    %v2983 = vmul.f32 %v2907, %v432
    %v2984 = vmul.f32 %v2910, %v432
    %v2985 = vmul.f32 %v2913, %v432
    %v2986 = vmul.f32 %v2916, %v432
    %v2987 = vmul.f32 %v2919, %v432
    %v2988 = vmul.f32 %v2922, %v432
    %v2989 = vmul.f32 %v2925, %v432
    %v2990 = vmul.f32 %v2928, %v432
    %v2991 = vmul.f32 %v2931, %v432
    %v2992 = vmul.f32 %v2934, %v432
    %v2993 = vmul.f32 %v2937, %v432
    %v2994 = vmul.f32 %v2940, %v432
    %v2995 = vmul.f32 %v2943, %v432
    %v2996 = vmul.f32 %v2946, %v432
    %v2997 = vmul.f32 %v2949, %v432
    %v2998 = vmul.f32 %v2952, %v432
    %v2999 = vmul.f32 %v2955, %v432
    %v3000 = vmul.f32 %v2958, %v432
    %v3001 = vmul.f32 %v2961, %v432
    %v3002 = vmul.f32 %v2964, %v432
    %v3003 = vmul.f32 %v2967, %v432
    %v3004 = vmul.f32 %v2970, %v432
    %v3005 = vmul.f32 %v2973, %v432
    %v3006 = vmul.f32 %v2782, %v2782
    %v3007 = vmul.f32 %v2783, %v2783
    %v3008 = vmul.f32 %v2784, %v2784
    %v3009 = vmul.f32 %v2785, %v2785
    %v3010 = vmul.f32 %v2786, %v2786
    %v3011 = vmul.f32 %v2787, %v2787
    %v3012 = vmul.f32 %v2788, %v2788
    %v3013 = vmul.f32 %v2789, %v2789
    %v3014 = vmul.f32 %v2790, %v2790
    %v3015 = vmul.f32 %v2791, %v2791
    %v3016 = vmul.f32 %v2792, %v2792
    %v3017 = vmul.f32 %v2793, %v2793
    %v3018 = vmul.f32 %v2794, %v2794
    %v3019 = vmul.f32 %v2795, %v2795
    %v3020 = vmul.f32 %v2796, %v2796
    %v3021 = vmul.f32 %v2797, %v2797
    %v3022 = vmul.f32 %v2798, %v2798
    %v3023 = vmul.f32 %v2799, %v2799
    %v3024 = vmul.f32 %v2800, %v2800
    %v3025 = vmul.f32 %v2801, %v2801
    %v3026 = vmul.f32 %v2802, %v2802
    %v3027 = vmul.f32 %v2803, %v2803
    %v3028 = vmul.f32 %v2804, %v2804
    %v3029 = vmul.f32 %v2805, %v2805
    %v3030 = vmul.f32 %v2806, %v2806
    %v3031 = vmul.f32 %v2807, %v2807
    %v3032 = vmul.f32 %v2808, %v2808
    %v3033 = vmul.f32 %v2809, %v2809
    %v3034 = vmul.f32 %v2810, %v2810
    %v3035 = vmul.f32 %v2811, %v2811
    %v3036 = vmul.f32 %v2812, %v2812
    %v3037 = vmul.f32 %v2813, %v2813
    %v3038 = vsub.f32 %v2974, %v3006
    %v3039 = vsub.f32 %v2975, %v3007
    %v3040 = vsub.f32 %v2976, %v3008
    %v3041 = vsub.f32 %v2977, %v3009
    %v3042 = vsub.f32 %v2978, %v3010
    %v3043 = vsub.f32 %v2979, %v3011
    %v3044 = vsub.f32 %v2980, %v3012
    %v3045 = vsub.f32 %v2981, %v3013
    %v3046 = vsub.f32 %v2982, %v3014
    %v3047 = vsub.f32 %v2983, %v3015
    %v3048 = vsub.f32 %v2984, %v3016
    %v3049 = vsub.f32 %v2985, %v3017
    %v3050 = vsub.f32 %v2986, %v3018
    %v3051 = vsub.f32 %v2987, %v3019
    %v3052 = vsub.f32 %v2988, %v3020
    %v3053 = vsub.f32 %v2989, %v3021
    %v3054 = vsub.f32 %v2990, %v3022
    %v3055 = vsub.f32 %v2991, %v3023
    %v3056 = vsub.f32 %v2992, %v3024
    %v3057 = vsub.f32 %v2993, %v3025
    %v3058 = vsub.f32 %v2994, %v3026
    %v3059 = vsub.f32 %v2995, %v3027
    %v3060 = vsub.f32 %v2996, %v3028
    %v3061 = vsub.f32 %v2997, %v3029
    %v3062 = vsub.f32 %v2998, %v3030
    %v3063 = vsub.f32 %v2999, %v3031
    %v3064 = vsub.f32 %v3000, %v3032
    %v3065 = vsub.f32 %v3001, %v3033
    %v3066 = vsub.f32 %v3002, %v3034
    %v3067 = vsub.f32 %v3003, %v3035
    %v3068 = vsub.f32 %v3004, %v3036
    %v3069 = vsub.f32 %v3005, %v3037
    %v3070 = vmax.f32 %v3038, 0.0
    %v3071 = vmax.f32 %v3039, 0.0
    %v3072 = vmax.f32 %v3040, 0.0
    %v3073 = vmax.f32 %v3041, 0.0
    %v3074 = vmax.f32 %v3042, 0.0
    %v3075 = vmax.f32 %v3043, 0.0
    %v3076 = vmax.f32 %v3044, 0.0
    %v3077 = vmax.f32 %v3045, 0.0
    %v3078 = vmax.f32 %v3046, 0.0
    %v3079 = vmax.f32 %v3047, 0.0
    %v3080 = vmax.f32 %v3048, 0.0
    %v3081 = vmax.f32 %v3049, 0.0
    %v3082 = vmax.f32 %v3050, 0.0
    %v3083 = vmax.f32 %v3051, 0.0
    %v3084 = vmax.f32 %v3052, 0.0
    %v3085 = vmax.f32 %v3053, 0.0
    %v3086 = vmax.f32 %v3054, 0.0
    %v3087 = vmax.f32 %v3055, 0.0
    %v3088 = vmax.f32 %v3056, 0.0
    %v3089 = vmax.f32 %v3057, 0.0
    %v3090 = vmax.f32 %v3058, 0.0
    %v3091 = vmax.f32 %v3059, 0.0
    %v3092 = vmax.f32 %v3060, 0.0
    %v3093 = vmax.f32 %v3061, 0.0
    %v3094 = vmax.f32 %v3062, 0.0
    %v3095 = vmax.f32 %v3063, 0.0
    %v3096 = vmax.f32 %v3064, 0.0
    %v3097 = vmax.f32 %v3065, 0.0
    %v3098 = vmax.f32 %v3066, 0.0
    %v3099 = vmax.f32 %v3067, 0.0
    %v3100 = vmax.f32 %v3068, 0.0
    %v3101 = vmax.f32 %v3069, 0.0
    %v3102 = vsub.f32 %v2237, %v2782
    %v3103 = vsub.f32 %v2239, %v2782
    %v3104 = vsub.f32 %v2243, %v2783
    %v3105 = vsub.f32 %v2245, %v2783
    %v3106 = vsub.f32 %v2249, %v2784
    %v3107 = vsub.f32 %v2251, %v2784
    %v3108 = vsub.f32 %v2255, %v2785
    %v3109 = vsub.f32 %v2257, %v2785
    %v3110 = vsub.f32 %v2261, %v2786
    %v3111 = vsub.f32 %v2263, %v2786
    %v3112 = vsub.f32 %v2267, %v2787
    %v3113 = vsub.f32 %v2269, %v2787
    %v3114 = vsub.f32 %v2273, %v2788
    %v3115 = vsub.f32 %v2275, %v2788
    %v3116 = vsub.f32 %v2279, %v2789
    %v3117 = vsub.f32 %v2281, %v2789
    %v3118 = vsub.f32 %v2285, %v2790
    %v3119 = vsub.f32 %v2287, %v2790
    %v3120 = vsub.f32 %v2291, %v2791
    %v3121 = vsub.f32 %v2293, %v2791
    %v3122 = vsub.f32 %v2297, %v2792
    %v3123 = vsub.f32 %v2299, %v2792
    %v3124 = vsub.f32 %v2303, %v2793
    %v3125 = vsub.f32 %v2305, %v2793
    %v3126 = vsub.f32 %v2309, %v2794
    %v3127 = vsub.f32 %v2311, %v2794
    %v3128 = vsub.f32 %v2315, %v2795
    %v3129 = vsub.f32 %v2317, %v2795
    %v3130 = vsub.f32 %v2321, %v2796
    %v3131 = vsub.f32 %v2323, %v2796
    %v3132 = vsub.f32 %v2327, %v2797
    %v3133 = vsub.f32 %v2329, %v2797
    %v3134 = vsub.f32 %v2333, %v2798
    %v3135 = vsub.f32 %v2335, %v2798
    %v3136 = vsub.f32 %v2339, %v2799
    %v3137 = vsub.f32 %v2341, %v2799
    %v3138 = vsub.f32 %v2345, %v2800
    %v3139 = vsub.f32 %v2347, %v2800
    %v3140 = vsub.f32 %v2351, %v2801
    %v3141 = vsub.f32 %v2353, %v2801
    %v3142 = vsub.f32 %v2357, %v2802
    %v3143 = vsub.f32 %v2359, %v2802
    %v3144 = vsub.f32 %v2363, %v2803
    %v3145 = vsub.f32 %v2365, %v2803
    %v3146 = vsub.f32 %v2369, %v2804
    %v3147 = vsub.f32 %v2371, %v2804
    %v3148 = vsub.f32 %v2375, %v2805
    %v3149 = vsub.f32 %v2377, %v2805
    %v3150 = vsub.f32 %v2381, %v2806
    %v3151 = vsub.f32 %v2383, %v2806
    %v3152 = vsub.f32 %v2387, %v2807
    %v3153 = vsub.f32 %v2389, %v2807
    %v3154 = vsub.f32 %v2393, %v2808
    %v3155 = vsub.f32 %v2395, %v2808
    %v3156 = vsub.f32 %v2399, %v2809
    %v3157 = vsub.f32 %v2401, %v2809
    %v3158 = vsub.f32 %v2405, %v2810
    %v3159 = vsub.f32 %v2407, %v2810
    %v3160 = vsub.f32 %v2411, %v2811
    %v3161 = vsub.f32 %v2413, %v2811
    %v3162 = vsub.f32 %v2417, %v2812
    %v3163 = vsub.f32 %v2419, %v2812
    %v3164 = vsub.f32 %v2423, %v2813
    %v3165 = vsub.f32 %v2425, %v2813
    %v3166 = vadd.f32 %v3070, 1e-06
    %v3167 = vadd.f32 %v3071, 1e-06
    %v3168 = vadd.f32 %v3072, 1e-06
    %v3169 = vadd.f32 %v3073, 1e-06
    %v3170 = vadd.f32 %v3074, 1e-06
    %v3171 = vadd.f32 %v3075, 1e-06
    %v3172 = vadd.f32 %v3076, 1e-06
    %v3173 = vadd.f32 %v3077, 1e-06
    %v3174 = vadd.f32 %v3078, 1e-06
    %v3175 = vadd.f32 %v3079, 1e-06
    %v3176 = vadd.f32 %v3080, 1e-06
    %v3177 = vadd.f32 %v3081, 1e-06
    %v3178 = vadd.f32 %v3082, 1e-06
    %v3179 = vadd.f32 %v3083, 1e-06
    %v3180 = vadd.f32 %v3084, 1e-06
    %v3181 = vadd.f32 %v3085, 1e-06
    %v3182 = vadd.f32 %v3086, 1e-06
    %v3183 = vadd.f32 %v3087, 1e-06
    %v3184 = vadd.f32 %v3088, 1e-06
    %v3185 = vadd.f32 %v3089, 1e-06
    %v3186 = vadd.f32 %v3090, 1e-06
    %v3187 = vadd.f32 %v3091, 1e-06
    %v3188 = vadd.f32 %v3092, 1e-06
    %v3189 = vadd.f32 %v3093, 1e-06
    %v3190 = vadd.f32 %v3094, 1e-06
    %v3191 = vadd.f32 %v3095, 1e-06
    %v3192 = vadd.f32 %v3096, 1e-06
    %v3193 = vadd.f32 %v3097, 1e-06
    %v3194 = vadd.f32 %v3098, 1e-06
    %v3195 = vadd.f32 %v3099, 1e-06
    %v3196 = vadd.f32 %v3100, 1e-06
    %v3197 = vadd.f32 %v3101, 1e-06
    %v3198 = vrsqrt.pop %v3166
    %v3199 = vrsqrt.pop %v3167
    %v3200 = vrsqrt.pop %v3168
    %v3201 = vrsqrt.pop %v3169
    %v3202 = vrsqrt.pop %v3170
    %v3203 = vrsqrt.pop %v3171
    %v3204 = vrsqrt.pop %v3172
    %v3205 = vrsqrt.pop %v3173
    %v3206 = vrsqrt.pop %v3174
    %v3207 = vrsqrt.pop %v3175
    %v3208 = vrsqrt.pop %v3176
    %v3209 = vrsqrt.pop %v3177
    %v3210 = vrsqrt.pop %v3178
    %v3211 = vrsqrt.pop %v3179
    %v3212 = vrsqrt.pop %v3180
    %v3213 = vrsqrt.pop %v3181
    %v3214 = vrsqrt.pop %v3182
    %v3215 = vrsqrt.pop %v3183
    %v3216 = vrsqrt.pop %v3184
    %v3217 = vrsqrt.pop %v3185
    %v3218 = vrsqrt.pop %v3186
    %v3219 = vrsqrt.pop %v3187
    %v3220 = vrsqrt.pop %v3188
    %v3221 = vrsqrt.pop %v3189
    %v3222 = vrsqrt.pop %v3190
    %v3223 = vrsqrt.pop %v3191
    %v3224 = vrsqrt.pop %v3192
    %v3225 = vrsqrt.pop %v3193
    %v3226 = vrsqrt.pop %v3194
    %v3227 = vrsqrt.pop %v3195
    %v3228 = vrsqrt.pop %v3196
    %v3229 = vrsqrt.pop %v3197
    %v3230 = vmul.f32 %v3102, %v3198
    %v3231 = vmul.f32 %v3103, %v3198
    %v3232 = vmul.f32 %v3104, %v3199
    %v3233 = vmul.f32 %v3105, %v3199
    %v3234 = vmul.f32 %v3106, %v3200
    %v3235 = vmul.f32 %v3107, %v3200
    %v3236 = vmul.f32 %v3108, %v3201
    %v3237 = vmul.f32 %v3109, %v3201
    %v3238 = vmul.f32 %v3110, %v3202
    %v3239 = vmul.f32 %v3111, %v3202
    %v3240 = vmul.f32 %v3112, %v3203
    %v3241 = vmul.f32 %v3113, %v3203
    %v3242 = vmul.f32 %v3114, %v3204
    %v3243 = vmul.f32 %v3115, %v3204
    %v3244 = vmul.f32 %v3116, %v3205
    %v3245 = vmul.f32 %v3117, %v3205
    %v3246 = vmul.f32 %v3118, %v3206
    %v3247 = vmul.f32 %v3119, %v3206
    %v3248 = vmul.f32 %v3120, %v3207
    %v3249 = vmul.f32 %v3121, %v3207
    %v3250 = vmul.f32 %v3122, %v3208
    %v3251 = vmul.f32 %v3123, %v3208
    %v3252 = vmul.f32 %v3124, %v3209
    %v3253 = vmul.f32 %v3125, %v3209
    %v3254 = vmul.f32 %v3126, %v3210
    %v3255 = vmul.f32 %v3127, %v3210
    %v3256 = vmul.f32 %v3128, %v3211
    %v3257 = vmul.f32 %v3129, %v3211
    %v3258 = vmul.f32 %v3130, %v3212
    %v3259 = vmul.f32 %v3131, %v3212
    %v3260 = vmul.f32 %v3132, %v3213
    %v3261 = vmul.f32 %v3133, %v3213
    %v3262 = vmul.f32 %v3134, %v3214
    %v3263 = vmul.f32 %v3135, %v3214
    %v3264 = vmul.f32 %v3136, %v3215
    %v3265 = vmul.f32 %v3137, %v3215
    %v3266 = vmul.f32 %v3138, %v3216
    %v3267 = vmul.f32 %v3139, %v3216
    %v3268 = vmul.f32 %v3140, %v3217
    %v3269 = vmul.f32 %v3141, %v3217
    %v3270 = vmul.f32 %v3142, %v3218
    %v3271 = vmul.f32 %v3143, %v3218
    %v3272 = vmul.f32 %v3144, %v3219
    %v3273 = vmul.f32 %v3145, %v3219
    %v3274 = vmul.f32 %v3146, %v3220
    %v3275 = vmul.f32 %v3147, %v3220
    %v3276 = vmul.f32 %v3148, %v3221
    %v3277 = vmul.f32 %v3149, %v3221
    %v3278 = vmul.f32 %v3150, %v3222
    %v3279 = vmul.f32 %v3151, %v3222
    %v3280 = vmul.f32 %v3152, %v3223
    %v3281 = vmul.f32 %v3153, %v3223
    %v3282 = vmul.f32 %v3154, %v3224
    %v3283 = vmul.f32 %v3155, %v3224
    %v3284 = vmul.f32 %v3156, %v3225
    %v3285 = vmul.f32 %v3157, %v3225
    %v3286 = vmul.f32 %v3158, %v3226
    %v3287 = vmul.f32 %v3159, %v3226
    %v3288 = vmul.f32 %v3160, %v3227
    %v3289 = vmul.f32 %v3161, %v3227
    %v3290 = vmul.f32 %v3162, %v3228
    %v3291 = vmul.f32 %v3163, %v3228
    %v3292 = vmul.f32 %v3164, %v3229
    %v3293 = vmul.f32 %v3165, %v3229
    %v3295 = vlaneseq
    %v3296 = vshrl.u32 %v3295, 7
    %v3297 = vsub.s32 0, %v3296
    %v3298 = vrot.slane %v2684, %v3297
    %v3299 = vlaneseq
    %v3300 = vshrl.u32 %v3299, 7
    %v3301 = vsub.s32 1, %v3300
    %v3302 = vrot.slane %v2684, %v3301
    %v3305 = vmul.f32 %v3230, %v3298
    %v3306 = vmul.f32 %v3231, %v3302
    %v3307 = vmul.f32 %v3232, %v3298
    %v3308 = vmul.f32 %v3233, %v3302
    %v3309 = vmul.f32 %v3234, %v3298
    %v3310 = vmul.f32 %v3235, %v3302
    %v3311 = vmul.f32 %v3236, %v3298
    %v3312 = vmul.f32 %v3237, %v3302
    %v3313 = vmul.f32 %v3238, %v3298
    %v3314 = vmul.f32 %v3239, %v3302
    %v3315 = vmul.f32 %v3240, %v3298
    %v3316 = vmul.f32 %v3241, %v3302
    %v3317 = vmul.f32 %v3242, %v3298
    %v3318 = vmul.f32 %v3243, %v3302
    %v3319 = vmul.f32 %v3244, %v3298
    %v3320 = vmul.f32 %v3245, %v3302
    %v3321 = vmul.f32 %v3246, %v3298
    %v3322 = vmul.f32 %v3247, %v3302
    %v3323 = vmul.f32 %v3248, %v3298
    %v3324 = vmul.f32 %v3249, %v3302
    %v3325 = vmul.f32 %v3250, %v3298
    %v3326 = vmul.f32 %v3251, %v3302
    %v3327 = vmul.f32 %v3252, %v3298
    %v3328 = vmul.f32 %v3253, %v3302
    %v3329 = vmul.f32 %v3254, %v3298
    %v3330 = vmul.f32 %v3255, %v3302
    %v3331 = vmul.f32 %v3256, %v3298
    %v3332 = vmul.f32 %v3257, %v3302
    %v3333 = vmul.f32 %v3258, %v3298
    %v3334 = vmul.f32 %v3259, %v3302
    %v3335 = vmul.f32 %v3260, %v3298
    %v3336 = vmul.f32 %v3261, %v3302
    %v3337 = vmul.f32 %v3262, %v3298
    %v3338 = vmul.f32 %v3263, %v3302
    %v3339 = vmul.f32 %v3264, %v3298
    %v3340 = vmul.f32 %v3265, %v3302
    %v3341 = vmul.f32 %v3266, %v3298
    %v3342 = vmul.f32 %v3267, %v3302
    %v3343 = vmul.f32 %v3268, %v3298
    %v3344 = vmul.f32 %v3269, %v3302
    %v3345 = vmul.f32 %v3270, %v3298
    %v3346 = vmul.f32 %v3271, %v3302
    %v3347 = vmul.f32 %v3272, %v3298
    %v3348 = vmul.f32 %v3273, %v3302
    %v3349 = vmul.f32 %v3274, %v3298
    %v3350 = vmul.f32 %v3275, %v3302
    %v3351 = vmul.f32 %v3276, %v3298
    %v3352 = vmul.f32 %v3277, %v3302
    %v3353 = vmul.f32 %v3278, %v3298
    %v3354 = vmul.f32 %v3279, %v3302
    %v3355 = vmul.f32 %v3280, %v3298
    %v3356 = vmul.f32 %v3281, %v3302
    %v3357 = vmul.f32 %v3282, %v3298
    %v3358 = vmul.f32 %v3283, %v3302
    %v3359 = vmul.f32 %v3284, %v3298
    %v3360 = vmul.f32 %v3285, %v3302
    %v3361 = vmul.f32 %v3286, %v3298
    %v3362 = vmul.f32 %v3287, %v3302
    %v3363 = vmul.f32 %v3288, %v3298
    %v3364 = vmul.f32 %v3289, %v3302
    %v3365 = vmul.f32 %v3290, %v3298
    %v3366 = vmul.f32 %v3291, %v3302
    %v3367 = vmul.f32 %v3292, %v3298
    %v3368 = vmul.f32 %v3293, %v3302
    %v3370 = vlaneseq
    %v3371 = vshrl.u32 %v3370, 7
    %v3372 = vsub.s32 0, %v3371
    %v3373 = vrot.slane %v2685, %v3372
    %v3374 = vlaneseq
    %v3375 = vshrl.u32 %v3374, 7
    %v3376 = vsub.s32 1, %v3375
    %v3377 = vrot.slane %v2685, %v3376
    %v3380 = vadd.f32 %v3305, %v3373
    %v3381 = vadd.f32 %v3306, %v3377
    %v3382 = vadd.f32 %v3307, %v3373
    %v3383 = vadd.f32 %v3308, %v3377
    %v3384 = vadd.f32 %v3309, %v3373
    %v3385 = vadd.f32 %v3310, %v3377
    %v3386 = vadd.f32 %v3311, %v3373
    %v3387 = vadd.f32 %v3312, %v3377
    %v3388 = vadd.f32 %v3313, %v3373
    %v3389 = vadd.f32 %v3314, %v3377
    %v3390 = vadd.f32 %v3315, %v3373
    %v3391 = vadd.f32 %v3316, %v3377
    %v3392 = vadd.f32 %v3317, %v3373
    %v3393 = vadd.f32 %v3318, %v3377
    %v3394 = vadd.f32 %v3319, %v3373
    %v3395 = vadd.f32 %v3320, %v3377
    %v3396 = vadd.f32 %v3321, %v3373
    %v3397 = vadd.f32 %v3322, %v3377
    %v3398 = vadd.f32 %v3323, %v3373
    %v3399 = vadd.f32 %v3324, %v3377
    %v3400 = vadd.f32 %v3325, %v3373
    %v3401 = vadd.f32 %v3326, %v3377
    %v3402 = vadd.f32 %v3327, %v3373
    %v3403 = vadd.f32 %v3328, %v3377
    %v3404 = vadd.f32 %v3329, %v3373
    %v3405 = vadd.f32 %v3330, %v3377
    %v3406 = vadd.f32 %v3331, %v3373
    %v3407 = vadd.f32 %v3332, %v3377
    %v3408 = vadd.f32 %v3333, %v3373
    %v3409 = vadd.f32 %v3334, %v3377
    %v3410 = vadd.f32 %v3335, %v3373
    %v3411 = vadd.f32 %v3336, %v3377
    %v3412 = vadd.f32 %v3337, %v3373
    %v3413 = vadd.f32 %v3338, %v3377
    %v3414 = vadd.f32 %v3339, %v3373
    %v3415 = vadd.f32 %v3340, %v3377
    %v3416 = vadd.f32 %v3341, %v3373
    %v3417 = vadd.f32 %v3342, %v3377
    %v3418 = vadd.f32 %v3343, %v3373
    %v3419 = vadd.f32 %v3344, %v3377
    %v3420 = vadd.f32 %v3345, %v3373
    %v3421 = vadd.f32 %v3346, %v3377
    %v3422 = vadd.f32 %v3347, %v3373
    %v3423 = vadd.f32 %v3348, %v3377
    %v3424 = vadd.f32 %v3349, %v3373
    %v3425 = vadd.f32 %v3350, %v3377
    %v3426 = vadd.f32 %v3351, %v3373
    %v3427 = vadd.f32 %v3352, %v3377
    %v3428 = vadd.f32 %v3353, %v3373
    %v3429 = vadd.f32 %v3354, %v3377
    %v3430 = vadd.f32 %v3355, %v3373
    %v3431 = vadd.f32 %v3356, %v3377
    %v3432 = vadd.f32 %v3357, %v3373
    %v3433 = vadd.f32 %v3358, %v3377
    %v3434 = vadd.f32 %v3359, %v3373
    %v3435 = vadd.f32 %v3360, %v3377
    %v3436 = vadd.f32 %v3361, %v3373
    %v3437 = vadd.f32 %v3362, %v3377
    %v3438 = vadd.f32 %v3363, %v3373
    %v3439 = vadd.f32 %v3364, %v3377
    %v3440 = vadd.f32 %v3365, %v3373
    %v3441 = vadd.f32 %v3366, %v3377
    %v3442 = vadd.f32 %v3367, %v3373
    %v3443 = vadd.f32 %v3368, %v3377
    %v3444 = vadd.f32 %v2494, %v2496
    %3445 = vadd.xlane.f32.xlu0 %v3444
    %v3446 = vpop.xlane.xlu0 %3445
    %v3447 = vadd.f32 %v2500, %v2502
    %3448 = vadd.xlane.f32.xlu0 %v3447
    %v3449 = vpop.xlane.xlu0 %3448
    %v3450 = vadd.f32 %v2506, %v2508
    %3451 = vadd.xlane.f32.xlu0 %v3450
    %v3452 = vpop.xlane.xlu0 %3451
    %v3453 = vadd.f32 %v2512, %v2514
    %3454 = vadd.xlane.f32.xlu0 %v3453
    %v3455 = vpop.xlane.xlu0 %3454
    %v3456 = vadd.f32 %v2518, %v2520
    %3457 = vadd.xlane.f32.xlu0 %v3456
    %v3458 = vpop.xlane.xlu0 %3457
    %v3459 = vadd.f32 %v2524, %v2526
    %3460 = vadd.xlane.f32.xlu0 %v3459
    %v3461 = vpop.xlane.xlu0 %3460
    %v3462 = vadd.f32 %v2530, %v2532
    %3463 = vadd.xlane.f32.xlu0 %v3462
    %v3464 = vpop.xlane.xlu0 %3463
    %v3465 = vadd.f32 %v2536, %v2538
    %3466 = vadd.xlane.f32.xlu0 %v3465
    %v3467 = vpop.xlane.xlu0 %3466
    %v3468 = vadd.f32 %v2542, %v2544
    %3469 = vadd.xlane.f32.xlu0 %v3468
    %v3470 = vpop.xlane.xlu0 %3469
    %v3471 = vadd.f32 %v2548, %v2550
    %3472 = vadd.xlane.f32.xlu0 %v3471
    %v3473 = vpop.xlane.xlu0 %3472
    %v3474 = vadd.f32 %v2554, %v2556
    %3475 = vadd.xlane.f32.xlu0 %v3474
    %v3476 = vpop.xlane.xlu0 %3475
    %v3477 = vadd.f32 %v2560, %v2562
    %3478 = vadd.xlane.f32.xlu0 %v3477
    %v3479 = vpop.xlane.xlu0 %3478
    %v3480 = vadd.f32 %v2566, %v2568
    %3481 = vadd.xlane.f32.xlu0 %v3480
    %v3482 = vpop.xlane.xlu0 %3481
    %v3483 = vadd.f32 %v2572, %v2574
    %3484 = vadd.xlane.f32.xlu0 %v3483
    %v3485 = vpop.xlane.xlu0 %3484
    %v3486 = vadd.f32 %v2578, %v2580
    %3487 = vadd.xlane.f32.xlu0 %v3486
    %v3488 = vpop.xlane.xlu0 %3487
    %v3489 = vadd.f32 %v2584, %v2586
    %3490 = vadd.xlane.f32.xlu0 %v3489
    %v3491 = vpop.xlane.xlu0 %3490
    %v3492 = vadd.f32 %v2590, %v2592
    %3493 = vadd.xlane.f32.xlu0 %v3492
    %v3494 = vpop.xlane.xlu0 %3493
    %v3495 = vadd.f32 %v2596, %v2598
    %3496 = vadd.xlane.f32.xlu0 %v3495
    %v3497 = vpop.xlane.xlu0 %3496
    %v3498 = vadd.f32 %v2602, %v2604
    %3499 = vadd.xlane.f32.xlu0 %v3498
    %v3500 = vpop.xlane.xlu0 %3499
    %v3501 = vadd.f32 %v2608, %v2610
    %3502 = vadd.xlane.f32.xlu0 %v3501
    %v3503 = vpop.xlane.xlu0 %3502
    %v3504 = vadd.f32 %v2614, %v2616
    %3505 = vadd.xlane.f32.xlu0 %v3504
    %v3506 = vpop.xlane.xlu0 %3505
    %v3507 = vadd.f32 %v2620, %v2622
    %3508 = vadd.xlane.f32.xlu0 %v3507
    %v3509 = vpop.xlane.xlu0 %3508
    %v3510 = vadd.f32 %v2626, %v2628
    %3511 = vadd.xlane.f32.xlu0 %v3510
    %v3512 = vpop.xlane.xlu0 %3511
    %v3513 = vadd.f32 %v2632, %v2634
    %3514 = vadd.xlane.f32.xlu0 %v3513
    %v3515 = vpop.xlane.xlu0 %3514
    %v3516 = vadd.f32 %v2638, %v2640
    %3517 = vadd.xlane.f32.xlu0 %v3516
    %v3518 = vpop.xlane.xlu0 %3517
    %v3519 = vadd.f32 %v2644, %v2646
    %3520 = vadd.xlane.f32.xlu0 %v3519
    %v3521 = vpop.xlane.xlu0 %3520
    %v3522 = vadd.f32 %v2650, %v2652
    %3523 = vadd.xlane.f32.xlu0 %v3522
    %v3524 = vpop.xlane.xlu0 %3523
    %v3525 = vadd.f32 %v2656, %v2658
    %3526 = vadd.xlane.f32.xlu0 %v3525
    %v3527 = vpop.xlane.xlu0 %3526
    %v3528 = vadd.f32 %v2662, %v2664
    %3529 = vadd.xlane.f32.xlu0 %v3528
    %v3530 = vpop.xlane.xlu0 %3529
    %v3531 = vadd.f32 %v2668, %v2670
    %3532 = vadd.xlane.f32.xlu0 %v3531
    %v3533 = vpop.xlane.xlu0 %3532
    %v3534 = vadd.f32 %v2674, %v2676
    %3535 = vadd.xlane.f32.xlu0 %v3534
    %v3536 = vpop.xlane.xlu0 %3535
    %v3537 = vadd.f32 %v2680, %v2682
    %3538 = vadd.xlane.f32.xlu0 %v3537
    %v3539 = vpop.xlane.xlu0 %3538
    %v3540 = vmul.f32 %v3446, %v432
    %v3541 = vmul.f32 %v3449, %v432
    %v3542 = vmul.f32 %v3452, %v432
    %v3543 = vmul.f32 %v3455, %v432
    %v3544 = vmul.f32 %v3458, %v432
    %v3545 = vmul.f32 %v3461, %v432
    %v3546 = vmul.f32 %v3464, %v432
    %v3547 = vmul.f32 %v3467, %v432
    %v3548 = vmul.f32 %v3470, %v432
    %v3549 = vmul.f32 %v3473, %v432
    %v3550 = vmul.f32 %v3476, %v432
    %v3551 = vmul.f32 %v3479, %v432
    %v3552 = vmul.f32 %v3482, %v432
    %v3553 = vmul.f32 %v3485, %v432
    %v3554 = vmul.f32 %v3488, %v432
    %v3555 = vmul.f32 %v3491, %v432
    %v3556 = vmul.f32 %v3494, %v432
    %v3557 = vmul.f32 %v3497, %v432
    %v3558 = vmul.f32 %v3500, %v432
    %v3559 = vmul.f32 %v3503, %v432
    %v3560 = vmul.f32 %v3506, %v432
    %v3561 = vmul.f32 %v3509, %v432
    %v3562 = vmul.f32 %v3512, %v432
    %v3563 = vmul.f32 %v3515, %v432
    %v3564 = vmul.f32 %v3518, %v432
    %v3565 = vmul.f32 %v3521, %v432
    %v3566 = vmul.f32 %v3524, %v432
    %v3567 = vmul.f32 %v3527, %v432
    %v3568 = vmul.f32 %v3530, %v432
    %v3569 = vmul.f32 %v3533, %v432
    %v3570 = vmul.f32 %v3536, %v432
    %v3571 = vmul.f32 %v3539, %v432
    %v3572 = vmul.f32 %v2494, %v2494
    %v3573 = vmul.f32 %v2496, %v2496
    %v3574 = vmul.f32 %v2500, %v2500
    %v3575 = vmul.f32 %v2502, %v2502
    %v3576 = vmul.f32 %v2506, %v2506
    %v3577 = vmul.f32 %v2508, %v2508
    %v3578 = vmul.f32 %v2512, %v2512
    %v3579 = vmul.f32 %v2514, %v2514
    %v3580 = vmul.f32 %v2518, %v2518
    %v3581 = vmul.f32 %v2520, %v2520
    %v3582 = vmul.f32 %v2524, %v2524
    %v3583 = vmul.f32 %v2526, %v2526
    %v3584 = vmul.f32 %v2530, %v2530
    %v3585 = vmul.f32 %v2532, %v2532
    %v3586 = vmul.f32 %v2536, %v2536
    %v3587 = vmul.f32 %v2538, %v2538
    %v3588 = vmul.f32 %v2542, %v2542
    %v3589 = vmul.f32 %v2544, %v2544
    %v3590 = vmul.f32 %v2548, %v2548
    %v3591 = vmul.f32 %v2550, %v2550
    %v3592 = vmul.f32 %v2554, %v2554
    %v3593 = vmul.f32 %v2556, %v2556
    %v3594 = vmul.f32 %v2560, %v2560
    %v3595 = vmul.f32 %v2562, %v2562
    %v3596 = vmul.f32 %v2566, %v2566
    %v3597 = vmul.f32 %v2568, %v2568
    %v3598 = vmul.f32 %v2572, %v2572
    %v3599 = vmul.f32 %v2574, %v2574
    %v3600 = vmul.f32 %v2578, %v2578
    %v3601 = vmul.f32 %v2580, %v2580
    %v3602 = vmul.f32 %v2584, %v2584
    %v3603 = vmul.f32 %v2586, %v2586
    %v3604 = vmul.f32 %v2590, %v2590
    %v3605 = vmul.f32 %v2592, %v2592
    %v3606 = vmul.f32 %v2596, %v2596
    %v3607 = vmul.f32 %v2598, %v2598
    %v3608 = vmul.f32 %v2602, %v2602
    %v3609 = vmul.f32 %v2604, %v2604
    %v3610 = vmul.f32 %v2608, %v2608
    %v3611 = vmul.f32 %v2610, %v2610
    %v3612 = vmul.f32 %v2614, %v2614
    %v3613 = vmul.f32 %v2616, %v2616
    %v3614 = vmul.f32 %v2620, %v2620
    %v3615 = vmul.f32 %v2622, %v2622
    %v3616 = vmul.f32 %v2626, %v2626
    %v3617 = vmul.f32 %v2628, %v2628
    %v3618 = vmul.f32 %v2632, %v2632
    %v3619 = vmul.f32 %v2634, %v2634
    %v3620 = vmul.f32 %v2638, %v2638
    %v3621 = vmul.f32 %v2640, %v2640
    %v3622 = vmul.f32 %v2644, %v2644
    %v3623 = vmul.f32 %v2646, %v2646
    %v3624 = vmul.f32 %v2650, %v2650
    %v3625 = vmul.f32 %v2652, %v2652
    %v3626 = vmul.f32 %v2656, %v2656
    %v3627 = vmul.f32 %v2658, %v2658
    %v3628 = vmul.f32 %v2662, %v2662
    %v3629 = vmul.f32 %v2664, %v2664
    %v3630 = vmul.f32 %v2668, %v2668
    %v3631 = vmul.f32 %v2670, %v2670
    %v3632 = vmul.f32 %v2674, %v2674
    %v3633 = vmul.f32 %v2676, %v2676
    %v3634 = vmul.f32 %v2680, %v2680
    %v3635 = vmul.f32 %v2682, %v2682
    %v3636 = vadd.f32 %v3572, %v3573
    %3637 = vadd.xlane.f32.xlu0 %v3636
    %v3638 = vpop.xlane.xlu0 %3637
    %v3639 = vadd.f32 %v3574, %v3575
    %3640 = vadd.xlane.f32.xlu0 %v3639
    %v3641 = vpop.xlane.xlu0 %3640
    %v3642 = vadd.f32 %v3576, %v3577
    %3643 = vadd.xlane.f32.xlu0 %v3642
    %v3644 = vpop.xlane.xlu0 %3643
    %v3645 = vadd.f32 %v3578, %v3579
    %3646 = vadd.xlane.f32.xlu0 %v3645
    %v3647 = vpop.xlane.xlu0 %3646
    %v3648 = vadd.f32 %v3580, %v3581
    %3649 = vadd.xlane.f32.xlu0 %v3648
    %v3650 = vpop.xlane.xlu0 %3649
    %v3651 = vadd.f32 %v3582, %v3583
    %3652 = vadd.xlane.f32.xlu0 %v3651
    %v3653 = vpop.xlane.xlu0 %3652
    %v3654 = vadd.f32 %v3584, %v3585
    %3655 = vadd.xlane.f32.xlu0 %v3654
    %v3656 = vpop.xlane.xlu0 %3655
    %v3657 = vadd.f32 %v3586, %v3587
    %3658 = vadd.xlane.f32.xlu0 %v3657
    %v3659 = vpop.xlane.xlu0 %3658
    %v3660 = vadd.f32 %v3588, %v3589
    %3661 = vadd.xlane.f32.xlu0 %v3660
    %v3662 = vpop.xlane.xlu0 %3661
    %v3663 = vadd.f32 %v3590, %v3591
    %3664 = vadd.xlane.f32.xlu0 %v3663
    %v3665 = vpop.xlane.xlu0 %3664
    %v3666 = vadd.f32 %v3592, %v3593
    %3667 = vadd.xlane.f32.xlu0 %v3666
    %v3668 = vpop.xlane.xlu0 %3667
    %v3669 = vadd.f32 %v3594, %v3595
    %3670 = vadd.xlane.f32.xlu0 %v3669
    %v3671 = vpop.xlane.xlu0 %3670
    %v3672 = vadd.f32 %v3596, %v3597
    %3673 = vadd.xlane.f32.xlu0 %v3672
    %v3674 = vpop.xlane.xlu0 %3673
    %v3675 = vadd.f32 %v3598, %v3599
    %3676 = vadd.xlane.f32.xlu0 %v3675
    %v3677 = vpop.xlane.xlu0 %3676
    %v3678 = vadd.f32 %v3600, %v3601
    %3679 = vadd.xlane.f32.xlu0 %v3678
    %v3680 = vpop.xlane.xlu0 %3679
    %v3681 = vadd.f32 %v3602, %v3603
    %3682 = vadd.xlane.f32.xlu0 %v3681
    %v3683 = vpop.xlane.xlu0 %3682
    %v3684 = vadd.f32 %v3604, %v3605
    %3685 = vadd.xlane.f32.xlu0 %v3684
    %v3686 = vpop.xlane.xlu0 %3685
    %v3687 = vadd.f32 %v3606, %v3607
    %3688 = vadd.xlane.f32.xlu0 %v3687
    %v3689 = vpop.xlane.xlu0 %3688
    %v3690 = vadd.f32 %v3608, %v3609
    %3691 = vadd.xlane.f32.xlu0 %v3690
    %v3692 = vpop.xlane.xlu0 %3691
    %v3693 = vadd.f32 %v3610, %v3611
    %3694 = vadd.xlane.f32.xlu0 %v3693
    %v3695 = vpop.xlane.xlu0 %3694
    %v3696 = vadd.f32 %v3612, %v3613
    %3697 = vadd.xlane.f32.xlu0 %v3696
    %v3698 = vpop.xlane.xlu0 %3697
    %v3699 = vadd.f32 %v3614, %v3615
    %3700 = vadd.xlane.f32.xlu0 %v3699
    %v3701 = vpop.xlane.xlu0 %3700
    %v3702 = vadd.f32 %v3616, %v3617
    %3703 = vadd.xlane.f32.xlu0 %v3702
    %v3704 = vpop.xlane.xlu0 %3703
    %v3705 = vadd.f32 %v3618, %v3619
    %3706 = vadd.xlane.f32.xlu0 %v3705
    %v3707 = vpop.xlane.xlu0 %3706
    %v3708 = vadd.f32 %v3620, %v3621
    %3709 = vadd.xlane.f32.xlu0 %v3708
    %v3710 = vpop.xlane.xlu0 %3709
    %v3711 = vadd.f32 %v3622, %v3623
    %3712 = vadd.xlane.f32.xlu0 %v3711
    %v3713 = vpop.xlane.xlu0 %3712
    %v3714 = vadd.f32 %v3624, %v3625
    %3715 = vadd.xlane.f32.xlu0 %v3714
    %v3716 = vpop.xlane.xlu0 %3715
    %v3717 = vadd.f32 %v3626, %v3627
    %3718 = vadd.xlane.f32.xlu0 %v3717
    %v3719 = vpop.xlane.xlu0 %3718
    %v3720 = vadd.f32 %v3628, %v3629
    %3721 = vadd.xlane.f32.xlu0 %v3720
    %v3722 = vpop.xlane.xlu0 %3721
    %v3723 = vadd.f32 %v3630, %v3631
    %3724 = vadd.xlane.f32.xlu0 %v3723
    %v3725 = vpop.xlane.xlu0 %3724
    %v3726 = vadd.f32 %v3632, %v3633
    %3727 = vadd.xlane.f32.xlu0 %v3726
    %v3728 = vpop.xlane.xlu0 %3727
    %v3729 = vadd.f32 %v3634, %v3635
    %3730 = vadd.xlane.f32.xlu0 %v3729
    %v3731 = vpop.xlane.xlu0 %3730
    %v3732 = vmul.f32 %v3638, %v432
    %v3733 = vmul.f32 %v3641, %v432
    %v3734 = vmul.f32 %v3644, %v432
    %v3735 = vmul.f32 %v3647, %v432
    %v3736 = vmul.f32 %v3650, %v432
    %v3737 = vmul.f32 %v3653, %v432
    %v3738 = vmul.f32 %v3656, %v432
    %v3739 = vmul.f32 %v3659, %v432
    %v3740 = vmul.f32 %v3662, %v432
    %v3741 = vmul.f32 %v3665, %v432
    %v3742 = vmul.f32 %v3668, %v432
    %v3743 = vmul.f32 %v3671, %v432
    %v3744 = vmul.f32 %v3674, %v432
    %v3745 = vmul.f32 %v3677, %v432
    %v3746 = vmul.f32 %v3680, %v432
    %v3747 = vmul.f32 %v3683, %v432
    %v3748 = vmul.f32 %v3686, %v432
    %v3749 = vmul.f32 %v3689, %v432
    %v3750 = vmul.f32 %v3692, %v432
    %v3751 = vmul.f32 %v3695, %v432
    %v3752 = vmul.f32 %v3698, %v432
    %v3753 = vmul.f32 %v3701, %v432
    %v3754 = vmul.f32 %v3704, %v432
    %v3755 = vmul.f32 %v3707, %v432
    %v3756 = vmul.f32 %v3710, %v432
    %v3757 = vmul.f32 %v3713, %v432
    %v3758 = vmul.f32 %v3716, %v432
    %v3759 = vmul.f32 %v3719, %v432
    %v3760 = vmul.f32 %v3722, %v432
    %v3761 = vmul.f32 %v3725, %v432
    %v3762 = vmul.f32 %v3728, %v432
    %v3763 = vmul.f32 %v3731, %v432
    %v3764 = vmul.f32 %v3540, %v3540
    %v3765 = vmul.f32 %v3541, %v3541
    %v3766 = vmul.f32 %v3542, %v3542
    %v3767 = vmul.f32 %v3543, %v3543
    %v3768 = vmul.f32 %v3544, %v3544
    %v3769 = vmul.f32 %v3545, %v3545
    %v3770 = vmul.f32 %v3546, %v3546
    %v3771 = vmul.f32 %v3547, %v3547
    %v3772 = vmul.f32 %v3548, %v3548
    %v3773 = vmul.f32 %v3549, %v3549
    %v3774 = vmul.f32 %v3550, %v3550
    %v3775 = vmul.f32 %v3551, %v3551
    %v3776 = vmul.f32 %v3552, %v3552
    %v3777 = vmul.f32 %v3553, %v3553
    %v3778 = vmul.f32 %v3554, %v3554
    %v3779 = vmul.f32 %v3555, %v3555
    %v3780 = vmul.f32 %v3556, %v3556
    %v3781 = vmul.f32 %v3557, %v3557
    %v3782 = vmul.f32 %v3558, %v3558
    %v3783 = vmul.f32 %v3559, %v3559
    %v3784 = vmul.f32 %v3560, %v3560
    %v3785 = vmul.f32 %v3561, %v3561
    %v3786 = vmul.f32 %v3562, %v3562
    %v3787 = vmul.f32 %v3563, %v3563
    %v3788 = vmul.f32 %v3564, %v3564
    %v3789 = vmul.f32 %v3565, %v3565
    %v3790 = vmul.f32 %v3566, %v3566
    %v3791 = vmul.f32 %v3567, %v3567
    %v3792 = vmul.f32 %v3568, %v3568
    %v3793 = vmul.f32 %v3569, %v3569
    %v3794 = vmul.f32 %v3570, %v3570
    %v3795 = vmul.f32 %v3571, %v3571
    %v3796 = vsub.f32 %v3732, %v3764
    %v3797 = vsub.f32 %v3733, %v3765
    %v3798 = vsub.f32 %v3734, %v3766
    %v3799 = vsub.f32 %v3735, %v3767
    %v3800 = vsub.f32 %v3736, %v3768
    %v3801 = vsub.f32 %v3737, %v3769
    %v3802 = vsub.f32 %v3738, %v3770
    %v3803 = vsub.f32 %v3739, %v3771
    %v3804 = vsub.f32 %v3740, %v3772
    %v3805 = vsub.f32 %v3741, %v3773
    %v3806 = vsub.f32 %v3742, %v3774
    %v3807 = vsub.f32 %v3743, %v3775
    %v3808 = vsub.f32 %v3744, %v3776
    %v3809 = vsub.f32 %v3745, %v3777
    %v3810 = vsub.f32 %v3746, %v3778
    %v3811 = vsub.f32 %v3747, %v3779
    %v3812 = vsub.f32 %v3748, %v3780
    %v3813 = vsub.f32 %v3749, %v3781
    %v3814 = vsub.f32 %v3750, %v3782
    %v3815 = vsub.f32 %v3751, %v3783
    %v3816 = vsub.f32 %v3752, %v3784
    %v3817 = vsub.f32 %v3753, %v3785
    %v3818 = vsub.f32 %v3754, %v3786
    %v3819 = vsub.f32 %v3755, %v3787
    %v3820 = vsub.f32 %v3756, %v3788
    %v3821 = vsub.f32 %v3757, %v3789
    %v3822 = vsub.f32 %v3758, %v3790
    %v3823 = vsub.f32 %v3759, %v3791
    %v3824 = vsub.f32 %v3760, %v3792
    %v3825 = vsub.f32 %v3761, %v3793
    %v3826 = vsub.f32 %v3762, %v3794
    %v3827 = vsub.f32 %v3763, %v3795
    %v3828 = vmax.f32 %v3796, 0.0
    %v3829 = vmax.f32 %v3797, 0.0
    %v3830 = vmax.f32 %v3798, 0.0
    %v3831 = vmax.f32 %v3799, 0.0
    %v3832 = vmax.f32 %v3800, 0.0
    %v3833 = vmax.f32 %v3801, 0.0
    %v3834 = vmax.f32 %v3802, 0.0
    %v3835 = vmax.f32 %v3803, 0.0
    %v3836 = vmax.f32 %v3804, 0.0
    %v3837 = vmax.f32 %v3805, 0.0
    %v3838 = vmax.f32 %v3806, 0.0
    %v3839 = vmax.f32 %v3807, 0.0
    %v3840 = vmax.f32 %v3808, 0.0
    %v3841 = vmax.f32 %v3809, 0.0
    %v3842 = vmax.f32 %v3810, 0.0
    %v3843 = vmax.f32 %v3811, 0.0
    %v3844 = vmax.f32 %v3812, 0.0
    %v3845 = vmax.f32 %v3813, 0.0
    %v3846 = vmax.f32 %v3814, 0.0
    %v3847 = vmax.f32 %v3815, 0.0
    %v3848 = vmax.f32 %v3816, 0.0
    %v3849 = vmax.f32 %v3817, 0.0
    %v3850 = vmax.f32 %v3818, 0.0
    %v3851 = vmax.f32 %v3819, 0.0
    %v3852 = vmax.f32 %v3820, 0.0
    %v3853 = vmax.f32 %v3821, 0.0
    %v3854 = vmax.f32 %v3822, 0.0
    %v3855 = vmax.f32 %v3823, 0.0
    %v3856 = vmax.f32 %v3824, 0.0
    %v3857 = vmax.f32 %v3825, 0.0
    %v3858 = vmax.f32 %v3826, 0.0
    %v3859 = vmax.f32 %v3827, 0.0
    %v3860 = vsub.f32 %v2494, %v3540
    %v3861 = vsub.f32 %v2496, %v3540
    %v3862 = vsub.f32 %v2500, %v3541
    %v3863 = vsub.f32 %v2502, %v3541
    %v3864 = vsub.f32 %v2506, %v3542
    %v3865 = vsub.f32 %v2508, %v3542
    %v3866 = vsub.f32 %v2512, %v3543
    %v3867 = vsub.f32 %v2514, %v3543
    %v3868 = vsub.f32 %v2518, %v3544
    %v3869 = vsub.f32 %v2520, %v3544
    %v3870 = vsub.f32 %v2524, %v3545
    %v3871 = vsub.f32 %v2526, %v3545
    %v3872 = vsub.f32 %v2530, %v3546
    %v3873 = vsub.f32 %v2532, %v3546
    %v3874 = vsub.f32 %v2536, %v3547
    %v3875 = vsub.f32 %v2538, %v3547
    %v3876 = vsub.f32 %v2542, %v3548
    %v3877 = vsub.f32 %v2544, %v3548
    %v3878 = vsub.f32 %v2548, %v3549
    %v3879 = vsub.f32 %v2550, %v3549
    %v3880 = vsub.f32 %v2554, %v3550
    %v3881 = vsub.f32 %v2556, %v3550
    %v3882 = vsub.f32 %v2560, %v3551
    %v3883 = vsub.f32 %v2562, %v3551
    %v3884 = vsub.f32 %v2566, %v3552
    %v3885 = vsub.f32 %v2568, %v3552
    %v3886 = vsub.f32 %v2572, %v3553
    %v3887 = vsub.f32 %v2574, %v3553
    %v3888 = vsub.f32 %v2578, %v3554
    %v3889 = vsub.f32 %v2580, %v3554
    %v3890 = vsub.f32 %v2584, %v3555
    %v3891 = vsub.f32 %v2586, %v3555
    %v3892 = vsub.f32 %v2590, %v3556
    %v3893 = vsub.f32 %v2592, %v3556
    %v3894 = vsub.f32 %v2596, %v3557
    %v3895 = vsub.f32 %v2598, %v3557
    %v3896 = vsub.f32 %v2602, %v3558
    %v3897 = vsub.f32 %v2604, %v3558
    %v3898 = vsub.f32 %v2608, %v3559
    %v3899 = vsub.f32 %v2610, %v3559
    %v3900 = vsub.f32 %v2614, %v3560
    %v3901 = vsub.f32 %v2616, %v3560
    %v3902 = vsub.f32 %v2620, %v3561
    %v3903 = vsub.f32 %v2622, %v3561
    %v3904 = vsub.f32 %v2626, %v3562
    %v3905 = vsub.f32 %v2628, %v3562
    %v3906 = vsub.f32 %v2632, %v3563
    %v3907 = vsub.f32 %v2634, %v3563
    %v3908 = vsub.f32 %v2638, %v3564
    %v3909 = vsub.f32 %v2640, %v3564
    %v3910 = vsub.f32 %v2644, %v3565
    %v3911 = vsub.f32 %v2646, %v3565
    %v3912 = vsub.f32 %v2650, %v3566
    %v3913 = vsub.f32 %v2652, %v3566
    %v3914 = vsub.f32 %v2656, %v3567
    %v3915 = vsub.f32 %v2658, %v3567
    %v3916 = vsub.f32 %v2662, %v3568
    %v3917 = vsub.f32 %v2664, %v3568
    %v3918 = vsub.f32 %v2668, %v3569
    %v3919 = vsub.f32 %v2670, %v3569
    %v3920 = vsub.f32 %v2674, %v3570
    %v3921 = vsub.f32 %v2676, %v3570
    %v3922 = vsub.f32 %v2680, %v3571
    %v3923 = vsub.f32 %v2682, %v3571
    %v3924 = vadd.f32 %v3828, 1e-06
    %v3925 = vadd.f32 %v3829, 1e-06
    %v3926 = vadd.f32 %v3830, 1e-06
    %v3927 = vadd.f32 %v3831, 1e-06
    %v3928 = vadd.f32 %v3832, 1e-06
    %v3929 = vadd.f32 %v3833, 1e-06
    %v3930 = vadd.f32 %v3834, 1e-06
    %v3931 = vadd.f32 %v3835, 1e-06
    %v3932 = vadd.f32 %v3836, 1e-06
    %v3933 = vadd.f32 %v3837, 1e-06
    %v3934 = vadd.f32 %v3838, 1e-06
    %v3935 = vadd.f32 %v3839, 1e-06
    %v3936 = vadd.f32 %v3840, 1e-06
    %v3937 = vadd.f32 %v3841, 1e-06
    %v3938 = vadd.f32 %v3842, 1e-06
    %v3939 = vadd.f32 %v3843, 1e-06
    %v3940 = vadd.f32 %v3844, 1e-06
    %v3941 = vadd.f32 %v3845, 1e-06
    %v3942 = vadd.f32 %v3846, 1e-06
    %v3943 = vadd.f32 %v3847, 1e-06
    %v3944 = vadd.f32 %v3848, 1e-06
    %v3945 = vadd.f32 %v3849, 1e-06
    %v3946 = vadd.f32 %v3850, 1e-06
    %v3947 = vadd.f32 %v3851, 1e-06
    %v3948 = vadd.f32 %v3852, 1e-06
    %v3949 = vadd.f32 %v3853, 1e-06
    %v3950 = vadd.f32 %v3854, 1e-06
    %v3951 = vadd.f32 %v3855, 1e-06
    %v3952 = vadd.f32 %v3856, 1e-06
    %v3953 = vadd.f32 %v3857, 1e-06
    %v3954 = vadd.f32 %v3858, 1e-06
    %v3955 = vadd.f32 %v3859, 1e-06
    %v3956 = vrsqrt.pop %v3924
    %v3957 = vrsqrt.pop %v3925
    %v3958 = vrsqrt.pop %v3926
    %v3959 = vrsqrt.pop %v3927
    %v3960 = vrsqrt.pop %v3928
    %v3961 = vrsqrt.pop %v3929
    %v3962 = vrsqrt.pop %v3930
    %v3963 = vrsqrt.pop %v3931
    %v3964 = vrsqrt.pop %v3932
    %v3965 = vrsqrt.pop %v3933
    %v3966 = vrsqrt.pop %v3934
    %v3967 = vrsqrt.pop %v3935
    %v3968 = vrsqrt.pop %v3936
    %v3969 = vrsqrt.pop %v3937
    %v3970 = vrsqrt.pop %v3938
    %v3971 = vrsqrt.pop %v3939
    %v3972 = vrsqrt.pop %v3940
    %v3973 = vrsqrt.pop %v3941
    %v3974 = vrsqrt.pop %v3942
    %v3975 = vrsqrt.pop %v3943
    %v3976 = vrsqrt.pop %v3944
    %v3977 = vrsqrt.pop %v3945
    %v3978 = vrsqrt.pop %v3946
    %v3979 = vrsqrt.pop %v3947
    %v3980 = vrsqrt.pop %v3948
    %v3981 = vrsqrt.pop %v3949
    %v3982 = vrsqrt.pop %v3950
    %v3983 = vrsqrt.pop %v3951
    %v3984 = vrsqrt.pop %v3952
    %v3985 = vrsqrt.pop %v3953
    %v3986 = vrsqrt.pop %v3954
    %v3987 = vrsqrt.pop %v3955
    %v3988 = vmul.f32 %v3860, %v3956
    %v3989 = vmul.f32 %v3861, %v3956
    %v3990 = vmul.f32 %v3862, %v3957
    %v3991 = vmul.f32 %v3863, %v3957
    %v3992 = vmul.f32 %v3864, %v3958
    %v3993 = vmul.f32 %v3865, %v3958
    %v3994 = vmul.f32 %v3866, %v3959
    %v3995 = vmul.f32 %v3867, %v3959
    %v3996 = vmul.f32 %v3868, %v3960
    %v3997 = vmul.f32 %v3869, %v3960
    %v3998 = vmul.f32 %v3870, %v3961
    %v3999 = vmul.f32 %v3871, %v3961
    %v4000 = vmul.f32 %v3872, %v3962
    %v4001 = vmul.f32 %v3873, %v3962
    %v4002 = vmul.f32 %v3874, %v3963
    %v4003 = vmul.f32 %v3875, %v3963
    %v4004 = vmul.f32 %v3876, %v3964
    %v4005 = vmul.f32 %v3877, %v3964
    %v4006 = vmul.f32 %v3878, %v3965
    %v4007 = vmul.f32 %v3879, %v3965
    %v4008 = vmul.f32 %v3880, %v3966
    %v4009 = vmul.f32 %v3881, %v3966
    %v4010 = vmul.f32 %v3882, %v3967
    %v4011 = vmul.f32 %v3883, %v3967
    %v4012 = vmul.f32 %v3884, %v3968
    %v4013 = vmul.f32 %v3885, %v3968
    %v4014 = vmul.f32 %v3886, %v3969
    %v4015 = vmul.f32 %v3887, %v3969
    %v4016 = vmul.f32 %v3888, %v3970
    %v4017 = vmul.f32 %v3889, %v3970
    %v4018 = vmul.f32 %v3890, %v3971
    %v4019 = vmul.f32 %v3891, %v3971
    %v4020 = vmul.f32 %v3892, %v3972
    %v4021 = vmul.f32 %v3893, %v3972
    %v4022 = vmul.f32 %v3894, %v3973
    %v4023 = vmul.f32 %v3895, %v3973
    %v4024 = vmul.f32 %v3896, %v3974
    %v4025 = vmul.f32 %v3897, %v3974
    %v4026 = vmul.f32 %v3898, %v3975
    %v4027 = vmul.f32 %v3899, %v3975
    %v4028 = vmul.f32 %v3900, %v3976
    %v4029 = vmul.f32 %v3901, %v3976
    %v4030 = vmul.f32 %v3902, %v3977
    %v4031 = vmul.f32 %v3903, %v3977
    %v4032 = vmul.f32 %v3904, %v3978
    %v4033 = vmul.f32 %v3905, %v3978
    %v4034 = vmul.f32 %v3906, %v3979
    %v4035 = vmul.f32 %v3907, %v3979
    %v4036 = vmul.f32 %v3908, %v3980
    %v4037 = vmul.f32 %v3909, %v3980
    %v4038 = vmul.f32 %v3910, %v3981
    %v4039 = vmul.f32 %v3911, %v3981
    %v4040 = vmul.f32 %v3912, %v3982
    %v4041 = vmul.f32 %v3913, %v3982
    %v4042 = vmul.f32 %v3914, %v3983
    %v4043 = vmul.f32 %v3915, %v3983
    %v4044 = vmul.f32 %v3916, %v3984
    %v4045 = vmul.f32 %v3917, %v3984
    %v4046 = vmul.f32 %v3918, %v3985
    %v4047 = vmul.f32 %v3919, %v3985
    %v4048 = vmul.f32 %v3920, %v3986
    %v4049 = vmul.f32 %v3921, %v3986
    %v4050 = vmul.f32 %v3922, %v3987
    %v4051 = vmul.f32 %v3923, %v3987
    %v4052 = vmul.f32 %v3988, %v3298
    %v4053 = vmul.f32 %v3989, %v3302
    %v4054 = vmul.f32 %v3990, %v3298
    %v4055 = vmul.f32 %v3991, %v3302
    %v4056 = vmul.f32 %v3992, %v3298
    %v4057 = vmul.f32 %v3993, %v3302
    %v4058 = vmul.f32 %v3994, %v3298
    %v4059 = vmul.f32 %v3995, %v3302
    %v4060 = vmul.f32 %v3996, %v3298
    %v4061 = vmul.f32 %v3997, %v3302
    %v4062 = vmul.f32 %v3998, %v3298
    %v4063 = vmul.f32 %v3999, %v3302
    %v4064 = vmul.f32 %v4000, %v3298
    %v4065 = vmul.f32 %v4001, %v3302
    %v4066 = vmul.f32 %v4002, %v3298
    %v4067 = vmul.f32 %v4003, %v3302
    %v4068 = vmul.f32 %v4004, %v3298
    %v4069 = vmul.f32 %v4005, %v3302
    %v4070 = vmul.f32 %v4006, %v3298
    %v4071 = vmul.f32 %v4007, %v3302
    %v4072 = vmul.f32 %v4008, %v3298
    %v4073 = vmul.f32 %v4009, %v3302
    %v4074 = vmul.f32 %v4010, %v3298
    %v4075 = vmul.f32 %v4011, %v3302
    %v4076 = vmul.f32 %v4012, %v3298
    %v4077 = vmul.f32 %v4013, %v3302
    %v4078 = vmul.f32 %v4014, %v3298
    %v4079 = vmul.f32 %v4015, %v3302
    %v4080 = vmul.f32 %v4016, %v3298
    %v4081 = vmul.f32 %v4017, %v3302
    %v4082 = vmul.f32 %v4018, %v3298
    %v4083 = vmul.f32 %v4019, %v3302
    %v4084 = vmul.f32 %v4020, %v3298
    %v4085 = vmul.f32 %v4021, %v3302
    %v4086 = vmul.f32 %v4022, %v3298
    %v4087 = vmul.f32 %v4023, %v3302
    %v4088 = vmul.f32 %v4024, %v3298
    %v4089 = vmul.f32 %v4025, %v3302
    %v4090 = vmul.f32 %v4026, %v3298
    %v4091 = vmul.f32 %v4027, %v3302
    %v4092 = vmul.f32 %v4028, %v3298
    %v4093 = vmul.f32 %v4029, %v3302
    %v4094 = vmul.f32 %v4030, %v3298
    %v4095 = vmul.f32 %v4031, %v3302
    %v4096 = vmul.f32 %v4032, %v3298
    %v4097 = vmul.f32 %v4033, %v3302
    %v4098 = vmul.f32 %v4034, %v3298
    %v4099 = vmul.f32 %v4035, %v3302
    %v4100 = vmul.f32 %v4036, %v3298
    %v4101 = vmul.f32 %v4037, %v3302
    %v4102 = vmul.f32 %v4038, %v3298
    %v4103 = vmul.f32 %v4039, %v3302
    %v4104 = vmul.f32 %v4040, %v3298
    %v4105 = vmul.f32 %v4041, %v3302
    %v4106 = vmul.f32 %v4042, %v3298
    %v4107 = vmul.f32 %v4043, %v3302
    %v4108 = vmul.f32 %v4044, %v3298
    %v4109 = vmul.f32 %v4045, %v3302
    %v4110 = vmul.f32 %v4046, %v3298
    %v4111 = vmul.f32 %v4047, %v3302
    %v4112 = vmul.f32 %v4048, %v3298
    %v4113 = vmul.f32 %v4049, %v3302
    %v4114 = vmul.f32 %v4050, %v3298
    %v4115 = vmul.f32 %v4051, %v3302
    %v4116 = vadd.f32 %v4052, %v3373
    %v4117 = vadd.f32 %v4053, %v3377
    %v4118 = vadd.f32 %v4054, %v3373
    %v4119 = vadd.f32 %v4055, %v3377
    %v4120 = vadd.f32 %v4056, %v3373
    %v4121 = vadd.f32 %v4057, %v3377
    %v4122 = vadd.f32 %v4058, %v3373
    %v4123 = vadd.f32 %v4059, %v3377
    %v4124 = vadd.f32 %v4060, %v3373
    %v4125 = vadd.f32 %v4061, %v3377
    %v4126 = vadd.f32 %v4062, %v3373
    %v4127 = vadd.f32 %v4063, %v3377
    %v4128 = vadd.f32 %v4064, %v3373
    %v4129 = vadd.f32 %v4065, %v3377
    %v4130 = vadd.f32 %v4066, %v3373
    %v4131 = vadd.f32 %v4067, %v3377
    %v4132 = vadd.f32 %v4068, %v3373
    %v4133 = vadd.f32 %v4069, %v3377
    %v4134 = vadd.f32 %v4070, %v3373
    %v4135 = vadd.f32 %v4071, %v3377
    %v4136 = vadd.f32 %v4072, %v3373
    %v4137 = vadd.f32 %v4073, %v3377
    %v4138 = vadd.f32 %v4074, %v3373
    %v4139 = vadd.f32 %v4075, %v3377
    %v4140 = vadd.f32 %v4076, %v3373
    %v4141 = vadd.f32 %v4077, %v3377
    %v4142 = vadd.f32 %v4078, %v3373
    %v4143 = vadd.f32 %v4079, %v3377
    %v4144 = vadd.f32 %v4080, %v3373
    %v4145 = vadd.f32 %v4081, %v3377
    %v4146 = vadd.f32 %v4082, %v3373
    %v4147 = vadd.f32 %v4083, %v3377
    %v4148 = vadd.f32 %v4084, %v3373
    %v4149 = vadd.f32 %v4085, %v3377
    %v4150 = vadd.f32 %v4086, %v3373
    %v4151 = vadd.f32 %v4087, %v3377
    %v4152 = vadd.f32 %v4088, %v3373
    %v4153 = vadd.f32 %v4089, %v3377
    %v4154 = vadd.f32 %v4090, %v3373
    %v4155 = vadd.f32 %v4091, %v3377
    %v4156 = vadd.f32 %v4092, %v3373
    %v4157 = vadd.f32 %v4093, %v3377
    %v4158 = vadd.f32 %v4094, %v3373
    %v4159 = vadd.f32 %v4095, %v3377
    %v4160 = vadd.f32 %v4096, %v3373
    %v4161 = vadd.f32 %v4097, %v3377
    %v4162 = vadd.f32 %v4098, %v3373
    %v4163 = vadd.f32 %v4099, %v3377
    %v4164 = vadd.f32 %v4100, %v3373
    %v4165 = vadd.f32 %v4101, %v3377
    %v4166 = vadd.f32 %v4102, %v3373
    %v4167 = vadd.f32 %v4103, %v3377
    %v4168 = vadd.f32 %v4104, %v3373
    %v4169 = vadd.f32 %v4105, %v3377
    %v4170 = vadd.f32 %v4106, %v3373
    %v4171 = vadd.f32 %v4107, %v3377
    %v4172 = vadd.f32 %v4108, %v3373
    %v4173 = vadd.f32 %v4109, %v3377
    %v4174 = vadd.f32 %v4110, %v3373
    %v4175 = vadd.f32 %v4111, %v3377
    %v4176 = vadd.f32 %v4112, %v3373
    %v4177 = vadd.f32 %v4113, %v3377
    %v4178 = vadd.f32 %v4114, %v3373
    %v4179 = vadd.f32 %v4115, %v3377
    %v4180 = vadd.f32 %v1232, %v3380
    %v4181 = vadd.f32 %v1234, %v3381
    %v4182 = vadd.f32 %v1345, %v4116
    %v4183 = vadd.f32 %v1347, %v4117
    %v4184 = vadd.f32 %v1842, %v3382
    %v4185 = vadd.f32 %v1844, %v3383
    %v4186 = vadd.f32 %v1955, %v4118
    %v4187 = vadd.f32 %v1957, %v4119
    %v4188 = vadd.f32 %v1236, %v3384
    %v4189 = vadd.f32 %v1238, %v3385
    %v4190 = vadd.f32 %v1349, %v4120
    %v4191 = vadd.f32 %v1351, %v4121
    %v4192 = vadd.f32 %v1846, %v3386
    %v4193 = vadd.f32 %v1848, %v3387
    %v4194 = vadd.f32 %v1959, %v4122
    %v4195 = vadd.f32 %v1961, %v4123
    %v4196 = vadd.f32 %v1242, %v3388
    %v4197 = vadd.f32 %v1244, %v3389
    %v4198 = vadd.f32 %v1355, %v4124
    %v4199 = vadd.f32 %v1357, %v4125
    %v4200 = vadd.f32 %v1852, %v3390
    %v4201 = vadd.f32 %v1854, %v3391
    %v4202 = vadd.f32 %v1965, %v4126
    %v4203 = vadd.f32 %v1967, %v4127
    %v4204 = vadd.f32 %v1246, %v3392
    %v4205 = vadd.f32 %v1248, %v3393
    %v4206 = vadd.f32 %v1359, %v4128
    %v4207 = vadd.f32 %v1361, %v4129
    %v4208 = vadd.f32 %v1856, %v3394
    %v4209 = vadd.f32 %v1858, %v3395
    %v4210 = vadd.f32 %v1969, %v4130
    %v4211 = vadd.f32 %v1971, %v4131
    %v4212 = vadd.f32 %v1252, %v3396
    %v4213 = vadd.f32 %v1254, %v3397
    %v4214 = vadd.f32 %v1365, %v4132
    %v4215 = vadd.f32 %v1367, %v4133
    %v4216 = vadd.f32 %v1862, %v3398
    %v4217 = vadd.f32 %v1864, %v3399
    %v4218 = vadd.f32 %v1975, %v4134
    %v4219 = vadd.f32 %v1977, %v4135
    %v4220 = vadd.f32 %v1256, %v3400
    %v4221 = vadd.f32 %v1258, %v3401
    %v4222 = vadd.f32 %v1369, %v4136
    %v4223 = vadd.f32 %v1371, %v4137
    %v4224 = vadd.f32 %v1866, %v3402
    %v4225 = vadd.f32 %v1868, %v3403
    %v4226 = vadd.f32 %v1979, %v4138
    %v4227 = vadd.f32 %v1981, %v4139
    %v4228 = vadd.f32 %v1262, %v3404
    %v4229 = vadd.f32 %v1264, %v3405
    %v4230 = vadd.f32 %v1375, %v4140
    %v4231 = vadd.f32 %v1377, %v4141
    %v4232 = vadd.f32 %v1872, %v3406
    %v4233 = vadd.f32 %v1874, %v3407
    %v4234 = vadd.f32 %v1985, %v4142
    %v4235 = vadd.f32 %v1987, %v4143
    %v4236 = vadd.f32 %v1266, %v3408
    %v4237 = vadd.f32 %v1268, %v3409
    %v4238 = vadd.f32 %v1379, %v4144
    %v4239 = vadd.f32 %v1381, %v4145
    %v4240 = vadd.f32 %v1876, %v3410
    %v4241 = vadd.f32 %v1878, %v3411
    %v4242 = vadd.f32 %v1989, %v4146
    %v4243 = vadd.f32 %v1991, %v4147
    %v4244 = vadd.f32 %v1272, %v3412
    %v4245 = vadd.f32 %v1274, %v3413
    %v4246 = vadd.f32 %v1385, %v4148
    %v4247 = vadd.f32 %v1387, %v4149
    %v4248 = vadd.f32 %v1882, %v3414
    %v4249 = vadd.f32 %v1884, %v3415
    %v4250 = vadd.f32 %v1995, %v4150
    %v4251 = vadd.f32 %v1997, %v4151
    %v4252 = vadd.f32 %v1276, %v3416
    %v4253 = vadd.f32 %v1278, %v3417
    %v4254 = vadd.f32 %v1389, %v4152
    %v4255 = vadd.f32 %v1391, %v4153
    %v4256 = vadd.f32 %v1886, %v3418
    %v4257 = vadd.f32 %v1888, %v3419
    %v4258 = vadd.f32 %v1999, %v4154
    %v4259 = vadd.f32 %v2001, %v4155
    %v4260 = vadd.f32 %v1282, %v3420
    %v4261 = vadd.f32 %v1284, %v3421
    %v4262 = vadd.f32 %v1395, %v4156
    %v4263 = vadd.f32 %v1397, %v4157
    %v4264 = vadd.f32 %v1892, %v3422
    %v4265 = vadd.f32 %v1894, %v3423
    %v4266 = vadd.f32 %v2005, %v4158
    %v4267 = vadd.f32 %v2007, %v4159
    %v4268 = vadd.f32 %v1286, %v3424
    %v4269 = vadd.f32 %v1288, %v3425
    %v4270 = vadd.f32 %v1399, %v4160
    %v4271 = vadd.f32 %v1401, %v4161
    %v4272 = vadd.f32 %v1896, %v3426
    %v4273 = vadd.f32 %v1898, %v3427
    %v4274 = vadd.f32 %v2009, %v4162
    %v4275 = vadd.f32 %v2011, %v4163
    %v4276 = vadd.f32 %v1292, %v3428
    %v4277 = vadd.f32 %v1294, %v3429
    %v4278 = vadd.f32 %v1405, %v4164
    %v4279 = vadd.f32 %v1407, %v4165
    %v4280 = vadd.f32 %v1902, %v3430
    %v4281 = vadd.f32 %v1904, %v3431
    %v4282 = vadd.f32 %v2015, %v4166
    %v4283 = vadd.f32 %v2017, %v4167
    %v4284 = vadd.f32 %v1296, %v3432
    %v4285 = vadd.f32 %v1298, %v3433
    %v4286 = vadd.f32 %v1409, %v4168
    %v4287 = vadd.f32 %v1411, %v4169
    %v4288 = vadd.f32 %v1906, %v3434
    %v4289 = vadd.f32 %v1908, %v3435
    %v4290 = vadd.f32 %v2019, %v4170
    %v4291 = vadd.f32 %v2021, %v4171
    %v4292 = vadd.f32 %v1302, %v3436
    %v4293 = vadd.f32 %v1304, %v3437
    %v4294 = vadd.f32 %v1415, %v4172
    %v4295 = vadd.f32 %v1417, %v4173
    %v4296 = vadd.f32 %v1912, %v3438
    %v4297 = vadd.f32 %v1914, %v3439
    %v4298 = vadd.f32 %v2025, %v4174
    %v4299 = vadd.f32 %v2027, %v4175
    %v4300 = vadd.f32 %v1306, %v3440
    %v4301 = vadd.f32 %v1308, %v3441
    %v4302 = vadd.f32 %v1419, %v4176
    %v4303 = vadd.f32 %v1421, %v4177
    %v4304 = vadd.f32 %v1916, %v3442
    %v4305 = vadd.f32 %v1918, %v3443
    %v4306 = vadd.f32 %v2029, %v4178
    %v4307 = vadd.f32 %v2031, %v4179
    %v4308 = vpack.c.bf16 %v4180, %v4180
    %v4309 = vpack.c.bf16 %v4181, %v4181
    %v4310 = vpack.c.bf16 %v4182, %v4182
    %v4311 = vpack.c.bf16 %v4183, %v4183
    %v4312 = vpack.c.bf16 %v4184, %v4184
    %v4313 = vpack.c.bf16 %v4185, %v4185
    %v4314 = vpack.c.bf16 %v4186, %v4186
    %v4315 = vpack.c.bf16 %v4187, %v4187
    %v4316 = vpack.c.bf16 %v4188, %v4188
    %v4317 = vpack.c.bf16 %v4189, %v4189
    %v4318 = vpack.c.bf16 %v4190, %v4190
    %v4319 = vpack.c.bf16 %v4191, %v4191
    %v4320 = vpack.c.bf16 %v4192, %v4192
    %v4321 = vpack.c.bf16 %v4193, %v4193
    %v4322 = vpack.c.bf16 %v4194, %v4194
    %v4323 = vpack.c.bf16 %v4195, %v4195
    %v4324 = vpack.c.bf16 %v4196, %v4196
    %v4325 = vpack.c.bf16 %v4197, %v4197
    %v4326 = vpack.c.bf16 %v4198, %v4198
    %v4327 = vpack.c.bf16 %v4199, %v4199
    %v4328 = vpack.c.bf16 %v4200, %v4200
    %v4329 = vpack.c.bf16 %v4201, %v4201
    %v4330 = vpack.c.bf16 %v4202, %v4202
    %v4331 = vpack.c.bf16 %v4203, %v4203
    %v4332 = vpack.c.bf16 %v4204, %v4204
    %v4333 = vpack.c.bf16 %v4205, %v4205
    %v4334 = vpack.c.bf16 %v4206, %v4206
    %v4335 = vpack.c.bf16 %v4207, %v4207
    %v4336 = vpack.c.bf16 %v4208, %v4208
    %v4337 = vpack.c.bf16 %v4209, %v4209
    %v4338 = vpack.c.bf16 %v4210, %v4210
    %v4339 = vpack.c.bf16 %v4211, %v4211
    %v4340 = vpack.c.bf16 %v4212, %v4212
    %v4341 = vpack.c.bf16 %v4213, %v4213
    %v4342 = vpack.c.bf16 %v4214, %v4214
    %v4343 = vpack.c.bf16 %v4215, %v4215
    %v4344 = vpack.c.bf16 %v4216, %v4216
    %v4345 = vpack.c.bf16 %v4217, %v4217
    %v4346 = vpack.c.bf16 %v4218, %v4218
    %v4347 = vpack.c.bf16 %v4219, %v4219
    %v4348 = vpack.c.bf16 %v4220, %v4220
    %v4349 = vpack.c.bf16 %v4221, %v4221
    %v4350 = vpack.c.bf16 %v4222, %v4222
    %v4351 = vpack.c.bf16 %v4223, %v4223
    %v4352 = vpack.c.bf16 %v4224, %v4224
    %v4353 = vpack.c.bf16 %v4225, %v4225
    %v4354 = vpack.c.bf16 %v4226, %v4226
    %v4355 = vpack.c.bf16 %v4227, %v4227
    %v4356 = vpack.c.bf16 %v4228, %v4228
    %v4357 = vpack.c.bf16 %v4229, %v4229
    %v4358 = vpack.c.bf16 %v4230, %v4230
    %v4359 = vpack.c.bf16 %v4231, %v4231
    %v4360 = vpack.c.bf16 %v4232, %v4232
    %v4361 = vpack.c.bf16 %v4233, %v4233
    %v4362 = vpack.c.bf16 %v4234, %v4234
    %v4363 = vpack.c.bf16 %v4235, %v4235
    %v4364 = vpack.c.bf16 %v4236, %v4236
    %v4365 = vpack.c.bf16 %v4237, %v4237
    %v4366 = vpack.c.bf16 %v4238, %v4238
    %v4367 = vpack.c.bf16 %v4239, %v4239
    %v4368 = vpack.c.bf16 %v4240, %v4240
    %v4369 = vpack.c.bf16 %v4241, %v4241
    %v4370 = vpack.c.bf16 %v4242, %v4242
    %v4371 = vpack.c.bf16 %v4243, %v4243
    %v4372 = vpack.c.bf16 %v4244, %v4244
    %v4373 = vpack.c.bf16 %v4245, %v4245
    %v4374 = vpack.c.bf16 %v4246, %v4246
    %v4375 = vpack.c.bf16 %v4247, %v4247
    %v4376 = vpack.c.bf16 %v4248, %v4248
    %v4377 = vpack.c.bf16 %v4249, %v4249
    %v4378 = vpack.c.bf16 %v4250, %v4250
    %v4379 = vpack.c.bf16 %v4251, %v4251
    %v4380 = vpack.c.bf16 %v4252, %v4252
    %v4381 = vpack.c.bf16 %v4253, %v4253
    %v4382 = vpack.c.bf16 %v4254, %v4254
    %v4383 = vpack.c.bf16 %v4255, %v4255
    %v4384 = vpack.c.bf16 %v4256, %v4256
    %v4385 = vpack.c.bf16 %v4257, %v4257
    %v4386 = vpack.c.bf16 %v4258, %v4258
    %v4387 = vpack.c.bf16 %v4259, %v4259
    %v4388 = vpack.c.bf16 %v4260, %v4260
    %v4389 = vpack.c.bf16 %v4261, %v4261
    %v4390 = vpack.c.bf16 %v4262, %v4262
    %v4391 = vpack.c.bf16 %v4263, %v4263
    %v4392 = vpack.c.bf16 %v4264, %v4264
    %v4393 = vpack.c.bf16 %v4265, %v4265
    %v4394 = vpack.c.bf16 %v4266, %v4266
    %v4395 = vpack.c.bf16 %v4267, %v4267
    %v4396 = vpack.c.bf16 %v4268, %v4268
    %v4397 = vpack.c.bf16 %v4269, %v4269
    %v4398 = vpack.c.bf16 %v4270, %v4270
    %v4399 = vpack.c.bf16 %v4271, %v4271
    %v4400 = vpack.c.bf16 %v4272, %v4272
    %v4401 = vpack.c.bf16 %v4273, %v4273
    %v4402 = vpack.c.bf16 %v4274, %v4274
    %v4403 = vpack.c.bf16 %v4275, %v4275
    %v4404 = vpack.c.bf16 %v4276, %v4276
    %v4405 = vpack.c.bf16 %v4277, %v4277
    %v4406 = vpack.c.bf16 %v4278, %v4278
    %v4407 = vpack.c.bf16 %v4279, %v4279
    %v4408 = vpack.c.bf16 %v4280, %v4280
    %v4409 = vpack.c.bf16 %v4281, %v4281
    %v4410 = vpack.c.bf16 %v4282, %v4282
    %v4411 = vpack.c.bf16 %v4283, %v4283
    %v4412 = vpack.c.bf16 %v4284, %v4284
    %v4413 = vpack.c.bf16 %v4285, %v4285
    %v4414 = vpack.c.bf16 %v4286, %v4286
    %v4415 = vpack.c.bf16 %v4287, %v4287
    %v4416 = vpack.c.bf16 %v4288, %v4288
    %v4417 = vpack.c.bf16 %v4289, %v4289
    %v4418 = vpack.c.bf16 %v4290, %v4290
    %v4419 = vpack.c.bf16 %v4291, %v4291
    %v4420 = vpack.c.bf16 %v4292, %v4292
    %v4421 = vpack.c.bf16 %v4293, %v4293
    %v4422 = vpack.c.bf16 %v4294, %v4294
    %v4423 = vpack.c.bf16 %v4295, %v4295
    %v4424 = vpack.c.bf16 %v4296, %v4296
    %v4425 = vpack.c.bf16 %v4297, %v4297
    %v4426 = vpack.c.bf16 %v4298, %v4298
    %v4427 = vpack.c.bf16 %v4299, %v4299
    %v4428 = vpack.c.bf16 %v4300, %v4300
    %v4429 = vpack.c.bf16 %v4301, %v4301
    %v4430 = vpack.c.bf16 %v4302, %v4302
    %v4431 = vpack.c.bf16 %v4303, %v4303
    %v4432 = vpack.c.bf16 %v4304, %v4304
    %v4433 = vpack.c.bf16 %v4305, %v4305
    %v4434 = vpack.c.bf16 %v4306, %v4306
    %v4435 = vpack.c.bf16 %v4307, %v4307
    %v4564 = vunpack.c.l.b16 %v4308
    %v4565 = vunpack.c.l.b16 %v4309
    %v4566 = vunpack.c.l.b16 %v4310
    %v4567 = vunpack.c.l.b16 %v4311
    %v4568 = vunpack.c.l.b16 %v4312
    %v4569 = vunpack.c.l.b16 %v4313
    %v4570 = vunpack.c.l.b16 %v4314
    %v4571 = vunpack.c.l.b16 %v4315
    %v4572 = vunpack.c.l.b16 %v4316
    %v4573 = vunpack.c.l.b16 %v4317
    %v4574 = vunpack.c.l.b16 %v4318
    %v4575 = vunpack.c.l.b16 %v4319
    %v4576 = vunpack.c.l.b16 %v4320
    %v4577 = vunpack.c.l.b16 %v4321
    %v4578 = vunpack.c.l.b16 %v4322
    %v4579 = vunpack.c.l.b16 %v4323
    %v4580 = vunpack.c.l.b16 %v4324
    %v4581 = vunpack.c.l.b16 %v4325
    %v4582 = vunpack.c.l.b16 %v4326
    %v4583 = vunpack.c.l.b16 %v4327
    %v4584 = vunpack.c.l.b16 %v4328
    %v4585 = vunpack.c.l.b16 %v4329
    %v4586 = vunpack.c.l.b16 %v4330
    %v4587 = vunpack.c.l.b16 %v4331
    %v4588 = vunpack.c.l.b16 %v4332
    %v4589 = vunpack.c.l.b16 %v4333
    %v4590 = vunpack.c.l.b16 %v4334
    %v4591 = vunpack.c.l.b16 %v4335
    %v4592 = vunpack.c.l.b16 %v4336
    %v4593 = vunpack.c.l.b16 %v4337
    %v4594 = vunpack.c.l.b16 %v4338
    %v4595 = vunpack.c.l.b16 %v4339
    %v4596 = vunpack.c.l.b16 %v4340
    %v4597 = vunpack.c.l.b16 %v4341
    %v4598 = vunpack.c.l.b16 %v4342
    %v4599 = vunpack.c.l.b16 %v4343
    %v4600 = vunpack.c.l.b16 %v4344
    %v4601 = vunpack.c.l.b16 %v4345
    %v4602 = vunpack.c.l.b16 %v4346
    %v4603 = vunpack.c.l.b16 %v4347
    %v4604 = vunpack.c.l.b16 %v4348
    %v4605 = vunpack.c.l.b16 %v4349
    %v4606 = vunpack.c.l.b16 %v4350
    %v4607 = vunpack.c.l.b16 %v4351
    %v4608 = vunpack.c.l.b16 %v4352
    %v4609 = vunpack.c.l.b16 %v4353
    %v4610 = vunpack.c.l.b16 %v4354
    %v4611 = vunpack.c.l.b16 %v4355
    %v4612 = vunpack.c.l.b16 %v4356
    %v4613 = vunpack.c.l.b16 %v4357
    %v4614 = vunpack.c.l.b16 %v4358
    %v4615 = vunpack.c.l.b16 %v4359
    %v4616 = vunpack.c.l.b16 %v4360
    %v4617 = vunpack.c.l.b16 %v4361
    %v4618 = vunpack.c.l.b16 %v4362
    %v4619 = vunpack.c.l.b16 %v4363
    %v4620 = vunpack.c.l.b16 %v4364
    %v4621 = vunpack.c.l.b16 %v4365
    %v4622 = vunpack.c.l.b16 %v4366
    %v4623 = vunpack.c.l.b16 %v4367
    %v4624 = vunpack.c.l.b16 %v4368
    %v4625 = vunpack.c.l.b16 %v4369
    %v4626 = vunpack.c.l.b16 %v4370
    %v4627 = vunpack.c.l.b16 %v4371
    %v4628 = vunpack.c.l.b16 %v4372
    %v4629 = vunpack.c.l.b16 %v4373
    %v4630 = vunpack.c.l.b16 %v4374
    %v4631 = vunpack.c.l.b16 %v4375
    %v4632 = vunpack.c.l.b16 %v4376
    %v4633 = vunpack.c.l.b16 %v4377
    %v4634 = vunpack.c.l.b16 %v4378
    %v4635 = vunpack.c.l.b16 %v4379
    %v4636 = vunpack.c.l.b16 %v4380
    %v4637 = vunpack.c.l.b16 %v4381
    %v4638 = vunpack.c.l.b16 %v4382
    %v4639 = vunpack.c.l.b16 %v4383
    %v4640 = vunpack.c.l.b16 %v4384
    %v4641 = vunpack.c.l.b16 %v4385
    %v4642 = vunpack.c.l.b16 %v4386
    %v4643 = vunpack.c.l.b16 %v4387
    %v4644 = vunpack.c.l.b16 %v4388
    %v4645 = vunpack.c.l.b16 %v4389
    %v4646 = vunpack.c.l.b16 %v4390
    %v4647 = vunpack.c.l.b16 %v4391
    %v4648 = vunpack.c.l.b16 %v4392
    %v4649 = vunpack.c.l.b16 %v4393
    %v4650 = vunpack.c.l.b16 %v4394
    %v4651 = vunpack.c.l.b16 %v4395
    %v4652 = vunpack.c.l.b16 %v4396
    %v4653 = vunpack.c.l.b16 %v4397
    %v4654 = vunpack.c.l.b16 %v4398
    %v4655 = vunpack.c.l.b16 %v4399
    %v4656 = vunpack.c.l.b16 %v4400
    %v4657 = vunpack.c.l.b16 %v4401
    %v4658 = vunpack.c.l.b16 %v4402
    %v4659 = vunpack.c.l.b16 %v4403
    %v4660 = vunpack.c.l.b16 %v4404
    %v4661 = vunpack.c.l.b16 %v4405
    %v4662 = vunpack.c.l.b16 %v4406
    %v4663 = vunpack.c.l.b16 %v4407
    %v4664 = vunpack.c.l.b16 %v4408
    %v4665 = vunpack.c.l.b16 %v4409
    %v4666 = vunpack.c.l.b16 %v4410
    %v4667 = vunpack.c.l.b16 %v4411
    %v4668 = vunpack.c.l.b16 %v4412
    %v4669 = vunpack.c.l.b16 %v4413
    %v4670 = vunpack.c.l.b16 %v4414
    %v4671 = vunpack.c.l.b16 %v4415
    %v4672 = vunpack.c.l.b16 %v4416
    %v4673 = vunpack.c.l.b16 %v4417
    %v4674 = vunpack.c.l.b16 %v4418
    %v4675 = vunpack.c.l.b16 %v4419
    %v4676 = vunpack.c.l.b16 %v4420
    %v4677 = vunpack.c.l.b16 %v4421
    %v4678 = vunpack.c.l.b16 %v4422
    %v4679 = vunpack.c.l.b16 %v4423
    %v4680 = vunpack.c.l.b16 %v4424
    %v4681 = vunpack.c.l.b16 %v4425
    %v4682 = vunpack.c.l.b16 %v4426
    %v4683 = vunpack.c.l.b16 %v4427
    %v4684 = vunpack.c.l.b16 %v4428
    %v4685 = vunpack.c.l.b16 %v4429
    %v4686 = vunpack.c.l.b16 %v4430
    %v4687 = vunpack.c.l.b16 %v4431
    %v4688 = vunpack.c.l.b16 %v4432
    %v4689 = vunpack.c.l.b16 %v4433
    %v4690 = vunpack.c.l.b16 %v4434
    %v4691 = vunpack.c.l.b16 %v4435
    %v4692 = vpack.c.b16 %v4565, %v4564
    %v4693 = vpack.c.b16 %v4567, %v4566
    %v4694 = vpack.c.b16 %v4569, %v4568
    %v4695 = vpack.c.b16 %v4571, %v4570
    %v4696 = vpack.c.b16 %v4573, %v4572
    %v4697 = vpack.c.b16 %v4575, %v4574
    %v4698 = vpack.c.b16 %v4577, %v4576
    %v4699 = vpack.c.b16 %v4579, %v4578
    %v4700 = vpack.c.b16 %v4581, %v4580
    %v4701 = vpack.c.b16 %v4583, %v4582
    %v4702 = vpack.c.b16 %v4585, %v4584
    %v4703 = vpack.c.b16 %v4587, %v4586
    %v4704 = vpack.c.b16 %v4589, %v4588
    %v4705 = vpack.c.b16 %v4591, %v4590
    %v4706 = vpack.c.b16 %v4593, %v4592
    %v4707 = vpack.c.b16 %v4595, %v4594
    %v4708 = vpack.c.b16 %v4597, %v4596
    %v4709 = vpack.c.b16 %v4599, %v4598
    %v4710 = vpack.c.b16 %v4601, %v4600
    %v4711 = vpack.c.b16 %v4603, %v4602
    %v4712 = vpack.c.b16 %v4605, %v4604
    %v4713 = vpack.c.b16 %v4607, %v4606
    %v4714 = vpack.c.b16 %v4609, %v4608
    %v4715 = vpack.c.b16 %v4611, %v4610
    %v4716 = vpack.c.b16 %v4613, %v4612
    %v4717 = vpack.c.b16 %v4615, %v4614
    %v4718 = vpack.c.b16 %v4617, %v4616
    %v4719 = vpack.c.b16 %v4619, %v4618
    %v4720 = vpack.c.b16 %v4621, %v4620
    %v4721 = vpack.c.b16 %v4623, %v4622
    %v4722 = vpack.c.b16 %v4625, %v4624
    %v4723 = vpack.c.b16 %v4627, %v4626
    %v4724 = vpack.c.b16 %v4629, %v4628
    %v4725 = vpack.c.b16 %v4631, %v4630
    %v4726 = vpack.c.b16 %v4633, %v4632
    %v4727 = vpack.c.b16 %v4635, %v4634
    %v4728 = vpack.c.b16 %v4637, %v4636
    %v4729 = vpack.c.b16 %v4639, %v4638
    %v4730 = vpack.c.b16 %v4641, %v4640
    %v4731 = vpack.c.b16 %v4643, %v4642
    %v4732 = vpack.c.b16 %v4645, %v4644
    %v4733 = vpack.c.b16 %v4647, %v4646
    %v4734 = vpack.c.b16 %v4649, %v4648
    %v4735 = vpack.c.b16 %v4651, %v4650
    %v4736 = vpack.c.b16 %v4653, %v4652
    %v4737 = vpack.c.b16 %v4655, %v4654
    %v4738 = vpack.c.b16 %v4657, %v4656
    %v4739 = vpack.c.b16 %v4659, %v4658
    %v4740 = vpack.c.b16 %v4661, %v4660
    %v4741 = vpack.c.b16 %v4663, %v4662
    %v4742 = vpack.c.b16 %v4665, %v4664
    %v4743 = vpack.c.b16 %v4667, %v4666
    %v4744 = vpack.c.b16 %v4669, %v4668
    %v4745 = vpack.c.b16 %v4671, %v4670
    %v4746 = vpack.c.b16 %v4673, %v4672
    %v4747 = vpack.c.b16 %v4675, %v4674
    %v4748 = vpack.c.b16 %v4677, %v4676
    %v4749 = vpack.c.b16 %v4679, %v4678
    %v4750 = vpack.c.b16 %v4681, %v4680
    %v4751 = vpack.c.b16 %v4683, %v4682
    %v4752 = vpack.c.b16 %v4685, %v4684
    %v4753 = vpack.c.b16 %v4687, %v4686
    %v4754 = vpack.c.b16 %v4689, %v4688
    %v4755 = vpack.c.b16 %v4691, %v4690
    %4820 = vst [vmem:[%s11] sm:$0xff] %v4692
    %4821 = vst [vmem:[%s11 + $0x8] sm:$0xff] %v4693
    %4822 = vst [vmem:[%s11 + $0x10] sm:$0xff] %v4694
    %4823 = vst [vmem:[%s11 + $0x18] sm:$0xff] %v4695
    %4824 = vst [vmem:[%s11 + $0x20] sm:$0xff] %v4696
    %4825 = vst [vmem:[%s11 + $0x28] sm:$0xff] %v4697
    %4826 = vst [vmem:[%s11 + $0x30] sm:$0xff] %v4698
    %4827 = vst [vmem:[%s11 + $0x38] sm:$0xff] %v4699
    %4828 = vst [vmem:[%s11 + $0x40] sm:$0xff] %v4700
    %4829 = vst [vmem:[%s11 + $0x48] sm:$0xff] %v4701
    %4830 = vst [vmem:[%s11 + $0x50] sm:$0xff] %v4702
    %4831 = vst [vmem:[%s11 + $0x58] sm:$0xff] %v4703
    %4832 = vst [vmem:[%s11 + $0x60] sm:$0xff] %v4704
    %4833 = vst [vmem:[%s11 + $0x68] sm:$0xff] %v4705
    %4834 = vst [vmem:[%s11 + $0x70] sm:$0xff] %v4706
    %4835 = vst [vmem:[%s11 + $0x78] sm:$0xff] %v4707
    %4836 = vst [vmem:[%s11 + $0x80] sm:$0xff] %v4708
    %4837 = vst [vmem:[%s11 + $0x88] sm:$0xff] %v4709
    %4838 = vst [vmem:[%s11 + $0x90] sm:$0xff] %v4710
    %4839 = vst [vmem:[%s11 + $0x98] sm:$0xff] %v4711
    %4840 = vst [vmem:[%s11 + $0xa0] sm:$0xff] %v4712
    %4841 = vst [vmem:[%s11 + $0xa8] sm:$0xff] %v4713
    %4842 = vst [vmem:[%s11 + $0xb0] sm:$0xff] %v4714
    %4843 = vst [vmem:[%s11 + $0xb8] sm:$0xff] %v4715
    %4844 = vst [vmem:[%s11 + $0xc0] sm:$0xff] %v4716
    %4845 = vst [vmem:[%s11 + $0xc8] sm:$0xff] %v4717
    %4846 = vst [vmem:[%s11 + $0xd0] sm:$0xff] %v4718
    %4847 = vst [vmem:[%s11 + $0xd8] sm:$0xff] %v4719
    %4848 = vst [vmem:[%s11 + $0xe0] sm:$0xff] %v4720
    %4849 = vst [vmem:[%s11 + $0xe8] sm:$0xff] %v4721
    %4850 = vst [vmem:[%s11 + $0xf0] sm:$0xff] %v4722
    %4851 = vst [vmem:[%s11 + $0xf8] sm:$0xff] %v4723
    %4852 = vst [vmem:[%s11 + $0x100] sm:$0xff] %v4724
    %4853 = vst [vmem:[%s11 + $0x108] sm:$0xff] %v4725
    %4854 = vst [vmem:[%s11 + $0x110] sm:$0xff] %v4726
    %4855 = vst [vmem:[%s11 + $0x118] sm:$0xff] %v4727
    %4856 = vst [vmem:[%s11 + $0x120] sm:$0xff] %v4728
    %4857 = vst [vmem:[%s11 + $0x128] sm:$0xff] %v4729
    %4858 = vst [vmem:[%s11 + $0x130] sm:$0xff] %v4730
    %4859 = vst [vmem:[%s11 + $0x138] sm:$0xff] %v4731
    %4860 = vst [vmem:[%s11 + $0x140] sm:$0xff] %v4732
    %4861 = vst [vmem:[%s11 + $0x148] sm:$0xff] %v4733
    %4862 = vst [vmem:[%s11 + $0x150] sm:$0xff] %v4734
    %4863 = vst [vmem:[%s11 + $0x158] sm:$0xff] %v4735
    %4864 = vst [vmem:[%s11 + $0x160] sm:$0xff] %v4736
    %4865 = vst [vmem:[%s11 + $0x168] sm:$0xff] %v4737
    %4866 = vst [vmem:[%s11 + $0x170] sm:$0xff] %v4738
    %4867 = vst [vmem:[%s11 + $0x178] sm:$0xff] %v4739
    %4868 = vst [vmem:[%s11 + $0x180] sm:$0xff] %v4740
    %4869 = vst [vmem:[%s11 + $0x188] sm:$0xff] %v4741
    %4870 = vst [vmem:[%s11 + $0x190] sm:$0xff] %v4742
    %4871 = vst [vmem:[%s11 + $0x198] sm:$0xff] %v4743
    %4872 = vst [vmem:[%s11 + $0x1a0] sm:$0xff] %v4744
    %4873 = vst [vmem:[%s11 + $0x1a8] sm:$0xff] %v4745
    %4874 = vst [vmem:[%s11 + $0x1b0] sm:$0xff] %v4746
    %4875 = vst [vmem:[%s11 + $0x1b8] sm:$0xff] %v4747
    %4876 = vst [vmem:[%s11 + $0x1c0] sm:$0xff] %v4748
    %4877 = vst [vmem:[%s11 + $0x1c8] sm:$0xff] %v4749
    %4878 = vst [vmem:[%s11 + $0x1d0] sm:$0xff] %v4750
    %4879 = vst [vmem:[%s11 + $0x1d8] sm:$0xff] %v4751
    %4880 = vst [vmem:[%s11 + $0x1e0] sm:$0xff] %v4752
    %4881 = vst [vmem:[%s11 + $0x1e8] sm:$0xff] %v4753
    %4882 = vst [vmem:[%s11 + $0x1f0] sm:$0xff] %v4754
    %4883 = vst [vmem:[%s11 + $0x1f8] sm:$0xff] %v4755
    // Predicated region
    $region82: #{build_neck_forward.2} parent=1 // pred_check
      _
    $region83: #{build_neck_forward.2} parent=1 // pred_check_branch
      %4885 = sbr.rel (0) target = $region85
    $region84: #{build_neck_forward.2} parent=1 // pred_region
      _
    $region85: #{build_neck_forward.2} parent=1 // pred_fallthru
      _
    // Predicated region
    $region86: #{build_neck_forward.2} parent=1 // pred_check
      _
    $region87: #{build_neck_forward.2} parent=1 // pred_check_branch
      %4887 = sbr.rel (0) target = $region89
    $region88: #{build_neck_forward.2} parent=1 // pred_region
      _
    $region89: #{build_neck_forward.2} parent=1 // pred_fallthru
      _
    %4888 = vsyncpa [#allocation3], 1
    %4889 = vsyncpa [#allocation5], 1
    %4890 = vsyncpa [#allocation8], 1
    %4891 = vsyncpa [#allocation11], 1
    %4892 = vsyncpa [#allocation14], 1

</llo_original>
